<compile_context>
chip_gen: v6e
topology: v6e:2x2x1
jax: 0.10.0
libtpu: 0.0.40
codegen_flags: <defaults>
</compile_context>

<pallas_src>
import functools
import math

import jax
import jax.numpy as jnp
from jax import lax
from jax.experimental import pallas as pl
from jax.experimental.pallas import tpu as pltpu

# ---------------- tiny synthetic BERT config ----------------
VOCAB = 64
TYPE_VOCAB = 2
MAX_POS = 32
HIDDEN = 32
NUM_HEADS = 4
HEAD_DIM = HIDDEN // NUM_HEADS
INTERMEDIATE = 64
NUM_LAYERS = 2
LN_EPS = 1e-12


# ---------------- math helpers (usable in- and out-of-kernel) ----------------
def _layer_norm(x, g, b):
    mu = jnp.mean(x, axis=-1, keepdims=True)
    var = jnp.mean(jnp.square(x - mu), axis=-1, keepdims=True)
    return (x - mu) * lax.rsqrt(var + LN_EPS) * g + b


def _gelu(x):
    # tanh-approximation GELU: one EUP transcendental + a few VPU ops.
    c = math.sqrt(2.0 / math.pi)
    return 0.5 * x * (1.0 + jnp.tanh(c * (x + 0.044715 * x * x * x)))


# ---------------- fused Pallas kernel ----------------
def _fused_kernel(emb_ref, mask_ref,                      # activations (whole batch)
                  embg_ref, embb_ref,                     # embedding LayerNorm
                  wq_ref, bq_ref, wk_ref, bk_ref, wv_ref, bv_ref,   # head-major attn weights
                  wo_ref, bo_ref,
                  ln1g_ref, ln1b_ref, wi_ref, bi_ref, w2_ref, c2_ref,
                  ln2g_ref, ln2b_ref,
                  clsw_ref, clsb_ref,                     # classifier head
                  o_ref,
                  *, batch, seq, num_layers, num_heads, head_dim):
    S, nh, hd = seq, num_heads, head_dim
    H = emb_ref.shape[-1]
    bf16 = jnp.bfloat16

    # --- embeddings LayerNorm on the flattened [B*S, H] slab (f32 stats) ---
    x = _layer_norm(emb_ref[...], embg_ref[...], embb_ref[...])          # [B*S, H] f32

    # --- additive key-padding bias, [B, 1, S]; sliced per example below ---
    bias = (1.0 - mask_ref[...]) * (-10000.0)

    for l in range(num_layers):               # static unroll (NUM_LAYERS small)
        wq_l, wk_l, wv_l = wq_ref[l], wk_ref[l], wv_ref[l]               # [nh, H, hd] bf16
        bq_l, bk_l, bv_l = bq_ref[l], bk_ref[l], bv_ref[l]               # [nh, 1, hd] f32
        wo_l = wo_ref[l]                                                 # [nh, hd, H] bf16

        x16 = x.astype(bf16)
        attn_parts = []
        for b in range(batch):                # static unroll over examples
            xb = x16[b * S:(b + 1) * S, :]                               # [S, H] (sublane-aligned)
            xh = jnp.broadcast_to(xb[None, :, :], (nh, S, H))            # [nh, S, H]

            # head-major projections: one batched MXU einsum each, heads land
            # directly on the leading axis (no lane slicing / stacking).
            q = jnp.einsum('hsd,hde->hse', xh, wq_l,
                           preferred_element_type=jnp.float32) + bq_l    # [nh, S, hd]
            k = jnp.einsum('hsd,hde->hse', xh, wk_l,
                           preferred_element_type=jnp.float32) + bk_l
            v = jnp.einsum('hsd,hde->hse', xh, wv_l,
                           preferred_element_type=jnp.float32) + bv_l

            s = jnp.einsum('hqd,hkd->hqk', q.astype(bf16), k.astype(bf16),
                           preferred_element_type=jnp.float32)           # [nh, S, S]
            s = s + bias[b:b + 1]                                        # [1,1,S] broadcast add
            s = s - jnp.max(s, axis=-1, keepdims=True)                   # f32 softmax stats
            p = jnp.exp(s)
            p = p * pl.reciprocal(jnp.sum(p, axis=-1, keepdims=True), approx=True)

            ctx = jnp.einsum('hqk,hkd->hqd', p.astype(bf16), v.astype(bf16),
                             preferred_element_type=jnp.float32)         # [nh, S, hd]
            attn_h = jnp.einsum('hqd,hde->hqe', ctx.astype(bf16), wo_l,
                                preferred_element_type=jnp.float32)      # [nh, S, H]
            attn_parts.append(jnp.sum(attn_h, axis=0))                   # [S, H] head merge

        attn_out = jnp.concatenate(attn_parts, axis=0) + bo_ref[l]       # [B*S, H]

        h1 = _layer_norm(x + attn_out, ln1g_ref[l], ln1b_ref[l])         # post-LN (BERT)
        inter = _gelu(jnp.dot(h1.astype(bf16), wi_ref[l],
                              preferred_element_type=jnp.float32) + bi_ref[l])
        ffn = jnp.dot(inter.astype(bf16), w2_ref[l],
                      preferred_element_type=jnp.float32) + c2_ref[l]
        x = _layer_norm(h1 + ffn, ln2g_ref[l], ln2b_ref[l])

    # --- classifier: gather [CLS] rows (row b*S), lane mul + reduce, sigmoid ---
    cls_rows = jnp.concatenate([x[b * S:b * S + 1, :] for b in range(batch)],
                               axis=0)                                   # [B, H]
    z = jnp.sum(cls_rows * clsw_ref[...], axis=-1, keepdims=True) + clsb_ref[...]   # [B, 1]
    o_ref[...] = 0.5 * (1.0 + jnp.tanh(0.5 * z))   # sigmoid via one EUP tanh


# ---------------- pallas_call wrapper ----------------
def _full_spec(a):
    zeros = (0,) * a.ndim
    return pl.BlockSpec(a.shape, lambda i, _z=zeros: _z)


_WEIGHT_KEYS = ('emb_ln_g', 'emb_ln_b',
                'wq', 'bq', 'wk', 'bk', 'wv', 'bv',
                'wo', 'bo',
                'ln1_g', 'ln1_b', 'wi', 'bi', 'w2', 'c2',
                'ln2_g', 'ln2_b',
                'cls_w', 'cls_b')


def _fused_forward_call(kp, emb2, mask3, batch, seq):
    weight_args = tuple(kp[k] for k in _WEIGHT_KEYS)
    kernel = functools.partial(_fused_kernel, batch=batch, seq=seq,
                               num_layers=NUM_LAYERS, num_heads=NUM_HEADS,
                               head_dim=HEAD_DIM)
    out = pl.pallas_call(
        kernel,
        out_shape=jax.ShapeDtypeStruct((batch, 1), jnp.float32),
        grid=(1,),   # whole batch in one step (see TODO about batch-blocking on v7x)
        in_specs=[_full_spec(emb2), _full_spec(mask3)]
                 + [_full_spec(w) for w in weight_args],
        out_specs=pl.BlockSpec((batch, 1), lambda i: (0, 0)),
        compiler_params=pltpu.CompilerParams(dimension_semantics=("arbitrary",)),
    )(emb2, mask3, *weight_args)
    return out[:, 0]                                                     # [B]


# ---------------- parameter init (deterministic, synthetic) ----------------
def init_params(key):
    k_iter = iter(jax.random.split(key, 64))
    nk = lambda: next(k_iter)

    def xavier(k, shape):
        lim = math.sqrt(6.0 / (shape[0] + shape[1]))
        return jax.random.uniform(k, shape, jnp.float32, -lim, lim)

    params = {
        'word_emb': 0.02 * jax.random.normal(nk(), (VOCAB, HIDDEN), jnp.float32),
        'pos_emb': 0.02 * jax.random.normal(nk(), (MAX_POS, HIDDEN), jnp.float32),
        'tok_emb': 0.02 * jax.random.normal(nk(), (TYPE_VOCAB, HIDDEN), jnp.float32),
        'emb_ln_g': jnp.ones((1, HIDDEN), jnp.float32),
        'emb_ln_b': jnp.zeros((1, HIDDEN), jnp.float32),
    }
    layers = []
    for _ in range(NUM_LAYERS):
        layers.append(dict(
            wq=xavier(nk(), (HIDDEN, HIDDEN)), bq=jnp.zeros((1, HIDDEN), jnp.float32),
            wk=xavier(nk(), (HIDDEN, HIDDEN)), bk=jnp.zeros((1, HIDDEN), jnp.float32),
            wv=xavier(nk(), (HIDDEN, HIDDEN)), bv=jnp.zeros((1, HIDDEN), jnp.float32),
            wo=xavier(nk(), (HIDDEN, HIDDEN)), bo=jnp.zeros((1, HIDDEN), jnp.float32),
            ln1_g=jnp.ones((1, HIDDEN), jnp.float32), ln1_b=jnp.zeros((1, HIDDEN), jnp.float32),
            wi=xavier(nk(), (HIDDEN, INTERMEDIATE)), bi=jnp.zeros((1, INTERMEDIATE), jnp.float32),
            w2=xavier(nk(), (INTERMEDIATE, HIDDEN)), c2=jnp.zeros((1, HIDDEN), jnp.float32),
            ln2_g=jnp.ones((1, HIDDEN), jnp.float32), ln2_b=jnp.zeros((1, HIDDEN), jnp.float32),
        ))
    params['layers'] = layers
    # ext_layer (Classifier): Linear(HIDDEN, 1), xavier_uniform_ (param_init_glorot)
    params['cls_w'] = xavier(nk(), (HIDDEN, 1))
    params['cls_b'] = jnp.zeros((1, 1), jnp.float32)
    return params


def prep_kernel_params(p):
    """Stack per-layer weights, make Q/K/V/Wo head-major, fold 1/sqrt(hd) into
    Wq/bq, and cast matmul weights to bf16 — all once at parameter-prep time."""
    scale = 1.0 / math.sqrt(HEAD_DIM)
    bf16 = jnp.bfloat16
    layers = p['layers']
    st = lambda f: jnp.stack([f(lp) for lp in layers], axis=0)

    def heads_in(w):    # [H, H] -> [nh, H, hd]   (output feature j = h*hd + d)
        return w.reshape(HIDDEN, NUM_HEADS, HEAD_DIM).transpose(1, 0, 2)

    def heads_bias(b):  # [1, H] -> [nh, 1, hd]
        return b.reshape(NUM_HEADS, HEAD_DIM)[:, None, :]

    return {
        'word_emb': p['word_emb'], 'pos_emb': p['pos_emb'], 'tok_emb': p['tok_emb'],
        'emb_ln_g': p['emb_ln_g'], 'emb_ln_b': p['emb_ln_b'],
        'wq': st(lambda lp: heads_in(lp['wq'] * scale)).astype(bf16),   # [L, nh, H, hd]
        'bq': st(lambda lp: heads_bias(lp['bq'] * scale)),              # [L, nh, 1, hd] f32
        'wk': st(lambda lp: heads_in(lp['wk'])).astype(bf16),
        'bk': st(lambda lp: heads_bias(lp['bk'])),
        'wv': st(lambda lp: heads_in(lp['wv'])).astype(bf16),
        'bv': st(lambda lp: heads_bias(lp['bv'])),
        'wo': st(lambda lp: lp['wo'].reshape(NUM_HEADS, HEAD_DIM, HIDDEN)).astype(bf16),
        'bo': st(lambda lp: lp['bo']),
        'ln1_g': st(lambda lp: lp['ln1_g']), 'ln1_b': st(lambda lp: lp['ln1_b']),
        'wi': st(lambda lp: lp['wi']).astype(bf16), 'bi': st(lambda lp: lp['bi']),
        'w2': st(lambda lp: lp['w2']).astype(bf16), 'c2': st(lambda lp: lp['c2']),
        'ln2_g': st(lambda lp: lp['ln2_g']), 'ln2_b': st(lambda lp: lp['ln2_b']),
        'cls_w': p['cls_w'].T,     # [1, H] for lane-wise multiply + reduce (f32)
        'cls_b': p['cls_b'],       # [1, 1]
    }


# ---------------- ExtSummarizer.forward (kernel path) ----------------
def ext_summarizer_forward(kp, src, segs, clss, mask_src):
    B, S = src.shape
    # --- Bert.forward embeddings (eval / no-grad: dropout is identity) ---
    pos = jnp.arange(S)
    emb = (kp['word_emb'][src]
           + kp['pos_emb'][pos][None, :, :]
           + kp['tok_emb'][segs]).astype(jnp.float32)        # gathers stay in XLA
    emb2 = emb.reshape(B * S, HIDDEN)                        # flatten for the kernel (free in XLA)
    mask3 = mask_src.astype(jnp.float32).reshape(B, 1, S)
    # --- fused kernel: emb LN -> encoder layers -> [CLS] -> sigmoid(Linear) ---
    # NOTE: `clss` is not used by this forward (it scores only position 0).
    return _fused_forward_call(kp, emb2, mask3, B, S)        # [B]


# ---------------- pure-JAX reference (f32, exact GELU/softmax) ----------------
def ext_summarizer_reference(p, src, segs, clss, mask_src):
    B, S = src.shape
    nh, hd = NUM_HEADS, HEAD_DIM
    pos = jnp.arange(S)
    x = (p['word_emb'][src] + p['pos_emb'][pos][None] + p['tok_emb'][segs]).astype(jnp.float32)
    x = _layer_norm(x, p['emb_ln_g'], p['emb_ln_b'])
    bias = (1.0 - mask_src.astype(jnp.float32))[:, None, None, :] * (-10000.0)   # [B,1,1,S]
    for lp in p['layers']:
        q = (x @ lp['wq'] + lp['bq']) / math.sqrt(hd)
        k = x @ lp['wk'] + lp['bk']
        v = x @ lp['wv'] + lp['bv']
        split = lambda t: t.reshape(B, S, nh, hd).transpose(0, 2, 1, 3)
        s = jnp.einsum('bhqd,bhkd->bhqk', split(q), split(k)) + bias
        pattn = jax.nn.softmax(s, axis=-1)
        ctx = jnp.einsum('bhqk,bhkd->bhqd', pattn, split(v))
        ctx = ctx.transpose(0, 2, 1, 3).reshape(B, S, HIDDEN)
        attn_out = ctx @ lp['wo'] + lp['bo']
        h1 = _layer_norm(x + attn_out, lp['ln1_g'], lp['ln1_b'])
        inter = jax.nn.gelu(h1 @ lp['wi'] + lp['bi'], approximate=False)
        ffn = inter @ lp['w2'] + lp['c2']
        x = _layer_norm(h1 + ffn, lp['ln2_g'], lp['ln2_b'])
    z = x[:, 0, :] @ p['cls_w'] + p['cls_b']
    return jax.nn.sigmoid(z)[:, 0]


if __name__ == "__main__":
    key = jax.random.PRNGKey(0)
    pk, dk1, dk2 = jax.random.split(key, 3)
    params = init_params(pk)
    kp = prep_kernel_params(params)

    B, S = 2, 8
    src = jax.random.randint(dk1, (B, S), 1, VOCAB, dtype=jnp.int32)
    segs = jax.random.randint(dk2, (B, S), 0, TYPE_VOCAB, dtype=jnp.int32)
    clss = jnp.zeros((B, 1), jnp.int32)                          # unused by this forward
    mask_src = jnp.ones((B, S), jnp.float32).at[1, 6:].set(0.0)  # pad 2 tokens in example 1

    fwd = jax.jit(ext_summarizer_forward)
    sent_scores = jax.block_until_ready(fwd(kp, src, segs, clss, mask_src))
    assert sent_scores.shape == (B,)
    assert bool(jnp.all(jnp.isfinite(sent_scores)))

    # loose tolerance: bf16 matmuls + approx-reciprocal softmax + tanh-GELU vs exact f32 ref
    ref_scores = ext_summarizer_reference(params, src, segs, clss, mask_src)
    max_err = float(jnp.max(jnp.abs(sent_scores - ref_scores)))
    assert max_err < 5e-2, f"kernel vs reference mismatch: max_err={max_err}"
    print("KERNEL_OK")
</pallas_src>

<mosaic_0001>
module attributes {stable_mosaic.version = 11 : i64} {
  func.func @_fused_kernel(%arg0: i32, %arg1: memref<16x32xf32, #tpu.memory_space<vmem>>, %arg2: memref<2x1x8xf32, #tpu.memory_space<vmem>>, %arg3: memref<1x32xf32, #tpu.memory_space<vmem>>, %arg4: memref<1x32xf32, #tpu.memory_space<vmem>>, %arg5: memref<2x4x32x8xbf16, #tpu.memory_space<vmem>>, %arg6: memref<2x4x1x8xf32, #tpu.memory_space<vmem>>, %arg7: memref<2x4x32x8xbf16, #tpu.memory_space<vmem>>, %arg8: memref<2x4x1x8xf32, #tpu.memory_space<vmem>>, %arg9: memref<2x4x32x8xbf16, #tpu.memory_space<vmem>>, %arg10: memref<2x4x1x8xf32, #tpu.memory_space<vmem>>, %arg11: memref<2x4x8x32xbf16, #tpu.memory_space<vmem>>, %arg12: memref<2x1x32xf32, #tpu.memory_space<vmem>>, %arg13: memref<2x1x32xf32, #tpu.memory_space<vmem>>, %arg14: memref<2x1x32xf32, #tpu.memory_space<vmem>>, %arg15: memref<2x32x64xbf16, #tpu.memory_space<vmem>>, %arg16: memref<2x1x64xf32, #tpu.memory_space<vmem>>, %arg17: memref<2x64x32xbf16, #tpu.memory_space<vmem>>, %arg18: memref<2x1x32xf32, #tpu.memory_space<vmem>>, %arg19: memref<2x1x32xf32, #tpu.memory_space<vmem>>, %arg20: memref<2x1x32xf32, #tpu.memory_space<vmem>>, %arg21: memref<1x32xf32, #tpu.memory_space<vmem>>, %arg22: memref<1x1xf32, #tpu.memory_space<vmem>>, %arg23: memref<2x1xf32, #tpu.memory_space<vmem>>) attributes {dimension_semantics = [#tpu.dimension_semantics<arbitrary>], iteration_bounds = array<i64: 1>, scalar_prefetch = 0 : i64, scratch_operands = 0 : i64, tpu.core_type = #tpu.core_type<tc>, window_params = [{pipeline_mode = #tpu.pipeline_mode<synchronous>, transform_indices = @transform_0, window_bounds = array<i64: 16, 32>}, {pipeline_mode = #tpu.pipeline_mode<synchronous>, transform_indices = @transform_1, window_bounds = array<i64: 2, 1, 8>}, {pipeline_mode = #tpu.pipeline_mode<synchronous>, transform_indices = @transform_2, window_bounds = array<i64: 1, 32>}, {pipeline_mode = #tpu.pipeline_mode<synchronous>, transform_indices = @transform_3, window_bounds = array<i64: 1, 32>}, {pipeline_mode = #tpu.pipeline_mode<synchronous>, transform_indices = @transform_4, window_bounds = array<i64: 2, 4, 32, 8>}, {pipeline_mode = #tpu.pipeline_mode<synchronous>, transform_indices = @transform_5, window_bounds = array<i64: 2, 4, 1, 8>}, {pipeline_mode = #tpu.pipeline_mode<synchronous>, transform_indices = @transform_6, window_bounds = array<i64: 2, 4, 32, 8>}, {pipeline_mode = #tpu.pipeline_mode<synchronous>, transform_indices = @transform_7, window_bounds = array<i64: 2, 4, 1, 8>}, {pipeline_mode = #tpu.pipeline_mode<synchronous>, transform_indices = @transform_8, window_bounds = array<i64: 2, 4, 32, 8>}, {pipeline_mode = #tpu.pipeline_mode<synchronous>, transform_indices = @transform_9, window_bounds = array<i64: 2, 4, 1, 8>}, {pipeline_mode = #tpu.pipeline_mode<synchronous>, transform_indices = @transform_10, window_bounds = array<i64: 2, 4, 8, 32>}, {pipeline_mode = #tpu.pipeline_mode<synchronous>, transform_indices = @transform_11, window_bounds = array<i64: 2, 1, 32>}, {pipeline_mode = #tpu.pipeline_mode<synchronous>, transform_indices = @transform_12, window_bounds = array<i64: 2, 1, 32>}, {pipeline_mode = #tpu.pipeline_mode<synchronous>, transform_indices = @transform_13, window_bounds = array<i64: 2, 1, 32>}, {pipeline_mode = #tpu.pipeline_mode<synchronous>, transform_indices = @transform_14, window_bounds = array<i64: 2, 32, 64>}, {pipeline_mode = #tpu.pipeline_mode<synchronous>, transform_indices = @transform_15, window_bounds = array<i64: 2, 1, 64>}, {pipeline_mode = #tpu.pipeline_mode<synchronous>, transform_indices = @transform_16, window_bounds = array<i64: 2, 64, 32>}, {pipeline_mode = #tpu.pipeline_mode<synchronous>, transform_indices = @transform_17, window_bounds = array<i64: 2, 1, 32>}, {pipeline_mode = #tpu.pipeline_mode<synchronous>, transform_indices = @transform_18, window_bounds = array<i64: 2, 1, 32>}, {pipeline_mode = #tpu.pipeline_mode<synchronous>, transform_indices = @transform_19, window_bounds = array<i64: 2, 1, 32>}, {pipeline_mode = #tpu.pipeline_mode<synchronous>, transform_indices = @transform_20, window_bounds = array<i64: 1, 32>}, {pipeline_mode = #tpu.pipeline_mode<synchronous>, transform_indices = @transform_21, window_bounds = array<i64: 1, 1>}, {pipeline_mode = #tpu.pipeline_mode<synchronous>, transform_indices = @transform_22, window_bounds = array<i64: 2, 1>}]} {
    %c0 = arith.constant 0 : index
    %c0_0 = arith.constant 0 : index
    %0 = vector.load %arg1[%c0, %c0_0] : memref<16x32xf32, #tpu.memory_space<vmem>>, vector<16x32xf32>
    %c0_1 = arith.constant 0 : index
    %c0_2 = arith.constant 0 : index
    %1 = vector.load %arg3[%c0_1, %c0_2] : memref<1x32xf32, #tpu.memory_space<vmem>>, vector<1x32xf32>
    %c0_3 = arith.constant 0 : index
    %c0_4 = arith.constant 0 : index
    %2 = vector.load %arg4[%c0_3, %c0_4] : memref<1x32xf32, #tpu.memory_space<vmem>>, vector<1x32xf32>
    %cst = arith.constant dense<0.000000e+00> : vector<16xf32>
    %3 = vector.multi_reduction <add>, %0, %cst [1] : vector<16x32xf32> to vector<16xf32>
    %4 = vector.shape_cast %3 : vector<16xf32> to vector<16x1xf32>
    %cst_5 = arith.constant 3.200000e+01 : f32
    %5 = vector.broadcast %cst_5 : f32 to vector<16x1xf32>
    %6 = arith.divf %4, %5 : vector<16x1xf32>
    %7 = vector.broadcast %6 : vector<16x1xf32> to vector<16x32xf32>
    %8 = arith.subf %0, %7 : vector<16x32xf32>
    %9 = arith.mulf %8, %8 : vector<16x32xf32>
    %cst_6 = arith.constant dense<0.000000e+00> : vector<16xf32>
    %10 = vector.multi_reduction <add>, %9, %cst_6 [1] : vector<16x32xf32> to vector<16xf32>
    %11 = vector.shape_cast %10 : vector<16xf32> to vector<16x1xf32>
    %cst_7 = arith.constant 3.200000e+01 : f32
    %12 = vector.broadcast %cst_7 : f32 to vector<16x1xf32>
    %13 = arith.divf %11, %12 : vector<16x1xf32>
    %14 = vector.broadcast %6 : vector<16x1xf32> to vector<16x32xf32>
    %15 = arith.subf %0, %14 : vector<16x32xf32>
    %cst_8 = arith.constant 9.99999996E-13 : f32
    %16 = vector.broadcast %cst_8 : f32 to vector<16x1xf32>
    %17 = arith.addf %13, %16 : vector<16x1xf32>
    %18 = math.rsqrt %17 : vector<16x1xf32>
    %19 = vector.broadcast %18 : vector<16x1xf32> to vector<16x32xf32>
    %20 = arith.mulf %15, %19 : vector<16x32xf32>
    %21 = vector.broadcast %1 : vector<1x32xf32> to vector<16x32xf32>
    %22 = arith.mulf %20, %21 : vector<16x32xf32>
    %23 = vector.broadcast %2 : vector<1x32xf32> to vector<16x32xf32>
    %24 = arith.addf %22, %23 : vector<16x32xf32>
    %c0_9 = arith.constant 0 : index
    %c0_10 = arith.constant 0 : index
    %c0_11 = arith.constant 0 : index
    %25 = vector.load %arg2[%c0_9, %c0_10, %c0_11] : memref<2x1x8xf32, #tpu.memory_space<vmem>>, vector<2x1x8xf32>
    %cst_12 = arith.constant 1.000000e+00 : f32
    %26 = vector.broadcast %cst_12 : f32 to vector<2x1x8xf32>
    %27 = arith.subf %26, %25 : vector<2x1x8xf32>
    %cst_13 = arith.constant -1.000000e+04 : f32
    %28 = vector.broadcast %cst_13 : f32 to vector<2x1x8xf32>
    %29 = arith.mulf %27, %28 : vector<2x1x8xf32>
    %c0_14 = arith.constant 0 : index
    %c0_15 = arith.constant 0 : index
    %c0_16 = arith.constant 0 : index
    %c0_17 = arith.constant 0 : index
    %30 = vector.load %arg5[%c0_14, %c0_15, %c0_16, %c0_17] : memref<2x4x32x8xbf16, #tpu.memory_space<vmem>>, vector<1x4x32x8xbf16>
    %31 = vector.shape_cast %30 : vector<1x4x32x8xbf16> to vector<4x32x8xbf16>
    %c0_18 = arith.constant 0 : index
    %c0_19 = arith.constant 0 : index
    %c0_20 = arith.constant 0 : index
    %c0_21 = arith.constant 0 : index
    %32 = vector.load %arg7[%c0_18, %c0_19, %c0_20, %c0_21] : memref<2x4x32x8xbf16, #tpu.memory_space<vmem>>, vector<1x4x32x8xbf16>
    %33 = vector.shape_cast %32 : vector<1x4x32x8xbf16> to vector<4x32x8xbf16>
    %c0_22 = arith.constant 0 : index
    %c0_23 = arith.constant 0 : index
    %c0_24 = arith.constant 0 : index
    %c0_25 = arith.constant 0 : index
    %34 = vector.load %arg9[%c0_22, %c0_23, %c0_24, %c0_25] : memref<2x4x32x8xbf16, #tpu.memory_space<vmem>>, vector<1x4x32x8xbf16>
    %35 = vector.shape_cast %34 : vector<1x4x32x8xbf16> to vector<4x32x8xbf16>
    %c0_26 = arith.constant 0 : index
    %c0_27 = arith.constant 0 : index
    %c0_28 = arith.constant 0 : index
    %c0_29 = arith.constant 0 : index
    %36 = vector.load %arg6[%c0_26, %c0_27, %c0_28, %c0_29] : memref<2x4x1x8xf32, #tpu.memory_space<vmem>>, vector<1x4x1x8xf32>
    %37 = vector.shape_cast %36 : vector<1x4x1x8xf32> to vector<4x1x8xf32>
    %c0_30 = arith.constant 0 : index
    %c0_31 = arith.constant 0 : index
    %c0_32 = arith.constant 0 : index
    %c0_33 = arith.constant 0 : index
    %38 = vector.load %arg8[%c0_30, %c0_31, %c0_32, %c0_33] : memref<2x4x1x8xf32, #tpu.memory_space<vmem>>, vector<1x4x1x8xf32>
    %39 = vector.shape_cast %38 : vector<1x4x1x8xf32> to vector<4x1x8xf32>
    %c0_34 = arith.constant 0 : index
    %c0_35 = arith.constant 0 : index
    %c0_36 = arith.constant 0 : index
    %c0_37 = arith.constant 0 : index
    %40 = vector.load %arg10[%c0_34, %c0_35, %c0_36, %c0_37] : memref<2x4x1x8xf32, #tpu.memory_space<vmem>>, vector<1x4x1x8xf32>
    %41 = vector.shape_cast %40 : vector<1x4x1x8xf32> to vector<4x1x8xf32>
    %c0_38 = arith.constant 0 : index
    %c0_39 = arith.constant 0 : index
    %c0_40 = arith.constant 0 : index
    %c0_41 = arith.constant 0 : index
    %42 = vector.load %arg11[%c0_38, %c0_39, %c0_40, %c0_41] : memref<2x4x8x32xbf16, #tpu.memory_space<vmem>>, vector<1x4x8x32xbf16>
    %43 = vector.shape_cast %42 : vector<1x4x8x32xbf16> to vector<4x8x32xbf16>
    %44 = arith.truncf %24 : vector<16x32xf32> to vector<16x32xbf16>
    %45 = vector.extract_strided_slice %44 {offsets = [0, 0], sizes = [8, 32], strides = [1, 1]} : vector<16x32xbf16> to vector<8x32xbf16>
    %46 = vector.shape_cast %45 : vector<8x32xbf16> to vector<1x8x32xbf16>
    %47 = vector.shape_cast %46 : vector<1x8x32xbf16> to vector<1x8x32xbf16>
    %48 = vector.broadcast %47 : vector<1x8x32xbf16> to vector<4x8x32xbf16>
    "tpu.trace_start"() <{level = 10 : i32, message = "hsd,hde->hse"}> : () -> ()
    %cst_42 = arith.constant dense<0.000000e+00> : vector<4x8x8xf32>
    %49 = tpu.matmul %48, %31, %cst_42 {dimension_numbers = #tpu.dot_dimension_numbers<[2], [1], [1], [2], [0, 0, 0, 1, 1, 2], [0], [0]>} : vector<4x8x32xbf16>, vector<4x32x8xbf16>, vector<4x8x8xf32> -> vector<4x8x8xf32>
    "tpu.trace_stop"() : () -> ()
    %50 = vector.broadcast %37 : vector<4x1x8xf32> to vector<4x8x8xf32>
    %51 = arith.addf %49, %50 : vector<4x8x8xf32>
    "tpu.trace_start"() <{level = 10 : i32, message = "hsd,hde->hse"}> : () -> ()
    %cst_43 = arith.constant dense<0.000000e+00> : vector<4x8x8xf32>
    %52 = tpu.matmul %48, %33, %cst_43 {dimension_numbers = #tpu.dot_dimension_numbers<[2], [1], [1], [2], [0, 0, 0, 1, 1, 2], [0], [0]>} : vector<4x8x32xbf16>, vector<4x32x8xbf16>, vector<4x8x8xf32> -> vector<4x8x8xf32>
    "tpu.trace_stop"() : () -> ()
    %53 = vector.broadcast %39 : vector<4x1x8xf32> to vector<4x8x8xf32>
    %54 = arith.addf %52, %53 : vector<4x8x8xf32>
    "tpu.trace_start"() <{level = 10 : i32, message = "hsd,hde->hse"}> : () -> ()
    %cst_44 = arith.constant dense<0.000000e+00> : vector<4x8x8xf32>
    %55 = tpu.matmul %48, %35, %cst_44 {dimension_numbers = #tpu.dot_dimension_numbers<[2], [1], [1], [2], [0, 0, 0, 1, 1, 2], [0], [0]>} : vector<4x8x32xbf16>, vector<4x32x8xbf16>, vector<4x8x8xf32> -> vector<4x8x8xf32>
    "tpu.trace_stop"() : () -> ()
    %56 = vector.broadcast %41 : vector<4x1x8xf32> to vector<4x8x8xf32>
    %57 = arith.addf %55, %56 : vector<4x8x8xf32>
    %58 = arith.truncf %51 : vector<4x8x8xf32> to vector<4x8x8xbf16>
    %59 = arith.truncf %54 : vector<4x8x8xf32> to vector<4x8x8xbf16>
    "tpu.trace_start"() <{level = 10 : i32, message = "hqd,hkd->hqk"}> : () -> ()
    %cst_45 = arith.constant dense<0.000000e+00> : vector<4x8x8xf32>
    %60 = tpu.matmul %58, %59, %cst_45 {dimension_numbers = #tpu.dot_dimension_numbers<[2], [2], [1], [1], [0, 0, 0, 1, 1, 1], [0], [0]>} : vector<4x8x8xbf16>, vector<4x8x8xbf16>, vector<4x8x8xf32> -> vector<4x8x8xf32>
    "tpu.trace_stop"() : () -> ()
    %61 = vector.extract_strided_slice %29 {offsets = [0, 0, 0], sizes = [1, 1, 8], strides = [1, 1, 1]} : vector<2x1x8xf32> to vector<1x1x8xf32>
    %62 = vector.broadcast %61 : vector<1x1x8xf32> to vector<4x8x8xf32>
    %63 = arith.addf %60, %62 : vector<4x8x8xf32>
    %cst_46 = arith.constant dense<0xFF800000> : vector<4x8xf32>
    %64 = vector.multi_reduction <maximumf>, %63, %cst_46 [2] : vector<4x8x8xf32> to vector<4x8xf32>
    %65 = vector.shape_cast %64 : vector<4x8xf32> to vector<4x8x1xf32>
    %66 = vector.broadcast %65 : vector<4x8x1xf32> to vector<4x8x8xf32>
    %67 = arith.subf %63, %66 : vector<4x8x8xf32>
    %68 = math.exp %67 : vector<4x8x8xf32>
    %cst_47 = arith.constant dense<0.000000e+00> : vector<4x8xf32>
    %69 = vector.multi_reduction <add>, %68, %cst_47 [2] : vector<4x8x8xf32> to vector<4x8xf32>
    %70 = vector.shape_cast %69 : vector<4x8xf32> to vector<4x8x1xf32>
    %71 = tpu.reciprocal %70 {approx = true} : vector<4x8x1xf32> -> vector<4x8x1xf32>
    %72 = vector.broadcast %71 : vector<4x8x1xf32> to vector<4x8x8xf32>
    %73 = arith.mulf %68, %72 : vector<4x8x8xf32>
    %74 = arith.truncf %73 : vector<4x8x8xf32> to vector<4x8x8xbf16>
    %75 = arith.truncf %57 : vector<4x8x8xf32> to vector<4x8x8xbf16>
    "tpu.trace_start"() <{level = 10 : i32, message = "hqk,hkd->hqd"}> : () -> ()
    %cst_48 = arith.constant dense<0.000000e+00> : vector<4x8x8xf32>
    %76 = tpu.matmul %74, %75, %cst_48 {dimension_numbers = #tpu.dot_dimension_numbers<[2], [1], [1], [2], [0, 0, 0, 1, 1, 2], [0], [0]>} : vector<4x8x8xbf16>, vector<4x8x8xbf16>, vector<4x8x8xf32> -> vector<4x8x8xf32>
    "tpu.trace_stop"() : () -> ()
    %77 = arith.truncf %76 : vector<4x8x8xf32> to vector<4x8x8xbf16>
    "tpu.trace_start"() <{level = 10 : i32, message = "hqd,hde->hqe"}> : () -> ()
    %cst_49 = arith.constant dense<0.000000e+00> : vector<4x8x32xf32>
    %78 = tpu.matmul %77, %43, %cst_49 {dimension_numbers = #tpu.dot_dimension_numbers<[2], [1], [1], [2], [0, 0, 0, 1, 1, 2], [0], [0]>} : vector<4x8x8xbf16>, vector<4x8x32xbf16>, vector<4x8x32xf32> -> vector<4x8x32xf32>
    "tpu.trace_stop"() : () -> ()
    %cst_50 = arith.constant dense<0.000000e+00> : vector<8x32xf32>
    %79 = vector.multi_reduction <add>, %78, %cst_50 [0] : vector<4x8x32xf32> to vector<8x32xf32>
    %80 = vector.extract_strided_slice %44 {offsets = [8, 0], sizes = [8, 32], strides = [1, 1]} : vector<16x32xbf16> to vector<8x32xbf16>
    %81 = vector.shape_cast %80 : vector<8x32xbf16> to vector<1x8x32xbf16>
    %82 = vector.shape_cast %81 : vector<1x8x32xbf16> to vector<1x8x32xbf16>
    %83 = vector.broadcast %82 : vector<1x8x32xbf16> to vector<4x8x32xbf16>
    "tpu.trace_start"() <{level = 10 : i32, message = "hsd,hde->hse"}> : () -> ()
    %cst_51 = arith.constant dense<0.000000e+00> : vector<4x8x8xf32>
    %84 = tpu.matmul %83, %31, %cst_51 {dimension_numbers = #tpu.dot_dimension_numbers<[2], [1], [1], [2], [0, 0, 0, 1, 1, 2], [0], [0]>} : vector<4x8x32xbf16>, vector<4x32x8xbf16>, vector<4x8x8xf32> -> vector<4x8x8xf32>
    "tpu.trace_stop"() : () -> ()
    %85 = vector.broadcast %37 : vector<4x1x8xf32> to vector<4x8x8xf32>
    %86 = arith.addf %84, %85 : vector<4x8x8xf32>
    "tpu.trace_start"() <{level = 10 : i32, message = "hsd,hde->hse"}> : () -> ()
    %cst_52 = arith.constant dense<0.000000e+00> : vector<4x8x8xf32>
    %87 = tpu.matmul %83, %33, %cst_52 {dimension_numbers = #tpu.dot_dimension_numbers<[2], [1], [1], [2], [0, 0, 0, 1, 1, 2], [0], [0]>} : vector<4x8x32xbf16>, vector<4x32x8xbf16>, vector<4x8x8xf32> -> vector<4x8x8xf32>
    "tpu.trace_stop"() : () -> ()
    %88 = vector.broadcast %39 : vector<4x1x8xf32> to vector<4x8x8xf32>
    %89 = arith.addf %87, %88 : vector<4x8x8xf32>
    "tpu.trace_start"() <{level = 10 : i32, message = "hsd,hde->hse"}> : () -> ()
    %cst_53 = arith.constant dense<0.000000e+00> : vector<4x8x8xf32>
    %90 = tpu.matmul %83, %35, %cst_53 {dimension_numbers = #tpu.dot_dimension_numbers<[2], [1], [1], [2], [0, 0, 0, 1, 1, 2], [0], [0]>} : vector<4x8x32xbf16>, vector<4x32x8xbf16>, vector<4x8x8xf32> -> vector<4x8x8xf32>
    "tpu.trace_stop"() : () -> ()
    %91 = vector.broadcast %41 : vector<4x1x8xf32> to vector<4x8x8xf32>
    %92 = arith.addf %90, %91 : vector<4x8x8xf32>
    %93 = arith.truncf %86 : vector<4x8x8xf32> to vector<4x8x8xbf16>
    %94 = arith.truncf %89 : vector<4x8x8xf32> to vector<4x8x8xbf16>
    "tpu.trace_start"() <{level = 10 : i32, message = "hqd,hkd->hqk"}> : () -> ()
    %cst_54 = arith.constant dense<0.000000e+00> : vector<4x8x8xf32>
    %95 = tpu.matmul %93, %94, %cst_54 {dimension_numbers = #tpu.dot_dimension_numbers<[2], [2], [1], [1], [0, 0, 0, 1, 1, 1], [0], [0]>} : vector<4x8x8xbf16>, vector<4x8x8xbf16>, vector<4x8x8xf32> -> vector<4x8x8xf32>
    "tpu.trace_stop"() : () -> ()
    %96 = vector.extract_strided_slice %29 {offsets = [1, 0, 0], sizes = [1, 1, 8], strides = [1, 1, 1]} : vector<2x1x8xf32> to vector<1x1x8xf32>
    %97 = vector.broadcast %96 : vector<1x1x8xf32> to vector<4x8x8xf32>
    %98 = arith.addf %95, %97 : vector<4x8x8xf32>
    %cst_55 = arith.constant dense<0xFF800000> : vector<4x8xf32>
    %99 = vector.multi_reduction <maximumf>, %98, %cst_55 [2] : vector<4x8x8xf32> to vector<4x8xf32>
    %100 = vector.shape_cast %99 : vector<4x8xf32> to vector<4x8x1xf32>
    %101 = vector.broadcast %100 : vector<4x8x1xf32> to vector<4x8x8xf32>
    %102 = arith.subf %98, %101 : vector<4x8x8xf32>
    %103 = math.exp %102 : vector<4x8x8xf32>
    %cst_56 = arith.constant dense<0.000000e+00> : vector<4x8xf32>
    %104 = vector.multi_reduction <add>, %103, %cst_56 [2] : vector<4x8x8xf32> to vector<4x8xf32>
    %105 = vector.shape_cast %104 : vector<4x8xf32> to vector<4x8x1xf32>
    %106 = tpu.reciprocal %105 {approx = true} : vector<4x8x1xf32> -> vector<4x8x1xf32>
    %107 = vector.broadcast %106 : vector<4x8x1xf32> to vector<4x8x8xf32>
    %108 = arith.mulf %103, %107 : vector<4x8x8xf32>
    %109 = arith.truncf %108 : vector<4x8x8xf32> to vector<4x8x8xbf16>
    %110 = arith.truncf %92 : vector<4x8x8xf32> to vector<4x8x8xbf16>
    "tpu.trace_start"() <{level = 10 : i32, message = "hqk,hkd->hqd"}> : () -> ()
    %cst_57 = arith.constant dense<0.000000e+00> : vector<4x8x8xf32>
    %111 = tpu.matmul %109, %110, %cst_57 {dimension_numbers = #tpu.dot_dimension_numbers<[2], [1], [1], [2], [0, 0, 0, 1, 1, 2], [0], [0]>} : vector<4x8x8xbf16>, vector<4x8x8xbf16>, vector<4x8x8xf32> -> vector<4x8x8xf32>
    "tpu.trace_stop"() : () -> ()
    %112 = arith.truncf %111 : vector<4x8x8xf32> to vector<4x8x8xbf16>
    "tpu.trace_start"() <{level = 10 : i32, message = "hqd,hde->hqe"}> : () -> ()
    %cst_58 = arith.constant dense<0.000000e+00> : vector<4x8x32xf32>
    %113 = tpu.matmul %112, %43, %cst_58 {dimension_numbers = #tpu.dot_dimension_numbers<[2], [1], [1], [2], [0, 0, 0, 1, 1, 2], [0], [0]>} : vector<4x8x8xbf16>, vector<4x8x32xbf16>, vector<4x8x32xf32> -> vector<4x8x32xf32>
    "tpu.trace_stop"() : () -> ()
    %cst_59 = arith.constant dense<0.000000e+00> : vector<8x32xf32>
    %114 = vector.multi_reduction <add>, %113, %cst_59 [0] : vector<4x8x32xf32> to vector<8x32xf32>
    %115 = tpu.concatenate %79, %114 in 0 : vector<8x32xf32>, vector<8x32xf32> -> vector<16x32xf32>
    %c0_60 = arith.constant 0 : index
    %c0_61 = arith.constant 0 : index
    %c0_62 = arith.constant 0 : index
    %116 = vector.load %arg12[%c0_60, %c0_61, %c0_62] : memref<2x1x32xf32, #tpu.memory_space<vmem>>, vector<1x1x32xf32>
    %117 = vector.shape_cast %116 : vector<1x1x32xf32> to vector<1x32xf32>
    %118 = vector.broadcast %117 : vector<1x32xf32> to vector<16x32xf32>
    %119 = arith.addf %115, %118 : vector<16x32xf32>
    %120 = arith.addf %24, %119 : vector<16x32xf32>
    %c0_63 = arith.constant 0 : index
    %c0_64 = arith.constant 0 : index
    %c0_65 = arith.constant 0 : index
    %121 = vector.load %arg13[%c0_63, %c0_64, %c0_65] : memref<2x1x32xf32, #tpu.memory_space<vmem>>, vector<1x1x32xf32>
    %122 = vector.shape_cast %121 : vector<1x1x32xf32> to vector<1x32xf32>
    %c0_66 = arith.constant 0 : index
    %c0_67 = arith.constant 0 : index
    %c0_68 = arith.constant 0 : index
    %123 = vector.load %arg14[%c0_66, %c0_67, %c0_68] : memref<2x1x32xf32, #tpu.memory_space<vmem>>, vector<1x1x32xf32>
    %124 = vector.shape_cast %123 : vector<1x1x32xf32> to vector<1x32xf32>
    %cst_69 = arith.constant dense<0.000000e+00> : vector<16xf32>
    %125 = vector.multi_reduction <add>, %120, %cst_69 [1] : vector<16x32xf32> to vector<16xf32>
    %126 = vector.shape_cast %125 : vector<16xf32> to vector<16x1xf32>
    %cst_70 = arith.constant 3.200000e+01 : f32
    %127 = vector.broadcast %cst_70 : f32 to vector<16x1xf32>
    %128 = arith.divf %126, %127 : vector<16x1xf32>
    %129 = vector.broadcast %128 : vector<16x1xf32> to vector<16x32xf32>
    %130 = arith.subf %120, %129 : vector<16x32xf32>
    %131 = arith.mulf %130, %130 : vector<16x32xf32>
    %cst_71 = arith.constant dense<0.000000e+00> : vector<16xf32>
    %132 = vector.multi_reduction <add>, %131, %cst_71 [1] : vector<16x32xf32> to vector<16xf32>
    %133 = vector.shape_cast %132 : vector<16xf32> to vector<16x1xf32>
    %cst_72 = arith.constant 3.200000e+01 : f32
    %134 = vector.broadcast %cst_72 : f32 to vector<16x1xf32>
    %135 = arith.divf %133, %134 : vector<16x1xf32>
    %136 = vector.broadcast %128 : vector<16x1xf32> to vector<16x32xf32>
    %137 = arith.subf %120, %136 : vector<16x32xf32>
    %cst_73 = arith.constant 9.99999996E-13 : f32
    %138 = vector.broadcast %cst_73 : f32 to vector<16x1xf32>
    %139 = arith.addf %135, %138 : vector<16x1xf32>
    %140 = math.rsqrt %139 : vector<16x1xf32>
    %141 = vector.broadcast %140 : vector<16x1xf32> to vector<16x32xf32>
    %142 = arith.mulf %137, %141 : vector<16x32xf32>
    %143 = vector.broadcast %122 : vector<1x32xf32> to vector<16x32xf32>
    %144 = arith.mulf %142, %143 : vector<16x32xf32>
    %145 = vector.broadcast %124 : vector<1x32xf32> to vector<16x32xf32>
    %146 = arith.addf %144, %145 : vector<16x32xf32>
    %147 = arith.truncf %146 : vector<16x32xf32> to vector<16x32xbf16>
    %c0_74 = arith.constant 0 : index
    %c0_75 = arith.constant 0 : index
    %c0_76 = arith.constant 0 : index
    %148 = vector.load %arg15[%c0_74, %c0_75, %c0_76] : memref<2x32x64xbf16, #tpu.memory_space<vmem>>, vector<1x32x64xbf16>
    %149 = vector.shape_cast %148 : vector<1x32x64xbf16> to vector<32x64xbf16>
    %cst_77 = arith.constant dense<0.000000e+00> : vector<16x64xf32>
    %150 = tpu.matmul %147, %149, %cst_77 {dimension_numbers = #tpu.dot_dimension_numbers<[1], [0], [0], [1], [0, 0, 1, 1], [], []>} : vector<16x32xbf16>, vector<32x64xbf16>, vector<16x64xf32> -> vector<16x64xf32>
    %c0_78 = arith.constant 0 : index
    %c0_79 = arith.constant 0 : index
    %c0_80 = arith.constant 0 : index
    %151 = vector.load %arg16[%c0_78, %c0_79, %c0_80] : memref<2x1x64xf32, #tpu.memory_space<vmem>>, vector<1x1x64xf32>
    %152 = vector.shape_cast %151 : vector<1x1x64xf32> to vector<1x64xf32>
    %153 = vector.broadcast %152 : vector<1x64xf32> to vector<16x64xf32>
    %154 = arith.addf %150, %153 : vector<16x64xf32>
    %cst_81 = arith.constant 5.000000e-01 : f32
    %155 = vector.broadcast %cst_81 : f32 to vector<16x64xf32>
    %156 = arith.mulf %155, %154 : vector<16x64xf32>
    %cst_82 = arith.constant 4.471500e-02 : f32
    %157 = vector.broadcast %cst_82 : f32 to vector<16x64xf32>
    %158 = arith.mulf %157, %154 : vector<16x64xf32>
    %159 = arith.mulf %158, %154 : vector<16x64xf32>
    %160 = arith.mulf %159, %154 : vector<16x64xf32>
    %161 = arith.addf %154, %160 : vector<16x64xf32>
    %cst_83 = arith.constant 0.797884583 : f32
    %162 = vector.broadcast %cst_83 : f32 to vector<16x64xf32>
    %163 = arith.mulf %162, %161 : vector<16x64xf32>
    %164 = math.tanh %163 : vector<16x64xf32>
    %cst_84 = arith.constant 1.000000e+00 : f32
    %165 = vector.broadcast %cst_84 : f32 to vector<16x64xf32>
    %166 = arith.addf %165, %164 : vector<16x64xf32>
    %167 = arith.mulf %156, %166 : vector<16x64xf32>
    %168 = arith.truncf %167 : vector<16x64xf32> to vector<16x64xbf16>
    %c0_85 = arith.constant 0 : index
    %c0_86 = arith.constant 0 : index
    %c0_87 = arith.constant 0 : index
    %169 = vector.load %arg17[%c0_85, %c0_86, %c0_87] : memref<2x64x32xbf16, #tpu.memory_space<vmem>>, vector<1x64x32xbf16>
    %170 = vector.shape_cast %169 : vector<1x64x32xbf16> to vector<64x32xbf16>
    %cst_88 = arith.constant dense<0.000000e+00> : vector<16x32xf32>
    %171 = tpu.matmul %168, %170, %cst_88 {dimension_numbers = #tpu.dot_dimension_numbers<[1], [0], [0], [1], [0, 0, 1, 1], [], []>} : vector<16x64xbf16>, vector<64x32xbf16>, vector<16x32xf32> -> vector<16x32xf32>
    %c0_89 = arith.constant 0 : index
    %c0_90 = arith.constant 0 : index
    %c0_91 = arith.constant 0 : index
    %172 = vector.load %arg18[%c0_89, %c0_90, %c0_91] : memref<2x1x32xf32, #tpu.memory_space<vmem>>, vector<1x1x32xf32>
    %173 = vector.shape_cast %172 : vector<1x1x32xf32> to vector<1x32xf32>
    %174 = vector.broadcast %173 : vector<1x32xf32> to vector<16x32xf32>
    %175 = arith.addf %171, %174 : vector<16x32xf32>
    %176 = arith.addf %146, %175 : vector<16x32xf32>
    %c0_92 = arith.constant 0 : index
    %c0_93 = arith.constant 0 : index
    %c0_94 = arith.constant 0 : index
    %177 = vector.load %arg19[%c0_92, %c0_93, %c0_94] : memref<2x1x32xf32, #tpu.memory_space<vmem>>, vector<1x1x32xf32>
    %178 = vector.shape_cast %177 : vector<1x1x32xf32> to vector<1x32xf32>
    %c0_95 = arith.constant 0 : index
    %c0_96 = arith.constant 0 : index
    %c0_97 = arith.constant 0 : index
    %179 = vector.load %arg20[%c0_95, %c0_96, %c0_97] : memref<2x1x32xf32, #tpu.memory_space<vmem>>, vector<1x1x32xf32>
    %180 = vector.shape_cast %179 : vector<1x1x32xf32> to vector<1x32xf32>
    %cst_98 = arith.constant dense<0.000000e+00> : vector<16xf32>
    %181 = vector.multi_reduction <add>, %176, %cst_98 [1] : vector<16x32xf32> to vector<16xf32>
    %182 = vector.shape_cast %181 : vector<16xf32> to vector<16x1xf32>
    %cst_99 = arith.constant 3.200000e+01 : f32
    %183 = vector.broadcast %cst_99 : f32 to vector<16x1xf32>
    %184 = arith.divf %182, %183 : vector<16x1xf32>
    %185 = vector.broadcast %184 : vector<16x1xf32> to vector<16x32xf32>
    %186 = arith.subf %176, %185 : vector<16x32xf32>
    %187 = arith.mulf %186, %186 : vector<16x32xf32>
    %cst_100 = arith.constant dense<0.000000e+00> : vector<16xf32>
    %188 = vector.multi_reduction <add>, %187, %cst_100 [1] : vector<16x32xf32> to vector<16xf32>
    %189 = vector.shape_cast %188 : vector<16xf32> to vector<16x1xf32>
    %cst_101 = arith.constant 3.200000e+01 : f32
    %190 = vector.broadcast %cst_101 : f32 to vector<16x1xf32>
    %191 = arith.divf %189, %190 : vector<16x1xf32>
    %192 = vector.broadcast %184 : vector<16x1xf32> to vector<16x32xf32>
    %193 = arith.subf %176, %192 : vector<16x32xf32>
    %cst_102 = arith.constant 9.99999996E-13 : f32
    %194 = vector.broadcast %cst_102 : f32 to vector<16x1xf32>
    %195 = arith.addf %191, %194 : vector<16x1xf32>
    %196 = math.rsqrt %195 : vector<16x1xf32>
    %197 = vector.broadcast %196 : vector<16x1xf32> to vector<16x32xf32>
    %198 = arith.mulf %193, %197 : vector<16x32xf32>
    %199 = vector.broadcast %178 : vector<1x32xf32> to vector<16x32xf32>
    %200 = arith.mulf %198, %199 : vector<16x32xf32>
    %201 = vector.broadcast %180 : vector<1x32xf32> to vector<16x32xf32>
    %202 = arith.addf %200, %201 : vector<16x32xf32>
    %c1 = arith.constant 1 : index
    %c0_103 = arith.constant 0 : index
    %c0_104 = arith.constant 0 : index
    %c0_105 = arith.constant 0 : index
    %203 = vector.load %arg5[%c1, %c0_103, %c0_104, %c0_105] : memref<2x4x32x8xbf16, #tpu.memory_space<vmem>>, vector<1x4x32x8xbf16>
    %204 = vector.shape_cast %203 : vector<1x4x32x8xbf16> to vector<4x32x8xbf16>
    %c1_106 = arith.constant 1 : index
    %c0_107 = arith.constant 0 : index
    %c0_108 = arith.constant 0 : index
    %c0_109 = arith.constant 0 : index
    %205 = vector.load %arg7[%c1_106, %c0_107, %c0_108, %c0_109] : memref<2x4x32x8xbf16, #tpu.memory_space<vmem>>, vector<1x4x32x8xbf16>
    %206 = vector.shape_cast %205 : vector<1x4x32x8xbf16> to vector<4x32x8xbf16>
    %c1_110 = arith.constant 1 : index
    %c0_111 = arith.constant 0 : index
    %c0_112 = arith.constant 0 : index
    %c0_113 = arith.constant 0 : index
    %207 = vector.load %arg9[%c1_110, %c0_111, %c0_112, %c0_113] : memref<2x4x32x8xbf16, #tpu.memory_space<vmem>>, vector<1x4x32x8xbf16>
    %208 = vector.shape_cast %207 : vector<1x4x32x8xbf16> to vector<4x32x8xbf16>
    %c1_114 = arith.constant 1 : index
    %c0_115 = arith.constant 0 : index
    %c0_116 = arith.constant 0 : index
    %c0_117 = arith.constant 0 : index
    %209 = vector.load %arg6[%c1_114, %c0_115, %c0_116, %c0_117] : memref<2x4x1x8xf32, #tpu.memory_space<vmem>>, vector<1x4x1x8xf32>
    %210 = vector.shape_cast %209 : vector<1x4x1x8xf32> to vector<4x1x8xf32>
    %c1_118 = arith.constant 1 : index
    %c0_119 = arith.constant 0 : index
    %c0_120 = arith.constant 0 : index
    %c0_121 = arith.constant 0 : index
    %211 = vector.load %arg8[%c1_118, %c0_119, %c0_120, %c0_121] : memref<2x4x1x8xf32, #tpu.memory_space<vmem>>, vector<1x4x1x8xf32>
    %212 = vector.shape_cast %211 : vector<1x4x1x8xf32> to vector<4x1x8xf32>
    %c1_122 = arith.constant 1 : index
    %c0_123 = arith.constant 0 : index
    %c0_124 = arith.constant 0 : index
    %c0_125 = arith.constant 0 : index
    %213 = vector.load %arg10[%c1_122, %c0_123, %c0_124, %c0_125] : memref<2x4x1x8xf32, #tpu.memory_space<vmem>>, vector<1x4x1x8xf32>
    %214 = vector.shape_cast %213 : vector<1x4x1x8xf32> to vector<4x1x8xf32>
    %c1_126 = arith.constant 1 : index
    %c0_127 = arith.constant 0 : index
    %c0_128 = arith.constant 0 : index
    %c0_129 = arith.constant 0 : index
    %215 = vector.load %arg11[%c1_126, %c0_127, %c0_128, %c0_129] : memref<2x4x8x32xbf16, #tpu.memory_space<vmem>>, vector<1x4x8x32xbf16>
    %216 = vector.shape_cast %215 : vector<1x4x8x32xbf16> to vector<4x8x32xbf16>
    %217 = arith.truncf %202 : vector<16x32xf32> to vector<16x32xbf16>
    %218 = vector.extract_strided_slice %217 {offsets = [0, 0], sizes = [8, 32], strides = [1, 1]} : vector<16x32xbf16> to vector<8x32xbf16>
    %219 = vector.shape_cast %218 : vector<8x32xbf16> to vector<1x8x32xbf16>
    %220 = vector.shape_cast %219 : vector<1x8x32xbf16> to vector<1x8x32xbf16>
    %221 = vector.broadcast %220 : vector<1x8x32xbf16> to vector<4x8x32xbf16>
    "tpu.trace_start"() <{level = 10 : i32, message = "hsd,hde->hse"}> : () -> ()
    %cst_130 = arith.constant dense<0.000000e+00> : vector<4x8x8xf32>
    %222 = tpu.matmul %221, %204, %cst_130 {dimension_numbers = #tpu.dot_dimension_numbers<[2], [1], [1], [2], [0, 0, 0, 1, 1, 2], [0], [0]>} : vector<4x8x32xbf16>, vector<4x32x8xbf16>, vector<4x8x8xf32> -> vector<4x8x8xf32>
    "tpu.trace_stop"() : () -> ()
    %223 = vector.broadcast %210 : vector<4x1x8xf32> to vector<4x8x8xf32>
    %224 = arith.addf %222, %223 : vector<4x8x8xf32>
    "tpu.trace_start"() <{level = 10 : i32, message = "hsd,hde->hse"}> : () -> ()
    %cst_131 = arith.constant dense<0.000000e+00> : vector<4x8x8xf32>
    %225 = tpu.matmul %221, %206, %cst_131 {dimension_numbers = #tpu.dot_dimension_numbers<[2], [1], [1], [2], [0, 0, 0, 1, 1, 2], [0], [0]>} : vector<4x8x32xbf16>, vector<4x32x8xbf16>, vector<4x8x8xf32> -> vector<4x8x8xf32>
    "tpu.trace_stop"() : () -> ()
    %226 = vector.broadcast %212 : vector<4x1x8xf32> to vector<4x8x8xf32>
    %227 = arith.addf %225, %226 : vector<4x8x8xf32>
    "tpu.trace_start"() <{level = 10 : i32, message = "hsd,hde->hse"}> : () -> ()
    %cst_132 = arith.constant dense<0.000000e+00> : vector<4x8x8xf32>
    %228 = tpu.matmul %221, %208, %cst_132 {dimension_numbers = #tpu.dot_dimension_numbers<[2], [1], [1], [2], [0, 0, 0, 1, 1, 2], [0], [0]>} : vector<4x8x32xbf16>, vector<4x32x8xbf16>, vector<4x8x8xf32> -> vector<4x8x8xf32>
    "tpu.trace_stop"() : () -> ()
    %229 = vector.broadcast %214 : vector<4x1x8xf32> to vector<4x8x8xf32>
    %230 = arith.addf %228, %229 : vector<4x8x8xf32>
    %231 = arith.truncf %224 : vector<4x8x8xf32> to vector<4x8x8xbf16>
    %232 = arith.truncf %227 : vector<4x8x8xf32> to vector<4x8x8xbf16>
    "tpu.trace_start"() <{level = 10 : i32, message = "hqd,hkd->hqk"}> : () -> ()
    %cst_133 = arith.constant dense<0.000000e+00> : vector<4x8x8xf32>
    %233 = tpu.matmul %231, %232, %cst_133 {dimension_numbers = #tpu.dot_dimension_numbers<[2], [2], [1], [1], [0, 0, 0, 1, 1, 1], [0], [0]>} : vector<4x8x8xbf16>, vector<4x8x8xbf16>, vector<4x8x8xf32> -> vector<4x8x8xf32>
    "tpu.trace_stop"() : () -> ()
    %234 = vector.extract_strided_slice %29 {offsets = [0, 0, 0], sizes = [1, 1, 8], strides = [1, 1, 1]} : vector<2x1x8xf32> to vector<1x1x8xf32>
    %235 = vector.broadcast %234 : vector<1x1x8xf32> to vector<4x8x8xf32>
    %236 = arith.addf %233, %235 : vector<4x8x8xf32>
    %cst_134 = arith.constant dense<0xFF800000> : vector<4x8xf32>
    %237 = vector.multi_reduction <maximumf>, %236, %cst_134 [2] : vector<4x8x8xf32> to vector<4x8xf32>
    %238 = vector.shape_cast %237 : vector<4x8xf32> to vector<4x8x1xf32>
    %239 = vector.broadcast %238 : vector<4x8x1xf32> to vector<4x8x8xf32>
    %240 = arith.subf %236, %239 : vector<4x8x8xf32>
    %241 = math.exp %240 : vector<4x8x8xf32>
    %cst_135 = arith.constant dense<0.000000e+00> : vector<4x8xf32>
    %242 = vector.multi_reduction <add>, %241, %cst_135 [2] : vector<4x8x8xf32> to vector<4x8xf32>
    %243 = vector.shape_cast %242 : vector<4x8xf32> to vector<4x8x1xf32>
    %244 = tpu.reciprocal %243 {approx = true} : vector<4x8x1xf32> -> vector<4x8x1xf32>
    %245 = vector.broadcast %244 : vector<4x8x1xf32> to vector<4x8x8xf32>
    %246 = arith.mulf %241, %245 : vector<4x8x8xf32>
    %247 = arith.truncf %246 : vector<4x8x8xf32> to vector<4x8x8xbf16>
    %248 = arith.truncf %230 : vector<4x8x8xf32> to vector<4x8x8xbf16>
    "tpu.trace_start"() <{level = 10 : i32, message = "hqk,hkd->hqd"}> : () -> ()
    %cst_136 = arith.constant dense<0.000000e+00> : vector<4x8x8xf32>
    %249 = tpu.matmul %247, %248, %cst_136 {dimension_numbers = #tpu.dot_dimension_numbers<[2], [1], [1], [2], [0, 0, 0, 1, 1, 2], [0], [0]>} : vector<4x8x8xbf16>, vector<4x8x8xbf16>, vector<4x8x8xf32> -> vector<4x8x8xf32>
    "tpu.trace_stop"() : () -> ()
    %250 = arith.truncf %249 : vector<4x8x8xf32> to vector<4x8x8xbf16>
    "tpu.trace_start"() <{level = 10 : i32, message = "hqd,hde->hqe"}> : () -> ()
    %cst_137 = arith.constant dense<0.000000e+00> : vector<4x8x32xf32>
    %251 = tpu.matmul %250, %216, %cst_137 {dimension_numbers = #tpu.dot_dimension_numbers<[2], [1], [1], [2], [0, 0, 0, 1, 1, 2], [0], [0]>} : vector<4x8x8xbf16>, vector<4x8x32xbf16>, vector<4x8x32xf32> -> vector<4x8x32xf32>
    "tpu.trace_stop"() : () -> ()
    %cst_138 = arith.constant dense<0.000000e+00> : vector<8x32xf32>
    %252 = vector.multi_reduction <add>, %251, %cst_138 [0] : vector<4x8x32xf32> to vector<8x32xf32>
    %253 = vector.extract_strided_slice %217 {offsets = [8, 0], sizes = [8, 32], strides = [1, 1]} : vector<16x32xbf16> to vector<8x32xbf16>
    %254 = vector.shape_cast %253 : vector<8x32xbf16> to vector<1x8x32xbf16>
    %255 = vector.shape_cast %254 : vector<1x8x32xbf16> to vector<1x8x32xbf16>
    %256 = vector.broadcast %255 : vector<1x8x32xbf16> to vector<4x8x32xbf16>
    "tpu.trace_start"() <{level = 10 : i32, message = "hsd,hde->hse"}> : () -> ()
    %cst_139 = arith.constant dense<0.000000e+00> : vector<4x8x8xf32>
    %257 = tpu.matmul %256, %204, %cst_139 {dimension_numbers = #tpu.dot_dimension_numbers<[2], [1], [1], [2], [0, 0, 0, 1, 1, 2], [0], [0]>} : vector<4x8x32xbf16>, vector<4x32x8xbf16>, vector<4x8x8xf32> -> vector<4x8x8xf32>
    "tpu.trace_stop"() : () -> ()
    %258 = vector.broadcast %210 : vector<4x1x8xf32> to vector<4x8x8xf32>
    %259 = arith.addf %257, %258 : vector<4x8x8xf32>
    "tpu.trace_start"() <{level = 10 : i32, message = "hsd,hde->hse"}> : () -> ()
    %cst_140 = arith.constant dense<0.000000e+00> : vector<4x8x8xf32>
    %260 = tpu.matmul %256, %206, %cst_140 {dimension_numbers = #tpu.dot_dimension_numbers<[2], [1], [1], [2], [0, 0, 0, 1, 1, 2], [0], [0]>} : vector<4x8x32xbf16>, vector<4x32x8xbf16>, vector<4x8x8xf32> -> vector<4x8x8xf32>
    "tpu.trace_stop"() : () -> ()
    %261 = vector.broadcast %212 : vector<4x1x8xf32> to vector<4x8x8xf32>
    %262 = arith.addf %260, %261 : vector<4x8x8xf32>
    "tpu.trace_start"() <{level = 10 : i32, message = "hsd,hde->hse"}> : () -> ()
    %cst_141 = arith.constant dense<0.000000e+00> : vector<4x8x8xf32>
    %263 = tpu.matmul %256, %208, %cst_141 {dimension_numbers = #tpu.dot_dimension_numbers<[2], [1], [1], [2], [0, 0, 0, 1, 1, 2], [0], [0]>} : vector<4x8x32xbf16>, vector<4x32x8xbf16>, vector<4x8x8xf32> -> vector<4x8x8xf32>
    "tpu.trace_stop"() : () -> ()
    %264 = vector.broadcast %214 : vector<4x1x8xf32> to vector<4x8x8xf32>
    %265 = arith.addf %263, %264 : vector<4x8x8xf32>
    %266 = arith.truncf %259 : vector<4x8x8xf32> to vector<4x8x8xbf16>
    %267 = arith.truncf %262 : vector<4x8x8xf32> to vector<4x8x8xbf16>
    "tpu.trace_start"() <{level = 10 : i32, message = "hqd,hkd->hqk"}> : () -> ()
    %cst_142 = arith.constant dense<0.000000e+00> : vector<4x8x8xf32>
    %268 = tpu.matmul %266, %267, %cst_142 {dimension_numbers = #tpu.dot_dimension_numbers<[2], [2], [1], [1], [0, 0, 0, 1, 1, 1], [0], [0]>} : vector<4x8x8xbf16>, vector<4x8x8xbf16>, vector<4x8x8xf32> -> vector<4x8x8xf32>
    "tpu.trace_stop"() : () -> ()
    %269 = vector.extract_strided_slice %29 {offsets = [1, 0, 0], sizes = [1, 1, 8], strides = [1, 1, 1]} : vector<2x1x8xf32> to vector<1x1x8xf32>
    %270 = vector.broadcast %269 : vector<1x1x8xf32> to vector<4x8x8xf32>
    %271 = arith.addf %268, %270 : vector<4x8x8xf32>
    %cst_143 = arith.constant dense<0xFF800000> : vector<4x8xf32>
    %272 = vector.multi_reduction <maximumf>, %271, %cst_143 [2] : vector<4x8x8xf32> to vector<4x8xf32>
    %273 = vector.shape_cast %272 : vector<4x8xf32> to vector<4x8x1xf32>
    %274 = vector.broadcast %273 : vector<4x8x1xf32> to vector<4x8x8xf32>
    %275 = arith.subf %271, %274 : vector<4x8x8xf32>
    %276 = math.exp %275 : vector<4x8x8xf32>
    %cst_144 = arith.constant dense<0.000000e+00> : vector<4x8xf32>
    %277 = vector.multi_reduction <add>, %276, %cst_144 [2] : vector<4x8x8xf32> to vector<4x8xf32>
    %278 = vector.shape_cast %277 : vector<4x8xf32> to vector<4x8x1xf32>
    %279 = tpu.reciprocal %278 {approx = true} : vector<4x8x1xf32> -> vector<4x8x1xf32>
    %280 = vector.broadcast %279 : vector<4x8x1xf32> to vector<4x8x8xf32>
    %281 = arith.mulf %276, %280 : vector<4x8x8xf32>
    %282 = arith.truncf %281 : vector<4x8x8xf32> to vector<4x8x8xbf16>
    %283 = arith.truncf %265 : vector<4x8x8xf32> to vector<4x8x8xbf16>
    "tpu.trace_start"() <{level = 10 : i32, message = "hqk,hkd->hqd"}> : () -> ()
    %cst_145 = arith.constant dense<0.000000e+00> : vector<4x8x8xf32>
    %284 = tpu.matmul %282, %283, %cst_145 {dimension_numbers = #tpu.dot_dimension_numbers<[2], [1], [1], [2], [0, 0, 0, 1, 1, 2], [0], [0]>} : vector<4x8x8xbf16>, vector<4x8x8xbf16>, vector<4x8x8xf32> -> vector<4x8x8xf32>
    "tpu.trace_stop"() : () -> ()
    %285 = arith.truncf %284 : vector<4x8x8xf32> to vector<4x8x8xbf16>
    "tpu.trace_start"() <{level = 10 : i32, message = "hqd,hde->hqe"}> : () -> ()
    %cst_146 = arith.constant dense<0.000000e+00> : vector<4x8x32xf32>
    %286 = tpu.matmul %285, %216, %cst_146 {dimension_numbers = #tpu.dot_dimension_numbers<[2], [1], [1], [2], [0, 0, 0, 1, 1, 2], [0], [0]>} : vector<4x8x8xbf16>, vector<4x8x32xbf16>, vector<4x8x32xf32> -> vector<4x8x32xf32>
    "tpu.trace_stop"() : () -> ()
    %cst_147 = arith.constant dense<0.000000e+00> : vector<8x32xf32>
    %287 = vector.multi_reduction <add>, %286, %cst_147 [0] : vector<4x8x32xf32> to vector<8x32xf32>
    %288 = tpu.concatenate %252, %287 in 0 : vector<8x32xf32>, vector<8x32xf32> -> vector<16x32xf32>
    %c1_148 = arith.constant 1 : index
    %c0_149 = arith.constant 0 : index
    %c0_150 = arith.constant 0 : index
    %289 = vector.load %arg12[%c1_148, %c0_149, %c0_150] : memref<2x1x32xf32, #tpu.memory_space<vmem>>, vector<1x1x32xf32>
    %290 = vector.shape_cast %289 : vector<1x1x32xf32> to vector<1x32xf32>
    %291 = vector.broadcast %290 : vector<1x32xf32> to vector<16x32xf32>
    %292 = arith.addf %288, %291 : vector<16x32xf32>
    %293 = arith.addf %202, %292 : vector<16x32xf32>
    %c1_151 = arith.constant 1 : index
    %c0_152 = arith.constant 0 : index
    %c0_153 = arith.constant 0 : index
    %294 = vector.load %arg13[%c1_151, %c0_152, %c0_153] : memref<2x1x32xf32, #tpu.memory_space<vmem>>, vector<1x1x32xf32>
    %295 = vector.shape_cast %294 : vector<1x1x32xf32> to vector<1x32xf32>
    %c1_154 = arith.constant 1 : index
    %c0_155 = arith.constant 0 : index
    %c0_156 = arith.constant 0 : index
    %296 = vector.load %arg14[%c1_154, %c0_155, %c0_156] : memref<2x1x32xf32, #tpu.memory_space<vmem>>, vector<1x1x32xf32>
    %297 = vector.shape_cast %296 : vector<1x1x32xf32> to vector<1x32xf32>
    %cst_157 = arith.constant dense<0.000000e+00> : vector<16xf32>
    %298 = vector.multi_reduction <add>, %293, %cst_157 [1] : vector<16x32xf32> to vector<16xf32>
    %299 = vector.shape_cast %298 : vector<16xf32> to vector<16x1xf32>
    %cst_158 = arith.constant 3.200000e+01 : f32
    %300 = vector.broadcast %cst_158 : f32 to vector<16x1xf32>
    %301 = arith.divf %299, %300 : vector<16x1xf32>
    %302 = vector.broadcast %301 : vector<16x1xf32> to vector<16x32xf32>
    %303 = arith.subf %293, %302 : vector<16x32xf32>
    %304 = arith.mulf %303, %303 : vector<16x32xf32>
    %cst_159 = arith.constant dense<0.000000e+00> : vector<16xf32>
    %305 = vector.multi_reduction <add>, %304, %cst_159 [1] : vector<16x32xf32> to vector<16xf32>
    %306 = vector.shape_cast %305 : vector<16xf32> to vector<16x1xf32>
    %cst_160 = arith.constant 3.200000e+01 : f32
    %307 = vector.broadcast %cst_160 : f32 to vector<16x1xf32>
    %308 = arith.divf %306, %307 : vector<16x1xf32>
    %309 = vector.broadcast %301 : vector<16x1xf32> to vector<16x32xf32>
    %310 = arith.subf %293, %309 : vector<16x32xf32>
    %cst_161 = arith.constant 9.99999996E-13 : f32
    %311 = vector.broadcast %cst_161 : f32 to vector<16x1xf32>
    %312 = arith.addf %308, %311 : vector<16x1xf32>
    %313 = math.rsqrt %312 : vector<16x1xf32>
    %314 = vector.broadcast %313 : vector<16x1xf32> to vector<16x32xf32>
    %315 = arith.mulf %310, %314 : vector<16x32xf32>
    %316 = vector.broadcast %295 : vector<1x32xf32> to vector<16x32xf32>
    %317 = arith.mulf %315, %316 : vector<16x32xf32>
    %318 = vector.broadcast %297 : vector<1x32xf32> to vector<16x32xf32>
    %319 = arith.addf %317, %318 : vector<16x32xf32>
    %320 = arith.truncf %319 : vector<16x32xf32> to vector<16x32xbf16>
    %c1_162 = arith.constant 1 : index
    %c0_163 = arith.constant 0 : index
    %c0_164 = arith.constant 0 : index
    %321 = vector.load %arg15[%c1_162, %c0_163, %c0_164] : memref<2x32x64xbf16, #tpu.memory_space<vmem>>, vector<1x32x64xbf16>
    %322 = vector.shape_cast %321 : vector<1x32x64xbf16> to vector<32x64xbf16>
    %cst_165 = arith.constant dense<0.000000e+00> : vector<16x64xf32>
    %323 = tpu.matmul %320, %322, %cst_165 {dimension_numbers = #tpu.dot_dimension_numbers<[1], [0], [0], [1], [0, 0, 1, 1], [], []>} : vector<16x32xbf16>, vector<32x64xbf16>, vector<16x64xf32> -> vector<16x64xf32>
    %c1_166 = arith.constant 1 : index
    %c0_167 = arith.constant 0 : index
    %c0_168 = arith.constant 0 : index
    %324 = vector.load %arg16[%c1_166, %c0_167, %c0_168] : memref<2x1x64xf32, #tpu.memory_space<vmem>>, vector<1x1x64xf32>
    %325 = vector.shape_cast %324 : vector<1x1x64xf32> to vector<1x64xf32>
    %326 = vector.broadcast %325 : vector<1x64xf32> to vector<16x64xf32>
    %327 = arith.addf %323, %326 : vector<16x64xf32>
    %cst_169 = arith.constant 5.000000e-01 : f32
    %328 = vector.broadcast %cst_169 : f32 to vector<16x64xf32>
    %329 = arith.mulf %328, %327 : vector<16x64xf32>
    %cst_170 = arith.constant 4.471500e-02 : f32
    %330 = vector.broadcast %cst_170 : f32 to vector<16x64xf32>
    %331 = arith.mulf %330, %327 : vector<16x64xf32>
    %332 = arith.mulf %331, %327 : vector<16x64xf32>
    %333 = arith.mulf %332, %327 : vector<16x64xf32>
    %334 = arith.addf %327, %333 : vector<16x64xf32>
    %cst_171 = arith.constant 0.797884583 : f32
    %335 = vector.broadcast %cst_171 : f32 to vector<16x64xf32>
    %336 = arith.mulf %335, %334 : vector<16x64xf32>
    %337 = math.tanh %336 : vector<16x64xf32>
    %cst_172 = arith.constant 1.000000e+00 : f32
    %338 = vector.broadcast %cst_172 : f32 to vector<16x64xf32>
    %339 = arith.addf %338, %337 : vector<16x64xf32>
    %340 = arith.mulf %329, %339 : vector<16x64xf32>
    %341 = arith.truncf %340 : vector<16x64xf32> to vector<16x64xbf16>
    %c1_173 = arith.constant 1 : index
    %c0_174 = arith.constant 0 : index
    %c0_175 = arith.constant 0 : index
    %342 = vector.load %arg17[%c1_173, %c0_174, %c0_175] : memref<2x64x32xbf16, #tpu.memory_space<vmem>>, vector<1x64x32xbf16>
    %343 = vector.shape_cast %342 : vector<1x64x32xbf16> to vector<64x32xbf16>
    %cst_176 = arith.constant dense<0.000000e+00> : vector<16x32xf32>
    %344 = tpu.matmul %341, %343, %cst_176 {dimension_numbers = #tpu.dot_dimension_numbers<[1], [0], [0], [1], [0, 0, 1, 1], [], []>} : vector<16x64xbf16>, vector<64x32xbf16>, vector<16x32xf32> -> vector<16x32xf32>
    %c1_177 = arith.constant 1 : index
    %c0_178 = arith.constant 0 : index
    %c0_179 = arith.constant 0 : index
    %345 = vector.load %arg18[%c1_177, %c0_178, %c0_179] : memref<2x1x32xf32, #tpu.memory_space<vmem>>, vector<1x1x32xf32>
    %346 = vector.shape_cast %345 : vector<1x1x32xf32> to vector<1x32xf32>
    %347 = vector.broadcast %346 : vector<1x32xf32> to vector<16x32xf32>
    %348 = arith.addf %344, %347 : vector<16x32xf32>
    %349 = arith.addf %319, %348 : vector<16x32xf32>
    %c1_180 = arith.constant 1 : index
    %c0_181 = arith.constant 0 : index
    %c0_182 = arith.constant 0 : index
    %350 = vector.load %arg19[%c1_180, %c0_181, %c0_182] : memref<2x1x32xf32, #tpu.memory_space<vmem>>, vector<1x1x32xf32>
    %351 = vector.shape_cast %350 : vector<1x1x32xf32> to vector<1x32xf32>
    %c1_183 = arith.constant 1 : index
    %c0_184 = arith.constant 0 : index
    %c0_185 = arith.constant 0 : index
    %352 = vector.load %arg20[%c1_183, %c0_184, %c0_185] : memref<2x1x32xf32, #tpu.memory_space<vmem>>, vector<1x1x32xf32>
    %353 = vector.shape_cast %352 : vector<1x1x32xf32> to vector<1x32xf32>
    %cst_186 = arith.constant dense<0.000000e+00> : vector<16xf32>
    %354 = vector.multi_reduction <add>, %349, %cst_186 [1] : vector<16x32xf32> to vector<16xf32>
    %355 = vector.shape_cast %354 : vector<16xf32> to vector<16x1xf32>
    %cst_187 = arith.constant 3.200000e+01 : f32
    %356 = vector.broadcast %cst_187 : f32 to vector<16x1xf32>
    %357 = arith.divf %355, %356 : vector<16x1xf32>
    %358 = vector.broadcast %357 : vector<16x1xf32> to vector<16x32xf32>
    %359 = arith.subf %349, %358 : vector<16x32xf32>
    %360 = arith.mulf %359, %359 : vector<16x32xf32>
    %cst_188 = arith.constant dense<0.000000e+00> : vector<16xf32>
    %361 = vector.multi_reduction <add>, %360, %cst_188 [1] : vector<16x32xf32> to vector<16xf32>
    %362 = vector.shape_cast %361 : vector<16xf32> to vector<16x1xf32>
    %cst_189 = arith.constant 3.200000e+01 : f32
    %363 = vector.broadcast %cst_189 : f32 to vector<16x1xf32>
    %364 = arith.divf %362, %363 : vector<16x1xf32>
    %365 = vector.broadcast %357 : vector<16x1xf32> to vector<16x32xf32>
    %366 = arith.subf %349, %365 : vector<16x32xf32>
    %cst_190 = arith.constant 9.99999996E-13 : f32
    %367 = vector.broadcast %cst_190 : f32 to vector<16x1xf32>
    %368 = arith.addf %364, %367 : vector<16x1xf32>
    %369 = math.rsqrt %368 : vector<16x1xf32>
    %370 = vector.broadcast %369 : vector<16x1xf32> to vector<16x32xf32>
    %371 = arith.mulf %366, %370 : vector<16x32xf32>
    %372 = vector.broadcast %351 : vector<1x32xf32> to vector<16x32xf32>
    %373 = arith.mulf %371, %372 : vector<16x32xf32>
    %374 = vector.broadcast %353 : vector<1x32xf32> to vector<16x32xf32>
    %375 = arith.addf %373, %374 : vector<16x32xf32>
    %376 = vector.extract_strided_slice %375 {offsets = [0, 0], sizes = [1, 32], strides = [1, 1]} : vector<16x32xf32> to vector<1x32xf32>
    %377 = vector.extract_strided_slice %375 {offsets = [8, 0], sizes = [1, 32], strides = [1, 1]} : vector<16x32xf32> to vector<1x32xf32>
    %378 = tpu.concatenate %376, %377 in 0 : vector<1x32xf32>, vector<1x32xf32> -> vector<2x32xf32>
    %c0_191 = arith.constant 0 : index
    %c0_192 = arith.constant 0 : index
    %379 = vector.load %arg21[%c0_191, %c0_192] : memref<1x32xf32, #tpu.memory_space<vmem>>, vector<1x32xf32>
    %380 = vector.broadcast %379 : vector<1x32xf32> to vector<2x32xf32>
    %381 = arith.mulf %378, %380 : vector<2x32xf32>
    %cst_193 = arith.constant dense<0.000000e+00> : vector<2xf32>
    %382 = vector.multi_reduction <add>, %381, %cst_193 [1] : vector<2x32xf32> to vector<2xf32>
    %383 = vector.shape_cast %382 : vector<2xf32> to vector<2x1xf32>
    %c0_194 = arith.constant 0 : index
    %c0_195 = arith.constant 0 : index
    %384 = vector.load %arg22[%c0_194, %c0_195] : memref<1x1xf32, #tpu.memory_space<vmem>>, vector<1x1xf32>
    %385 = vector.broadcast %384 : vector<1x1xf32> to vector<2x1xf32>
    %386 = arith.addf %383, %385 : vector<2x1xf32>
    %cst_196 = arith.constant 5.000000e-01 : f32
    %387 = vector.broadcast %cst_196 : f32 to vector<2x1xf32>
    %388 = arith.mulf %387, %386 : vector<2x1xf32>
    %389 = math.tanh %388 : vector<2x1xf32>
    %cst_197 = arith.constant 1.000000e+00 : f32
    %390 = vector.broadcast %cst_197 : f32 to vector<2x1xf32>
    %391 = arith.addf %390, %389 : vector<2x1xf32>
    %cst_198 = arith.constant 5.000000e-01 : f32
    %392 = vector.broadcast %cst_198 : f32 to vector<2x1xf32>
    %393 = arith.mulf %392, %391 : vector<2x1xf32>
    %c0_199 = arith.constant 0 : index
    %c0_200 = arith.constant 0 : index
    %394 = vector.load %arg23[%c0_199, %c0_200] : memref<2x1xf32, #tpu.memory_space<vmem>>, vector<2x1xf32>
    tpu.vector_store %arg23[%c0_199, %c0_200], %393 {strides = array<i32>} : memref<2x1xf32, #tpu.memory_space<vmem>>, vector<2x1xf32>,
    return
  }
  func.func @transform_0(%arg0: i32) -> (i32, i32) {
    %c0_i32 = arith.constant 0 : i32
    %c0_i32_0 = arith.constant 0 : i32
    %c0_i32_1 = arith.constant 0 : i32
    return %c0_i32, %c0_i32_0 : i32, i32
  }
  func.func @transform_1(%arg0: i32) -> (i32, i32, i32) {
    %c0_i32 = arith.constant 0 : i32
    %c0_i32_0 = arith.constant 0 : i32
    %c0_i32_1 = arith.constant 0 : i32
    %c0_i32_2 = arith.constant 0 : i32
    return %c0_i32, %c0_i32_0, %c0_i32_1 : i32, i32, i32
  }
  func.func @transform_2(%arg0: i32) -> (i32, i32) {
    %c0_i32 = arith.constant 0 : i32
    %c0_i32_0 = arith.constant 0 : i32
    %c0_i32_1 = arith.constant 0 : i32
    return %c0_i32, %c0_i32_0 : i32, i32
  }
  func.func @transform_3(%arg0: i32) -> (i32, i32) {
    %c0_i32 = arith.constant 0 : i32
    %c0_i32_0 = arith.constant 0 : i32
    %c0_i32_1 = arith.constant 0 : i32
    return %c0_i32, %c0_i32_0 : i32, i32
  }
  func.func @transform_4(%arg0: i32) -> (i32, i32, i32, i32) {
    %c0_i32 = arith.constant 0 : i32
    %c0_i32_0 = arith.constant 0 : i32
    %c0_i32_1 = arith.constant 0 : i32
    %c0_i32_2 = arith.constant 0 : i32
    %c0_i32_3 = arith.constant 0 : i32
    return %c0_i32, %c0_i32_0, %c0_i32_1, %c0_i32_2 : i32, i32, i32, i32
  }
  func.func @transform_5(%arg0: i32) -> (i32, i32, i32, i32) {
    %c0_i32 = arith.constant 0 : i32
    %c0_i32_0 = arith.constant 0 : i32
    %c0_i32_1 = arith.constant 0 : i32
    %c0_i32_2 = arith.constant 0 : i32
    %c0_i32_3 = arith.constant 0 : i32
    return %c0_i32, %c0_i32_0, %c0_i32_1, %c0_i32_2 : i32, i32, i32, i32
  }
  func.func @transform_6(%arg0: i32) -> (i32, i32, i32, i32) {
    %c0_i32 = arith.constant 0 : i32
    %c0_i32_0 = arith.constant 0 : i32
    %c0_i32_1 = arith.constant 0 : i32
    %c0_i32_2 = arith.constant 0 : i32
    %c0_i32_3 = arith.constant 0 : i32
    return %c0_i32, %c0_i32_0, %c0_i32_1, %c0_i32_2 : i32, i32, i32, i32
  }
  func.func @transform_7(%arg0: i32) -> (i32, i32, i32, i32) {
    %c0_i32 = arith.constant 0 : i32
    %c0_i32_0 = arith.constant 0 : i32
    %c0_i32_1 = arith.constant 0 : i32
    %c0_i32_2 = arith.constant 0 : i32
    %c0_i32_3 = arith.constant 0 : i32
    return %c0_i32, %c0_i32_0, %c0_i32_1, %c0_i32_2 : i32, i32, i32, i32
  }
  func.func @transform_8(%arg0: i32) -> (i32, i32, i32, i32) {
    %c0_i32 = arith.constant 0 : i32
    %c0_i32_0 = arith.constant 0 : i32
    %c0_i32_1 = arith.constant 0 : i32
    %c0_i32_2 = arith.constant 0 : i32
    %c0_i32_3 = arith.constant 0 : i32
    return %c0_i32, %c0_i32_0, %c0_i32_1, %c0_i32_2 : i32, i32, i32, i32
  }
  func.func @transform_9(%arg0: i32) -> (i32, i32, i32, i32) {
    %c0_i32 = arith.constant 0 : i32
    %c0_i32_0 = arith.constant 0 : i32
    %c0_i32_1 = arith.constant 0 : i32
    %c0_i32_2 = arith.constant 0 : i32
    %c0_i32_3 = arith.constant 0 : i32
    return %c0_i32, %c0_i32_0, %c0_i32_1, %c0_i32_2 : i32, i32, i32, i32
  }
  func.func @transform_10(%arg0: i32) -> (i32, i32, i32, i32) {
    %c0_i32 = arith.constant 0 : i32
    %c0_i32_0 = arith.constant 0 : i32
    %c0_i32_1 = arith.constant 0 : i32
    %c0_i32_2 = arith.constant 0 : i32
    %c0_i32_3 = arith.constant 0 : i32
    return %c0_i32, %c0_i32_0, %c0_i32_1, %c0_i32_2 : i32, i32, i32, i32
  }
  func.func @transform_11(%arg0: i32) -> (i32, i32, i32) {
    %c0_i32 = arith.constant 0 : i32
    %c0_i32_0 = arith.constant 0 : i32
    %c0_i32_1 = arith.constant 0 : i32
    %c0_i32_2 = arith.constant 0 : i32
    return %c0_i32, %c0_i32_0, %c0_i32_1 : i32, i32, i32
  }
  func.func @transform_12(%arg0: i32) -> (i32, i32, i32) {
    %c0_i32 = arith.constant 0 : i32
    %c0_i32_0 = arith.constant 0 : i32
    %c0_i32_1 = arith.constant 0 : i32
    %c0_i32_2 = arith.constant 0 : i32
    return %c0_i32, %c0_i32_0, %c0_i32_1 : i32, i32, i32
  }
  func.func @transform_13(%arg0: i32) -> (i32, i32, i32) {
    %c0_i32 = arith.constant 0 : i32
    %c0_i32_0 = arith.constant 0 : i32
    %c0_i32_1 = arith.constant 0 : i32
    %c0_i32_2 = arith.constant 0 : i32
    return %c0_i32, %c0_i32_0, %c0_i32_1 : i32, i32, i32
  }
  func.func @transform_14(%arg0: i32) -> (i32, i32, i32) {
    %c0_i32 = arith.constant 0 : i32
    %c0_i32_0 = arith.constant 0 : i32
    %c0_i32_1 = arith.constant 0 : i32
    %c0_i32_2 = arith.constant 0 : i32
    return %c0_i32, %c0_i32_0, %c0_i32_1 : i32, i32, i32
  }
  func.func @transform_15(%arg0: i32) -> (i32, i32, i32) {
    %c0_i32 = arith.constant 0 : i32
    %c0_i32_0 = arith.constant 0 : i32
    %c0_i32_1 = arith.constant 0 : i32
    %c0_i32_2 = arith.constant 0 : i32
    return %c0_i32, %c0_i32_0, %c0_i32_1 : i32, i32, i32
  }
  func.func @transform_16(%arg0: i32) -> (i32, i32, i32) {
    %c0_i32 = arith.constant 0 : i32
    %c0_i32_0 = arith.constant 0 : i32
    %c0_i32_1 = arith.constant 0 : i32
    %c0_i32_2 = arith.constant 0 : i32
    return %c0_i32, %c0_i32_0, %c0_i32_1 : i32, i32, i32
  }
  func.func @transform_17(%arg0: i32) -> (i32, i32, i32) {
    %c0_i32 = arith.constant 0 : i32
    %c0_i32_0 = arith.constant 0 : i32
    %c0_i32_1 = arith.constant 0 : i32
    %c0_i32_2 = arith.constant 0 : i32
    return %c0_i32, %c0_i32_0, %c0_i32_1 : i32, i32, i32
  }
  func.func @transform_18(%arg0: i32) -> (i32, i32, i32) {
    %c0_i32 = arith.constant 0 : i32
    %c0_i32_0 = arith.constant 0 : i32
    %c0_i32_1 = arith.constant 0 : i32
    %c0_i32_2 = arith.constant 0 : i32
    return %c0_i32, %c0_i32_0, %c0_i32_1 : i32, i32, i32
  }
  func.func @transform_19(%arg0: i32) -> (i32, i32, i32) {
    %c0_i32 = arith.constant 0 : i32
    %c0_i32_0 = arith.constant 0 : i32
    %c0_i32_1 = arith.constant 0 : i32
    %c0_i32_2 = arith.constant 0 : i32
    return %c0_i32, %c0_i32_0, %c0_i32_1 : i32, i32, i32
  }
  func.func @transform_20(%arg0: i32) -> (i32, i32) {
    %c0_i32 = arith.constant 0 : i32
    %c0_i32_0 = arith.constant 0 : i32
    %c0_i32_1 = arith.constant 0 : i32
    return %c0_i32, %c0_i32_0 : i32, i32
  }
  func.func @transform_21(%arg0: i32) -> (i32, i32) {
    %c0_i32 = arith.constant 0 : i32
    %c0_i32_0 = arith.constant 0 : i32
    %c0_i32_1 = arith.constant 0 : i32
    return %c0_i32, %c0_i32_0 : i32, i32
  }
  func.func @transform_22(%arg0: i32) -> (i32, i32) {
    %c0_i32 = arith.constant 0 : i32
    %c0_i32_0 = arith.constant 0 : i32
    %c0_i32_1 = arith.constant 0 : i32
    return %c0_i32, %c0_i32_0 : i32, i32
  }
}

</mosaic_0001>

<llo_original>
// kernel: ext_summarizer_forward.1
$region0: #{ext_summarizer_forward.1}
  #allocation0 [shape = 'u32[]', space=smem, size = 0x4, offset = 0x4, fixed_abs, tag = 'smem constant byte address 0x4 - core index']
  #allocation1 [shape = 'u32[144,128]{1,0:T(1,128)}', space=vmem, size = 0x12000, scoped, tag = 'internal scratch']
  #allocation2 [shape = 'f32[1,1]{1,0:T(1,128)S(1)}', space=vmem, size = 0x200, scoped, tag = 'scoped memory for ext_summarizer_forward.1']
  %s0 = inlined_call_operand.vmem [shape: f32[16,32], index: 0, kind: input, shape index: {}]
  %s1 = inlined_call_operand.vmem [shape: f32[2,1,8], index: 1, kind: input, shape index: {}]
  %s2 = inlined_call_operand.vmem [shape: f32[1,32], index: 2, kind: input, shape index: {}]
  %s3 = inlined_call_operand.vmem [shape: f32[1,32], index: 3, kind: input, shape index: {}]
  %s4 = inlined_call_operand.vmem [shape: bf16[2,4,32,8], index: 4, kind: input, shape index: {}]
  %s5 = inlined_call_operand.vmem [shape: f32[2,4,1,8], index: 5, kind: input, shape index: {}]
  %s6 = inlined_call_operand.vmem [shape: bf16[2,4,32,8], index: 6, kind: input, shape index: {}]
  %s7 = inlined_call_operand.vmem [shape: f32[2,4,1,8], index: 7, kind: input, shape index: {}]
  %s8 = inlined_call_operand.vmem [shape: bf16[2,4,32,8], index: 8, kind: input, shape index: {}]
  %s9 = inlined_call_operand.vmem [shape: f32[2,4,1,8], index: 9, kind: input, shape index: {}]
  %s10 = inlined_call_operand.vmem [shape: bf16[2,4,8,32], index: 10, kind: input, shape index: {}]
  %s11 = inlined_call_operand.vmem [shape: f32[2,1,32], index: 11, kind: input, shape index: {}]
  %s12 = inlined_call_operand.vmem [shape: f32[2,1,32], index: 12, kind: input, shape index: {}]
  %s13 = inlined_call_operand.vmem [shape: f32[2,1,32], index: 13, kind: input, shape index: {}]
  %s14 = inlined_call_operand.vmem [shape: bf16[2,32,64], index: 14, kind: input, shape index: {}]
  %s15 = inlined_call_operand.vmem [shape: f32[2,1,64], index: 15, kind: input, shape index: {}]
  %s16 = inlined_call_operand.vmem [shape: bf16[2,64,32], index: 16, kind: input, shape index: {}]
  %s17 = inlined_call_operand.vmem [shape: f32[2,1,32], index: 17, kind: input, shape index: {}]
  %s18 = inlined_call_operand.vmem [shape: f32[2,1,32], index: 18, kind: input, shape index: {}]
  %s19 = inlined_call_operand.vmem [shape: f32[2,1,32], index: 19, kind: input, shape index: {}]
  %s20 = inlined_call_operand.vmem [shape: f32[1,32], index: 20, kind: input, shape index: {}]
  %s21 = inlined_call_operand.<no memory space> [shape: f32[1,1], index: 21, kind: input, shape index: {}]
  %s22 = inlined_call_operand.vmem [shape: f32[2,1], index: 22, kind: output, shape index: {}]
  %s23 = sld [smem:[#allocation0]]
  $region98: #{ext_summarizer_forward.1} parent=0
    _
  %s25 = ssub.s32 1, %s23
  %s26 = scalar_select 0, %s25, %s23
  %v27 = vstv %s21
  %28 = vst [vmem:[#allocation2] sm:$0x1] %v27
  // Predicated region
  $region2: #{ext_summarizer_forward.1} parent=0 // pred_check
    _
  $region3: #{ext_summarizer_forward.1} parent=0 // pred_check_branch
    %30 = sbr.rel (0) target = $region5
  $region4: #{ext_summarizer_forward.1} parent=0 // pred_region
    _
  $region5: #{ext_summarizer_forward.1} parent=0 // pred_fallthru
    _
  // Predicated region
  $region6: #{ext_summarizer_forward.1} parent=0 // pred_check
    _
  $region7: #{ext_summarizer_forward.1} parent=0 // pred_check_branch
    %32 = sbr.rel (0) target = $region9
  $region8: #{ext_summarizer_forward.1} parent=0 // pred_region
    _
  $region9: #{ext_summarizer_forward.1} parent=0 // pred_fallthru
    _
  // Predicated region
  $region10: #{ext_summarizer_forward.1} parent=0 // pred_check
    _
  $region11: #{ext_summarizer_forward.1} parent=0 // pred_check_branch
    %34 = sbr.rel (0) target = $region13
  $region12: #{ext_summarizer_forward.1} parent=0 // pred_region
    _
  $region13: #{ext_summarizer_forward.1} parent=0 // pred_fallthru
    _
  // Predicated region
  $region14: #{ext_summarizer_forward.1} parent=0 // pred_check
    _
  $region15: #{ext_summarizer_forward.1} parent=0 // pred_check_branch
    %36 = sbr.rel (0) target = $region17
  $region16: #{ext_summarizer_forward.1} parent=0 // pred_region
    _
  $region17: #{ext_summarizer_forward.1} parent=0 // pred_fallthru
    _
  // Predicated region
  $region18: #{ext_summarizer_forward.1} parent=0 // pred_check
    _
  $region19: #{ext_summarizer_forward.1} parent=0 // pred_check_branch
    %38 = sbr.rel (0) target = $region21
  $region20: #{ext_summarizer_forward.1} parent=0 // pred_region
    _
  $region21: #{ext_summarizer_forward.1} parent=0 // pred_fallthru
    _
  // Predicated region
  $region22: #{ext_summarizer_forward.1} parent=0 // pred_check
    _
  $region23: #{ext_summarizer_forward.1} parent=0 // pred_check_branch
    %40 = sbr.rel (0) target = $region25
  $region24: #{ext_summarizer_forward.1} parent=0 // pred_region
    _
  $region25: #{ext_summarizer_forward.1} parent=0 // pred_fallthru
    _
  // Predicated region
  $region26: #{ext_summarizer_forward.1} parent=0 // pred_check
    _
  $region27: #{ext_summarizer_forward.1} parent=0 // pred_check_branch
    %42 = sbr.rel (0) target = $region29
  $region28: #{ext_summarizer_forward.1} parent=0 // pred_region
    _
  $region29: #{ext_summarizer_forward.1} parent=0 // pred_fallthru
    _
  // Predicated region
  $region30: #{ext_summarizer_forward.1} parent=0 // pred_check
    _
  $region31: #{ext_summarizer_forward.1} parent=0 // pred_check_branch
    %44 = sbr.rel (0) target = $region33
  $region32: #{ext_summarizer_forward.1} parent=0 // pred_region
    _
  $region33: #{ext_summarizer_forward.1} parent=0 // pred_fallthru
    _
  // Predicated region
  $region34: #{ext_summarizer_forward.1} parent=0 // pred_check
    _
  $region35: #{ext_summarizer_forward.1} parent=0 // pred_check_branch
    %46 = sbr.rel (0) target = $region37
  $region36: #{ext_summarizer_forward.1} parent=0 // pred_region
    _
  $region37: #{ext_summarizer_forward.1} parent=0 // pred_fallthru
    _
  // Predicated region
  $region38: #{ext_summarizer_forward.1} parent=0 // pred_check
    _
  $region39: #{ext_summarizer_forward.1} parent=0 // pred_check_branch
    %48 = sbr.rel (0) target = $region41
  $region40: #{ext_summarizer_forward.1} parent=0 // pred_region
    _
  $region41: #{ext_summarizer_forward.1} parent=0 // pred_fallthru
    _
  // Predicated region
  $region42: #{ext_summarizer_forward.1} parent=0 // pred_check
    _
  $region43: #{ext_summarizer_forward.1} parent=0 // pred_check_branch
    %50 = sbr.rel (0) target = $region45
  $region44: #{ext_summarizer_forward.1} parent=0 // pred_region
    _
  $region45: #{ext_summarizer_forward.1} parent=0 // pred_fallthru
    _
  // Predicated region
  $region46: #{ext_summarizer_forward.1} parent=0 // pred_check
    _
  $region47: #{ext_summarizer_forward.1} parent=0 // pred_check_branch
    %52 = sbr.rel (0) target = $region49
  $region48: #{ext_summarizer_forward.1} parent=0 // pred_region
    _
  $region49: #{ext_summarizer_forward.1} parent=0 // pred_fallthru
    _
  // Predicated region
  $region50: #{ext_summarizer_forward.1} parent=0 // pred_check
    _
  $region51: #{ext_summarizer_forward.1} parent=0 // pred_check_branch
    %54 = sbr.rel (0) target = $region53
  $region52: #{ext_summarizer_forward.1} parent=0 // pred_region
    _
  $region53: #{ext_summarizer_forward.1} parent=0 // pred_fallthru
    _
  // Predicated region
  $region54: #{ext_summarizer_forward.1} parent=0 // pred_check
    _
  $region55: #{ext_summarizer_forward.1} parent=0 // pred_check_branch
    %56 = sbr.rel (0) target = $region57
  $region56: #{ext_summarizer_forward.1} parent=0 // pred_region
    _
  $region57: #{ext_summarizer_forward.1} parent=0 // pred_fallthru
    _
  // Predicated region
  $region58: #{ext_summarizer_forward.1} parent=0 // pred_check
    _
  $region59: #{ext_summarizer_forward.1} parent=0 // pred_check_branch
    %58 = sbr.rel (0) target = $region61
  $region60: #{ext_summarizer_forward.1} parent=0 // pred_region
    _
  $region61: #{ext_summarizer_forward.1} parent=0 // pred_fallthru
    _
  // Predicated region
  $region62: #{ext_summarizer_forward.1} parent=0 // pred_check
    _
  $region63: #{ext_summarizer_forward.1} parent=0 // pred_check_branch
    %60 = sbr.rel (0) target = $region65
  $region64: #{ext_summarizer_forward.1} parent=0 // pred_region
    _
  $region65: #{ext_summarizer_forward.1} parent=0 // pred_fallthru
    _
  // Predicated region
  $region66: #{ext_summarizer_forward.1} parent=0 // pred_check
    _
  $region67: #{ext_summarizer_forward.1} parent=0 // pred_check_branch
    %62 = sbr.rel (0) target = $region69
  $region68: #{ext_summarizer_forward.1} parent=0 // pred_region
    _
  $region69: #{ext_summarizer_forward.1} parent=0 // pred_fallthru
    _
  // Predicated region
  $region70: #{ext_summarizer_forward.1} parent=0 // pred_check
    _
  $region71: #{ext_summarizer_forward.1} parent=0 // pred_check_branch
    %64 = sbr.rel (0) target = $region73
  $region72: #{ext_summarizer_forward.1} parent=0 // pred_region
    _
  $region73: #{ext_summarizer_forward.1} parent=0 // pred_fallthru
    _
  // Predicated region
  $region74: #{ext_summarizer_forward.1} parent=0 // pred_check
    _
  $region75: #{ext_summarizer_forward.1} parent=0 // pred_check_branch
    %66 = sbr.rel (0) target = $region77
  $region76: #{ext_summarizer_forward.1} parent=0 // pred_region
    _
  $region77: #{ext_summarizer_forward.1} parent=0 // pred_fallthru
    _
  // Predicated region
  $region78: #{ext_summarizer_forward.1} parent=0 // pred_check
    _
  $region79: #{ext_summarizer_forward.1} parent=0 // pred_check_branch
    %68 = sbr.rel (0) target = $region81
  $region80: #{ext_summarizer_forward.1} parent=0 // pred_region
    _
  $region81: #{ext_summarizer_forward.1} parent=0 // pred_fallthru
    _
  // Predicated region
  $region82: #{ext_summarizer_forward.1} parent=0 // pred_check
    _
  $region83: #{ext_summarizer_forward.1} parent=0 // pred_check_branch
    %70 = sbr.rel (0) target = $region85
  $region84: #{ext_summarizer_forward.1} parent=0 // pred_region
    _
  $region85: #{ext_summarizer_forward.1} parent=0 // pred_fallthru
    _
  // Predicated region
  $region86: #{ext_summarizer_forward.1} parent=0 // pred_check
    _
  $region87: #{ext_summarizer_forward.1} parent=0 // pred_check_branch
    %72 = sbr.rel (0) target = $region89
  $region88: #{ext_summarizer_forward.1} parent=0 // pred_region
    _
  $region89: #{ext_summarizer_forward.1} parent=0 // pred_fallthru
    _
  %v74 = vld [vmem:[%s0] sm:$0xff]
  %v75 = vld [vmem:[%s0 + $0x8] sm:$0xff]
  %v76 = vld [vmem:[%s2] sm:$0x1]
  %v77 = vld [vmem:[%s3] sm:$0x1]
  %vm78 = vcmask 261120
  %v79 = vsel %vm78, %v74, 0.0
  %80 = vadd.xlane.f32.xlu0 %v79
  %v81 = vpop.xlane.xlu0 %80
  %v82 = vsel %vm78, %v75, 0.0
  %83 = vadd.xlane.f32.xlu0 %v82
  %v84 = vpop.xlane.xlu0 %83
  %v85 = vrcp.pop 32.0
  %v86 = vmul.f32 %v81, %v85
  %v87 = vmul.f32 %v84, %v85
  %v88 = vsub.f32 %v74, %v86
  %v89 = vsub.f32 %v75, %v87
  %v90 = vmul.f32 %v88, %v88
  %v91 = vmul.f32 %v89, %v89
  %v92 = vsel %vm78, %v90, 0.0
  %93 = vadd.xlane.f32.xlu0 %v92
  %v94 = vpop.xlane.xlu0 %93
  %v95 = vsel %vm78, %v91, 0.0
  %96 = vadd.xlane.f32.xlu0 %v95
  %v97 = vpop.xlane.xlu0 %96
  %v98 = vmul.f32 %v94, %v85
  %v99 = vmul.f32 %v97, %v85
  %v100 = vadd.f32 %v98, 1e-12
  %v101 = vadd.f32 %v99, 1e-12
  %v102 = vrsqrt.pop %v100
  %v103 = vrsqrt.pop %v101
  %v104 = vmul.f32 %v88, %v102
  %v105 = vmul.f32 %v89, %v103
  %v107 = vlaneseq
  %v108 = vshrl.u32 %v107, 7
  %v109 = vsub.s32 0, %v108
  %v110 = vrot.slane %v76, %v109
  %v112 = vmul.f32 %v104, %v110
  %v113 = vmul.f32 %v105, %v110
  %v115 = vlaneseq
  %v116 = vshrl.u32 %v115, 7
  %v117 = vsub.s32 0, %v116
  %v118 = vrot.slane %v77, %v117
  %v120 = vadd.f32 %v112, %v118
  %v121 = vadd.f32 %v113, %v118
  %v122 = vld [vmem:[%s1] sm:$0x1]
  %v123 = vld [vmem:[%s1 + $0x1] sm:$0x1]
  %v124 = vsub.f32 1.0, %v122
  %v125 = vsub.f32 1.0, %v123
  %v126 = vmul.f32 %v124, -10000.0
  %v127 = vmul.f32 %v125, -10000.0
  %v128 = vld [vmem:[%s4] sm:$0xf]
  %v129 = vld [vmem:[%s4 + $0x4] sm:$0xf]
  %v130 = vld [vmem:[%s4 + $0x8] sm:$0xf]
  %v131 = vld [vmem:[%s4 + $0xc] sm:$0xf]
  %v132 = vld [vmem:[%s4 + $0x10] sm:$0xf]
  %v133 = vld [vmem:[%s4 + $0x14] sm:$0xf]
  %v134 = vld [vmem:[%s4 + $0x18] sm:$0xf]
  %v135 = vld [vmem:[%s4 + $0x1c] sm:$0xf]
  %v136 = vld [vmem:[%s4 + $0x20] sm:$0xf]
  %v137 = vld [vmem:[%s4 + $0x24] sm:$0xf]
  %v138 = vld [vmem:[%s4 + $0x28] sm:$0xf]
  %v139 = vld [vmem:[%s4 + $0x2c] sm:$0xf]
  %v140 = vld [vmem:[%s4 + $0x30] sm:$0xf]
  %v141 = vld [vmem:[%s4 + $0x34] sm:$0xf]
  %v142 = vld [vmem:[%s4 + $0x38] sm:$0xf]
  %v143 = vld [vmem:[%s4 + $0x3c] sm:$0xf]
  %v144 = vld [vmem:[%s6] sm:$0xf]
  %v145 = vld [vmem:[%s6 + $0x4] sm:$0xf]
  %v146 = vld [vmem:[%s6 + $0x8] sm:$0xf]
  %v147 = vld [vmem:[%s6 + $0xc] sm:$0xf]
  %v148 = vld [vmem:[%s6 + $0x10] sm:$0xf]
  %v149 = vld [vmem:[%s6 + $0x14] sm:$0xf]
  %v150 = vld [vmem:[%s6 + $0x18] sm:$0xf]
  %v151 = vld [vmem:[%s6 + $0x1c] sm:$0xf]
  %v152 = vld [vmem:[%s6 + $0x20] sm:$0xf]
  %v153 = vld [vmem:[%s6 + $0x24] sm:$0xf]
  %v154 = vld [vmem:[%s6 + $0x28] sm:$0xf]
  %v155 = vld [vmem:[%s6 + $0x2c] sm:$0xf]
  %v156 = vld [vmem:[%s6 + $0x30] sm:$0xf]
  %v157 = vld [vmem:[%s6 + $0x34] sm:$0xf]
  %v158 = vld [vmem:[%s6 + $0x38] sm:$0xf]
  %v159 = vld [vmem:[%s6 + $0x3c] sm:$0xf]
  %v160 = vld [vmem:[%s8] sm:$0xf]
  %v161 = vld [vmem:[%s8 + $0x4] sm:$0xf]
  %v162 = vld [vmem:[%s8 + $0x8] sm:$0xf]
  %v163 = vld [vmem:[%s8 + $0xc] sm:$0xf]
  %v164 = vld [vmem:[%s8 + $0x10] sm:$0xf]
  %v165 = vld [vmem:[%s8 + $0x14] sm:$0xf]
  %v166 = vld [vmem:[%s8 + $0x18] sm:$0xf]
  %v167 = vld [vmem:[%s8 + $0x1c] sm:$0xf]
  %v168 = vld [vmem:[%s8 + $0x20] sm:$0xf]
  %v169 = vld [vmem:[%s8 + $0x24] sm:$0xf]
  %v170 = vld [vmem:[%s8 + $0x28] sm:$0xf]
  %v171 = vld [vmem:[%s8 + $0x2c] sm:$0xf]
  %v172 = vld [vmem:[%s8 + $0x30] sm:$0xf]
  %v173 = vld [vmem:[%s8 + $0x34] sm:$0xf]
  %v174 = vld [vmem:[%s8 + $0x38] sm:$0xf]
  %v175 = vld [vmem:[%s8 + $0x3c] sm:$0xf]
  %v176 = vld [vmem:[%s5] sm:$0x1]
  %v177 = vld [vmem:[%s5 + $0x1] sm:$0x1]
  %v178 = vld [vmem:[%s5 + $0x2] sm:$0x1]
  %v179 = vld [vmem:[%s5 + $0x3] sm:$0x1]
  %v180 = vld [vmem:[%s7] sm:$0x1]
  %v181 = vld [vmem:[%s7 + $0x1] sm:$0x1]
  %v182 = vld [vmem:[%s7 + $0x2] sm:$0x1]
  %v183 = vld [vmem:[%s7 + $0x3] sm:$0x1]
  %v184 = vld [vmem:[%s9] sm:$0x1]
  %v185 = vld [vmem:[%s9 + $0x1] sm:$0x1]
  %v186 = vld [vmem:[%s9 + $0x2] sm:$0x1]
  %v187 = vld [vmem:[%s9 + $0x3] sm:$0x1]
  %v188 = vld [vmem:[%s10] sm:$0xf]
  %v189 = vld [vmem:[%s10 + $0x4] sm:$0xf]
  %v190 = vld [vmem:[%s10 + $0x8] sm:$0xf]
  %v191 = vld [vmem:[%s10 + $0xc] sm:$0xf]
  %v192 = vpack.c.bf16 %v121, %v120
  %v197 = vlaneseq
  %v198 = vshrl.u32 %v197, 7
  %v199 = vsub.s32 0, %v198
  %v200 = vrot.slane %v176, %v199
  %v201 = vlaneseq
  %v202 = vshrl.u32 %v201, 7
  %v203 = vsub.s32 0, %v202
  %v204 = vrot.slane %v177, %v203
  %v205 = vlaneseq
  %v206 = vshrl.u32 %v205, 7
  %v207 = vsub.s32 0, %v206
  %v208 = vrot.slane %v178, %v207
  %v209 = vlaneseq
  %v210 = vshrl.u32 %v209, 7
  %v211 = vsub.s32 0, %v210
  %v212 = vrot.slane %v179, %v211
  %v221 = vunpack.c.l.b16 %v128
  %v222 = vunpack.c.l.b16 %v129
  %v223 = vunpack.c.l.b16 %v130
  %v224 = vunpack.c.l.b16 %v131
  %v225 = vpack.c.b16 %v222, %v221
  %v226 = vpack.c.b16 %v224, %v223
  %v230 = vsel %vm78, %v192, 0
  %232 = vmatprep.subr.bf16.mxu0 0
  %233 = vmatpush1.bf16.msra.mxu0 0
  %234 = vmatprep.subr.bf16.mxu0 0
  %235 = vmatpush1.bf16.msra.mxu0 0
  %236 = vmatprep.subr.bf16.mxu0 0
  %237 = vmatpush1.bf16.msra.mxu0 0
  %238 = vmatprep.subr.bf16.mxu0 0
  %239 = vmatpush1.bf16.msra.mxu0 0
  %240 = vmatprep.subr.bf16.mxu0 0
  %241 = vmatpush1.bf16.msra.mxu0 0
  %242 = vmatprep.subr.bf16.mxu0 0
  %243 = vmatpush1.bf16.msra.mxu0 0
  %244 = vmatprep.subr.bf16.mxu0 0
  %245 = vmatpush1.bf16.msra.mxu0 %v226
  %246 = vmatprep.subr.bf16.mxu0 0
  %247 = vmatpush1.bf16.msra.mxu0 %v225
  %248 = vmatprep.subr.bf16.mxu0 0
  %249 = vmatpush2.bf16.msra.mxu0 0
  %250 = vmatprep.subr.bf16.mxu0 0
  %251 = vmatpush2.bf16.msra.mxu0 0
  %252 = vmatprep.subr.bf16.mxu0 0
  %253 = vmatpush2.bf16.msra.mxu0 0
  %254 = vmatprep.subr.bf16.mxu0 0
  %255 = vmatpush2.bf16.msra.mxu0 0
  %256 = vmatprep.subr.bf16.mxu0 0
  %257 = vmatpush2.bf16.msra.mxu0 0
  %258 = vmatprep.subr.bf16.mxu0 0
  %259 = vmatpush2.bf16.msra.mxu0 0
  %260 = vmatprep.subr.bf16.mxu0 0
  %261 = vmatpush2.bf16.msra.mxu0 0
  %262 = vmatprep.subr.bf16.mxu0 0
  %263 = vmatpush2.bf16.msra.mxu0 0
  %264 = vmatprep.mubr.bf16.mxu0 0
  %265 = vmatmul.mubr.bf16.gmra.mxu0 %v230
  %v266 = vpop.f32.mrf.mxu0
  %v267 = vadd.f32 %v200, %v266
  %v268 = vpop.f32.mrf.mxu0
  %v269 = vpop.f32.mrf.mxu0
  %v270 = vpop.f32.mrf.mxu0
  %271 = vdwg.mxu0
  %v276 = vunpack.c.l.b16 %v132
  %v277 = vunpack.c.l.b16 %v133
  %v278 = vunpack.c.l.b16 %v134
  %v279 = vunpack.c.l.b16 %v135
  %v280 = vpack.c.b16 %v277, %v276
  %v281 = vpack.c.b16 %v279, %v278
  %284 = vmatprep.subr.bf16.mxu0 0
  %285 = vmatpush1.bf16.msra.mxu0 0
  %286 = vmatprep.subr.bf16.mxu0 0
  %287 = vmatpush1.bf16.msra.mxu0 0
  %288 = vmatprep.subr.bf16.mxu0 0
  %289 = vmatpush1.bf16.msra.mxu0 0
  %290 = vmatprep.subr.bf16.mxu0 0
  %291 = vmatpush1.bf16.msra.mxu0 0
  %292 = vmatprep.subr.bf16.mxu0 0
  %293 = vmatpush1.bf16.msra.mxu0 0
  %294 = vmatprep.subr.bf16.mxu0 0
  %295 = vmatpush1.bf16.msra.mxu0 0
  %296 = vmatprep.subr.bf16.mxu0 0
  %297 = vmatpush1.bf16.msra.mxu0 %v281
  %298 = vmatprep.subr.bf16.mxu0 0
  %299 = vmatpush1.bf16.msra.mxu0 %v280
  %300 = vmatprep.subr.bf16.mxu0 0
  %301 = vmatpush2.bf16.msra.mxu0 0
  %302 = vmatprep.subr.bf16.mxu0 0
  %303 = vmatpush2.bf16.msra.mxu0 0
  %304 = vmatprep.subr.bf16.mxu0 0
  %305 = vmatpush2.bf16.msra.mxu0 0
  %306 = vmatprep.subr.bf16.mxu0 0
  %307 = vmatpush2.bf16.msra.mxu0 0
  %308 = vmatprep.subr.bf16.mxu0 0
  %309 = vmatpush2.bf16.msra.mxu0 0
  %310 = vmatprep.subr.bf16.mxu0 0
  %311 = vmatpush2.bf16.msra.mxu0 0
  %312 = vmatprep.subr.bf16.mxu0 0
  %313 = vmatpush2.bf16.msra.mxu0 0
  %314 = vmatprep.subr.bf16.mxu0 0
  %315 = vmatpush2.bf16.msra.mxu0 0
  %316 = vmatprep.mubr.bf16.mxu0 0
  %317 = vmatmul.mubr.bf16.gmra.mxu0 %v230
  %v318 = vpop.f32.mrf.mxu0
  %v319 = vadd.f32 %v204, %v318
  %v320 = vpop.f32.mrf.mxu0
  %v321 = vpop.f32.mrf.mxu0
  %v322 = vpop.f32.mrf.mxu0
  %323 = vdwg.mxu0
  %v328 = vunpack.c.l.b16 %v136
  %v329 = vunpack.c.l.b16 %v137
  %v330 = vunpack.c.l.b16 %v138
  %v331 = vunpack.c.l.b16 %v139
  %v332 = vpack.c.b16 %v329, %v328
  %v333 = vpack.c.b16 %v331, %v330
  %336 = vmatprep.subr.bf16.mxu0 0
  %337 = vmatpush1.bf16.msra.mxu0 0
  %338 = vmatprep.subr.bf16.mxu0 0
  %339 = vmatpush1.bf16.msra.mxu0 0
  %340 = vmatprep.subr.bf16.mxu0 0
  %341 = vmatpush1.bf16.msra.mxu0 0
  %342 = vmatprep.subr.bf16.mxu0 0
  %343 = vmatpush1.bf16.msra.mxu0 0
  %344 = vmatprep.subr.bf16.mxu0 0
  %345 = vmatpush1.bf16.msra.mxu0 0
  %346 = vmatprep.subr.bf16.mxu0 0
  %347 = vmatpush1.bf16.msra.mxu0 0
  %348 = vmatprep.subr.bf16.mxu0 0
  %349 = vmatpush1.bf16.msra.mxu0 %v333
  %350 = vmatprep.subr.bf16.mxu0 0
  %351 = vmatpush1.bf16.msra.mxu0 %v332
  %352 = vmatprep.subr.bf16.mxu0 0
  %353 = vmatpush2.bf16.msra.mxu0 0
  %354 = vmatprep.subr.bf16.mxu0 0
  %355 = vmatpush2.bf16.msra.mxu0 0
  %356 = vmatprep.subr.bf16.mxu0 0
  %357 = vmatpush2.bf16.msra.mxu0 0
  %358 = vmatprep.subr.bf16.mxu0 0
  %359 = vmatpush2.bf16.msra.mxu0 0
  %360 = vmatprep.subr.bf16.mxu0 0
  %361 = vmatpush2.bf16.msra.mxu0 0
  %362 = vmatprep.subr.bf16.mxu0 0
  %363 = vmatpush2.bf16.msra.mxu0 0
  %364 = vmatprep.subr.bf16.mxu0 0
  %365 = vmatpush2.bf16.msra.mxu0 0
  %366 = vmatprep.subr.bf16.mxu0 0
  %367 = vmatpush2.bf16.msra.mxu0 0
  %368 = vmatprep.mubr.bf16.mxu0 0
  %369 = vmatmul.mubr.bf16.gmra.mxu0 %v230
  %v370 = vpop.f32.mrf.mxu0
  %v371 = vadd.f32 %v208, %v370
  %v372 = vpop.f32.mrf.mxu0
  %v373 = vpop.f32.mrf.mxu0
  %v374 = vpop.f32.mrf.mxu0
  %375 = vdwg.mxu0
  %v380 = vunpack.c.l.b16 %v140
  %v381 = vunpack.c.l.b16 %v141
  %v382 = vunpack.c.l.b16 %v142
  %v383 = vunpack.c.l.b16 %v143
  %v384 = vpack.c.b16 %v381, %v380
  %v385 = vpack.c.b16 %v383, %v382
  %388 = vmatprep.subr.bf16.mxu0 0
  %389 = vmatpush1.bf16.msra.mxu0 0
  %390 = vmatprep.subr.bf16.mxu0 0
  %391 = vmatpush1.bf16.msra.mxu0 0
  %392 = vmatprep.subr.bf16.mxu0 0
  %393 = vmatpush1.bf16.msra.mxu0 0
  %394 = vmatprep.subr.bf16.mxu0 0
  %395 = vmatpush1.bf16.msra.mxu0 0
  %396 = vmatprep.subr.bf16.mxu0 0
  %397 = vmatpush1.bf16.msra.mxu0 0
  %398 = vmatprep.subr.bf16.mxu0 0
  %399 = vmatpush1.bf16.msra.mxu0 0
  %400 = vmatprep.subr.bf16.mxu0 0
  %401 = vmatpush1.bf16.msra.mxu0 %v385
  %402 = vmatprep.subr.bf16.mxu0 0
  %403 = vmatpush1.bf16.msra.mxu0 %v384
  %404 = vmatprep.subr.bf16.mxu0 0
  %405 = vmatpush2.bf16.msra.mxu0 0
  %406 = vmatprep.subr.bf16.mxu0 0
  %407 = vmatpush2.bf16.msra.mxu0 0
  %408 = vmatprep.subr.bf16.mxu0 0
  %409 = vmatpush2.bf16.msra.mxu0 0
  %410 = vmatprep.subr.bf16.mxu0 0
  %411 = vmatpush2.bf16.msra.mxu0 0
  %412 = vmatprep.subr.bf16.mxu0 0
  %413 = vmatpush2.bf16.msra.mxu0 0
  %414 = vmatprep.subr.bf16.mxu0 0
  %415 = vmatpush2.bf16.msra.mxu0 0
  %416 = vmatprep.subr.bf16.mxu0 0
  %417 = vmatpush2.bf16.msra.mxu0 0
  %418 = vmatprep.subr.bf16.mxu0 0
  %419 = vmatpush2.bf16.msra.mxu0 0
  %420 = vmatprep.mubr.bf16.mxu0 0
  %421 = vmatmul.mubr.bf16.gmra.mxu0 %v230
  %v422 = vpop.f32.mrf.mxu0
  %v423 = vadd.f32 %v212, %v422
  %v424 = vpop.f32.mrf.mxu0
  %v425 = vpop.f32.mrf.mxu0
  %v426 = vpop.f32.mrf.mxu0
  %427 = vdwg.mxu0
  %v432 = vlaneseq
  %v433 = vshrl.u32 %v432, 7
  %v434 = vsub.s32 0, %v433
  %v435 = vrot.slane %v180, %v434
  %v436 = vlaneseq
  %v437 = vshrl.u32 %v436, 7
  %v438 = vsub.s32 0, %v437
  %v439 = vrot.slane %v181, %v438
  %v440 = vlaneseq
  %v441 = vshrl.u32 %v440, 7
  %v442 = vsub.s32 0, %v441
  %v443 = vrot.slane %v182, %v442
  %v444 = vlaneseq
  %v445 = vshrl.u32 %v444, 7
  %v446 = vsub.s32 0, %v445
  %v447 = vrot.slane %v183, %v446
  %v456 = vunpack.c.l.b16 %v144
  %v457 = vunpack.c.l.b16 %v145
  %v458 = vunpack.c.l.b16 %v146
  %v459 = vunpack.c.l.b16 %v147
  %v460 = vpack.c.b16 %v457, %v456
  %v461 = vpack.c.b16 %v459, %v458
  %464 = vmatprep.subr.bf16.mxu0 0
  %465 = vmatpush1.bf16.msra.mxu0 0
  %466 = vmatprep.subr.bf16.mxu0 0
  %467 = vmatpush1.bf16.msra.mxu0 0
  %468 = vmatprep.subr.bf16.mxu0 0
  %469 = vmatpush1.bf16.msra.mxu0 0
  %470 = vmatprep.subr.bf16.mxu0 0
  %471 = vmatpush1.bf16.msra.mxu0 0
  %472 = vmatprep.subr.bf16.mxu0 0
  %473 = vmatpush1.bf16.msra.mxu0 0
  %474 = vmatprep.subr.bf16.mxu0 0
  %475 = vmatpush1.bf16.msra.mxu0 0
  %476 = vmatprep.subr.bf16.mxu0 0
  %477 = vmatpush1.bf16.msra.mxu0 %v461
  %478 = vmatprep.subr.bf16.mxu0 0
  %479 = vmatpush1.bf16.msra.mxu0 %v460
  %480 = vmatprep.subr.bf16.mxu0 0
  %481 = vmatpush2.bf16.msra.mxu0 0
  %482 = vmatprep.subr.bf16.mxu0 0
  %483 = vmatpush2.bf16.msra.mxu0 0
  %484 = vmatprep.subr.bf16.mxu0 0
  %485 = vmatpush2.bf16.msra.mxu0 0
  %486 = vmatprep.subr.bf16.mxu0 0
  %487 = vmatpush2.bf16.msra.mxu0 0
  %488 = vmatprep.subr.bf16.mxu0 0
  %489 = vmatpush2.bf16.msra.mxu0 0
  %490 = vmatprep.subr.bf16.mxu0 0
  %491 = vmatpush2.bf16.msra.mxu0 0
  %492 = vmatprep.subr.bf16.mxu0 0
  %493 = vmatpush2.bf16.msra.mxu0 0
  %494 = vmatprep.subr.bf16.mxu0 0
  %495 = vmatpush2.bf16.msra.mxu0 0
  %496 = vmatprep.mubr.bf16.mxu0 0
  %497 = vmatmul.mubr.bf16.gmra.mxu0 %v230
  %v498 = vpop.f32.mrf.mxu0
  %v499 = vadd.f32 %v435, %v498
  %v500 = vpop.f32.mrf.mxu0
  %v501 = vpop.f32.mrf.mxu0
  %v502 = vpop.f32.mrf.mxu0
  %503 = vdwg.mxu0
  %v508 = vunpack.c.l.b16 %v148
  %v509 = vunpack.c.l.b16 %v149
  %v510 = vunpack.c.l.b16 %v150
  %v511 = vunpack.c.l.b16 %v151
  %v512 = vpack.c.b16 %v509, %v508
  %v513 = vpack.c.b16 %v511, %v510
  %516 = vmatprep.subr.bf16.mxu0 0
  %517 = vmatpush1.bf16.msra.mxu0 0
  %518 = vmatprep.subr.bf16.mxu0 0
  %519 = vmatpush1.bf16.msra.mxu0 0
  %520 = vmatprep.subr.bf16.mxu0 0
  %521 = vmatpush1.bf16.msra.mxu0 0
  %522 = vmatprep.subr.bf16.mxu0 0
  %523 = vmatpush1.bf16.msra.mxu0 0
  %524 = vmatprep.subr.bf16.mxu0 0
  %525 = vmatpush1.bf16.msra.mxu0 0
  %526 = vmatprep.subr.bf16.mxu0 0
  %527 = vmatpush1.bf16.msra.mxu0 0
  %528 = vmatprep.subr.bf16.mxu0 0
  %529 = vmatpush1.bf16.msra.mxu0 %v513
  %530 = vmatprep.subr.bf16.mxu0 0
  %531 = vmatpush1.bf16.msra.mxu0 %v512
  %532 = vmatprep.subr.bf16.mxu0 0
  %533 = vmatpush2.bf16.msra.mxu0 0
  %534 = vmatprep.subr.bf16.mxu0 0
  %535 = vmatpush2.bf16.msra.mxu0 0
  %536 = vmatprep.subr.bf16.mxu0 0
  %537 = vmatpush2.bf16.msra.mxu0 0
  %538 = vmatprep.subr.bf16.mxu0 0
  %539 = vmatpush2.bf16.msra.mxu0 0
  %540 = vmatprep.subr.bf16.mxu0 0
  %541 = vmatpush2.bf16.msra.mxu0 0
  %542 = vmatprep.subr.bf16.mxu0 0
  %543 = vmatpush2.bf16.msra.mxu0 0
  %544 = vmatprep.subr.bf16.mxu0 0
  %545 = vmatpush2.bf16.msra.mxu0 0
  %546 = vmatprep.subr.bf16.mxu0 0
  %547 = vmatpush2.bf16.msra.mxu0 0
  %548 = vmatprep.mubr.bf16.mxu0 0
  %549 = vmatmul.mubr.bf16.gmra.mxu0 %v230
  %v550 = vpop.f32.mrf.mxu0
  %v551 = vadd.f32 %v439, %v550
  %v552 = vpop.f32.mrf.mxu0
  %v553 = vpop.f32.mrf.mxu0
  %v554 = vpop.f32.mrf.mxu0
  %555 = vdwg.mxu0
  %v560 = vunpack.c.l.b16 %v152
  %v561 = vunpack.c.l.b16 %v153
  %v562 = vunpack.c.l.b16 %v154
  %v563 = vunpack.c.l.b16 %v155
  %v564 = vpack.c.b16 %v561, %v560
  %v565 = vpack.c.b16 %v563, %v562
  %568 = vmatprep.subr.bf16.mxu0 0
  %569 = vmatpush1.bf16.msra.mxu0 0
  %570 = vmatprep.subr.bf16.mxu0 0
  %571 = vmatpush1.bf16.msra.mxu0 0
  %572 = vmatprep.subr.bf16.mxu0 0
  %573 = vmatpush1.bf16.msra.mxu0 0
  %574 = vmatprep.subr.bf16.mxu0 0
  %575 = vmatpush1.bf16.msra.mxu0 0
  %576 = vmatprep.subr.bf16.mxu0 0
  %577 = vmatpush1.bf16.msra.mxu0 0
  %578 = vmatprep.subr.bf16.mxu0 0
  %579 = vmatpush1.bf16.msra.mxu0 0
  %580 = vmatprep.subr.bf16.mxu0 0
  %581 = vmatpush1.bf16.msra.mxu0 %v565
  %582 = vmatprep.subr.bf16.mxu0 0
  %583 = vmatpush1.bf16.msra.mxu0 %v564
  %584 = vmatprep.subr.bf16.mxu0 0
  %585 = vmatpush2.bf16.msra.mxu0 0
  %586 = vmatprep.subr.bf16.mxu0 0
  %587 = vmatpush2.bf16.msra.mxu0 0
  %588 = vmatprep.subr.bf16.mxu0 0
  %589 = vmatpush2.bf16.msra.mxu0 0
  %590 = vmatprep.subr.bf16.mxu0 0
  %591 = vmatpush2.bf16.msra.mxu0 0
  %592 = vmatprep.subr.bf16.mxu0 0
  %593 = vmatpush2.bf16.msra.mxu0 0
  %594 = vmatprep.subr.bf16.mxu0 0
  %595 = vmatpush2.bf16.msra.mxu0 0
  %596 = vmatprep.subr.bf16.mxu0 0
  %597 = vmatpush2.bf16.msra.mxu0 0
  %598 = vmatprep.subr.bf16.mxu0 0
  %599 = vmatpush2.bf16.msra.mxu0 0
  %600 = vmatprep.mubr.bf16.mxu0 0
  %601 = vmatmul.mubr.bf16.gmra.mxu0 %v230
  %v602 = vpop.f32.mrf.mxu0
  %v603 = vadd.f32 %v443, %v602
  %v604 = vpop.f32.mrf.mxu0
  %v605 = vpop.f32.mrf.mxu0
  %v606 = vpop.f32.mrf.mxu0
  %607 = vdwg.mxu0
  %v612 = vunpack.c.l.b16 %v156
  %v613 = vunpack.c.l.b16 %v157
  %v614 = vunpack.c.l.b16 %v158
  %v615 = vunpack.c.l.b16 %v159
  %v616 = vpack.c.b16 %v613, %v612
  %v617 = vpack.c.b16 %v615, %v614
  %620 = vmatprep.subr.bf16.mxu0 0
  %621 = vmatpush1.bf16.msra.mxu0 0
  %622 = vmatprep.subr.bf16.mxu0 0
  %623 = vmatpush1.bf16.msra.mxu0 0
  %624 = vmatprep.subr.bf16.mxu0 0
  %625 = vmatpush1.bf16.msra.mxu0 0
  %626 = vmatprep.subr.bf16.mxu0 0
  %627 = vmatpush1.bf16.msra.mxu0 0
  %628 = vmatprep.subr.bf16.mxu0 0
  %629 = vmatpush1.bf16.msra.mxu0 0
  %630 = vmatprep.subr.bf16.mxu0 0
  %631 = vmatpush1.bf16.msra.mxu0 0
  %632 = vmatprep.subr.bf16.mxu0 0
  %633 = vmatpush1.bf16.msra.mxu0 %v617
  %634 = vmatprep.subr.bf16.mxu0 0
  %635 = vmatpush1.bf16.msra.mxu0 %v616
  %636 = vmatprep.subr.bf16.mxu0 0
  %637 = vmatpush2.bf16.msra.mxu0 0
  %638 = vmatprep.subr.bf16.mxu0 0
  %639 = vmatpush2.bf16.msra.mxu0 0
  %640 = vmatprep.subr.bf16.mxu0 0
  %641 = vmatpush2.bf16.msra.mxu0 0
  %642 = vmatprep.subr.bf16.mxu0 0
  %643 = vmatpush2.bf16.msra.mxu0 0
  %644 = vmatprep.subr.bf16.mxu0 0
  %645 = vmatpush2.bf16.msra.mxu0 0
  %646 = vmatprep.subr.bf16.mxu0 0
  %647 = vmatpush2.bf16.msra.mxu0 0
  %648 = vmatprep.subr.bf16.mxu0 0
  %649 = vmatpush2.bf16.msra.mxu0 0
  %650 = vmatprep.subr.bf16.mxu0 0
  %651 = vmatpush2.bf16.msra.mxu0 0
  %652 = vmatprep.mubr.bf16.mxu0 0
  %653 = vmatmul.mubr.bf16.gmra.mxu0 %v230
  %v654 = vpop.f32.mrf.mxu0
  %v655 = vadd.f32 %v447, %v654
  %v656 = vpop.f32.mrf.mxu0
  %v657 = vpop.f32.mrf.mxu0
  %v658 = vpop.f32.mrf.mxu0
  %659 = vdwg.mxu0
  %v664 = vlaneseq
  %v665 = vshrl.u32 %v664, 7
  %v666 = vsub.s32 0, %v665
  %v667 = vrot.slane %v184, %v666
  %v668 = vlaneseq
  %v669 = vshrl.u32 %v668, 7
  %v670 = vsub.s32 0, %v669
  %v671 = vrot.slane %v185, %v670
  %v672 = vlaneseq
  %v673 = vshrl.u32 %v672, 7
  %v674 = vsub.s32 0, %v673
  %v675 = vrot.slane %v186, %v674
  %v676 = vlaneseq
  %v677 = vshrl.u32 %v676, 7
  %v678 = vsub.s32 0, %v677
  %v679 = vrot.slane %v187, %v678
  %v688 = vunpack.c.l.b16 %v160
  %v689 = vunpack.c.l.b16 %v161
  %v690 = vunpack.c.l.b16 %v162
  %v691 = vunpack.c.l.b16 %v163
  %v692 = vpack.c.b16 %v689, %v688
  %v693 = vpack.c.b16 %v691, %v690
  %696 = vmatprep.subr.bf16.mxu0 0
  %697 = vmatpush1.bf16.msra.mxu0 0
  %698 = vmatprep.subr.bf16.mxu0 0
  %699 = vmatpush1.bf16.msra.mxu0 0
  %700 = vmatprep.subr.bf16.mxu0 0
  %701 = vmatpush1.bf16.msra.mxu0 0
  %702 = vmatprep.subr.bf16.mxu0 0
  %703 = vmatpush1.bf16.msra.mxu0 0
  %704 = vmatprep.subr.bf16.mxu0 0
  %705 = vmatpush1.bf16.msra.mxu0 0
  %706 = vmatprep.subr.bf16.mxu0 0
  %707 = vmatpush1.bf16.msra.mxu0 0
  %708 = vmatprep.subr.bf16.mxu0 0
  %709 = vmatpush1.bf16.msra.mxu0 %v693
  %710 = vmatprep.subr.bf16.mxu0 0
  %711 = vmatpush1.bf16.msra.mxu0 %v692
  %712 = vmatprep.subr.bf16.mxu0 0
  %713 = vmatpush2.bf16.msra.mxu0 0
  %714 = vmatprep.subr.bf16.mxu0 0
  %715 = vmatpush2.bf16.msra.mxu0 0
  %716 = vmatprep.subr.bf16.mxu0 0
  %717 = vmatpush2.bf16.msra.mxu0 0
  %718 = vmatprep.subr.bf16.mxu0 0
  %719 = vmatpush2.bf16.msra.mxu0 0
  %720 = vmatprep.subr.bf16.mxu0 0
  %721 = vmatpush2.bf16.msra.mxu0 0
  %722 = vmatprep.subr.bf16.mxu0 0
  %723 = vmatpush2.bf16.msra.mxu0 0
  %724 = vmatprep.subr.bf16.mxu0 0
  %725 = vmatpush2.bf16.msra.mxu0 0
  %726 = vmatprep.subr.bf16.mxu0 0
  %727 = vmatpush2.bf16.msra.mxu0 0
  %728 = vmatprep.mubr.bf16.mxu0 0
  %729 = vmatmul.mubr.bf16.gmra.mxu0 %v230
  %v730 = vpop.f32.mrf.mxu0
  %v731 = vadd.f32 %v667, %v730
  %v732 = vpop.f32.mrf.mxu0
  %v733 = vpop.f32.mrf.mxu0
  %v734 = vpop.f32.mrf.mxu0
  %735 = vdwg.mxu0
  %v740 = vunpack.c.l.b16 %v164
  %v741 = vunpack.c.l.b16 %v165
  %v742 = vunpack.c.l.b16 %v166
  %v743 = vunpack.c.l.b16 %v167
  %v744 = vpack.c.b16 %v741, %v740
  %v745 = vpack.c.b16 %v743, %v742
  %748 = vmatprep.subr.bf16.mxu0 0
  %749 = vmatpush1.bf16.msra.mxu0 0
  %750 = vmatprep.subr.bf16.mxu0 0
  %751 = vmatpush1.bf16.msra.mxu0 0
  %752 = vmatprep.subr.bf16.mxu0 0
  %753 = vmatpush1.bf16.msra.mxu0 0
  %754 = vmatprep.subr.bf16.mxu0 0
  %755 = vmatpush1.bf16.msra.mxu0 0
  %756 = vmatprep.subr.bf16.mxu0 0
  %757 = vmatpush1.bf16.msra.mxu0 0
  %758 = vmatprep.subr.bf16.mxu0 0
  %759 = vmatpush1.bf16.msra.mxu0 0
  %760 = vmatprep.subr.bf16.mxu0 0
  %761 = vmatpush1.bf16.msra.mxu0 %v745
  %762 = vmatprep.subr.bf16.mxu0 0
  %763 = vmatpush1.bf16.msra.mxu0 %v744
  %764 = vmatprep.subr.bf16.mxu0 0
  %765 = vmatpush2.bf16.msra.mxu0 0
  %766 = vmatprep.subr.bf16.mxu0 0
  %767 = vmatpush2.bf16.msra.mxu0 0
  %768 = vmatprep.subr.bf16.mxu0 0
  %769 = vmatpush2.bf16.msra.mxu0 0
  %770 = vmatprep.subr.bf16.mxu0 0
  %771 = vmatpush2.bf16.msra.mxu0 0
  %772 = vmatprep.subr.bf16.mxu0 0
  %773 = vmatpush2.bf16.msra.mxu0 0
  %774 = vmatprep.subr.bf16.mxu0 0
  %775 = vmatpush2.bf16.msra.mxu0 0
  %776 = vmatprep.subr.bf16.mxu0 0
  %777 = vmatpush2.bf16.msra.mxu0 0
  %778 = vmatprep.subr.bf16.mxu0 0
  %779 = vmatpush2.bf16.msra.mxu0 0
  %780 = vmatprep.mubr.bf16.mxu0 0
  %781 = vmatmul.mubr.bf16.gmra.mxu0 %v230
  %v782 = vpop.f32.mrf.mxu0
  %v783 = vadd.f32 %v671, %v782
  %v784 = vpop.f32.mrf.mxu0
  %v785 = vpop.f32.mrf.mxu0
  %v786 = vpop.f32.mrf.mxu0
  %787 = vdwg.mxu0
  %v792 = vunpack.c.l.b16 %v168
  %v793 = vunpack.c.l.b16 %v169
  %v794 = vunpack.c.l.b16 %v170
  %v795 = vunpack.c.l.b16 %v171
  %v796 = vpack.c.b16 %v793, %v792
  %v797 = vpack.c.b16 %v795, %v794
  %800 = vmatprep.subr.bf16.mxu0 0
  %801 = vmatpush1.bf16.msra.mxu0 0
  %802 = vmatprep.subr.bf16.mxu0 0
  %803 = vmatpush1.bf16.msra.mxu0 0
  %804 = vmatprep.subr.bf16.mxu0 0
  %805 = vmatpush1.bf16.msra.mxu0 0
  %806 = vmatprep.subr.bf16.mxu0 0
  %807 = vmatpush1.bf16.msra.mxu0 0
  %808 = vmatprep.subr.bf16.mxu0 0
  %809 = vmatpush1.bf16.msra.mxu0 0
  %810 = vmatprep.subr.bf16.mxu0 0
  %811 = vmatpush1.bf16.msra.mxu0 0
  %812 = vmatprep.subr.bf16.mxu0 0
  %813 = vmatpush1.bf16.msra.mxu0 %v797
  %814 = vmatprep.subr.bf16.mxu0 0
  %815 = vmatpush1.bf16.msra.mxu0 %v796
  %816 = vmatprep.subr.bf16.mxu0 0
  %817 = vmatpush2.bf16.msra.mxu0 0
  %818 = vmatprep.subr.bf16.mxu0 0
  %819 = vmatpush2.bf16.msra.mxu0 0
  %820 = vmatprep.subr.bf16.mxu0 0
  %821 = vmatpush2.bf16.msra.mxu0 0
  %822 = vmatprep.subr.bf16.mxu0 0
  %823 = vmatpush2.bf16.msra.mxu0 0
  %824 = vmatprep.subr.bf16.mxu0 0
  %825 = vmatpush2.bf16.msra.mxu0 0
  %826 = vmatprep.subr.bf16.mxu0 0
  %827 = vmatpush2.bf16.msra.mxu0 0
  %828 = vmatprep.subr.bf16.mxu0 0
  %829 = vmatpush2.bf16.msra.mxu0 0
  %830 = vmatprep.subr.bf16.mxu0 0
  %831 = vmatpush2.bf16.msra.mxu0 0
  %832 = vmatprep.mubr.bf16.mxu0 0
  %833 = vmatmul.mubr.bf16.gmra.mxu0 %v230
  %v834 = vpop.f32.mrf.mxu0
  %v835 = vadd.f32 %v675, %v834
  %v836 = vpop.f32.mrf.mxu0
  %v837 = vpop.f32.mrf.mxu0
  %v838 = vpop.f32.mrf.mxu0
  %839 = vdwg.mxu0
  %v844 = vunpack.c.l.b16 %v172
  %v845 = vunpack.c.l.b16 %v173
  %v846 = vunpack.c.l.b16 %v174
  %v847 = vunpack.c.l.b16 %v175
  %v848 = vpack.c.b16 %v845, %v844
  %v849 = vpack.c.b16 %v847, %v846
  %852 = vmatprep.subr.bf16.mxu0 0
  %853 = vmatpush1.bf16.msra.mxu0 0
  %854 = vmatprep.subr.bf16.mxu0 0
  %855 = vmatpush1.bf16.msra.mxu0 0
  %856 = vmatprep.subr.bf16.mxu0 0
  %857 = vmatpush1.bf16.msra.mxu0 0
  %858 = vmatprep.subr.bf16.mxu0 0
  %859 = vmatpush1.bf16.msra.mxu0 0
  %860 = vmatprep.subr.bf16.mxu0 0
  %861 = vmatpush1.bf16.msra.mxu0 0
  %862 = vmatprep.subr.bf16.mxu0 0
  %863 = vmatpush1.bf16.msra.mxu0 0
  %864 = vmatprep.subr.bf16.mxu0 0
  %865 = vmatpush1.bf16.msra.mxu0 %v849
  %866 = vmatprep.subr.bf16.mxu0 0
  %867 = vmatpush1.bf16.msra.mxu0 %v848
  %868 = vmatprep.subr.bf16.mxu0 0
  %869 = vmatpush2.bf16.msra.mxu0 0
  %870 = vmatprep.subr.bf16.mxu0 0
  %871 = vmatpush2.bf16.msra.mxu0 0
  %872 = vmatprep.subr.bf16.mxu0 0
  %873 = vmatpush2.bf16.msra.mxu0 0
  %874 = vmatprep.subr.bf16.mxu0 0
  %875 = vmatpush2.bf16.msra.mxu0 0
  %876 = vmatprep.subr.bf16.mxu0 0
  %877 = vmatpush2.bf16.msra.mxu0 0
  %878 = vmatprep.subr.bf16.mxu0 0
  %879 = vmatpush2.bf16.msra.mxu0 0
  %880 = vmatprep.subr.bf16.mxu0 0
  %881 = vmatpush2.bf16.msra.mxu0 0
  %882 = vmatprep.subr.bf16.mxu0 0
  %883 = vmatpush2.bf16.msra.mxu0 0
  %884 = vmatprep.mubr.bf16.mxu0 0
  %885 = vmatmul.mubr.bf16.gmra.mxu0 %v230
  %v886 = vpop.f32.mrf.mxu0
  %v887 = vadd.f32 %v679, %v886
  %v888 = vpop.f32.mrf.mxu0
  %v889 = vpop.f32.mrf.mxu0
  %v890 = vpop.f32.mrf.mxu0
  %891 = vdwg.mxu0
  %v892 = vpack.c.bf16 %v267, %v267
  %v893 = vpack.c.bf16 %v319, %v319
  %v894 = vpack.c.bf16 %v371, %v371
  %v895 = vpack.c.bf16 %v423, %v423
  %v896 = vpack.c.bf16 %v499, %v499
  %v897 = vpack.c.bf16 %v551, %v551
  %v898 = vpack.c.bf16 %v603, %v603
  %v899 = vpack.c.bf16 %v655, %v655
  %v901 = vlaneseq
  %v902 = vshrl.u32 %v901, 7
  %v903 = vsub.s32 0, %v902
  %v904 = vrot.slane %v126, %v903
  %vm906 = vcmask 64512
  %v908 = vsel %vm906, %v892, 0
  %v911 = vsel %vm906, %v896, 0
  %913 = vmatprep.subr.bf16.mxu0 0
  %914 = vmatpush1.bf16.xpose.msra.mxu0 0
  %915 = vmatprep.subr.bf16.mxu0 0
  %916 = vmatpush1.bf16.xpose.msra.mxu0 0
  %917 = vmatprep.subr.bf16.mxu0 0
  %918 = vmatpush1.bf16.xpose.msra.mxu0 0
  %919 = vmatprep.subr.bf16.mxu0 0
  %920 = vmatpush1.bf16.xpose.msra.mxu0 0
  %921 = vmatprep.subr.bf16.mxu0 0
  %922 = vmatpush1.bf16.xpose.msra.mxu0 0
  %923 = vmatprep.subr.bf16.mxu0 0
  %924 = vmatpush1.bf16.xpose.msra.mxu0 0
  %925 = vmatprep.subr.bf16.mxu0 0
  %926 = vmatpush1.bf16.xpose.msra.mxu0 0
  %927 = vmatprep.subr.bf16.mxu0 0
  %928 = vmatpush1.bf16.xpose.msra.mxu0 %v911
  %929 = vmatprep.subr.bf16.mxu0 0
  %930 = vmatpush2.bf16.xpose.msra.mxu0 0
  %931 = vmatprep.subr.bf16.mxu0 0
  %932 = vmatpush2.bf16.xpose.msra.mxu0 0
  %933 = vmatprep.subr.bf16.mxu0 0
  %934 = vmatpush2.bf16.xpose.msra.mxu0 0
  %935 = vmatprep.subr.bf16.mxu0 0
  %936 = vmatpush2.bf16.xpose.msra.mxu0 0
  %937 = vmatprep.subr.bf16.mxu0 0
  %938 = vmatpush2.bf16.xpose.msra.mxu0 0
  %939 = vmatprep.subr.bf16.mxu0 0
  %940 = vmatpush2.bf16.xpose.msra.mxu0 0
  %941 = vmatprep.subr.bf16.mxu0 0
  %942 = vmatpush2.bf16.xpose.msra.mxu0 0
  %943 = vmatprep.subr.bf16.mxu0 0
  %944 = vmatpush2.bf16.xpose.msra.mxu0 0
  %945 = vmatprep.mubr.bf16.mxu0 0
  %946 = vmatmul.mubr.bf16.gmra.mxu0 %v908
  %v947 = vpop.f32.mrf.mxu0
  %v948 = vadd.f32 %v904, %v947
  %v949 = vpop.f32.mrf.mxu0
  %v950 = vpop.f32.mrf.mxu0
  %v951 = vpop.f32.mrf.mxu0
  %952 = vdwg.mxu0
  %v954 = vsel %vm906, %v893, 0
  %v957 = vsel %vm906, %v897, 0
  %959 = vmatprep.subr.bf16.mxu0 0
  %960 = vmatpush1.bf16.xpose.msra.mxu0 0
  %961 = vmatprep.subr.bf16.mxu0 0
  %962 = vmatpush1.bf16.xpose.msra.mxu0 0
  %963 = vmatprep.subr.bf16.mxu0 0
  %964 = vmatpush1.bf16.xpose.msra.mxu0 0
  %965 = vmatprep.subr.bf16.mxu0 0
  %966 = vmatpush1.bf16.xpose.msra.mxu0 0
  %967 = vmatprep.subr.bf16.mxu0 0
  %968 = vmatpush1.bf16.xpose.msra.mxu0 0
  %969 = vmatprep.subr.bf16.mxu0 0
  %970 = vmatpush1.bf16.xpose.msra.mxu0 0
  %971 = vmatprep.subr.bf16.mxu0 0
  %972 = vmatpush1.bf16.xpose.msra.mxu0 0
  %973 = vmatprep.subr.bf16.mxu0 0
  %974 = vmatpush1.bf16.xpose.msra.mxu0 %v957
  %975 = vmatprep.subr.bf16.mxu0 0
  %976 = vmatpush2.bf16.xpose.msra.mxu0 0
  %977 = vmatprep.subr.bf16.mxu0 0
  %978 = vmatpush2.bf16.xpose.msra.mxu0 0
  %979 = vmatprep.subr.bf16.mxu0 0
  %980 = vmatpush2.bf16.xpose.msra.mxu0 0
  %981 = vmatprep.subr.bf16.mxu0 0
  %982 = vmatpush2.bf16.xpose.msra.mxu0 0
  %983 = vmatprep.subr.bf16.mxu0 0
  %984 = vmatpush2.bf16.xpose.msra.mxu0 0
  %985 = vmatprep.subr.bf16.mxu0 0
  %986 = vmatpush2.bf16.xpose.msra.mxu0 0
  %987 = vmatprep.subr.bf16.mxu0 0
  %988 = vmatpush2.bf16.xpose.msra.mxu0 0
  %989 = vmatprep.subr.bf16.mxu0 0
  %990 = vmatpush2.bf16.xpose.msra.mxu0 0
  %991 = vmatprep.mubr.bf16.mxu0 0
  %992 = vmatmul.mubr.bf16.gmra.mxu0 %v954
  %v993 = vpop.f32.mrf.mxu0
  %v994 = vadd.f32 %v904, %v993
  %v995 = vpop.f32.mrf.mxu0
  %v996 = vpop.f32.mrf.mxu0
  %v997 = vpop.f32.mrf.mxu0
  %998 = vdwg.mxu0
  %v1000 = vsel %vm906, %v894, 0
  %v1003 = vsel %vm906, %v898, 0
  %1005 = vmatprep.subr.bf16.mxu0 0
  %1006 = vmatpush1.bf16.xpose.msra.mxu0 0
  %1007 = vmatprep.subr.bf16.mxu0 0
  %1008 = vmatpush1.bf16.xpose.msra.mxu0 0
  %1009 = vmatprep.subr.bf16.mxu0 0
  %1010 = vmatpush1.bf16.xpose.msra.mxu0 0
  %1011 = vmatprep.subr.bf16.mxu0 0
  %1012 = vmatpush1.bf16.xpose.msra.mxu0 0
  %1013 = vmatprep.subr.bf16.mxu0 0
  %1014 = vmatpush1.bf16.xpose.msra.mxu0 0
  %1015 = vmatprep.subr.bf16.mxu0 0
  %1016 = vmatpush1.bf16.xpose.msra.mxu0 0
  %1017 = vmatprep.subr.bf16.mxu0 0
  %1018 = vmatpush1.bf16.xpose.msra.mxu0 0
  %1019 = vmatprep.subr.bf16.mxu0 0
  %1020 = vmatpush1.bf16.xpose.msra.mxu0 %v1003
  %1021 = vmatprep.subr.bf16.mxu0 0
  %1022 = vmatpush2.bf16.xpose.msra.mxu0 0
  %1023 = vmatprep.subr.bf16.mxu0 0
  %1024 = vmatpush2.bf16.xpose.msra.mxu0 0
  %1025 = vmatprep.subr.bf16.mxu0 0
  %1026 = vmatpush2.bf16.xpose.msra.mxu0 0
  %1027 = vmatprep.subr.bf16.mxu0 0
  %1028 = vmatpush2.bf16.xpose.msra.mxu0 0
  %1029 = vmatprep.subr.bf16.mxu0 0
  %1030 = vmatpush2.bf16.xpose.msra.mxu0 0
  %1031 = vmatprep.subr.bf16.mxu0 0
  %1032 = vmatpush2.bf16.xpose.msra.mxu0 0
  %1033 = vmatprep.subr.bf16.mxu0 0
  %1034 = vmatpush2.bf16.xpose.msra.mxu0 0
  %1035 = vmatprep.subr.bf16.mxu0 0
  %1036 = vmatpush2.bf16.xpose.msra.mxu0 0
  %1037 = vmatprep.mubr.bf16.mxu0 0
  %1038 = vmatmul.mubr.bf16.gmra.mxu0 %v1000
  %v1039 = vpop.f32.mrf.mxu0
  %v1040 = vadd.f32 %v904, %v1039
  %v1041 = vpop.f32.mrf.mxu0
  %v1042 = vpop.f32.mrf.mxu0
  %v1043 = vpop.f32.mrf.mxu0
  %1044 = vdwg.mxu0
  %v1046 = vsel %vm906, %v895, 0
  %v1049 = vsel %vm906, %v899, 0
  %1051 = vmatprep.subr.bf16.mxu0 0
  %1052 = vmatpush1.bf16.xpose.msra.mxu0 0
  %1053 = vmatprep.subr.bf16.mxu0 0
  %1054 = vmatpush1.bf16.xpose.msra.mxu0 0
  %1055 = vmatprep.subr.bf16.mxu0 0
  %1056 = vmatpush1.bf16.xpose.msra.mxu0 0
  %1057 = vmatprep.subr.bf16.mxu0 0
  %1058 = vmatpush1.bf16.xpose.msra.mxu0 0
  %1059 = vmatprep.subr.bf16.mxu0 0
  %1060 = vmatpush1.bf16.xpose.msra.mxu0 0
  %1061 = vmatprep.subr.bf16.mxu0 0
  %1062 = vmatpush1.bf16.xpose.msra.mxu0 0
  %1063 = vmatprep.subr.bf16.mxu0 0
  %1064 = vmatpush1.bf16.xpose.msra.mxu0 0
  %1065 = vmatprep.subr.bf16.mxu0 0
  %1066 = vmatpush1.bf16.xpose.msra.mxu0 %v1049
  %1067 = vmatprep.subr.bf16.mxu0 0
  %1068 = vmatpush2.bf16.xpose.msra.mxu0 0
  %1069 = vmatprep.subr.bf16.mxu0 0
  %1070 = vmatpush2.bf16.xpose.msra.mxu0 0
  %1071 = vmatprep.subr.bf16.mxu0 0
  %1072 = vmatpush2.bf16.xpose.msra.mxu0 0
  %1073 = vmatprep.subr.bf16.mxu0 0
  %1074 = vmatpush2.bf16.xpose.msra.mxu0 0
  %1075 = vmatprep.subr.bf16.mxu0 0
  %1076 = vmatpush2.bf16.xpose.msra.mxu0 0
  %1077 = vmatprep.subr.bf16.mxu0 0
  %1078 = vmatpush2.bf16.xpose.msra.mxu0 0
  %1079 = vmatprep.subr.bf16.mxu0 0
  %1080 = vmatpush2.bf16.xpose.msra.mxu0 0
  %1081 = vmatprep.subr.bf16.mxu0 0
  %1082 = vmatpush2.bf16.xpose.msra.mxu0 0
  %1083 = vmatprep.mubr.bf16.mxu0 0
  %1084 = vmatmul.mubr.bf16.gmra.mxu0 %v1046
  %v1085 = vpop.f32.mrf.mxu0
  %v1086 = vadd.f32 %v904, %v1085
  %v1087 = vpop.f32.mrf.mxu0
  %v1088 = vpop.f32.mrf.mxu0
  %v1089 = vpop.f32.mrf.mxu0
  %1090 = vdwg.mxu0
  %v1091 = vsel %vm906, %v948, -inf
  %1092 = vmax.xlane.f32.xlu0 %v1091
  %v1093 = vpop.xlane.xlu0 %1092
  %v1094 = vsel %vm906, %v994, -inf
  %1095 = vmax.xlane.f32.xlu0 %v1094
  %v1096 = vpop.xlane.xlu0 %1095
  %v1097 = vsel %vm906, %v1040, -inf
  %1098 = vmax.xlane.f32.xlu0 %v1097
  %v1099 = vpop.xlane.xlu0 %1098
  %v1100 = vsel %vm906, %v1086, -inf
  %1101 = vmax.xlane.f32.xlu0 %v1100
  %v1102 = vpop.xlane.xlu0 %1101
  %v1103 = vsub.f32 %v948, %v1093
  %v1104 = vsub.f32 %v994, %v1096
  %v1105 = vsub.f32 %v1040, %v1099
  %v1106 = vsub.f32 %v1086, %v1102
  %v1107 = vmul.f32 %v1103, 1.442695
  %v1108 = vpow.pop %v1107
  %v1109 = vmul.f32 %v1104, 1.442695
  %v1110 = vpow.pop %v1109
  %v1111 = vmul.f32 %v1105, 1.442695
  %v1112 = vpow.pop %v1111
  %v1113 = vmul.f32 %v1106, 1.442695
  %v1114 = vpow.pop %v1113
  %v1115 = vsel %vm906, %v1108, 0.0
  %1116 = vadd.xlane.f32.xlu0 %v1115
  %v1117 = vpop.xlane.xlu0 %1116
  %v1118 = vsel %vm906, %v1110, 0.0
  %1119 = vadd.xlane.f32.xlu0 %v1118
  %v1120 = vpop.xlane.xlu0 %1119
  %v1121 = vsel %vm906, %v1112, 0.0
  %1122 = vadd.xlane.f32.xlu0 %v1121
  %v1123 = vpop.xlane.xlu0 %1122
  %v1124 = vsel %vm906, %v1114, 0.0
  %1125 = vadd.xlane.f32.xlu0 %v1124
  %v1126 = vpop.xlane.xlu0 %1125
  %v1127 = vrcp.pop %v1117
  %v1128 = vrcp.pop %v1120
  %v1129 = vrcp.pop %v1123
  %v1130 = vrcp.pop %v1126
  %v1131 = vmul.f32 %v1108, %v1127
  %v1132 = vmul.f32 %v1110, %v1128
  %v1133 = vmul.f32 %v1112, %v1129
  %v1134 = vmul.f32 %v1114, %v1130
  %v1135 = vpack.c.bf16 %v1131, %v1131
  %v1136 = vpack.c.bf16 %v1132, %v1132
  %v1137 = vpack.c.bf16 %v1133, %v1133
  %v1138 = vpack.c.bf16 %v1134, %v1134
  %v1139 = vpack.c.bf16 %v731, %v731
  %v1140 = vpack.c.bf16 %v783, %v783
  %v1141 = vpack.c.bf16 %v835, %v835
  %v1142 = vpack.c.bf16 %v887, %v887
  %v1144 = vsel %vm906, %v1135, 0
  %vm1146 = vcmask 1043456
  %v1148 = vsel %vm1146, %v1139, 0
  %1150 = vmatprep.subr.bf16.mxu0 0
  %1151 = vmatpush1.bf16.msra.mxu0 0
  %1152 = vmatprep.subr.bf16.mxu0 0
  %1153 = vmatpush1.bf16.msra.mxu0 0
  %1154 = vmatprep.subr.bf16.mxu0 0
  %1155 = vmatpush1.bf16.msra.mxu0 0
  %1156 = vmatprep.subr.bf16.mxu0 0
  %1157 = vmatpush1.bf16.msra.mxu0 0
  %1158 = vmatprep.subr.bf16.mxu0 0
  %1159 = vmatpush1.bf16.msra.mxu0 0
  %1160 = vmatprep.subr.bf16.mxu0 0
  %1161 = vmatpush1.bf16.msra.mxu0 0
  %1162 = vmatprep.subr.bf16.mxu0 0
  %1163 = vmatpush1.bf16.msra.mxu0 0
  %1164 = vmatprep.subr.bf16.mxu0 0
  %1165 = vmatpush1.bf16.msra.mxu0 %v1148
  %1166 = vmatprep.subr.bf16.mxu0 0
  %1167 = vmatpush2.bf16.msra.mxu0 0
  %1168 = vmatprep.subr.bf16.mxu0 0
  %1169 = vmatpush2.bf16.msra.mxu0 0
  %1170 = vmatprep.subr.bf16.mxu0 0
  %1171 = vmatpush2.bf16.msra.mxu0 0
  %1172 = vmatprep.subr.bf16.mxu0 0
  %1173 = vmatpush2.bf16.msra.mxu0 0
  %1174 = vmatprep.subr.bf16.mxu0 0
  %1175 = vmatpush2.bf16.msra.mxu0 0
  %1176 = vmatprep.subr.bf16.mxu0 0
  %1177 = vmatpush2.bf16.msra.mxu0 0
  %1178 = vmatprep.subr.bf16.mxu0 0
  %1179 = vmatpush2.bf16.msra.mxu0 0
  %1180 = vmatprep.subr.bf16.mxu0 0
  %1181 = vmatpush2.bf16.msra.mxu0 0
  %1182 = vmatprep.mubr.bf16.mxu0 0
  %1183 = vmatmul.mubr.bf16.gmra.mxu0 %v1144
  %v1184 = vpop.f32.mrf.mxu0
  %v1185 = vadd.f32 0.0, %v1184
  %v1186 = vpop.f32.mrf.mxu0
  %v1187 = vpop.f32.mrf.mxu0
  %v1188 = vpop.f32.mrf.mxu0
  %1189 = vdwg.mxu0
  %v1191 = vsel %vm906, %v1136, 0
  %v1194 = vsel %vm1146, %v1140, 0
  %1196 = vmatprep.subr.bf16.mxu0 0
  %1197 = vmatpush1.bf16.msra.mxu0 0
  %1198 = vmatprep.subr.bf16.mxu0 0
  %1199 = vmatpush1.bf16.msra.mxu0 0
  %1200 = vmatprep.subr.bf16.mxu0 0
  %1201 = vmatpush1.bf16.msra.mxu0 0
  %1202 = vmatprep.subr.bf16.mxu0 0
  %1203 = vmatpush1.bf16.msra.mxu0 0
  %1204 = vmatprep.subr.bf16.mxu0 0
  %1205 = vmatpush1.bf16.msra.mxu0 0
  %1206 = vmatprep.subr.bf16.mxu0 0
  %1207 = vmatpush1.bf16.msra.mxu0 0
  %1208 = vmatprep.subr.bf16.mxu0 0
  %1209 = vmatpush1.bf16.msra.mxu0 0
  %1210 = vmatprep.subr.bf16.mxu0 0
  %1211 = vmatpush1.bf16.msra.mxu0 %v1194
  %1212 = vmatprep.subr.bf16.mxu0 0
  %1213 = vmatpush2.bf16.msra.mxu0 0
  %1214 = vmatprep.subr.bf16.mxu0 0
  %1215 = vmatpush2.bf16.msra.mxu0 0
  %1216 = vmatprep.subr.bf16.mxu0 0
  %1217 = vmatpush2.bf16.msra.mxu0 0
  %1218 = vmatprep.subr.bf16.mxu0 0
  %1219 = vmatpush2.bf16.msra.mxu0 0
  %1220 = vmatprep.subr.bf16.mxu0 0
  %1221 = vmatpush2.bf16.msra.mxu0 0
  %1222 = vmatprep.subr.bf16.mxu0 0
  %1223 = vmatpush2.bf16.msra.mxu0 0
  %1224 = vmatprep.subr.bf16.mxu0 0
  %1225 = vmatpush2.bf16.msra.mxu0 0
  %1226 = vmatprep.subr.bf16.mxu0 0
  %1227 = vmatpush2.bf16.msra.mxu0 0
  %1228 = vmatprep.mubr.bf16.mxu0 0
  %1229 = vmatmul.mubr.bf16.gmra.mxu0 %v1191
  %v1230 = vpop.f32.mrf.mxu0
  %v1231 = vadd.f32 0.0, %v1230
  %v1232 = vpop.f32.mrf.mxu0
  %v1233 = vpop.f32.mrf.mxu0
  %v1234 = vpop.f32.mrf.mxu0
  %1235 = vdwg.mxu0
  %v1237 = vsel %vm906, %v1137, 0
  %v1240 = vsel %vm1146, %v1141, 0
  %1242 = vmatprep.subr.bf16.mxu0 0
  %1243 = vmatpush1.bf16.msra.mxu0 0
  %1244 = vmatprep.subr.bf16.mxu0 0
  %1245 = vmatpush1.bf16.msra.mxu0 0
  %1246 = vmatprep.subr.bf16.mxu0 0
  %1247 = vmatpush1.bf16.msra.mxu0 0
  %1248 = vmatprep.subr.bf16.mxu0 0
  %1249 = vmatpush1.bf16.msra.mxu0 0
  %1250 = vmatprep.subr.bf16.mxu0 0
  %1251 = vmatpush1.bf16.msra.mxu0 0
  %1252 = vmatprep.subr.bf16.mxu0 0
  %1253 = vmatpush1.bf16.msra.mxu0 0
  %1254 = vmatprep.subr.bf16.mxu0 0
  %1255 = vmatpush1.bf16.msra.mxu0 0
  %1256 = vmatprep.subr.bf16.mxu0 0
  %1257 = vmatpush1.bf16.msra.mxu0 %v1240
  %1258 = vmatprep.subr.bf16.mxu0 0
  %1259 = vmatpush2.bf16.msra.mxu0 0
  %1260 = vmatprep.subr.bf16.mxu0 0
  %1261 = vmatpush2.bf16.msra.mxu0 0
  %1262 = vmatprep.subr.bf16.mxu0 0
  %1263 = vmatpush2.bf16.msra.mxu0 0
  %1264 = vmatprep.subr.bf16.mxu0 0
  %1265 = vmatpush2.bf16.msra.mxu0 0
  %1266 = vmatprep.subr.bf16.mxu0 0
  %1267 = vmatpush2.bf16.msra.mxu0 0
  %1268 = vmatprep.subr.bf16.mxu0 0
  %1269 = vmatpush2.bf16.msra.mxu0 0
  %1270 = vmatprep.subr.bf16.mxu0 0
  %1271 = vmatpush2.bf16.msra.mxu0 0
  %1272 = vmatprep.subr.bf16.mxu0 0
  %1273 = vmatpush2.bf16.msra.mxu0 0
  %1274 = vmatprep.mubr.bf16.mxu0 0
  %1275 = vmatmul.mubr.bf16.gmra.mxu0 %v1237
  %v1276 = vpop.f32.mrf.mxu0
  %v1277 = vadd.f32 0.0, %v1276
  %v1278 = vpop.f32.mrf.mxu0
  %v1279 = vpop.f32.mrf.mxu0
  %v1280 = vpop.f32.mrf.mxu0
  %1281 = vdwg.mxu0
  %v1283 = vsel %vm906, %v1138, 0
  %v1286 = vsel %vm1146, %v1142, 0
  %1288 = vmatprep.subr.bf16.mxu0 0
  %1289 = vmatpush1.bf16.msra.mxu0 0
  %1290 = vmatprep.subr.bf16.mxu0 0
  %1291 = vmatpush1.bf16.msra.mxu0 0
  %1292 = vmatprep.subr.bf16.mxu0 0
  %1293 = vmatpush1.bf16.msra.mxu0 0
  %1294 = vmatprep.subr.bf16.mxu0 0
  %1295 = vmatpush1.bf16.msra.mxu0 0
  %1296 = vmatprep.subr.bf16.mxu0 0
  %1297 = vmatpush1.bf16.msra.mxu0 0
  %1298 = vmatprep.subr.bf16.mxu0 0
  %1299 = vmatpush1.bf16.msra.mxu0 0
  %1300 = vmatprep.subr.bf16.mxu0 0
  %1301 = vmatpush1.bf16.msra.mxu0 0
  %1302 = vmatprep.subr.bf16.mxu0 0
  %1303 = vmatpush1.bf16.msra.mxu0 %v1286
  %1304 = vmatprep.subr.bf16.mxu0 0
  %1305 = vmatpush2.bf16.msra.mxu0 0
  %1306 = vmatprep.subr.bf16.mxu0 0
  %1307 = vmatpush2.bf16.msra.mxu0 0
  %1308 = vmatprep.subr.bf16.mxu0 0
  %1309 = vmatpush2.bf16.msra.mxu0 0
  %1310 = vmatprep.subr.bf16.mxu0 0
  %1311 = vmatpush2.bf16.msra.mxu0 0
  %1312 = vmatprep.subr.bf16.mxu0 0
  %1313 = vmatpush2.bf16.msra.mxu0 0
  %1314 = vmatprep.subr.bf16.mxu0 0
  %1315 = vmatpush2.bf16.msra.mxu0 0
  %1316 = vmatprep.subr.bf16.mxu0 0
  %1317 = vmatpush2.bf16.msra.mxu0 0
  %1318 = vmatprep.subr.bf16.mxu0 0
  %1319 = vmatpush2.bf16.msra.mxu0 0
  %1320 = vmatprep.mubr.bf16.mxu0 0
  %1321 = vmatmul.mubr.bf16.gmra.mxu0 %v1283
  %v1322 = vpop.f32.mrf.mxu0
  %v1323 = vadd.f32 0.0, %v1322
  %v1324 = vpop.f32.mrf.mxu0
  %v1325 = vpop.f32.mrf.mxu0
  %v1326 = vpop.f32.mrf.mxu0
  %1327 = vdwg.mxu0
  %v1328 = vpack.c.bf16 %v1185, %v1185
  %v1329 = vpack.c.bf16 %v1231, %v1231
  %v1330 = vpack.c.bf16 %v1277, %v1277
  %v1331 = vpack.c.bf16 %v1323, %v1323
  %v1333 = vsel %vm906, %v1328, 0
  %v1336 = vsel %vm1146, %v188, 0
  %1338 = vmatprep.subr.bf16.mxu0 0
  %1339 = vmatpush1.bf16.msra.mxu0 0
  %1340 = vmatprep.subr.bf16.mxu0 0
  %1341 = vmatpush1.bf16.msra.mxu0 0
  %1342 = vmatprep.subr.bf16.mxu0 0
  %1343 = vmatpush1.bf16.msra.mxu0 0
  %1344 = vmatprep.subr.bf16.mxu0 0
  %1345 = vmatpush1.bf16.msra.mxu0 0
  %1346 = vmatprep.subr.bf16.mxu0 0
  %1347 = vmatpush1.bf16.msra.mxu0 0
  %1348 = vmatprep.subr.bf16.mxu0 0
  %1349 = vmatpush1.bf16.msra.mxu0 0
  %1350 = vmatprep.subr.bf16.mxu0 0
  %1351 = vmatpush1.bf16.msra.mxu0 0
  %1352 = vmatprep.subr.bf16.mxu0 0
  %1353 = vmatpush1.bf16.msra.mxu0 %v1336
  %1354 = vmatprep.subr.bf16.mxu0 0
  %1355 = vmatpush2.bf16.msra.mxu0 0
  %1356 = vmatprep.subr.bf16.mxu0 0
  %1357 = vmatpush2.bf16.msra.mxu0 0
  %1358 = vmatprep.subr.bf16.mxu0 0
  %1359 = vmatpush2.bf16.msra.mxu0 0
  %1360 = vmatprep.subr.bf16.mxu0 0
  %1361 = vmatpush2.bf16.msra.mxu0 0
  %1362 = vmatprep.subr.bf16.mxu0 0
  %1363 = vmatpush2.bf16.msra.mxu0 0
  %1364 = vmatprep.subr.bf16.mxu0 0
  %1365 = vmatpush2.bf16.msra.mxu0 0
  %1366 = vmatprep.subr.bf16.mxu0 0
  %1367 = vmatpush2.bf16.msra.mxu0 0
  %1368 = vmatprep.subr.bf16.mxu0 0
  %1369 = vmatpush2.bf16.msra.mxu0 0
  %1370 = vmatprep.mubr.bf16.mxu0 0
  %1371 = vmatmul.mubr.bf16.gmra.mxu0 %v1333
  %v1372 = vpop.f32.mrf.mxu0
  %v1373 = vadd.f32 0.0, %v1372
  %v1374 = vpop.f32.mrf.mxu0
  %v1375 = vpop.f32.mrf.mxu0
  %v1376 = vpop.f32.mrf.mxu0
  %1377 = vdwg.mxu0
  %v1379 = vsel %vm906, %v1329, 0
  %v1382 = vsel %vm1146, %v189, 0
  %1384 = vmatprep.subr.bf16.mxu0 0
  %1385 = vmatpush1.bf16.msra.mxu0 0
  %1386 = vmatprep.subr.bf16.mxu0 0
  %1387 = vmatpush1.bf16.msra.mxu0 0
  %1388 = vmatprep.subr.bf16.mxu0 0
  %1389 = vmatpush1.bf16.msra.mxu0 0
  %1390 = vmatprep.subr.bf16.mxu0 0
  %1391 = vmatpush1.bf16.msra.mxu0 0
  %1392 = vmatprep.subr.bf16.mxu0 0
  %1393 = vmatpush1.bf16.msra.mxu0 0
  %1394 = vmatprep.subr.bf16.mxu0 0
  %1395 = vmatpush1.bf16.msra.mxu0 0
  %1396 = vmatprep.subr.bf16.mxu0 0
  %1397 = vmatpush1.bf16.msra.mxu0 0
  %1398 = vmatprep.subr.bf16.mxu0 0
  %1399 = vmatpush1.bf16.msra.mxu0 %v1382
  %1400 = vmatprep.subr.bf16.mxu0 0
  %1401 = vmatpush2.bf16.msra.mxu0 0
  %1402 = vmatprep.subr.bf16.mxu0 0
  %1403 = vmatpush2.bf16.msra.mxu0 0
  %1404 = vmatprep.subr.bf16.mxu0 0
  %1405 = vmatpush2.bf16.msra.mxu0 0
  %1406 = vmatprep.subr.bf16.mxu0 0
  %1407 = vmatpush2.bf16.msra.mxu0 0
  %1408 = vmatprep.subr.bf16.mxu0 0
  %1409 = vmatpush2.bf16.msra.mxu0 0
  %1410 = vmatprep.subr.bf16.mxu0 0
  %1411 = vmatpush2.bf16.msra.mxu0 0
  %1412 = vmatprep.subr.bf16.mxu0 0
  %1413 = vmatpush2.bf16.msra.mxu0 0
  %1414 = vmatprep.subr.bf16.mxu0 0
  %1415 = vmatpush2.bf16.msra.mxu0 0
  %1416 = vmatprep.mubr.bf16.mxu0 0
  %1417 = vmatmul.mubr.bf16.gmra.mxu0 %v1379
  %v1418 = vpop.f32.mrf.mxu0
  %v1419 = vadd.f32 0.0, %v1418
  %v1420 = vpop.f32.mrf.mxu0
  %v1421 = vpop.f32.mrf.mxu0
  %v1422 = vpop.f32.mrf.mxu0
  %1423 = vdwg.mxu0
  %v1425 = vsel %vm906, %v1330, 0
  %v1428 = vsel %vm1146, %v190, 0
  %1430 = vmatprep.subr.bf16.mxu0 0
  %1431 = vmatpush1.bf16.msra.mxu0 0
  %1432 = vmatprep.subr.bf16.mxu0 0
  %1433 = vmatpush1.bf16.msra.mxu0 0
  %1434 = vmatprep.subr.bf16.mxu0 0
  %1435 = vmatpush1.bf16.msra.mxu0 0
  %1436 = vmatprep.subr.bf16.mxu0 0
  %1437 = vmatpush1.bf16.msra.mxu0 0
  %1438 = vmatprep.subr.bf16.mxu0 0
  %1439 = vmatpush1.bf16.msra.mxu0 0
  %1440 = vmatprep.subr.bf16.mxu0 0
  %1441 = vmatpush1.bf16.msra.mxu0 0
  %1442 = vmatprep.subr.bf16.mxu0 0
  %1443 = vmatpush1.bf16.msra.mxu0 0
  %1444 = vmatprep.subr.bf16.mxu0 0
  %1445 = vmatpush1.bf16.msra.mxu0 %v1428
  %1446 = vmatprep.subr.bf16.mxu0 0
  %1447 = vmatpush2.bf16.msra.mxu0 0
  %1448 = vmatprep.subr.bf16.mxu0 0
  %1449 = vmatpush2.bf16.msra.mxu0 0
  %1450 = vmatprep.subr.bf16.mxu0 0
  %1451 = vmatpush2.bf16.msra.mxu0 0
  %1452 = vmatprep.subr.bf16.mxu0 0
  %1453 = vmatpush2.bf16.msra.mxu0 0
  %1454 = vmatprep.subr.bf16.mxu0 0
  %1455 = vmatpush2.bf16.msra.mxu0 0
  %1456 = vmatprep.subr.bf16.mxu0 0
  %1457 = vmatpush2.bf16.msra.mxu0 0
  %1458 = vmatprep.subr.bf16.mxu0 0
  %1459 = vmatpush2.bf16.msra.mxu0 0
  %1460 = vmatprep.subr.bf16.mxu0 0
  %1461 = vmatpush2.bf16.msra.mxu0 0
  %1462 = vmatprep.mubr.bf16.mxu0 0
  %1463 = vmatmul.mubr.bf16.gmra.mxu0 %v1425
  %v1464 = vpop.f32.mrf.mxu0
  %v1465 = vadd.f32 0.0, %v1464
  %v1466 = vpop.f32.mrf.mxu0
  %v1467 = vpop.f32.mrf.mxu0
  %v1468 = vpop.f32.mrf.mxu0
  %1469 = vdwg.mxu0
  %v1471 = vsel %vm906, %v1331, 0
  %v1474 = vsel %vm1146, %v191, 0
  %1476 = vmatprep.subr.bf16.mxu0 0
  %1477 = vmatpush1.bf16.msra.mxu0 0
  %1478 = vmatprep.subr.bf16.mxu0 0
  %1479 = vmatpush1.bf16.msra.mxu0 0
  %1480 = vmatprep.subr.bf16.mxu0 0
  %1481 = vmatpush1.bf16.msra.mxu0 0
  %1482 = vmatprep.subr.bf16.mxu0 0
  %1483 = vmatpush1.bf16.msra.mxu0 0
  %1484 = vmatprep.subr.bf16.mxu0 0
  %1485 = vmatpush1.bf16.msra.mxu0 0
  %1486 = vmatprep.subr.bf16.mxu0 0
  %1487 = vmatpush1.bf16.msra.mxu0 0
  %1488 = vmatprep.subr.bf16.mxu0 0
  %1489 = vmatpush1.bf16.msra.mxu0 0
  %1490 = vmatprep.subr.bf16.mxu0 0
  %1491 = vmatpush1.bf16.msra.mxu0 %v1474
  %1492 = vmatprep.subr.bf16.mxu0 0
  %1493 = vmatpush2.bf16.msra.mxu0 0
  %1494 = vmatprep.subr.bf16.mxu0 0
  %1495 = vmatpush2.bf16.msra.mxu0 0
  %1496 = vmatprep.subr.bf16.mxu0 0
  %1497 = vmatpush2.bf16.msra.mxu0 0
  %1498 = vmatprep.subr.bf16.mxu0 0
  %1499 = vmatpush2.bf16.msra.mxu0 0
  %1500 = vmatprep.subr.bf16.mxu0 0
  %1501 = vmatpush2.bf16.msra.mxu0 0
  %1502 = vmatprep.subr.bf16.mxu0 0
  %1503 = vmatpush2.bf16.msra.mxu0 0
  %1504 = vmatprep.subr.bf16.mxu0 0
  %1505 = vmatpush2.bf16.msra.mxu0 0
  %1506 = vmatprep.subr.bf16.mxu0 0
  %1507 = vmatpush2.bf16.msra.mxu0 0
  %1508 = vmatprep.mubr.bf16.mxu0 0
  %1509 = vmatmul.mubr.bf16.gmra.mxu0 %v1471
  %v1510 = vpop.f32.mrf.mxu0
  %v1511 = vadd.f32 0.0, %v1510
  %v1512 = vpop.f32.mrf.mxu0
  %v1513 = vpop.f32.mrf.mxu0
  %v1514 = vpop.f32.mrf.mxu0
  %1515 = vdwg.mxu0
  %v1516 = vsel %vm78, %v1373, 0.0
  %v1517 = vsel %vm78, %v1419, 0.0
  %v1518 = vadd.f32 %v1516, %v1517
  %v1519 = vsel %vm78, %v1465, 0.0
  %v1520 = vadd.f32 %v1518, %v1519
  %v1521 = vsel %vm78, %v1511, 0.0
  %v1522 = vadd.f32 %v1520, %v1521
  %v1524 = vrot.slane %v192, 4
  %v1526 = vsel %vm78, %v1524, 0
  %1528 = vmatprep.subr.bf16.mxu0 0
  %1529 = vmatpush1.bf16.msra.mxu0 0
  %1530 = vmatprep.subr.bf16.mxu0 0
  %1531 = vmatpush1.bf16.msra.mxu0 0
  %1532 = vmatprep.subr.bf16.mxu0 0
  %1533 = vmatpush1.bf16.msra.mxu0 0
  %1534 = vmatprep.subr.bf16.mxu0 0
  %1535 = vmatpush1.bf16.msra.mxu0 0
  %1536 = vmatprep.subr.bf16.mxu0 0
  %1537 = vmatpush1.bf16.msra.mxu0 0
  %1538 = vmatprep.subr.bf16.mxu0 0
  %1539 = vmatpush1.bf16.msra.mxu0 0
  %1540 = vmatprep.subr.bf16.mxu0 0
  %1541 = vmatpush1.bf16.msra.mxu0 %v226
  %1542 = vmatprep.subr.bf16.mxu0 0
  %1543 = vmatpush1.bf16.msra.mxu0 %v225
  %1544 = vmatprep.subr.bf16.mxu0 0
  %1545 = vmatpush2.bf16.msra.mxu0 0
  %1546 = vmatprep.subr.bf16.mxu0 0
  %1547 = vmatpush2.bf16.msra.mxu0 0
  %1548 = vmatprep.subr.bf16.mxu0 0
  %1549 = vmatpush2.bf16.msra.mxu0 0
  %1550 = vmatprep.subr.bf16.mxu0 0
  %1551 = vmatpush2.bf16.msra.mxu0 0
  %1552 = vmatprep.subr.bf16.mxu0 0
  %1553 = vmatpush2.bf16.msra.mxu0 0
  %1554 = vmatprep.subr.bf16.mxu0 0
  %1555 = vmatpush2.bf16.msra.mxu0 0
  %1556 = vmatprep.subr.bf16.mxu0 0
  %1557 = vmatpush2.bf16.msra.mxu0 0
  %1558 = vmatprep.subr.bf16.mxu0 0
  %1559 = vmatpush2.bf16.msra.mxu0 0
  %1560 = vmatprep.mubr.bf16.mxu0 0
  %1561 = vmatmul.mubr.bf16.gmra.mxu0 %v1526
  %v1562 = vpop.f32.mrf.mxu0
  %v1563 = vadd.f32 %v200, %v1562
  %v1564 = vpop.f32.mrf.mxu0
  %v1565 = vpop.f32.mrf.mxu0
  %v1566 = vpop.f32.mrf.mxu0
  %1567 = vdwg.mxu0
  %1568 = vmatprep.subr.bf16.mxu0 0
  %1569 = vmatpush1.bf16.msra.mxu0 0
  %1570 = vmatprep.subr.bf16.mxu0 0
  %1571 = vmatpush1.bf16.msra.mxu0 0
  %1572 = vmatprep.subr.bf16.mxu0 0
  %1573 = vmatpush1.bf16.msra.mxu0 0
  %1574 = vmatprep.subr.bf16.mxu0 0
  %1575 = vmatpush1.bf16.msra.mxu0 0
  %1576 = vmatprep.subr.bf16.mxu0 0
  %1577 = vmatpush1.bf16.msra.mxu0 0
  %1578 = vmatprep.subr.bf16.mxu0 0
  %1579 = vmatpush1.bf16.msra.mxu0 0
  %1580 = vmatprep.subr.bf16.mxu0 0
  %1581 = vmatpush1.bf16.msra.mxu0 %v281
  %1582 = vmatprep.subr.bf16.mxu0 0
  %1583 = vmatpush1.bf16.msra.mxu0 %v280
  %1584 = vmatprep.subr.bf16.mxu0 0
  %1585 = vmatpush2.bf16.msra.mxu0 0
  %1586 = vmatprep.subr.bf16.mxu0 0
  %1587 = vmatpush2.bf16.msra.mxu0 0
  %1588 = vmatprep.subr.bf16.mxu0 0
  %1589 = vmatpush2.bf16.msra.mxu0 0
  %1590 = vmatprep.subr.bf16.mxu0 0
  %1591 = vmatpush2.bf16.msra.mxu0 0
  %1592 = vmatprep.subr.bf16.mxu0 0
  %1593 = vmatpush2.bf16.msra.mxu0 0
  %1594 = vmatprep.subr.bf16.mxu0 0
  %1595 = vmatpush2.bf16.msra.mxu0 0
  %1596 = vmatprep.subr.bf16.mxu0 0
  %1597 = vmatpush2.bf16.msra.mxu0 0
  %1598 = vmatprep.subr.bf16.mxu0 0
  %1599 = vmatpush2.bf16.msra.mxu0 0
  %1600 = vmatprep.mubr.bf16.mxu0 0
  %1601 = vmatmul.mubr.bf16.gmra.mxu0 %v1526
  %v1602 = vpop.f32.mrf.mxu0
  %v1603 = vadd.f32 %v204, %v1602
  %v1604 = vpop.f32.mrf.mxu0
  %v1605 = vpop.f32.mrf.mxu0
  %v1606 = vpop.f32.mrf.mxu0
  %1607 = vdwg.mxu0
  %1608 = vmatprep.subr.bf16.mxu0 0
  %1609 = vmatpush1.bf16.msra.mxu0 0
  %1610 = vmatprep.subr.bf16.mxu0 0
  %1611 = vmatpush1.bf16.msra.mxu0 0
  %1612 = vmatprep.subr.bf16.mxu0 0
  %1613 = vmatpush1.bf16.msra.mxu0 0
  %1614 = vmatprep.subr.bf16.mxu0 0
  %1615 = vmatpush1.bf16.msra.mxu0 0
  %1616 = vmatprep.subr.bf16.mxu0 0
  %1617 = vmatpush1.bf16.msra.mxu0 0
  %1618 = vmatprep.subr.bf16.mxu0 0
  %1619 = vmatpush1.bf16.msra.mxu0 0
  %1620 = vmatprep.subr.bf16.mxu0 0
  %1621 = vmatpush1.bf16.msra.mxu0 %v333
  %1622 = vmatprep.subr.bf16.mxu0 0
  %1623 = vmatpush1.bf16.msra.mxu0 %v332
  %1624 = vmatprep.subr.bf16.mxu0 0
  %1625 = vmatpush2.bf16.msra.mxu0 0
  %1626 = vmatprep.subr.bf16.mxu0 0
  %1627 = vmatpush2.bf16.msra.mxu0 0
  %1628 = vmatprep.subr.bf16.mxu0 0
  %1629 = vmatpush2.bf16.msra.mxu0 0
  %1630 = vmatprep.subr.bf16.mxu0 0
  %1631 = vmatpush2.bf16.msra.mxu0 0
  %1632 = vmatprep.subr.bf16.mxu0 0
  %1633 = vmatpush2.bf16.msra.mxu0 0
  %1634 = vmatprep.subr.bf16.mxu0 0
  %1635 = vmatpush2.bf16.msra.mxu0 0
  %1636 = vmatprep.subr.bf16.mxu0 0
  %1637 = vmatpush2.bf16.msra.mxu0 0
  %1638 = vmatprep.subr.bf16.mxu0 0
  %1639 = vmatpush2.bf16.msra.mxu0 0
  %1640 = vmatprep.mubr.bf16.mxu0 0
  %1641 = vmatmul.mubr.bf16.gmra.mxu0 %v1526
  %v1642 = vpop.f32.mrf.mxu0
  %v1643 = vadd.f32 %v208, %v1642
  %v1644 = vpop.f32.mrf.mxu0
  %v1645 = vpop.f32.mrf.mxu0
  %v1646 = vpop.f32.mrf.mxu0
  %1647 = vdwg.mxu0
  %1648 = vmatprep.subr.bf16.mxu0 0
  %1649 = vmatpush1.bf16.msra.mxu0 0
  %1650 = vmatprep.subr.bf16.mxu0 0
  %1651 = vmatpush1.bf16.msra.mxu0 0
  %1652 = vmatprep.subr.bf16.mxu0 0
  %1653 = vmatpush1.bf16.msra.mxu0 0
  %1654 = vmatprep.subr.bf16.mxu0 0
  %1655 = vmatpush1.bf16.msra.mxu0 0
  %1656 = vmatprep.subr.bf16.mxu0 0
  %1657 = vmatpush1.bf16.msra.mxu0 0
  %1658 = vmatprep.subr.bf16.mxu0 0
  %1659 = vmatpush1.bf16.msra.mxu0 0
  %1660 = vmatprep.subr.bf16.mxu0 0
  %1661 = vmatpush1.bf16.msra.mxu0 %v385
  %1662 = vmatprep.subr.bf16.mxu0 0
  %1663 = vmatpush1.bf16.msra.mxu0 %v384
  %1664 = vmatprep.subr.bf16.mxu0 0
  %1665 = vmatpush2.bf16.msra.mxu0 0
  %1666 = vmatprep.subr.bf16.mxu0 0
  %1667 = vmatpush2.bf16.msra.mxu0 0
  %1668 = vmatprep.subr.bf16.mxu0 0
  %1669 = vmatpush2.bf16.msra.mxu0 0
  %1670 = vmatprep.subr.bf16.mxu0 0
  %1671 = vmatpush2.bf16.msra.mxu0 0
  %1672 = vmatprep.subr.bf16.mxu0 0
  %1673 = vmatpush2.bf16.msra.mxu0 0
  %1674 = vmatprep.subr.bf16.mxu0 0
  %1675 = vmatpush2.bf16.msra.mxu0 0
  %1676 = vmatprep.subr.bf16.mxu0 0
  %1677 = vmatpush2.bf16.msra.mxu0 0
  %1678 = vmatprep.subr.bf16.mxu0 0
  %1679 = vmatpush2.bf16.msra.mxu0 0
  %1680 = vmatprep.mubr.bf16.mxu0 0
  %1681 = vmatmul.mubr.bf16.gmra.mxu0 %v1526
  %v1682 = vpop.f32.mrf.mxu0
  %v1683 = vadd.f32 %v212, %v1682
  %v1684 = vpop.f32.mrf.mxu0
  %v1685 = vpop.f32.mrf.mxu0
  %v1686 = vpop.f32.mrf.mxu0
  %1687 = vdwg.mxu0
  %1688 = vmatprep.subr.bf16.mxu0 0
  %1689 = vmatpush1.bf16.msra.mxu0 0
  %1690 = vmatprep.subr.bf16.mxu0 0
  %1691 = vmatpush1.bf16.msra.mxu0 0
  %1692 = vmatprep.subr.bf16.mxu0 0
  %1693 = vmatpush1.bf16.msra.mxu0 0
  %1694 = vmatprep.subr.bf16.mxu0 0
  %1695 = vmatpush1.bf16.msra.mxu0 0
  %1696 = vmatprep.subr.bf16.mxu0 0
  %1697 = vmatpush1.bf16.msra.mxu0 0
  %1698 = vmatprep.subr.bf16.mxu0 0
  %1699 = vmatpush1.bf16.msra.mxu0 0
  %1700 = vmatprep.subr.bf16.mxu0 0
  %1701 = vmatpush1.bf16.msra.mxu0 %v461
  %1702 = vmatprep.subr.bf16.mxu0 0
  %1703 = vmatpush1.bf16.msra.mxu0 %v460
  %1704 = vmatprep.subr.bf16.mxu0 0
  %1705 = vmatpush2.bf16.msra.mxu0 0
  %1706 = vmatprep.subr.bf16.mxu0 0
  %1707 = vmatpush2.bf16.msra.mxu0 0
  %1708 = vmatprep.subr.bf16.mxu0 0
  %1709 = vmatpush2.bf16.msra.mxu0 0
  %1710 = vmatprep.subr.bf16.mxu0 0
  %1711 = vmatpush2.bf16.msra.mxu0 0
  %1712 = vmatprep.subr.bf16.mxu0 0
  %1713 = vmatpush2.bf16.msra.mxu0 0
  %1714 = vmatprep.subr.bf16.mxu0 0
  %1715 = vmatpush2.bf16.msra.mxu0 0
  %1716 = vmatprep.subr.bf16.mxu0 0
  %1717 = vmatpush2.bf16.msra.mxu0 0
  %1718 = vmatprep.subr.bf16.mxu0 0
  %1719 = vmatpush2.bf16.msra.mxu0 0
  %1720 = vmatprep.mubr.bf16.mxu0 0
  %1721 = vmatmul.mubr.bf16.gmra.mxu0 %v1526
  %v1722 = vpop.f32.mrf.mxu0
  %v1723 = vadd.f32 %v435, %v1722
  %v1724 = vpop.f32.mrf.mxu0
  %v1725 = vpop.f32.mrf.mxu0
  %v1726 = vpop.f32.mrf.mxu0
  %1727 = vdwg.mxu0
  %1728 = vmatprep.subr.bf16.mxu0 0
  %1729 = vmatpush1.bf16.msra.mxu0 0
  %1730 = vmatprep.subr.bf16.mxu0 0
  %1731 = vmatpush1.bf16.msra.mxu0 0
  %1732 = vmatprep.subr.bf16.mxu0 0
  %1733 = vmatpush1.bf16.msra.mxu0 0
  %1734 = vmatprep.subr.bf16.mxu0 0
  %1735 = vmatpush1.bf16.msra.mxu0 0
  %1736 = vmatprep.subr.bf16.mxu0 0
  %1737 = vmatpush1.bf16.msra.mxu0 0
  %1738 = vmatprep.subr.bf16.mxu0 0
  %1739 = vmatpush1.bf16.msra.mxu0 0
  %1740 = vmatprep.subr.bf16.mxu0 0
  %1741 = vmatpush1.bf16.msra.mxu0 %v513
  %1742 = vmatprep.subr.bf16.mxu0 0
  %1743 = vmatpush1.bf16.msra.mxu0 %v512
  %1744 = vmatprep.subr.bf16.mxu0 0
  %1745 = vmatpush2.bf16.msra.mxu0 0
  %1746 = vmatprep.subr.bf16.mxu0 0
  %1747 = vmatpush2.bf16.msra.mxu0 0
  %1748 = vmatprep.subr.bf16.mxu0 0
  %1749 = vmatpush2.bf16.msra.mxu0 0
  %1750 = vmatprep.subr.bf16.mxu0 0
  %1751 = vmatpush2.bf16.msra.mxu0 0
  %1752 = vmatprep.subr.bf16.mxu0 0
  %1753 = vmatpush2.bf16.msra.mxu0 0
  %1754 = vmatprep.subr.bf16.mxu0 0
  %1755 = vmatpush2.bf16.msra.mxu0 0
  %1756 = vmatprep.subr.bf16.mxu0 0
  %1757 = vmatpush2.bf16.msra.mxu0 0
  %1758 = vmatprep.subr.bf16.mxu0 0
  %1759 = vmatpush2.bf16.msra.mxu0 0
  %1760 = vmatprep.mubr.bf16.mxu0 0
  %1761 = vmatmul.mubr.bf16.gmra.mxu0 %v1526
  %v1762 = vpop.f32.mrf.mxu0
  %v1763 = vadd.f32 %v439, %v1762
  %v1764 = vpop.f32.mrf.mxu0
  %v1765 = vpop.f32.mrf.mxu0
  %v1766 = vpop.f32.mrf.mxu0
  %1767 = vdwg.mxu0
  %1768 = vmatprep.subr.bf16.mxu0 0
  %1769 = vmatpush1.bf16.msra.mxu0 0
  %1770 = vmatprep.subr.bf16.mxu0 0
  %1771 = vmatpush1.bf16.msra.mxu0 0
  %1772 = vmatprep.subr.bf16.mxu0 0
  %1773 = vmatpush1.bf16.msra.mxu0 0
  %1774 = vmatprep.subr.bf16.mxu0 0
  %1775 = vmatpush1.bf16.msra.mxu0 0
  %1776 = vmatprep.subr.bf16.mxu0 0
  %1777 = vmatpush1.bf16.msra.mxu0 0
  %1778 = vmatprep.subr.bf16.mxu0 0
  %1779 = vmatpush1.bf16.msra.mxu0 0
  %1780 = vmatprep.subr.bf16.mxu0 0
  %1781 = vmatpush1.bf16.msra.mxu0 %v565
  %1782 = vmatprep.subr.bf16.mxu0 0
  %1783 = vmatpush1.bf16.msra.mxu0 %v564
  %1784 = vmatprep.subr.bf16.mxu0 0
  %1785 = vmatpush2.bf16.msra.mxu0 0
  %1786 = vmatprep.subr.bf16.mxu0 0
  %1787 = vmatpush2.bf16.msra.mxu0 0
  %1788 = vmatprep.subr.bf16.mxu0 0
  %1789 = vmatpush2.bf16.msra.mxu0 0
  %1790 = vmatprep.subr.bf16.mxu0 0
  %1791 = vmatpush2.bf16.msra.mxu0 0
  %1792 = vmatprep.subr.bf16.mxu0 0
  %1793 = vmatpush2.bf16.msra.mxu0 0
  %1794 = vmatprep.subr.bf16.mxu0 0
  %1795 = vmatpush2.bf16.msra.mxu0 0
  %1796 = vmatprep.subr.bf16.mxu0 0
  %1797 = vmatpush2.bf16.msra.mxu0 0
  %1798 = vmatprep.subr.bf16.mxu0 0
  %1799 = vmatpush2.bf16.msra.mxu0 0
  %1800 = vmatprep.mubr.bf16.mxu0 0
  %1801 = vmatmul.mubr.bf16.gmra.mxu0 %v1526
  %v1802 = vpop.f32.mrf.mxu0
  %v1803 = vadd.f32 %v443, %v1802
  %v1804 = vpop.f32.mrf.mxu0
  %v1805 = vpop.f32.mrf.mxu0
  %v1806 = vpop.f32.mrf.mxu0
  %1807 = vdwg.mxu0
  %1808 = vmatprep.subr.bf16.mxu0 0
  %1809 = vmatpush1.bf16.msra.mxu0 0
  %1810 = vmatprep.subr.bf16.mxu0 0
  %1811 = vmatpush1.bf16.msra.mxu0 0
  %1812 = vmatprep.subr.bf16.mxu0 0
  %1813 = vmatpush1.bf16.msra.mxu0 0
  %1814 = vmatprep.subr.bf16.mxu0 0
  %1815 = vmatpush1.bf16.msra.mxu0 0
  %1816 = vmatprep.subr.bf16.mxu0 0
  %1817 = vmatpush1.bf16.msra.mxu0 0
  %1818 = vmatprep.subr.bf16.mxu0 0
  %1819 = vmatpush1.bf16.msra.mxu0 0
  %1820 = vmatprep.subr.bf16.mxu0 0
  %1821 = vmatpush1.bf16.msra.mxu0 %v617
  %1822 = vmatprep.subr.bf16.mxu0 0
  %1823 = vmatpush1.bf16.msra.mxu0 %v616
  %1824 = vmatprep.subr.bf16.mxu0 0
  %1825 = vmatpush2.bf16.msra.mxu0 0
  %1826 = vmatprep.subr.bf16.mxu0 0
  %1827 = vmatpush2.bf16.msra.mxu0 0
  %1828 = vmatprep.subr.bf16.mxu0 0
  %1829 = vmatpush2.bf16.msra.mxu0 0
  %1830 = vmatprep.subr.bf16.mxu0 0
  %1831 = vmatpush2.bf16.msra.mxu0 0
  %1832 = vmatprep.subr.bf16.mxu0 0
  %1833 = vmatpush2.bf16.msra.mxu0 0
  %1834 = vmatprep.subr.bf16.mxu0 0
  %1835 = vmatpush2.bf16.msra.mxu0 0
  %1836 = vmatprep.subr.bf16.mxu0 0
  %1837 = vmatpush2.bf16.msra.mxu0 0
  %1838 = vmatprep.subr.bf16.mxu0 0
  %1839 = vmatpush2.bf16.msra.mxu0 0
  %1840 = vmatprep.mubr.bf16.mxu0 0
  %1841 = vmatmul.mubr.bf16.gmra.mxu0 %v1526
  %v1842 = vpop.f32.mrf.mxu0
  %v1843 = vadd.f32 %v447, %v1842
  %v1844 = vpop.f32.mrf.mxu0
  %v1845 = vpop.f32.mrf.mxu0
  %v1846 = vpop.f32.mrf.mxu0
  %1847 = vdwg.mxu0
  %1848 = vmatprep.subr.bf16.mxu0 0
  %1849 = vmatpush1.bf16.msra.mxu0 0
  %1850 = vmatprep.subr.bf16.mxu0 0
  %1851 = vmatpush1.bf16.msra.mxu0 0
  %1852 = vmatprep.subr.bf16.mxu0 0
  %1853 = vmatpush1.bf16.msra.mxu0 0
  %1854 = vmatprep.subr.bf16.mxu0 0
  %1855 = vmatpush1.bf16.msra.mxu0 0
  %1856 = vmatprep.subr.bf16.mxu0 0
  %1857 = vmatpush1.bf16.msra.mxu0 0
  %1858 = vmatprep.subr.bf16.mxu0 0
  %1859 = vmatpush1.bf16.msra.mxu0 0
  %1860 = vmatprep.subr.bf16.mxu0 0
  %1861 = vmatpush1.bf16.msra.mxu0 %v693
  %1862 = vmatprep.subr.bf16.mxu0 0
  %1863 = vmatpush1.bf16.msra.mxu0 %v692
  %1864 = vmatprep.subr.bf16.mxu0 0
  %1865 = vmatpush2.bf16.msra.mxu0 0
  %1866 = vmatprep.subr.bf16.mxu0 0
  %1867 = vmatpush2.bf16.msra.mxu0 0
  %1868 = vmatprep.subr.bf16.mxu0 0
  %1869 = vmatpush2.bf16.msra.mxu0 0
  %1870 = vmatprep.subr.bf16.mxu0 0
  %1871 = vmatpush2.bf16.msra.mxu0 0
  %1872 = vmatprep.subr.bf16.mxu0 0
  %1873 = vmatpush2.bf16.msra.mxu0 0
  %1874 = vmatprep.subr.bf16.mxu0 0
  %1875 = vmatpush2.bf16.msra.mxu0 0
  %1876 = vmatprep.subr.bf16.mxu0 0
  %1877 = vmatpush2.bf16.msra.mxu0 0
  %1878 = vmatprep.subr.bf16.mxu0 0
  %1879 = vmatpush2.bf16.msra.mxu0 0
  %1880 = vmatprep.mubr.bf16.mxu0 0
  %1881 = vmatmul.mubr.bf16.gmra.mxu0 %v1526
  %v1882 = vpop.f32.mrf.mxu0
  %v1883 = vadd.f32 %v667, %v1882
  %v1884 = vpop.f32.mrf.mxu0
  %v1885 = vpop.f32.mrf.mxu0
  %v1886 = vpop.f32.mrf.mxu0
  %1887 = vdwg.mxu0
  %1888 = vmatprep.subr.bf16.mxu0 0
  %1889 = vmatpush1.bf16.msra.mxu0 0
  %1890 = vmatprep.subr.bf16.mxu0 0
  %1891 = vmatpush1.bf16.msra.mxu0 0
  %1892 = vmatprep.subr.bf16.mxu0 0
  %1893 = vmatpush1.bf16.msra.mxu0 0
  %1894 = vmatprep.subr.bf16.mxu0 0
  %1895 = vmatpush1.bf16.msra.mxu0 0
  %1896 = vmatprep.subr.bf16.mxu0 0
  %1897 = vmatpush1.bf16.msra.mxu0 0
  %1898 = vmatprep.subr.bf16.mxu0 0
  %1899 = vmatpush1.bf16.msra.mxu0 0
  %1900 = vmatprep.subr.bf16.mxu0 0
  %1901 = vmatpush1.bf16.msra.mxu0 %v745
  %1902 = vmatprep.subr.bf16.mxu0 0
  %1903 = vmatpush1.bf16.msra.mxu0 %v744
  %1904 = vmatprep.subr.bf16.mxu0 0
  %1905 = vmatpush2.bf16.msra.mxu0 0
  %1906 = vmatprep.subr.bf16.mxu0 0
  %1907 = vmatpush2.bf16.msra.mxu0 0
  %1908 = vmatprep.subr.bf16.mxu0 0
  %1909 = vmatpush2.bf16.msra.mxu0 0
  %1910 = vmatprep.subr.bf16.mxu0 0
  %1911 = vmatpush2.bf16.msra.mxu0 0
  %1912 = vmatprep.subr.bf16.mxu0 0
  %1913 = vmatpush2.bf16.msra.mxu0 0
  %1914 = vmatprep.subr.bf16.mxu0 0
  %1915 = vmatpush2.bf16.msra.mxu0 0
  %1916 = vmatprep.subr.bf16.mxu0 0
  %1917 = vmatpush2.bf16.msra.mxu0 0
  %1918 = vmatprep.subr.bf16.mxu0 0
  %1919 = vmatpush2.bf16.msra.mxu0 0
  %1920 = vmatprep.mubr.bf16.mxu0 0
  %1921 = vmatmul.mubr.bf16.gmra.mxu0 %v1526
  %v1922 = vpop.f32.mrf.mxu0
  %v1923 = vadd.f32 %v671, %v1922
  %v1924 = vpop.f32.mrf.mxu0
  %v1925 = vpop.f32.mrf.mxu0
  %v1926 = vpop.f32.mrf.mxu0
  %1927 = vdwg.mxu0
  %1928 = vmatprep.subr.bf16.mxu0 0
  %1929 = vmatpush1.bf16.msra.mxu0 0
  %1930 = vmatprep.subr.bf16.mxu0 0
  %1931 = vmatpush1.bf16.msra.mxu0 0
  %1932 = vmatprep.subr.bf16.mxu0 0
  %1933 = vmatpush1.bf16.msra.mxu0 0
  %1934 = vmatprep.subr.bf16.mxu0 0
  %1935 = vmatpush1.bf16.msra.mxu0 0
  %1936 = vmatprep.subr.bf16.mxu0 0
  %1937 = vmatpush1.bf16.msra.mxu0 0
  %1938 = vmatprep.subr.bf16.mxu0 0
  %1939 = vmatpush1.bf16.msra.mxu0 0
  %1940 = vmatprep.subr.bf16.mxu0 0
  %1941 = vmatpush1.bf16.msra.mxu0 %v797
  %1942 = vmatprep.subr.bf16.mxu0 0
  %1943 = vmatpush1.bf16.msra.mxu0 %v796
  %1944 = vmatprep.subr.bf16.mxu0 0
  %1945 = vmatpush2.bf16.msra.mxu0 0
  %1946 = vmatprep.subr.bf16.mxu0 0
  %1947 = vmatpush2.bf16.msra.mxu0 0
  %1948 = vmatprep.subr.bf16.mxu0 0
  %1949 = vmatpush2.bf16.msra.mxu0 0
  %1950 = vmatprep.subr.bf16.mxu0 0
  %1951 = vmatpush2.bf16.msra.mxu0 0
  %1952 = vmatprep.subr.bf16.mxu0 0
  %1953 = vmatpush2.bf16.msra.mxu0 0
  %1954 = vmatprep.subr.bf16.mxu0 0
  %1955 = vmatpush2.bf16.msra.mxu0 0
  %1956 = vmatprep.subr.bf16.mxu0 0
  %1957 = vmatpush2.bf16.msra.mxu0 0
  %1958 = vmatprep.subr.bf16.mxu0 0
  %1959 = vmatpush2.bf16.msra.mxu0 0
  %1960 = vmatprep.mubr.bf16.mxu0 0
  %1961 = vmatmul.mubr.bf16.gmra.mxu0 %v1526
  %v1962 = vpop.f32.mrf.mxu0
  %v1963 = vadd.f32 %v675, %v1962
  %v1964 = vpop.f32.mrf.mxu0
  %v1965 = vpop.f32.mrf.mxu0
  %v1966 = vpop.f32.mrf.mxu0
  %1967 = vdwg.mxu0
  %1968 = vmatprep.subr.bf16.mxu0 0
  %1969 = vmatpush1.bf16.msra.mxu0 0
  %1970 = vmatprep.subr.bf16.mxu0 0
  %1971 = vmatpush1.bf16.msra.mxu0 0
  %1972 = vmatprep.subr.bf16.mxu0 0
  %1973 = vmatpush1.bf16.msra.mxu0 0
  %1974 = vmatprep.subr.bf16.mxu0 0
  %1975 = vmatpush1.bf16.msra.mxu0 0
  %1976 = vmatprep.subr.bf16.mxu0 0
  %1977 = vmatpush1.bf16.msra.mxu0 0
  %1978 = vmatprep.subr.bf16.mxu0 0
  %1979 = vmatpush1.bf16.msra.mxu0 0
  %1980 = vmatprep.subr.bf16.mxu0 0
  %1981 = vmatpush1.bf16.msra.mxu0 %v849
  %1982 = vmatprep.subr.bf16.mxu0 0
  %1983 = vmatpush1.bf16.msra.mxu0 %v848
  %1984 = vmatprep.subr.bf16.mxu0 0
  %1985 = vmatpush2.bf16.msra.mxu0 0
  %1986 = vmatprep.subr.bf16.mxu0 0
  %1987 = vmatpush2.bf16.msra.mxu0 0
  %1988 = vmatprep.subr.bf16.mxu0 0
  %1989 = vmatpush2.bf16.msra.mxu0 0
  %1990 = vmatprep.subr.bf16.mxu0 0
  %1991 = vmatpush2.bf16.msra.mxu0 0
  %1992 = vmatprep.subr.bf16.mxu0 0
  %1993 = vmatpush2.bf16.msra.mxu0 0
  %1994 = vmatprep.subr.bf16.mxu0 0
  %1995 = vmatpush2.bf16.msra.mxu0 0
  %1996 = vmatprep.subr.bf16.mxu0 0
  %1997 = vmatpush2.bf16.msra.mxu0 0
  %1998 = vmatprep.subr.bf16.mxu0 0
  %1999 = vmatpush2.bf16.msra.mxu0 0
  %2000 = vmatprep.mubr.bf16.mxu0 0
  %2001 = vmatmul.mubr.bf16.gmra.mxu0 %v1526
  %v2002 = vpop.f32.mrf.mxu0
  %v2003 = vadd.f32 %v679, %v2002
  %v2004 = vpop.f32.mrf.mxu0
  %v2005 = vpop.f32.mrf.mxu0
  %v2006 = vpop.f32.mrf.mxu0
  %2007 = vdwg.mxu0
  %v2008 = vpack.c.bf16 %v1563, %v1563
  %v2009 = vpack.c.bf16 %v1603, %v1603
  %v2010 = vpack.c.bf16 %v1643, %v1643
  %v2011 = vpack.c.bf16 %v1683, %v1683
  %v2012 = vpack.c.bf16 %v1723, %v1723
  %v2013 = vpack.c.bf16 %v1763, %v1763
  %v2014 = vpack.c.bf16 %v1803, %v1803
  %v2015 = vpack.c.bf16 %v1843, %v1843
  %v2017 = vlaneseq
  %v2018 = vshrl.u32 %v2017, 7
  %v2019 = vsub.s32 0, %v2018
  %v2020 = vrot.slane %v127, %v2019
  %v2023 = vsel %vm906, %v2008, 0
  %v2026 = vsel %vm906, %v2012, 0
  %2028 = vmatprep.subr.bf16.mxu0 0
  %2029 = vmatpush1.bf16.xpose.msra.mxu0 0
  %2030 = vmatprep.subr.bf16.mxu0 0
  %2031 = vmatpush1.bf16.xpose.msra.mxu0 0
  %2032 = vmatprep.subr.bf16.mxu0 0
  %2033 = vmatpush1.bf16.xpose.msra.mxu0 0
  %2034 = vmatprep.subr.bf16.mxu0 0
  %2035 = vmatpush1.bf16.xpose.msra.mxu0 0
  %2036 = vmatprep.subr.bf16.mxu0 0
  %2037 = vmatpush1.bf16.xpose.msra.mxu0 0
  %2038 = vmatprep.subr.bf16.mxu0 0
  %2039 = vmatpush1.bf16.xpose.msra.mxu0 0
  %2040 = vmatprep.subr.bf16.mxu0 0
  %2041 = vmatpush1.bf16.xpose.msra.mxu0 0
  %2042 = vmatprep.subr.bf16.mxu0 0
  %2043 = vmatpush1.bf16.xpose.msra.mxu0 %v2026
  %2044 = vmatprep.subr.bf16.mxu0 0
  %2045 = vmatpush2.bf16.xpose.msra.mxu0 0
  %2046 = vmatprep.subr.bf16.mxu0 0
  %2047 = vmatpush2.bf16.xpose.msra.mxu0 0
  %2048 = vmatprep.subr.bf16.mxu0 0
  %2049 = vmatpush2.bf16.xpose.msra.mxu0 0
  %2050 = vmatprep.subr.bf16.mxu0 0
  %2051 = vmatpush2.bf16.xpose.msra.mxu0 0
  %2052 = vmatprep.subr.bf16.mxu0 0
  %2053 = vmatpush2.bf16.xpose.msra.mxu0 0
  %2054 = vmatprep.subr.bf16.mxu0 0
  %2055 = vmatpush2.bf16.xpose.msra.mxu0 0
  %2056 = vmatprep.subr.bf16.mxu0 0
  %2057 = vmatpush2.bf16.xpose.msra.mxu0 0
  %2058 = vmatprep.subr.bf16.mxu0 0
  %2059 = vmatpush2.bf16.xpose.msra.mxu0 0
  %2060 = vmatprep.mubr.bf16.mxu0 0
  %2061 = vmatmul.mubr.bf16.gmra.mxu0 %v2023
  %v2062 = vpop.f32.mrf.mxu0
  %v2063 = vadd.f32 %v2020, %v2062
  %v2064 = vpop.f32.mrf.mxu0
  %v2065 = vpop.f32.mrf.mxu0
  %v2066 = vpop.f32.mrf.mxu0
  %2067 = vdwg.mxu0
  %v2069 = vsel %vm906, %v2009, 0
  %v2072 = vsel %vm906, %v2013, 0
  %2074 = vmatprep.subr.bf16.mxu0 0
  %2075 = vmatpush1.bf16.xpose.msra.mxu0 0
  %2076 = vmatprep.subr.bf16.mxu0 0
  %2077 = vmatpush1.bf16.xpose.msra.mxu0 0
  %2078 = vmatprep.subr.bf16.mxu0 0
  %2079 = vmatpush1.bf16.xpose.msra.mxu0 0
  %2080 = vmatprep.subr.bf16.mxu0 0
  %2081 = vmatpush1.bf16.xpose.msra.mxu0 0
  %2082 = vmatprep.subr.bf16.mxu0 0
  %2083 = vmatpush1.bf16.xpose.msra.mxu0 0
  %2084 = vmatprep.subr.bf16.mxu0 0
  %2085 = vmatpush1.bf16.xpose.msra.mxu0 0
  %2086 = vmatprep.subr.bf16.mxu0 0
  %2087 = vmatpush1.bf16.xpose.msra.mxu0 0
  %2088 = vmatprep.subr.bf16.mxu0 0
  %2089 = vmatpush1.bf16.xpose.msra.mxu0 %v2072
  %2090 = vmatprep.subr.bf16.mxu0 0
  %2091 = vmatpush2.bf16.xpose.msra.mxu0 0
  %2092 = vmatprep.subr.bf16.mxu0 0
  %2093 = vmatpush2.bf16.xpose.msra.mxu0 0
  %2094 = vmatprep.subr.bf16.mxu0 0
  %2095 = vmatpush2.bf16.xpose.msra.mxu0 0
  %2096 = vmatprep.subr.bf16.mxu0 0
  %2097 = vmatpush2.bf16.xpose.msra.mxu0 0
  %2098 = vmatprep.subr.bf16.mxu0 0
  %2099 = vmatpush2.bf16.xpose.msra.mxu0 0
  %2100 = vmatprep.subr.bf16.mxu0 0
  %2101 = vmatpush2.bf16.xpose.msra.mxu0 0
  %2102 = vmatprep.subr.bf16.mxu0 0
  %2103 = vmatpush2.bf16.xpose.msra.mxu0 0
  %2104 = vmatprep.subr.bf16.mxu0 0
  %2105 = vmatpush2.bf16.xpose.msra.mxu0 0
  %2106 = vmatprep.mubr.bf16.mxu0 0
  %2107 = vmatmul.mubr.bf16.gmra.mxu0 %v2069
  %v2108 = vpop.f32.mrf.mxu0
  %v2109 = vadd.f32 %v2020, %v2108
  %v2110 = vpop.f32.mrf.mxu0
  %v2111 = vpop.f32.mrf.mxu0
  %v2112 = vpop.f32.mrf.mxu0
  %2113 = vdwg.mxu0
  %v2115 = vsel %vm906, %v2010, 0
  %v2118 = vsel %vm906, %v2014, 0
  %2120 = vmatprep.subr.bf16.mxu0 0
  %2121 = vmatpush1.bf16.xpose.msra.mxu0 0
  %2122 = vmatprep.subr.bf16.mxu0 0
  %2123 = vmatpush1.bf16.xpose.msra.mxu0 0
  %2124 = vmatprep.subr.bf16.mxu0 0
  %2125 = vmatpush1.bf16.xpose.msra.mxu0 0
  %2126 = vmatprep.subr.bf16.mxu0 0
  %2127 = vmatpush1.bf16.xpose.msra.mxu0 0
  %2128 = vmatprep.subr.bf16.mxu0 0
  %2129 = vmatpush1.bf16.xpose.msra.mxu0 0
  %2130 = vmatprep.subr.bf16.mxu0 0
  %2131 = vmatpush1.bf16.xpose.msra.mxu0 0
  %2132 = vmatprep.subr.bf16.mxu0 0
  %2133 = vmatpush1.bf16.xpose.msra.mxu0 0
  %2134 = vmatprep.subr.bf16.mxu0 0
  %2135 = vmatpush1.bf16.xpose.msra.mxu0 %v2118
  %2136 = vmatprep.subr.bf16.mxu0 0
  %2137 = vmatpush2.bf16.xpose.msra.mxu0 0
  %2138 = vmatprep.subr.bf16.mxu0 0
  %2139 = vmatpush2.bf16.xpose.msra.mxu0 0
  %2140 = vmatprep.subr.bf16.mxu0 0
  %2141 = vmatpush2.bf16.xpose.msra.mxu0 0
  %2142 = vmatprep.subr.bf16.mxu0 0
  %2143 = vmatpush2.bf16.xpose.msra.mxu0 0
  %2144 = vmatprep.subr.bf16.mxu0 0
  %2145 = vmatpush2.bf16.xpose.msra.mxu0 0
  %2146 = vmatprep.subr.bf16.mxu0 0
  %2147 = vmatpush2.bf16.xpose.msra.mxu0 0
  %2148 = vmatprep.subr.bf16.mxu0 0
  %2149 = vmatpush2.bf16.xpose.msra.mxu0 0
  %2150 = vmatprep.subr.bf16.mxu0 0
  %2151 = vmatpush2.bf16.xpose.msra.mxu0 0
  %2152 = vmatprep.mubr.bf16.mxu0 0
  %2153 = vmatmul.mubr.bf16.gmra.mxu0 %v2115
  %v2154 = vpop.f32.mrf.mxu0
  %v2155 = vadd.f32 %v2020, %v2154
  %v2156 = vpop.f32.mrf.mxu0
  %v2157 = vpop.f32.mrf.mxu0
  %v2158 = vpop.f32.mrf.mxu0
  %2159 = vdwg.mxu0
  %v2161 = vsel %vm906, %v2011, 0
  %v2164 = vsel %vm906, %v2015, 0
  %2166 = vmatprep.subr.bf16.mxu0 0
  %2167 = vmatpush1.bf16.xpose.msra.mxu0 0
  %2168 = vmatprep.subr.bf16.mxu0 0
  %2169 = vmatpush1.bf16.xpose.msra.mxu0 0
  %2170 = vmatprep.subr.bf16.mxu0 0
  %2171 = vmatpush1.bf16.xpose.msra.mxu0 0
  %2172 = vmatprep.subr.bf16.mxu0 0
  %2173 = vmatpush1.bf16.xpose.msra.mxu0 0
  %2174 = vmatprep.subr.bf16.mxu0 0
  %2175 = vmatpush1.bf16.xpose.msra.mxu0 0
  %2176 = vmatprep.subr.bf16.mxu0 0
  %2177 = vmatpush1.bf16.xpose.msra.mxu0 0
  %2178 = vmatprep.subr.bf16.mxu0 0
  %2179 = vmatpush1.bf16.xpose.msra.mxu0 0
  %2180 = vmatprep.subr.bf16.mxu0 0
  %2181 = vmatpush1.bf16.xpose.msra.mxu0 %v2164
  %2182 = vmatprep.subr.bf16.mxu0 0
  %2183 = vmatpush2.bf16.xpose.msra.mxu0 0
  %2184 = vmatprep.subr.bf16.mxu0 0
  %2185 = vmatpush2.bf16.xpose.msra.mxu0 0
  %2186 = vmatprep.subr.bf16.mxu0 0
  %2187 = vmatpush2.bf16.xpose.msra.mxu0 0
  %2188 = vmatprep.subr.bf16.mxu0 0
  %2189 = vmatpush2.bf16.xpose.msra.mxu0 0
  %2190 = vmatprep.subr.bf16.mxu0 0
  %2191 = vmatpush2.bf16.xpose.msra.mxu0 0
  %2192 = vmatprep.subr.bf16.mxu0 0
  %2193 = vmatpush2.bf16.xpose.msra.mxu0 0
  %2194 = vmatprep.subr.bf16.mxu0 0
  %2195 = vmatpush2.bf16.xpose.msra.mxu0 0
  %2196 = vmatprep.subr.bf16.mxu0 0
  %2197 = vmatpush2.bf16.xpose.msra.mxu0 0
  %2198 = vmatprep.mubr.bf16.mxu0 0
  %2199 = vmatmul.mubr.bf16.gmra.mxu0 %v2161
  %v2200 = vpop.f32.mrf.mxu0
  %v2201 = vadd.f32 %v2020, %v2200
  %v2202 = vpop.f32.mrf.mxu0
  %v2203 = vpop.f32.mrf.mxu0
  %v2204 = vpop.f32.mrf.mxu0
  %2205 = vdwg.mxu0
  %v2206 = vsel %vm906, %v2063, -inf
  %2207 = vmax.xlane.f32.xlu0 %v2206
  %v2208 = vpop.xlane.xlu0 %2207
  %v2209 = vsel %vm906, %v2109, -inf
  %2210 = vmax.xlane.f32.xlu0 %v2209
  %v2211 = vpop.xlane.xlu0 %2210
  %v2212 = vsel %vm906, %v2155, -inf
  %2213 = vmax.xlane.f32.xlu0 %v2212
  %v2214 = vpop.xlane.xlu0 %2213
  %v2215 = vsel %vm906, %v2201, -inf
  %2216 = vmax.xlane.f32.xlu0 %v2215
  %v2217 = vpop.xlane.xlu0 %2216
  %v2218 = vsub.f32 %v2063, %v2208
  %v2219 = vsub.f32 %v2109, %v2211
  %v2220 = vsub.f32 %v2155, %v2214
  %v2221 = vsub.f32 %v2201, %v2217
  %v2222 = vmul.f32 %v2218, 1.442695
  %v2223 = vpow.pop %v2222
  %v2224 = vmul.f32 %v2219, 1.442695
  %v2225 = vpow.pop %v2224
  %v2226 = vmul.f32 %v2220, 1.442695
  %v2227 = vpow.pop %v2226
  %v2228 = vmul.f32 %v2221, 1.442695
  %v2229 = vpow.pop %v2228
  %v2230 = vsel %vm906, %v2223, 0.0
  %2231 = vadd.xlane.f32.xlu0 %v2230
  %v2232 = vpop.xlane.xlu0 %2231
  %v2233 = vsel %vm906, %v2225, 0.0
  %2234 = vadd.xlane.f32.xlu0 %v2233
  %v2235 = vpop.xlane.xlu0 %2234
  %v2236 = vsel %vm906, %v2227, 0.0
  %2237 = vadd.xlane.f32.xlu0 %v2236
  %v2238 = vpop.xlane.xlu0 %2237
  %v2239 = vsel %vm906, %v2229, 0.0
  %2240 = vadd.xlane.f32.xlu0 %v2239
  %v2241 = vpop.xlane.xlu0 %2240
  %v2242 = vrcp.pop %v2232
  %v2243 = vrcp.pop %v2235
  %v2244 = vrcp.pop %v2238
  %v2245 = vrcp.pop %v2241
  %v2246 = vmul.f32 %v2223, %v2242
  %v2247 = vmul.f32 %v2225, %v2243
  %v2248 = vmul.f32 %v2227, %v2244
  %v2249 = vmul.f32 %v2229, %v2245
  %v2250 = vpack.c.bf16 %v2246, %v2246
  %v2251 = vpack.c.bf16 %v2247, %v2247
  %v2252 = vpack.c.bf16 %v2248, %v2248
  %v2253 = vpack.c.bf16 %v2249, %v2249
  %v2254 = vpack.c.bf16 %v1883, %v1883
  %v2255 = vpack.c.bf16 %v1923, %v1923
  %v2256 = vpack.c.bf16 %v1963, %v1963
  %v2257 = vpack.c.bf16 %v2003, %v2003
  %v2259 = vsel %vm906, %v2250, 0
  %v2262 = vsel %vm1146, %v2254, 0
  %2264 = vmatprep.subr.bf16.mxu0 0
  %2265 = vmatpush1.bf16.msra.mxu0 0
  %2266 = vmatprep.subr.bf16.mxu0 0
  %2267 = vmatpush1.bf16.msra.mxu0 0
  %2268 = vmatprep.subr.bf16.mxu0 0
  %2269 = vmatpush1.bf16.msra.mxu0 0
  %2270 = vmatprep.subr.bf16.mxu0 0
  %2271 = vmatpush1.bf16.msra.mxu0 0
  %2272 = vmatprep.subr.bf16.mxu0 0
  %2273 = vmatpush1.bf16.msra.mxu0 0
  %2274 = vmatprep.subr.bf16.mxu0 0
  %2275 = vmatpush1.bf16.msra.mxu0 0
  %2276 = vmatprep.subr.bf16.mxu0 0
  %2277 = vmatpush1.bf16.msra.mxu0 0
  %2278 = vmatprep.subr.bf16.mxu0 0
  %2279 = vmatpush1.bf16.msra.mxu0 %v2262
  %2280 = vmatprep.subr.bf16.mxu0 0
  %2281 = vmatpush2.bf16.msra.mxu0 0
  %2282 = vmatprep.subr.bf16.mxu0 0
  %2283 = vmatpush2.bf16.msra.mxu0 0
  %2284 = vmatprep.subr.bf16.mxu0 0
  %2285 = vmatpush2.bf16.msra.mxu0 0
  %2286 = vmatprep.subr.bf16.mxu0 0
  %2287 = vmatpush2.bf16.msra.mxu0 0
  %2288 = vmatprep.subr.bf16.mxu0 0
  %2289 = vmatpush2.bf16.msra.mxu0 0
  %2290 = vmatprep.subr.bf16.mxu0 0
  %2291 = vmatpush2.bf16.msra.mxu0 0
  %2292 = vmatprep.subr.bf16.mxu0 0
  %2293 = vmatpush2.bf16.msra.mxu0 0
  %2294 = vmatprep.subr.bf16.mxu0 0
  %2295 = vmatpush2.bf16.msra.mxu0 0
  %2296 = vmatprep.mubr.bf16.mxu0 0
  %2297 = vmatmul.mubr.bf16.gmra.mxu0 %v2259
  %v2298 = vpop.f32.mrf.mxu0
  %v2299 = vadd.f32 0.0, %v2298
  %v2300 = vpop.f32.mrf.mxu0
  %v2301 = vpop.f32.mrf.mxu0
  %v2302 = vpop.f32.mrf.mxu0
  %2303 = vdwg.mxu0
  %v2305 = vsel %vm906, %v2251, 0
  %v2308 = vsel %vm1146, %v2255, 0
  %2310 = vmatprep.subr.bf16.mxu0 0
  %2311 = vmatpush1.bf16.msra.mxu0 0
  %2312 = vmatprep.subr.bf16.mxu0 0
  %2313 = vmatpush1.bf16.msra.mxu0 0
  %2314 = vmatprep.subr.bf16.mxu0 0
  %2315 = vmatpush1.bf16.msra.mxu0 0
  %2316 = vmatprep.subr.bf16.mxu0 0
  %2317 = vmatpush1.bf16.msra.mxu0 0
  %2318 = vmatprep.subr.bf16.mxu0 0
  %2319 = vmatpush1.bf16.msra.mxu0 0
  %2320 = vmatprep.subr.bf16.mxu0 0
  %2321 = vmatpush1.bf16.msra.mxu0 0
  %2322 = vmatprep.subr.bf16.mxu0 0
  %2323 = vmatpush1.bf16.msra.mxu0 0
  %2324 = vmatprep.subr.bf16.mxu0 0
  %2325 = vmatpush1.bf16.msra.mxu0 %v2308
  %2326 = vmatprep.subr.bf16.mxu0 0
  %2327 = vmatpush2.bf16.msra.mxu0 0
  %2328 = vmatprep.subr.bf16.mxu0 0
  %2329 = vmatpush2.bf16.msra.mxu0 0
  %2330 = vmatprep.subr.bf16.mxu0 0
  %2331 = vmatpush2.bf16.msra.mxu0 0
  %2332 = vmatprep.subr.bf16.mxu0 0
  %2333 = vmatpush2.bf16.msra.mxu0 0
  %2334 = vmatprep.subr.bf16.mxu0 0
  %2335 = vmatpush2.bf16.msra.mxu0 0
  %2336 = vmatprep.subr.bf16.mxu0 0
  %2337 = vmatpush2.bf16.msra.mxu0 0
  %2338 = vmatprep.subr.bf16.mxu0 0
  %2339 = vmatpush2.bf16.msra.mxu0 0
  %2340 = vmatprep.subr.bf16.mxu0 0
  %2341 = vmatpush2.bf16.msra.mxu0 0
  %2342 = vmatprep.mubr.bf16.mxu0 0
  %2343 = vmatmul.mubr.bf16.gmra.mxu0 %v2305
  %v2344 = vpop.f32.mrf.mxu0
  %v2345 = vadd.f32 0.0, %v2344
  %v2346 = vpop.f32.mrf.mxu0
  %v2347 = vpop.f32.mrf.mxu0
  %v2348 = vpop.f32.mrf.mxu0
  %2349 = vdwg.mxu0
  %v2351 = vsel %vm906, %v2252, 0
  %v2354 = vsel %vm1146, %v2256, 0
  %2356 = vmatprep.subr.bf16.mxu0 0
  %2357 = vmatpush1.bf16.msra.mxu0 0
  %2358 = vmatprep.subr.bf16.mxu0 0
  %2359 = vmatpush1.bf16.msra.mxu0 0
  %2360 = vmatprep.subr.bf16.mxu0 0
  %2361 = vmatpush1.bf16.msra.mxu0 0
  %2362 = vmatprep.subr.bf16.mxu0 0
  %2363 = vmatpush1.bf16.msra.mxu0 0
  %2364 = vmatprep.subr.bf16.mxu0 0
  %2365 = vmatpush1.bf16.msra.mxu0 0
  %2366 = vmatprep.subr.bf16.mxu0 0
  %2367 = vmatpush1.bf16.msra.mxu0 0
  %2368 = vmatprep.subr.bf16.mxu0 0
  %2369 = vmatpush1.bf16.msra.mxu0 0
  %2370 = vmatprep.subr.bf16.mxu0 0
  %2371 = vmatpush1.bf16.msra.mxu0 %v2354
  %2372 = vmatprep.subr.bf16.mxu0 0
  %2373 = vmatpush2.bf16.msra.mxu0 0
  %2374 = vmatprep.subr.bf16.mxu0 0
  %2375 = vmatpush2.bf16.msra.mxu0 0
  %2376 = vmatprep.subr.bf16.mxu0 0
  %2377 = vmatpush2.bf16.msra.mxu0 0
  %2378 = vmatprep.subr.bf16.mxu0 0
  %2379 = vmatpush2.bf16.msra.mxu0 0
  %2380 = vmatprep.subr.bf16.mxu0 0
  %2381 = vmatpush2.bf16.msra.mxu0 0
  %2382 = vmatprep.subr.bf16.mxu0 0
  %2383 = vmatpush2.bf16.msra.mxu0 0
  %2384 = vmatprep.subr.bf16.mxu0 0
  %2385 = vmatpush2.bf16.msra.mxu0 0
  %2386 = vmatprep.subr.bf16.mxu0 0
  %2387 = vmatpush2.bf16.msra.mxu0 0
  %2388 = vmatprep.mubr.bf16.mxu0 0
  %2389 = vmatmul.mubr.bf16.gmra.mxu0 %v2351
  %v2390 = vpop.f32.mrf.mxu0
  %v2391 = vadd.f32 0.0, %v2390
  %v2392 = vpop.f32.mrf.mxu0
  %v2393 = vpop.f32.mrf.mxu0
  %v2394 = vpop.f32.mrf.mxu0
  %2395 = vdwg.mxu0
  %v2397 = vsel %vm906, %v2253, 0
  %v2400 = vsel %vm1146, %v2257, 0
  %2402 = vmatprep.subr.bf16.mxu0 0
  %2403 = vmatpush1.bf16.msra.mxu0 0
  %2404 = vmatprep.subr.bf16.mxu0 0
  %2405 = vmatpush1.bf16.msra.mxu0 0
  %2406 = vmatprep.subr.bf16.mxu0 0
  %2407 = vmatpush1.bf16.msra.mxu0 0
  %2408 = vmatprep.subr.bf16.mxu0 0
  %2409 = vmatpush1.bf16.msra.mxu0 0
  %2410 = vmatprep.subr.bf16.mxu0 0
  %2411 = vmatpush1.bf16.msra.mxu0 0
  %2412 = vmatprep.subr.bf16.mxu0 0
  %2413 = vmatpush1.bf16.msra.mxu0 0
  %2414 = vmatprep.subr.bf16.mxu0 0
  %2415 = vmatpush1.bf16.msra.mxu0 0
  %2416 = vmatprep.subr.bf16.mxu0 0
  %2417 = vmatpush1.bf16.msra.mxu0 %v2400
  %2418 = vmatprep.subr.bf16.mxu0 0
  %2419 = vmatpush2.bf16.msra.mxu0 0
  %2420 = vmatprep.subr.bf16.mxu0 0
  %2421 = vmatpush2.bf16.msra.mxu0 0
  %2422 = vmatprep.subr.bf16.mxu0 0
  %2423 = vmatpush2.bf16.msra.mxu0 0
  %2424 = vmatprep.subr.bf16.mxu0 0
  %2425 = vmatpush2.bf16.msra.mxu0 0
  %2426 = vmatprep.subr.bf16.mxu0 0
  %2427 = vmatpush2.bf16.msra.mxu0 0
  %2428 = vmatprep.subr.bf16.mxu0 0
  %2429 = vmatpush2.bf16.msra.mxu0 0
  %2430 = vmatprep.subr.bf16.mxu0 0
  %2431 = vmatpush2.bf16.msra.mxu0 0
  %2432 = vmatprep.subr.bf16.mxu0 0
  %2433 = vmatpush2.bf16.msra.mxu0 0
  %2434 = vmatprep.mubr.bf16.mxu0 0
  %2435 = vmatmul.mubr.bf16.gmra.mxu0 %v2397
  %v2436 = vpop.f32.mrf.mxu0
  %v2437 = vadd.f32 0.0, %v2436
  %v2438 = vpop.f32.mrf.mxu0
  %v2439 = vpop.f32.mrf.mxu0
  %v2440 = vpop.f32.mrf.mxu0
  %2441 = vdwg.mxu0
  %v2442 = vpack.c.bf16 %v2299, %v2299
  %v2443 = vpack.c.bf16 %v2345, %v2345
  %v2444 = vpack.c.bf16 %v2391, %v2391
  %v2445 = vpack.c.bf16 %v2437, %v2437
  %v2447 = vsel %vm906, %v2442, 0
  %2449 = vmatprep.subr.bf16.mxu0 0
  %2450 = vmatpush1.bf16.msra.mxu0 0
  %2451 = vmatprep.subr.bf16.mxu0 0
  %2452 = vmatpush1.bf16.msra.mxu0 0
  %2453 = vmatprep.subr.bf16.mxu0 0
  %2454 = vmatpush1.bf16.msra.mxu0 0
  %2455 = vmatprep.subr.bf16.mxu0 0
  %2456 = vmatpush1.bf16.msra.mxu0 0
  %2457 = vmatprep.subr.bf16.mxu0 0
  %2458 = vmatpush1.bf16.msra.mxu0 0
  %2459 = vmatprep.subr.bf16.mxu0 0
  %2460 = vmatpush1.bf16.msra.mxu0 0
  %2461 = vmatprep.subr.bf16.mxu0 0
  %2462 = vmatpush1.bf16.msra.mxu0 0
  %2463 = vmatprep.subr.bf16.mxu0 0
  %2464 = vmatpush1.bf16.msra.mxu0 %v1336
  %2465 = vmatprep.subr.bf16.mxu0 0
  %2466 = vmatpush2.bf16.msra.mxu0 0
  %2467 = vmatprep.subr.bf16.mxu0 0
  %2468 = vmatpush2.bf16.msra.mxu0 0
  %2469 = vmatprep.subr.bf16.mxu0 0
  %2470 = vmatpush2.bf16.msra.mxu0 0
  %2471 = vmatprep.subr.bf16.mxu0 0
  %2472 = vmatpush2.bf16.msra.mxu0 0
  %2473 = vmatprep.subr.bf16.mxu0 0
  %2474 = vmatpush2.bf16.msra.mxu0 0
  %2475 = vmatprep.subr.bf16.mxu0 0
  %2476 = vmatpush2.bf16.msra.mxu0 0
  %2477 = vmatprep.subr.bf16.mxu0 0
  %2478 = vmatpush2.bf16.msra.mxu0 0
  %2479 = vmatprep.subr.bf16.mxu0 0
  %2480 = vmatpush2.bf16.msra.mxu0 0
  %2481 = vmatprep.mubr.bf16.mxu0 0
  %2482 = vmatmul.mubr.bf16.gmra.mxu0 %v2447
  %v2483 = vpop.f32.mrf.mxu0
  %v2484 = vadd.f32 0.0, %v2483
  %v2485 = vpop.f32.mrf.mxu0
  %v2486 = vpop.f32.mrf.mxu0
  %v2487 = vpop.f32.mrf.mxu0
  %2488 = vdwg.mxu0
  %v2490 = vsel %vm906, %v2443, 0
  %2492 = vmatprep.subr.bf16.mxu0 0
  %2493 = vmatpush1.bf16.msra.mxu0 0
  %2494 = vmatprep.subr.bf16.mxu0 0
  %2495 = vmatpush1.bf16.msra.mxu0 0
  %2496 = vmatprep.subr.bf16.mxu0 0
  %2497 = vmatpush1.bf16.msra.mxu0 0
  %2498 = vmatprep.subr.bf16.mxu0 0
  %2499 = vmatpush1.bf16.msra.mxu0 0
  %2500 = vmatprep.subr.bf16.mxu0 0
  %2501 = vmatpush1.bf16.msra.mxu0 0
  %2502 = vmatprep.subr.bf16.mxu0 0
  %2503 = vmatpush1.bf16.msra.mxu0 0
  %2504 = vmatprep.subr.bf16.mxu0 0
  %2505 = vmatpush1.bf16.msra.mxu0 0
  %2506 = vmatprep.subr.bf16.mxu0 0
  %2507 = vmatpush1.bf16.msra.mxu0 %v1382
  %2508 = vmatprep.subr.bf16.mxu0 0
  %2509 = vmatpush2.bf16.msra.mxu0 0
  %2510 = vmatprep.subr.bf16.mxu0 0
  %2511 = vmatpush2.bf16.msra.mxu0 0
  %2512 = vmatprep.subr.bf16.mxu0 0
  %2513 = vmatpush2.bf16.msra.mxu0 0
  %2514 = vmatprep.subr.bf16.mxu0 0
  %2515 = vmatpush2.bf16.msra.mxu0 0
  %2516 = vmatprep.subr.bf16.mxu0 0
  %2517 = vmatpush2.bf16.msra.mxu0 0
  %2518 = vmatprep.subr.bf16.mxu0 0
  %2519 = vmatpush2.bf16.msra.mxu0 0
  %2520 = vmatprep.subr.bf16.mxu0 0
  %2521 = vmatpush2.bf16.msra.mxu0 0
  %2522 = vmatprep.subr.bf16.mxu0 0
  %2523 = vmatpush2.bf16.msra.mxu0 0
  %2524 = vmatprep.mubr.bf16.mxu0 0
  %2525 = vmatmul.mubr.bf16.gmra.mxu0 %v2490
  %v2526 = vpop.f32.mrf.mxu0
  %v2527 = vadd.f32 0.0, %v2526
  %v2528 = vpop.f32.mrf.mxu0
  %v2529 = vpop.f32.mrf.mxu0
  %v2530 = vpop.f32.mrf.mxu0
  %2531 = vdwg.mxu0
  %v2533 = vsel %vm906, %v2444, 0
  %2535 = vmatprep.subr.bf16.mxu0 0
  %2536 = vmatpush1.bf16.msra.mxu0 0
  %2537 = vmatprep.subr.bf16.mxu0 0
  %2538 = vmatpush1.bf16.msra.mxu0 0
  %2539 = vmatprep.subr.bf16.mxu0 0
  %2540 = vmatpush1.bf16.msra.mxu0 0
  %2541 = vmatprep.subr.bf16.mxu0 0
  %2542 = vmatpush1.bf16.msra.mxu0 0
  %2543 = vmatprep.subr.bf16.mxu0 0
  %2544 = vmatpush1.bf16.msra.mxu0 0
  %2545 = vmatprep.subr.bf16.mxu0 0
  %2546 = vmatpush1.bf16.msra.mxu0 0
  %2547 = vmatprep.subr.bf16.mxu0 0
  %2548 = vmatpush1.bf16.msra.mxu0 0
  %2549 = vmatprep.subr.bf16.mxu0 0
  %2550 = vmatpush1.bf16.msra.mxu0 %v1428
  %2551 = vmatprep.subr.bf16.mxu0 0
  %2552 = vmatpush2.bf16.msra.mxu0 0
  %2553 = vmatprep.subr.bf16.mxu0 0
  %2554 = vmatpush2.bf16.msra.mxu0 0
  %2555 = vmatprep.subr.bf16.mxu0 0
  %2556 = vmatpush2.bf16.msra.mxu0 0
  %2557 = vmatprep.subr.bf16.mxu0 0
  %2558 = vmatpush2.bf16.msra.mxu0 0
  %2559 = vmatprep.subr.bf16.mxu0 0
  %2560 = vmatpush2.bf16.msra.mxu0 0
  %2561 = vmatprep.subr.bf16.mxu0 0
  %2562 = vmatpush2.bf16.msra.mxu0 0
  %2563 = vmatprep.subr.bf16.mxu0 0
  %2564 = vmatpush2.bf16.msra.mxu0 0
  %2565 = vmatprep.subr.bf16.mxu0 0
  %2566 = vmatpush2.bf16.msra.mxu0 0
  %2567 = vmatprep.mubr.bf16.mxu0 0
  %2568 = vmatmul.mubr.bf16.gmra.mxu0 %v2533
  %v2569 = vpop.f32.mrf.mxu0
  %v2570 = vadd.f32 0.0, %v2569
  %v2571 = vpop.f32.mrf.mxu0
  %v2572 = vpop.f32.mrf.mxu0
  %v2573 = vpop.f32.mrf.mxu0
  %2574 = vdwg.mxu0
  %v2576 = vsel %vm906, %v2445, 0
  %2578 = vmatprep.subr.bf16.mxu0 0
  %2579 = vmatpush1.bf16.msra.mxu0 0
  %2580 = vmatprep.subr.bf16.mxu0 0
  %2581 = vmatpush1.bf16.msra.mxu0 0
  %2582 = vmatprep.subr.bf16.mxu0 0
  %2583 = vmatpush1.bf16.msra.mxu0 0
  %2584 = vmatprep.subr.bf16.mxu0 0
  %2585 = vmatpush1.bf16.msra.mxu0 0
  %2586 = vmatprep.subr.bf16.mxu0 0
  %2587 = vmatpush1.bf16.msra.mxu0 0
  %2588 = vmatprep.subr.bf16.mxu0 0
  %2589 = vmatpush1.bf16.msra.mxu0 0
  %2590 = vmatprep.subr.bf16.mxu0 0
  %2591 = vmatpush1.bf16.msra.mxu0 0
  %2592 = vmatprep.subr.bf16.mxu0 0
  %2593 = vmatpush1.bf16.msra.mxu0 %v1474
  %2594 = vmatprep.subr.bf16.mxu0 0
  %2595 = vmatpush2.bf16.msra.mxu0 0
  %2596 = vmatprep.subr.bf16.mxu0 0
  %2597 = vmatpush2.bf16.msra.mxu0 0
  %2598 = vmatprep.subr.bf16.mxu0 0
  %2599 = vmatpush2.bf16.msra.mxu0 0
  %2600 = vmatprep.subr.bf16.mxu0 0
  %2601 = vmatpush2.bf16.msra.mxu0 0
  %2602 = vmatprep.subr.bf16.mxu0 0
  %2603 = vmatpush2.bf16.msra.mxu0 0
  %2604 = vmatprep.subr.bf16.mxu0 0
  %2605 = vmatpush2.bf16.msra.mxu0 0
  %2606 = vmatprep.subr.bf16.mxu0 0
  %2607 = vmatpush2.bf16.msra.mxu0 0
  %2608 = vmatprep.subr.bf16.mxu0 0
  %2609 = vmatpush2.bf16.msra.mxu0 0
  %2610 = vmatprep.mubr.bf16.mxu0 0
  %2611 = vmatmul.mubr.bf16.gmra.mxu0 %v2576
  %v2612 = vpop.f32.mrf.mxu0
  %v2613 = vadd.f32 0.0, %v2612
  %v2614 = vpop.f32.mrf.mxu0
  %v2615 = vpop.f32.mrf.mxu0
  %v2616 = vpop.f32.mrf.mxu0
  %2617 = vdwg.mxu0
  %v2618 = vsel %vm78, %v2484, 0.0
  %v2619 = vsel %vm78, %v2527, 0.0
  %v2620 = vadd.f32 %v2618, %v2619
  %v2621 = vsel %vm78, %v2570, 0.0
  %v2622 = vadd.f32 %v2620, %v2621
  %v2623 = vsel %vm78, %v2613, 0.0
  %v2624 = vadd.f32 %v2622, %v2623
  %v2625 = vld [vmem:[%s11] sm:$0x1]
  %v2627 = vlaneseq
  %v2628 = vshrl.u32 %v2627, 7
  %v2629 = vsub.s32 0, %v2628
  %v2630 = vrot.slane %v2625, %v2629
  %v2632 = vadd.f32 %v1522, %v2630
  %v2633 = vadd.f32 %v2624, %v2630
  %v2634 = vadd.f32 %v120, %v2632
  %v2635 = vadd.f32 %v121, %v2633
  %v2636 = vld [vmem:[%s12] sm:$0x1]
  %v2637 = vld [vmem:[%s13] sm:$0x1]
  %v2638 = vsel %vm78, %v2634, 0.0
  %2639 = vadd.xlane.f32.xlu0 %v2638
  %v2640 = vpop.xlane.xlu0 %2639
  %v2641 = vsel %vm78, %v2635, 0.0
  %2642 = vadd.xlane.f32.xlu0 %v2641
  %v2643 = vpop.xlane.xlu0 %2642
  %v2644 = vmul.f32 %v2640, %v85
  %v2645 = vmul.f32 %v2643, %v85
  %v2646 = vsub.f32 %v2634, %v2644
  %v2647 = vsub.f32 %v2635, %v2645
  %v2648 = vmul.f32 %v2646, %v2646
  %v2649 = vmul.f32 %v2647, %v2647
  %v2650 = vsel %vm78, %v2648, 0.0
  %2651 = vadd.xlane.f32.xlu0 %v2650
  %v2652 = vpop.xlane.xlu0 %2651
  %v2653 = vsel %vm78, %v2649, 0.0
  %2654 = vadd.xlane.f32.xlu0 %v2653
  %v2655 = vpop.xlane.xlu0 %2654
  %v2656 = vmul.f32 %v2652, %v85
  %v2657 = vmul.f32 %v2655, %v85
  %v2658 = vadd.f32 %v2656, 1e-12
  %v2659 = vadd.f32 %v2657, 1e-12
  %v2660 = vrsqrt.pop %v2658
  %v2661 = vrsqrt.pop %v2659
  %v2662 = vmul.f32 %v2646, %v2660
  %v2663 = vmul.f32 %v2647, %v2661
  %v2665 = vlaneseq
  %v2666 = vshrl.u32 %v2665, 7
  %v2667 = vsub.s32 0, %v2666
  %v2668 = vrot.slane %v2636, %v2667
  %v2670 = vmul.f32 %v2662, %v2668
  %v2671 = vmul.f32 %v2663, %v2668
  %v2673 = vlaneseq
  %v2674 = vshrl.u32 %v2673, 7
  %v2675 = vsub.s32 0, %v2674
  %v2676 = vrot.slane %v2637, %v2675
  %v2678 = vadd.f32 %v2670, %v2676
  %v2679 = vadd.f32 %v2671, %v2676
  %v2680 = vpack.c.bf16 %v2679, %v2678
  %v2681 = vld [vmem:[%s14] sm:$0xf]
  %v2682 = vld [vmem:[%s14 + $0x4] sm:$0xf]
  %v2683 = vld [vmem:[%s14 + $0x8] sm:$0xf]
  %v2684 = vld [vmem:[%s14 + $0xc] sm:$0xf]
  %v2685 = vld [vmem:[%s15] sm:$0x1]
  %v2687 = vlaneseq
  %v2688 = vshrl.u32 %v2687, 7
  %v2689 = vsub.s32 0, %v2688
  %v2690 = vrot.slane %v2685, %v2689
  %v2696 = vunpack.c.l.b16 %v2681
  %v2697 = vunpack.c.l.b16 %v2682
  %v2698 = vunpack.c.l.b16 %v2683
  %v2699 = vunpack.c.l.b16 %v2684
  %v2700 = vpack.c.b16 %v2697, %v2696
  %v2701 = vpack.c.b16 %v2699, %v2698
  %v2705 = vsel %vm78, %v2680, 0
  %2707 = vmatprep.subr.bf16.mxu0 0
  %2708 = vmatpush1.bf16.msra.mxu0 0
  %2709 = vmatprep.subr.bf16.mxu0 0
  %2710 = vmatpush1.bf16.msra.mxu0 0
  %2711 = vmatprep.subr.bf16.mxu0 0
  %2712 = vmatpush1.bf16.msra.mxu0 0
  %2713 = vmatprep.subr.bf16.mxu0 0
  %2714 = vmatpush1.bf16.msra.mxu0 0
  %2715 = vmatprep.subr.bf16.mxu0 0
  %2716 = vmatpush1.bf16.msra.mxu0 0
  %2717 = vmatprep.subr.bf16.mxu0 0
  %2718 = vmatpush1.bf16.msra.mxu0 0
  %2719 = vmatprep.subr.bf16.mxu0 0
  %2720 = vmatpush1.bf16.msra.mxu0 %v2701
  %2721 = vmatprep.subr.bf16.mxu0 0
  %2722 = vmatpush1.bf16.msra.mxu0 %v2700
  %2723 = vmatprep.subr.bf16.mxu0 0
  %2724 = vmatpush2.bf16.msra.mxu0 0
  %2725 = vmatprep.subr.bf16.mxu0 0
  %2726 = vmatpush2.bf16.msra.mxu0 0
  %2727 = vmatprep.subr.bf16.mxu0 0
  %2728 = vmatpush2.bf16.msra.mxu0 0
  %2729 = vmatprep.subr.bf16.mxu0 0
  %2730 = vmatpush2.bf16.msra.mxu0 0
  %2731 = vmatprep.subr.bf16.mxu0 0
  %2732 = vmatpush2.bf16.msra.mxu0 0
  %2733 = vmatprep.subr.bf16.mxu0 0
  %2734 = vmatpush2.bf16.msra.mxu0 0
  %2735 = vmatprep.subr.bf16.mxu0 0
  %2736 = vmatpush2.bf16.msra.mxu0 0
  %2737 = vmatprep.subr.bf16.mxu0 0
  %2738 = vmatpush2.bf16.msra.mxu0 0
  %2739 = vmatprep.mubr.bf16.mxu0 0
  %2740 = vmatmul.mubr.bf16.gmra.mxu0 %v2705
  %v2741 = vpop.f32.mrf.mxu0
  %v2742 = vadd.f32 %v2690, %v2741
  %v2743 = vpop.f32.mrf.mxu0
  %v2744 = vpop.f32.mrf.mxu0
  %v2745 = vadd.f32 %v2690, %v2744
  %v2746 = vpop.f32.mrf.mxu0
  %2747 = vdwg.mxu0
  %v2748 = vmul.f32 %v2742, 0.5
  %v2749 = vmul.f32 %v2745, 0.5
  %v2750 = vmul.f32 %v2742, 0.044715
  %v2751 = vmul.f32 %v2745, 0.044715
  %v2752 = vmul.f32 %v2750, %v2742
  %v2753 = vmul.f32 %v2751, %v2745
  %v2754 = vmul.f32 %v2752, %v2742
  %v2755 = vmul.f32 %v2753, %v2745
  %v2756 = vadd.f32 %v2742, %v2754
  %v2757 = vadd.f32 %v2745, %v2755
  %v2758 = vmul.f32 %v2756, 0.7978846
  %v2759 = vmul.f32 %v2757, 0.7978846
  %v2760 = vtanh.pop %v2758
  %v2761 = vtanh.pop %v2759
  %v2762 = vadd.f32 %v2760, 1.0
  %v2763 = vadd.f32 %v2761, 1.0
  %v2764 = vmul.f32 %v2748, %v2762
  %v2765 = vmul.f32 %v2749, %v2763
  %v2766 = vpack.c.bf16 %v2765, %v2764
  %v2767 = vld [vmem:[%s16] sm:$0xf]
  %v2768 = vld [vmem:[%s16 + $0x4] sm:$0xf]
  %v2769 = vld [vmem:[%s16 + $0x8] sm:$0xf]
  %v2770 = vld [vmem:[%s16 + $0xc] sm:$0xf]
  %v2771 = vld [vmem:[%s16 + $0x10] sm:$0xf]
  %v2772 = vld [vmem:[%s16 + $0x14] sm:$0xf]
  %v2773 = vld [vmem:[%s16 + $0x18] sm:$0xf]
  %v2774 = vld [vmem:[%s16 + $0x1c] sm:$0xf]
  %v2775 = vld [vmem:[%s17] sm:$0x1]
  %v2777 = vlaneseq
  %v2778 = vshrl.u32 %v2777, 7
  %v2779 = vsub.s32 0, %v2778
  %v2780 = vrot.slane %v2775, %v2779
  %v2790 = vunpack.c.l.b16 %v2767
  %v2791 = vunpack.c.l.b16 %v2768
  %v2792 = vunpack.c.l.b16 %v2769
  %v2793 = vunpack.c.l.b16 %v2770
  %v2794 = vunpack.c.l.b16 %v2771
  %v2795 = vunpack.c.l.b16 %v2772
  %v2796 = vunpack.c.l.b16 %v2773
  %v2797 = vunpack.c.l.b16 %v2774
  %v2798 = vpack.c.b16 %v2791, %v2790
  %v2799 = vpack.c.b16 %v2793, %v2792
  %v2800 = vpack.c.b16 %v2795, %v2794
  %v2801 = vpack.c.b16 %v2797, %v2796
  %vm2806 = vcmask 523264
  %v2808 = vsel %vm2806, %v2766, 0
  %2810 = vmatprep.subr.bf16.mxu0 0
  %2811 = vmatpush1.bf16.msra.mxu0 0
  %2812 = vmatprep.subr.bf16.mxu0 0
  %2813 = vmatpush1.bf16.msra.mxu0 0
  %2814 = vmatprep.subr.bf16.mxu0 0
  %2815 = vmatpush1.bf16.msra.mxu0 0
  %2816 = vmatprep.subr.bf16.mxu0 0
  %2817 = vmatpush1.bf16.msra.mxu0 0
  %2818 = vmatprep.subr.bf16.mxu0 0
  %2819 = vmatpush1.bf16.msra.mxu0 %v2801
  %2820 = vmatprep.subr.bf16.mxu0 0
  %2821 = vmatpush1.bf16.msra.mxu0 %v2800
  %2822 = vmatprep.subr.bf16.mxu0 0
  %2823 = vmatpush1.bf16.msra.mxu0 %v2799
  %2824 = vmatprep.subr.bf16.mxu0 0
  %2825 = vmatpush1.bf16.msra.mxu0 %v2798
  %2826 = vmatprep.subr.bf16.mxu0 0
  %2827 = vmatpush2.bf16.msra.mxu0 0
  %2828 = vmatprep.subr.bf16.mxu0 0
  %2829 = vmatpush2.bf16.msra.mxu0 0
  %2830 = vmatprep.subr.bf16.mxu0 0
  %2831 = vmatpush2.bf16.msra.mxu0 0
  %2832 = vmatprep.subr.bf16.mxu0 0
  %2833 = vmatpush2.bf16.msra.mxu0 0
  %2834 = vmatprep.subr.bf16.mxu0 0
  %2835 = vmatpush2.bf16.msra.mxu0 0
  %2836 = vmatprep.subr.bf16.mxu0 0
  %2837 = vmatpush2.bf16.msra.mxu0 0
  %2838 = vmatprep.subr.bf16.mxu0 0
  %2839 = vmatpush2.bf16.msra.mxu0 0
  %2840 = vmatprep.subr.bf16.mxu0 0
  %2841 = vmatpush2.bf16.msra.mxu0 0
  %2842 = vmatprep.mubr.bf16.mxu0 0
  %2843 = vmatmul.mubr.bf16.gmra.mxu0 %v2808
  %v2844 = vpop.f32.mrf.mxu0
  %v2845 = vadd.f32 %v2780, %v2844
  %v2846 = vpop.f32.mrf.mxu0
  %v2847 = vpop.f32.mrf.mxu0
  %v2848 = vadd.f32 %v2780, %v2847
  %v2849 = vpop.f32.mrf.mxu0
  %2850 = vdwg.mxu0
  %v2851 = vadd.f32 %v2678, %v2845
  %v2852 = vadd.f32 %v2679, %v2848
  %v2853 = vld [vmem:[%s18] sm:$0x1]
  %v2854 = vld [vmem:[%s19] sm:$0x1]
  %v2855 = vsel %vm78, %v2851, 0.0
  %2856 = vadd.xlane.f32.xlu0 %v2855
  %v2857 = vpop.xlane.xlu0 %2856
  %v2858 = vsel %vm78, %v2852, 0.0
  %2859 = vadd.xlane.f32.xlu0 %v2858
  %v2860 = vpop.xlane.xlu0 %2859
  %v2861 = vmul.f32 %v2857, %v85
  %v2862 = vmul.f32 %v2860, %v85
  %v2863 = vsub.f32 %v2851, %v2861
  %v2864 = vsub.f32 %v2852, %v2862
  %v2865 = vmul.f32 %v2863, %v2863
  %v2866 = vmul.f32 %v2864, %v2864
  %v2867 = vsel %vm78, %v2865, 0.0
  %2868 = vadd.xlane.f32.xlu0 %v2867
  %v2869 = vpop.xlane.xlu0 %2868
  %v2870 = vsel %vm78, %v2866, 0.0
  %2871 = vadd.xlane.f32.xlu0 %v2870
  %v2872 = vpop.xlane.xlu0 %2871
  %v2873 = vmul.f32 %v2869, %v85
  %v2874 = vmul.f32 %v2872, %v85
  %v2875 = vadd.f32 %v2873, 1e-12
  %v2876 = vadd.f32 %v2874, 1e-12
  %v2877 = vrsqrt.pop %v2875
  %v2878 = vrsqrt.pop %v2876
  %v2879 = vmul.f32 %v2863, %v2877
  %v2880 = vmul.f32 %v2864, %v2878
  %v2882 = vlaneseq
  %v2883 = vshrl.u32 %v2882, 7
  %v2884 = vsub.s32 0, %v2883
  %v2885 = vrot.slane %v2853, %v2884
  %v2887 = vmul.f32 %v2879, %v2885
  %v2888 = vmul.f32 %v2880, %v2885
  %v2890 = vlaneseq
  %v2891 = vshrl.u32 %v2890, 7
  %v2892 = vsub.s32 0, %v2891
  %v2893 = vrot.slane %v2854, %v2892
  %v2895 = vadd.f32 %v2887, %v2893
  %v2896 = vadd.f32 %v2888, %v2893
  %s2897 = scalar_lea.vmem %s4, 64
  %v2898 = vld [vmem:[%s2897] sm:$0xf]
  %v2899 = vld [vmem:[%s2897 + $0x4] sm:$0xf]
  %v2900 = vld [vmem:[%s2897 + $0x8] sm:$0xf]
  %v2901 = vld [vmem:[%s2897 + $0xc] sm:$0xf]
  %v2902 = vld [vmem:[%s2897 + $0x10] sm:$0xf]
  %v2903 = vld [vmem:[%s2897 + $0x14] sm:$0xf]
  %v2904 = vld [vmem:[%s2897 + $0x18] sm:$0xf]
  %v2905 = vld [vmem:[%s2897 + $0x1c] sm:$0xf]
  %v2906 = vld [vmem:[%s2897 + $0x20] sm:$0xf]
  %v2907 = vld [vmem:[%s2897 + $0x24] sm:$0xf]
  %v2908 = vld [vmem:[%s2897 + $0x28] sm:$0xf]
  %v2909 = vld [vmem:[%s2897 + $0x2c] sm:$0xf]
  %v2910 = vld [vmem:[%s2897 + $0x30] sm:$0xf]
  %v2911 = vld [vmem:[%s2897 + $0x34] sm:$0xf]
  %v2912 = vld [vmem:[%s2897 + $0x38] sm:$0xf]
  %v2913 = vld [vmem:[%s2897 + $0x3c] sm:$0xf]
  %s2914 = scalar_lea.vmem %s6, 64
  %v2915 = vld [vmem:[%s2914] sm:$0xf]
  %v2916 = vld [vmem:[%s2914 + $0x4] sm:$0xf]
  %v2917 = vld [vmem:[%s2914 + $0x8] sm:$0xf]
  %v2918 = vld [vmem:[%s2914 + $0xc] sm:$0xf]
  %v2919 = vld [vmem:[%s2914 + $0x10] sm:$0xf]
  %v2920 = vld [vmem:[%s2914 + $0x14] sm:$0xf]
  %v2921 = vld [vmem:[%s2914 + $0x18] sm:$0xf]
  %v2922 = vld [vmem:[%s2914 + $0x1c] sm:$0xf]
  %v2923 = vld [vmem:[%s2914 + $0x20] sm:$0xf]
  %v2924 = vld [vmem:[%s2914 + $0x24] sm:$0xf]
  %v2925 = vld [vmem:[%s2914 + $0x28] sm:$0xf]
  %v2926 = vld [vmem:[%s2914 + $0x2c] sm:$0xf]
  %v2927 = vld [vmem:[%s2914 + $0x30] sm:$0xf]
  %v2928 = vld [vmem:[%s2914 + $0x34] sm:$0xf]
  %v2929 = vld [vmem:[%s2914 + $0x38] sm:$0xf]
  %v2930 = vld [vmem:[%s2914 + $0x3c] sm:$0xf]
  %s2931 = scalar_lea.vmem %s8, 64
  %v2932 = vld [vmem:[%s2931] sm:$0xf]
  %v2933 = vld [vmem:[%s2931 + $0x4] sm:$0xf]
  %v2934 = vld [vmem:[%s2931 + $0x8] sm:$0xf]
  %v2935 = vld [vmem:[%s2931 + $0xc] sm:$0xf]
  %v2936 = vld [vmem:[%s2931 + $0x10] sm:$0xf]
  %v2937 = vld [vmem:[%s2931 + $0x14] sm:$0xf]
  %v2938 = vld [vmem:[%s2931 + $0x18] sm:$0xf]
  %v2939 = vld [vmem:[%s2931 + $0x1c] sm:$0xf]
  %v2940 = vld [vmem:[%s2931 + $0x20] sm:$0xf]
  %v2941 = vld [vmem:[%s2931 + $0x24] sm:$0xf]
  %v2942 = vld [vmem:[%s2931 + $0x28] sm:$0xf]
  %v2943 = vld [vmem:[%s2931 + $0x2c] sm:$0xf]
  %v2944 = vld [vmem:[%s2931 + $0x30] sm:$0xf]
  %v2945 = vld [vmem:[%s2931 + $0x34] sm:$0xf]
  %v2946 = vld [vmem:[%s2931 + $0x38] sm:$0xf]
  %v2947 = vld [vmem:[%s2931 + $0x3c] sm:$0xf]
  %s2948 = scalar_lea.vmem %s5, 4
  %v2949 = vld [vmem:[%s2948] sm:$0x1]
  %v2950 = vld [vmem:[%s2948 + $0x1] sm:$0x1]
  %v2951 = vld [vmem:[%s2948 + $0x2] sm:$0x1]
  %v2952 = vld [vmem:[%s2948 + $0x3] sm:$0x1]
  %s2953 = scalar_lea.vmem %s7, 4
  %v2954 = vld [vmem:[%s2953] sm:$0x1]
  %v2955 = vld [vmem:[%s2953 + $0x1] sm:$0x1]
  %v2956 = vld [vmem:[%s2953 + $0x2] sm:$0x1]
  %v2957 = vld [vmem:[%s2953 + $0x3] sm:$0x1]
  %s2958 = scalar_lea.vmem %s9, 4
  %v2959 = vld [vmem:[%s2958] sm:$0x1]
  %v2960 = vld [vmem:[%s2958 + $0x1] sm:$0x1]
  %v2961 = vld [vmem:[%s2958 + $0x2] sm:$0x1]
  %v2962 = vld [vmem:[%s2958 + $0x3] sm:$0x1]
  %s2963 = scalar_lea.vmem %s10, 16
  %v2964 = vld [vmem:[%s2963] sm:$0xf]
  %v2965 = vld [vmem:[%s2963 + $0x4] sm:$0xf]
  %v2966 = vld [vmem:[%s2963 + $0x8] sm:$0xf]
  %v2967 = vld [vmem:[%s2963 + $0xc] sm:$0xf]
  %v2968 = vpack.c.bf16 %v2896, %v2895
  %v2973 = vlaneseq
  %v2974 = vshrl.u32 %v2973, 7
  %v2975 = vsub.s32 0, %v2974
  %v2976 = vrot.slane %v2949, %v2975
  %v2977 = vlaneseq
  %v2978 = vshrl.u32 %v2977, 7
  %v2979 = vsub.s32 0, %v2978
  %v2980 = vrot.slane %v2950, %v2979
  %v2981 = vlaneseq
  %v2982 = vshrl.u32 %v2981, 7
  %v2983 = vsub.s32 0, %v2982
  %v2984 = vrot.slane %v2951, %v2983
  %v2985 = vlaneseq
  %v2986 = vshrl.u32 %v2985, 7
  %v2987 = vsub.s32 0, %v2986
  %v2988 = vrot.slane %v2952, %v2987
  %v2997 = vunpack.c.l.b16 %v2898
  %v2998 = vunpack.c.l.b16 %v2899
  %v2999 = vunpack.c.l.b16 %v2900
  %v3000 = vunpack.c.l.b16 %v2901
  %v3001 = vpack.c.b16 %v2998, %v2997
  %v3002 = vpack.c.b16 %v3000, %v2999
  %v3006 = vsel %vm78, %v2968, 0
  %3008 = vmatprep.subr.bf16.mxu0 0
  %3009 = vmatpush1.bf16.msra.mxu0 0
  %3010 = vmatprep.subr.bf16.mxu0 0
  %3011 = vmatpush1.bf16.msra.mxu0 0
  %3012 = vmatprep.subr.bf16.mxu0 0
  %3013 = vmatpush1.bf16.msra.mxu0 0
  %3014 = vmatprep.subr.bf16.mxu0 0
  %3015 = vmatpush1.bf16.msra.mxu0 0
  %3016 = vmatprep.subr.bf16.mxu0 0
  %3017 = vmatpush1.bf16.msra.mxu0 0
  %3018 = vmatprep.subr.bf16.mxu0 0
  %3019 = vmatpush1.bf16.msra.mxu0 0
  %3020 = vmatprep.subr.bf16.mxu0 0
  %3021 = vmatpush1.bf16.msra.mxu0 %v3002
  %3022 = vmatprep.subr.bf16.mxu0 0
  %3023 = vmatpush1.bf16.msra.mxu0 %v3001
  %3024 = vmatprep.subr.bf16.mxu0 0
  %3025 = vmatpush2.bf16.msra.mxu0 0
  %3026 = vmatprep.subr.bf16.mxu0 0
  %3027 = vmatpush2.bf16.msra.mxu0 0
  %3028 = vmatprep.subr.bf16.mxu0 0
  %3029 = vmatpush2.bf16.msra.mxu0 0
  %3030 = vmatprep.subr.bf16.mxu0 0
  %3031 = vmatpush2.bf16.msra.mxu0 0
  %3032 = vmatprep.subr.bf16.mxu0 0
  %3033 = vmatpush2.bf16.msra.mxu0 0
  %3034 = vmatprep.subr.bf16.mxu0 0
  %3035 = vmatpush2.bf16.msra.mxu0 0
  %3036 = vmatprep.subr.bf16.mxu0 0
  %3037 = vmatpush2.bf16.msra.mxu0 0
  %3038 = vmatprep.subr.bf16.mxu0 0
  %3039 = vmatpush2.bf16.msra.mxu0 0
  %3040 = vmatprep.mubr.bf16.mxu0 0
  %3041 = vmatmul.mubr.bf16.gmra.mxu0 %v3006
  %v3042 = vpop.f32.mrf.mxu0
  %v3043 = vadd.f32 %v2976, %v3042
  %v3044 = vpop.f32.mrf.mxu0
  %v3045 = vpop.f32.mrf.mxu0
  %v3046 = vpop.f32.mrf.mxu0
  %3047 = vdwg.mxu0
  %v3052 = vunpack.c.l.b16 %v2902
  %v3053 = vunpack.c.l.b16 %v2903
  %v3054 = vunpack.c.l.b16 %v2904
  %v3055 = vunpack.c.l.b16 %v2905
  %v3056 = vpack.c.b16 %v3053, %v3052
  %v3057 = vpack.c.b16 %v3055, %v3054
  %3060 = vmatprep.subr.bf16.mxu0 0
  %3061 = vmatpush1.bf16.msra.mxu0 0
  %3062 = vmatprep.subr.bf16.mxu0 0
  %3063 = vmatpush1.bf16.msra.mxu0 0
  %3064 = vmatprep.subr.bf16.mxu0 0
  %3065 = vmatpush1.bf16.msra.mxu0 0
  %3066 = vmatprep.subr.bf16.mxu0 0
  %3067 = vmatpush1.bf16.msra.mxu0 0
  %3068 = vmatprep.subr.bf16.mxu0 0
  %3069 = vmatpush1.bf16.msra.mxu0 0
  %3070 = vmatprep.subr.bf16.mxu0 0
  %3071 = vmatpush1.bf16.msra.mxu0 0
  %3072 = vmatprep.subr.bf16.mxu0 0
  %3073 = vmatpush1.bf16.msra.mxu0 %v3057
  %3074 = vmatprep.subr.bf16.mxu0 0
  %3075 = vmatpush1.bf16.msra.mxu0 %v3056
  %3076 = vmatprep.subr.bf16.mxu0 0
  %3077 = vmatpush2.bf16.msra.mxu0 0
  %3078 = vmatprep.subr.bf16.mxu0 0
  %3079 = vmatpush2.bf16.msra.mxu0 0
  %3080 = vmatprep.subr.bf16.mxu0 0
  %3081 = vmatpush2.bf16.msra.mxu0 0
  %3082 = vmatprep.subr.bf16.mxu0 0
  %3083 = vmatpush2.bf16.msra.mxu0 0
  %3084 = vmatprep.subr.bf16.mxu0 0
  %3085 = vmatpush2.bf16.msra.mxu0 0
  %3086 = vmatprep.subr.bf16.mxu0 0
  %3087 = vmatpush2.bf16.msra.mxu0 0
  %3088 = vmatprep.subr.bf16.mxu0 0
  %3089 = vmatpush2.bf16.msra.mxu0 0
  %3090 = vmatprep.subr.bf16.mxu0 0
  %3091 = vmatpush2.bf16.msra.mxu0 0
  %3092 = vmatprep.mubr.bf16.mxu0 0
  %3093 = vmatmul.mubr.bf16.gmra.mxu0 %v3006
  %v3094 = vpop.f32.mrf.mxu0
  %v3095 = vadd.f32 %v2980, %v3094
  %v3096 = vpop.f32.mrf.mxu0
  %v3097 = vpop.f32.mrf.mxu0
  %v3098 = vpop.f32.mrf.mxu0
  %3099 = vdwg.mxu0
  %v3104 = vunpack.c.l.b16 %v2906
  %v3105 = vunpack.c.l.b16 %v2907
  %v3106 = vunpack.c.l.b16 %v2908
  %v3107 = vunpack.c.l.b16 %v2909
  %v3108 = vpack.c.b16 %v3105, %v3104
  %v3109 = vpack.c.b16 %v3107, %v3106
  %3112 = vmatprep.subr.bf16.mxu0 0
  %3113 = vmatpush1.bf16.msra.mxu0 0
  %3114 = vmatprep.subr.bf16.mxu0 0
  %3115 = vmatpush1.bf16.msra.mxu0 0
  %3116 = vmatprep.subr.bf16.mxu0 0
  %3117 = vmatpush1.bf16.msra.mxu0 0
  %3118 = vmatprep.subr.bf16.mxu0 0
  %3119 = vmatpush1.bf16.msra.mxu0 0
  %3120 = vmatprep.subr.bf16.mxu0 0
  %3121 = vmatpush1.bf16.msra.mxu0 0
  %3122 = vmatprep.subr.bf16.mxu0 0
  %3123 = vmatpush1.bf16.msra.mxu0 0
  %3124 = vmatprep.subr.bf16.mxu0 0
  %3125 = vmatpush1.bf16.msra.mxu0 %v3109
  %3126 = vmatprep.subr.bf16.mxu0 0
  %3127 = vmatpush1.bf16.msra.mxu0 %v3108
  %3128 = vmatprep.subr.bf16.mxu0 0
  %3129 = vmatpush2.bf16.msra.mxu0 0
  %3130 = vmatprep.subr.bf16.mxu0 0
  %3131 = vmatpush2.bf16.msra.mxu0 0
  %3132 = vmatprep.subr.bf16.mxu0 0
  %3133 = vmatpush2.bf16.msra.mxu0 0
  %3134 = vmatprep.subr.bf16.mxu0 0
  %3135 = vmatpush2.bf16.msra.mxu0 0
  %3136 = vmatprep.subr.bf16.mxu0 0
  %3137 = vmatpush2.bf16.msra.mxu0 0
  %3138 = vmatprep.subr.bf16.mxu0 0
  %3139 = vmatpush2.bf16.msra.mxu0 0
  %3140 = vmatprep.subr.bf16.mxu0 0
  %3141 = vmatpush2.bf16.msra.mxu0 0
  %3142 = vmatprep.subr.bf16.mxu0 0
  %3143 = vmatpush2.bf16.msra.mxu0 0
  %3144 = vmatprep.mubr.bf16.mxu0 0
  %3145 = vmatmul.mubr.bf16.gmra.mxu0 %v3006
  %v3146 = vpop.f32.mrf.mxu0
  %v3147 = vadd.f32 %v2984, %v3146
  %v3148 = vpop.f32.mrf.mxu0
  %v3149 = vpop.f32.mrf.mxu0
  %v3150 = vpop.f32.mrf.mxu0
  %3151 = vdwg.mxu0
  %v3156 = vunpack.c.l.b16 %v2910
  %v3157 = vunpack.c.l.b16 %v2911
  %v3158 = vunpack.c.l.b16 %v2912
  %v3159 = vunpack.c.l.b16 %v2913
  %v3160 = vpack.c.b16 %v3157, %v3156
  %v3161 = vpack.c.b16 %v3159, %v3158
  %3164 = vmatprep.subr.bf16.mxu0 0
  %3165 = vmatpush1.bf16.msra.mxu0 0
  %3166 = vmatprep.subr.bf16.mxu0 0
  %3167 = vmatpush1.bf16.msra.mxu0 0
  %3168 = vmatprep.subr.bf16.mxu0 0
  %3169 = vmatpush1.bf16.msra.mxu0 0
  %3170 = vmatprep.subr.bf16.mxu0 0
  %3171 = vmatpush1.bf16.msra.mxu0 0
  %3172 = vmatprep.subr.bf16.mxu0 0
  %3173 = vmatpush1.bf16.msra.mxu0 0
  %3174 = vmatprep.subr.bf16.mxu0 0
  %3175 = vmatpush1.bf16.msra.mxu0 0
  %3176 = vmatprep.subr.bf16.mxu0 0
  %3177 = vmatpush1.bf16.msra.mxu0 %v3161
  %3178 = vmatprep.subr.bf16.mxu0 0
  %3179 = vmatpush1.bf16.msra.mxu0 %v3160
  %3180 = vmatprep.subr.bf16.mxu0 0
  %3181 = vmatpush2.bf16.msra.mxu0 0
  %3182 = vmatprep.subr.bf16.mxu0 0
  %3183 = vmatpush2.bf16.msra.mxu0 0
  %3184 = vmatprep.subr.bf16.mxu0 0
  %3185 = vmatpush2.bf16.msra.mxu0 0
  %3186 = vmatprep.subr.bf16.mxu0 0
  %3187 = vmatpush2.bf16.msra.mxu0 0
  %3188 = vmatprep.subr.bf16.mxu0 0
  %3189 = vmatpush2.bf16.msra.mxu0 0
  %3190 = vmatprep.subr.bf16.mxu0 0
  %3191 = vmatpush2.bf16.msra.mxu0 0
  %3192 = vmatprep.subr.bf16.mxu0 0
  %3193 = vmatpush2.bf16.msra.mxu0 0
  %3194 = vmatprep.subr.bf16.mxu0 0
  %3195 = vmatpush2.bf16.msra.mxu0 0
  %3196 = vmatprep.mubr.bf16.mxu0 0
  %3197 = vmatmul.mubr.bf16.gmra.mxu0 %v3006
  %v3198 = vpop.f32.mrf.mxu0
  %v3199 = vadd.f32 %v2988, %v3198
  %v3200 = vpop.f32.mrf.mxu0
  %v3201 = vpop.f32.mrf.mxu0
  %v3202 = vpop.f32.mrf.mxu0
  %3203 = vdwg.mxu0
  %v3208 = vlaneseq
  %v3209 = vshrl.u32 %v3208, 7
  %v3210 = vsub.s32 0, %v3209
  %v3211 = vrot.slane %v2954, %v3210
  %v3212 = vlaneseq
  %v3213 = vshrl.u32 %v3212, 7
  %v3214 = vsub.s32 0, %v3213
  %v3215 = vrot.slane %v2955, %v3214
  %v3216 = vlaneseq
  %v3217 = vshrl.u32 %v3216, 7
  %v3218 = vsub.s32 0, %v3217
  %v3219 = vrot.slane %v2956, %v3218
  %v3220 = vlaneseq
  %v3221 = vshrl.u32 %v3220, 7
  %v3222 = vsub.s32 0, %v3221
  %v3223 = vrot.slane %v2957, %v3222
  %v3232 = vunpack.c.l.b16 %v2915
  %v3233 = vunpack.c.l.b16 %v2916
  %v3234 = vunpack.c.l.b16 %v2917
  %v3235 = vunpack.c.l.b16 %v2918
  %v3236 = vpack.c.b16 %v3233, %v3232
  %v3237 = vpack.c.b16 %v3235, %v3234
  %3240 = vmatprep.subr.bf16.mxu0 0
  %3241 = vmatpush1.bf16.msra.mxu0 0
  %3242 = vmatprep.subr.bf16.mxu0 0
  %3243 = vmatpush1.bf16.msra.mxu0 0
  %3244 = vmatprep.subr.bf16.mxu0 0
  %3245 = vmatpush1.bf16.msra.mxu0 0
  %3246 = vmatprep.subr.bf16.mxu0 0
  %3247 = vmatpush1.bf16.msra.mxu0 0
  %3248 = vmatprep.subr.bf16.mxu0 0
  %3249 = vmatpush1.bf16.msra.mxu0 0
  %3250 = vmatprep.subr.bf16.mxu0 0
  %3251 = vmatpush1.bf16.msra.mxu0 0
  %3252 = vmatprep.subr.bf16.mxu0 0
  %3253 = vmatpush1.bf16.msra.mxu0 %v3237
  %3254 = vmatprep.subr.bf16.mxu0 0
  %3255 = vmatpush1.bf16.msra.mxu0 %v3236
  %3256 = vmatprep.subr.bf16.mxu0 0
  %3257 = vmatpush2.bf16.msra.mxu0 0
  %3258 = vmatprep.subr.bf16.mxu0 0
  %3259 = vmatpush2.bf16.msra.mxu0 0
  %3260 = vmatprep.subr.bf16.mxu0 0
  %3261 = vmatpush2.bf16.msra.mxu0 0
  %3262 = vmatprep.subr.bf16.mxu0 0
  %3263 = vmatpush2.bf16.msra.mxu0 0
  %3264 = vmatprep.subr.bf16.mxu0 0
  %3265 = vmatpush2.bf16.msra.mxu0 0
  %3266 = vmatprep.subr.bf16.mxu0 0
  %3267 = vmatpush2.bf16.msra.mxu0 0
  %3268 = vmatprep.subr.bf16.mxu0 0
  %3269 = vmatpush2.bf16.msra.mxu0 0
  %3270 = vmatprep.subr.bf16.mxu0 0
  %3271 = vmatpush2.bf16.msra.mxu0 0
  %3272 = vmatprep.mubr.bf16.mxu0 0
  %3273 = vmatmul.mubr.bf16.gmra.mxu0 %v3006
  %v3274 = vpop.f32.mrf.mxu0
  %v3275 = vadd.f32 %v3211, %v3274
  %v3276 = vpop.f32.mrf.mxu0
  %v3277 = vpop.f32.mrf.mxu0
  %v3278 = vpop.f32.mrf.mxu0
  %3279 = vdwg.mxu0
  %v3284 = vunpack.c.l.b16 %v2919
  %v3285 = vunpack.c.l.b16 %v2920
  %v3286 = vunpack.c.l.b16 %v2921
  %v3287 = vunpack.c.l.b16 %v2922
  %v3288 = vpack.c.b16 %v3285, %v3284
  %v3289 = vpack.c.b16 %v3287, %v3286
  %3292 = vmatprep.subr.bf16.mxu0 0
  %3293 = vmatpush1.bf16.msra.mxu0 0
  %3294 = vmatprep.subr.bf16.mxu0 0
  %3295 = vmatpush1.bf16.msra.mxu0 0
  %3296 = vmatprep.subr.bf16.mxu0 0
  %3297 = vmatpush1.bf16.msra.mxu0 0
  %3298 = vmatprep.subr.bf16.mxu0 0
  %3299 = vmatpush1.bf16.msra.mxu0 0
  %3300 = vmatprep.subr.bf16.mxu0 0
  %3301 = vmatpush1.bf16.msra.mxu0 0
  %3302 = vmatprep.subr.bf16.mxu0 0
  %3303 = vmatpush1.bf16.msra.mxu0 0
  %3304 = vmatprep.subr.bf16.mxu0 0
  %3305 = vmatpush1.bf16.msra.mxu0 %v3289
  %3306 = vmatprep.subr.bf16.mxu0 0
  %3307 = vmatpush1.bf16.msra.mxu0 %v3288
  %3308 = vmatprep.subr.bf16.mxu0 0
  %3309 = vmatpush2.bf16.msra.mxu0 0
  %3310 = vmatprep.subr.bf16.mxu0 0
  %3311 = vmatpush2.bf16.msra.mxu0 0
  %3312 = vmatprep.subr.bf16.mxu0 0
  %3313 = vmatpush2.bf16.msra.mxu0 0
  %3314 = vmatprep.subr.bf16.mxu0 0
  %3315 = vmatpush2.bf16.msra.mxu0 0
  %3316 = vmatprep.subr.bf16.mxu0 0
  %3317 = vmatpush2.bf16.msra.mxu0 0
  %3318 = vmatprep.subr.bf16.mxu0 0
  %3319 = vmatpush2.bf16.msra.mxu0 0
  %3320 = vmatprep.subr.bf16.mxu0 0
  %3321 = vmatpush2.bf16.msra.mxu0 0
  %3322 = vmatprep.subr.bf16.mxu0 0
  %3323 = vmatpush2.bf16.msra.mxu0 0
  %3324 = vmatprep.mubr.bf16.mxu0 0
  %3325 = vmatmul.mubr.bf16.gmra.mxu0 %v3006
  %v3326 = vpop.f32.mrf.mxu0
  %v3327 = vadd.f32 %v3215, %v3326
  %v3328 = vpop.f32.mrf.mxu0
  %v3329 = vpop.f32.mrf.mxu0
  %v3330 = vpop.f32.mrf.mxu0
  %3331 = vdwg.mxu0
  %v3336 = vunpack.c.l.b16 %v2923
  %v3337 = vunpack.c.l.b16 %v2924
  %v3338 = vunpack.c.l.b16 %v2925
  %v3339 = vunpack.c.l.b16 %v2926
  %v3340 = vpack.c.b16 %v3337, %v3336
  %v3341 = vpack.c.b16 %v3339, %v3338
  %3344 = vmatprep.subr.bf16.mxu0 0
  %3345 = vmatpush1.bf16.msra.mxu0 0
  %3346 = vmatprep.subr.bf16.mxu0 0
  %3347 = vmatpush1.bf16.msra.mxu0 0
  %3348 = vmatprep.subr.bf16.mxu0 0
  %3349 = vmatpush1.bf16.msra.mxu0 0
  %3350 = vmatprep.subr.bf16.mxu0 0
  %3351 = vmatpush1.bf16.msra.mxu0 0
  %3352 = vmatprep.subr.bf16.mxu0 0
  %3353 = vmatpush1.bf16.msra.mxu0 0
  %3354 = vmatprep.subr.bf16.mxu0 0
  %3355 = vmatpush1.bf16.msra.mxu0 0
  %3356 = vmatprep.subr.bf16.mxu0 0
  %3357 = vmatpush1.bf16.msra.mxu0 %v3341
  %3358 = vmatprep.subr.bf16.mxu0 0
  %3359 = vmatpush1.bf16.msra.mxu0 %v3340
  %3360 = vmatprep.subr.bf16.mxu0 0
  %3361 = vmatpush2.bf16.msra.mxu0 0
  %3362 = vmatprep.subr.bf16.mxu0 0
  %3363 = vmatpush2.bf16.msra.mxu0 0
  %3364 = vmatprep.subr.bf16.mxu0 0
  %3365 = vmatpush2.bf16.msra.mxu0 0
  %3366 = vmatprep.subr.bf16.mxu0 0
  %3367 = vmatpush2.bf16.msra.mxu0 0
  %3368 = vmatprep.subr.bf16.mxu0 0
  %3369 = vmatpush2.bf16.msra.mxu0 0
  %3370 = vmatprep.subr.bf16.mxu0 0
  %3371 = vmatpush2.bf16.msra.mxu0 0
  %3372 = vmatprep.subr.bf16.mxu0 0
  %3373 = vmatpush2.bf16.msra.mxu0 0
  %3374 = vmatprep.subr.bf16.mxu0 0
  %3375 = vmatpush2.bf16.msra.mxu0 0
  %3376 = vmatprep.mubr.bf16.mxu0 0
  %3377 = vmatmul.mubr.bf16.gmra.mxu0 %v3006
  %v3378 = vpop.f32.mrf.mxu0
  %v3379 = vadd.f32 %v3219, %v3378
  %v3380 = vpop.f32.mrf.mxu0
  %v3381 = vpop.f32.mrf.mxu0
  %v3382 = vpop.f32.mrf.mxu0
  %3383 = vdwg.mxu0
  %v3388 = vunpack.c.l.b16 %v2927
  %v3389 = vunpack.c.l.b16 %v2928
  %v3390 = vunpack.c.l.b16 %v2929
  %v3391 = vunpack.c.l.b16 %v2930
  %v3392 = vpack.c.b16 %v3389, %v3388
  %v3393 = vpack.c.b16 %v3391, %v3390
  %3396 = vmatprep.subr.bf16.mxu0 0
  %3397 = vmatpush1.bf16.msra.mxu0 0
  %3398 = vmatprep.subr.bf16.mxu0 0
  %3399 = vmatpush1.bf16.msra.mxu0 0
  %3400 = vmatprep.subr.bf16.mxu0 0
  %3401 = vmatpush1.bf16.msra.mxu0 0
  %3402 = vmatprep.subr.bf16.mxu0 0
  %3403 = vmatpush1.bf16.msra.mxu0 0
  %3404 = vmatprep.subr.bf16.mxu0 0
  %3405 = vmatpush1.bf16.msra.mxu0 0
  %3406 = vmatprep.subr.bf16.mxu0 0
  %3407 = vmatpush1.bf16.msra.mxu0 0
  %3408 = vmatprep.subr.bf16.mxu0 0
  %3409 = vmatpush1.bf16.msra.mxu0 %v3393
  %3410 = vmatprep.subr.bf16.mxu0 0
  %3411 = vmatpush1.bf16.msra.mxu0 %v3392
  %3412 = vmatprep.subr.bf16.mxu0 0
  %3413 = vmatpush2.bf16.msra.mxu0 0
  %3414 = vmatprep.subr.bf16.mxu0 0
  %3415 = vmatpush2.bf16.msra.mxu0 0
  %3416 = vmatprep.subr.bf16.mxu0 0
  %3417 = vmatpush2.bf16.msra.mxu0 0
  %3418 = vmatprep.subr.bf16.mxu0 0
  %3419 = vmatpush2.bf16.msra.mxu0 0
  %3420 = vmatprep.subr.bf16.mxu0 0
  %3421 = vmatpush2.bf16.msra.mxu0 0
  %3422 = vmatprep.subr.bf16.mxu0 0
  %3423 = vmatpush2.bf16.msra.mxu0 0
  %3424 = vmatprep.subr.bf16.mxu0 0
  %3425 = vmatpush2.bf16.msra.mxu0 0
  %3426 = vmatprep.subr.bf16.mxu0 0
  %3427 = vmatpush2.bf16.msra.mxu0 0
  %3428 = vmatprep.mubr.bf16.mxu0 0
  %3429 = vmatmul.mubr.bf16.gmra.mxu0 %v3006
  %v3430 = vpop.f32.mrf.mxu0
  %v3431 = vadd.f32 %v3223, %v3430
  %v3432 = vpop.f32.mrf.mxu0
  %v3433 = vpop.f32.mrf.mxu0
  %v3434 = vpop.f32.mrf.mxu0
  %3435 = vdwg.mxu0
  %v3440 = vlaneseq
  %v3441 = vshrl.u32 %v3440, 7
  %v3442 = vsub.s32 0, %v3441
  %v3443 = vrot.slane %v2959, %v3442
  %v3444 = vlaneseq
  %v3445 = vshrl.u32 %v3444, 7
  %v3446 = vsub.s32 0, %v3445
  %v3447 = vrot.slane %v2960, %v3446
  %v3448 = vlaneseq
  %v3449 = vshrl.u32 %v3448, 7
  %v3450 = vsub.s32 0, %v3449
  %v3451 = vrot.slane %v2961, %v3450
  %v3452 = vlaneseq
  %v3453 = vshrl.u32 %v3452, 7
  %v3454 = vsub.s32 0, %v3453
  %v3455 = vrot.slane %v2962, %v3454
  %v3464 = vunpack.c.l.b16 %v2932
  %v3465 = vunpack.c.l.b16 %v2933
  %v3466 = vunpack.c.l.b16 %v2934
  %v3467 = vunpack.c.l.b16 %v2935
  %v3468 = vpack.c.b16 %v3465, %v3464
  %v3469 = vpack.c.b16 %v3467, %v3466
  %3472 = vmatprep.subr.bf16.mxu0 0
  %3473 = vmatpush1.bf16.msra.mxu0 0
  %3474 = vmatprep.subr.bf16.mxu0 0
  %3475 = vmatpush1.bf16.msra.mxu0 0
  %3476 = vmatprep.subr.bf16.mxu0 0
  %3477 = vmatpush1.bf16.msra.mxu0 0
  %3478 = vmatprep.subr.bf16.mxu0 0
  %3479 = vmatpush1.bf16.msra.mxu0 0
  %3480 = vmatprep.subr.bf16.mxu0 0
  %3481 = vmatpush1.bf16.msra.mxu0 0
  %3482 = vmatprep.subr.bf16.mxu0 0
  %3483 = vmatpush1.bf16.msra.mxu0 0
  %3484 = vmatprep.subr.bf16.mxu0 0
  %3485 = vmatpush1.bf16.msra.mxu0 %v3469
  %3486 = vmatprep.subr.bf16.mxu0 0
  %3487 = vmatpush1.bf16.msra.mxu0 %v3468
  %3488 = vmatprep.subr.bf16.mxu0 0
  %3489 = vmatpush2.bf16.msra.mxu0 0
  %3490 = vmatprep.subr.bf16.mxu0 0
  %3491 = vmatpush2.bf16.msra.mxu0 0
  %3492 = vmatprep.subr.bf16.mxu0 0
  %3493 = vmatpush2.bf16.msra.mxu0 0
  %3494 = vmatprep.subr.bf16.mxu0 0
  %3495 = vmatpush2.bf16.msra.mxu0 0
  %3496 = vmatprep.subr.bf16.mxu0 0
  %3497 = vmatpush2.bf16.msra.mxu0 0
  %3498 = vmatprep.subr.bf16.mxu0 0
  %3499 = vmatpush2.bf16.msra.mxu0 0
  %3500 = vmatprep.subr.bf16.mxu0 0
  %3501 = vmatpush2.bf16.msra.mxu0 0
  %3502 = vmatprep.subr.bf16.mxu0 0
  %3503 = vmatpush2.bf16.msra.mxu0 0
  %3504 = vmatprep.mubr.bf16.mxu0 0
  %3505 = vmatmul.mubr.bf16.gmra.mxu0 %v3006
  %v3506 = vpop.f32.mrf.mxu0
  %v3507 = vadd.f32 %v3443, %v3506
  %v3508 = vpop.f32.mrf.mxu0
  %v3509 = vpop.f32.mrf.mxu0
  %v3510 = vpop.f32.mrf.mxu0
  %3511 = vdwg.mxu0
  %v3516 = vunpack.c.l.b16 %v2936
  %v3517 = vunpack.c.l.b16 %v2937
  %v3518 = vunpack.c.l.b16 %v2938
  %v3519 = vunpack.c.l.b16 %v2939
  %v3520 = vpack.c.b16 %v3517, %v3516
  %v3521 = vpack.c.b16 %v3519, %v3518
  %3524 = vmatprep.subr.bf16.mxu0 0
  %3525 = vmatpush1.bf16.msra.mxu0 0
  %3526 = vmatprep.subr.bf16.mxu0 0
  %3527 = vmatpush1.bf16.msra.mxu0 0
  %3528 = vmatprep.subr.bf16.mxu0 0
  %3529 = vmatpush1.bf16.msra.mxu0 0
  %3530 = vmatprep.subr.bf16.mxu0 0
  %3531 = vmatpush1.bf16.msra.mxu0 0
  %3532 = vmatprep.subr.bf16.mxu0 0
  %3533 = vmatpush1.bf16.msra.mxu0 0
  %3534 = vmatprep.subr.bf16.mxu0 0
  %3535 = vmatpush1.bf16.msra.mxu0 0
  %3536 = vmatprep.subr.bf16.mxu0 0
  %3537 = vmatpush1.bf16.msra.mxu0 %v3521
  %3538 = vmatprep.subr.bf16.mxu0 0
  %3539 = vmatpush1.bf16.msra.mxu0 %v3520
  %3540 = vmatprep.subr.bf16.mxu0 0
  %3541 = vmatpush2.bf16.msra.mxu0 0
  %3542 = vmatprep.subr.bf16.mxu0 0
  %3543 = vmatpush2.bf16.msra.mxu0 0
  %3544 = vmatprep.subr.bf16.mxu0 0
  %3545 = vmatpush2.bf16.msra.mxu0 0
  %3546 = vmatprep.subr.bf16.mxu0 0
  %3547 = vmatpush2.bf16.msra.mxu0 0
  %3548 = vmatprep.subr.bf16.mxu0 0
  %3549 = vmatpush2.bf16.msra.mxu0 0
  %3550 = vmatprep.subr.bf16.mxu0 0
  %3551 = vmatpush2.bf16.msra.mxu0 0
  %3552 = vmatprep.subr.bf16.mxu0 0
  %3553 = vmatpush2.bf16.msra.mxu0 0
  %3554 = vmatprep.subr.bf16.mxu0 0
  %3555 = vmatpush2.bf16.msra.mxu0 0
  %3556 = vmatprep.mubr.bf16.mxu0 0
  %3557 = vmatmul.mubr.bf16.gmra.mxu0 %v3006
  %v3558 = vpop.f32.mrf.mxu0
  %v3559 = vadd.f32 %v3447, %v3558
  %v3560 = vpop.f32.mrf.mxu0
  %v3561 = vpop.f32.mrf.mxu0
  %v3562 = vpop.f32.mrf.mxu0
  %3563 = vdwg.mxu0
  %v3568 = vunpack.c.l.b16 %v2940
  %v3569 = vunpack.c.l.b16 %v2941
  %v3570 = vunpack.c.l.b16 %v2942
  %v3571 = vunpack.c.l.b16 %v2943
  %v3572 = vpack.c.b16 %v3569, %v3568
  %v3573 = vpack.c.b16 %v3571, %v3570
  %3576 = vmatprep.subr.bf16.mxu0 0
  %3577 = vmatpush1.bf16.msra.mxu0 0
  %3578 = vmatprep.subr.bf16.mxu0 0
  %3579 = vmatpush1.bf16.msra.mxu0 0
  %3580 = vmatprep.subr.bf16.mxu0 0
  %3581 = vmatpush1.bf16.msra.mxu0 0
  %3582 = vmatprep.subr.bf16.mxu0 0
  %3583 = vmatpush1.bf16.msra.mxu0 0
  %3584 = vmatprep.subr.bf16.mxu0 0
  %3585 = vmatpush1.bf16.msra.mxu0 0
  %3586 = vmatprep.subr.bf16.mxu0 0
  %3587 = vmatpush1.bf16.msra.mxu0 0
  %3588 = vmatprep.subr.bf16.mxu0 0
  %3589 = vmatpush1.bf16.msra.mxu0 %v3573
  %3590 = vmatprep.subr.bf16.mxu0 0
  %3591 = vmatpush1.bf16.msra.mxu0 %v3572
  %3592 = vmatprep.subr.bf16.mxu0 0
  %3593 = vmatpush2.bf16.msra.mxu0 0
  %3594 = vmatprep.subr.bf16.mxu0 0
  %3595 = vmatpush2.bf16.msra.mxu0 0
  %3596 = vmatprep.subr.bf16.mxu0 0
  %3597 = vmatpush2.bf16.msra.mxu0 0
  %3598 = vmatprep.subr.bf16.mxu0 0
  %3599 = vmatpush2.bf16.msra.mxu0 0
  %3600 = vmatprep.subr.bf16.mxu0 0
  %3601 = vmatpush2.bf16.msra.mxu0 0
  %3602 = vmatprep.subr.bf16.mxu0 0
  %3603 = vmatpush2.bf16.msra.mxu0 0
  %3604 = vmatprep.subr.bf16.mxu0 0
  %3605 = vmatpush2.bf16.msra.mxu0 0
  %3606 = vmatprep.subr.bf16.mxu0 0
  %3607 = vmatpush2.bf16.msra.mxu0 0
  %3608 = vmatprep.mubr.bf16.mxu0 0
  %3609 = vmatmul.mubr.bf16.gmra.mxu0 %v3006
  %v3610 = vpop.f32.mrf.mxu0
  %v3611 = vadd.f32 %v3451, %v3610
  %v3612 = vpop.f32.mrf.mxu0
  %v3613 = vpop.f32.mrf.mxu0
  %v3614 = vpop.f32.mrf.mxu0
  %3615 = vdwg.mxu0
  %v3620 = vunpack.c.l.b16 %v2944
  %v3621 = vunpack.c.l.b16 %v2945
  %v3622 = vunpack.c.l.b16 %v2946
  %v3623 = vunpack.c.l.b16 %v2947
  %v3624 = vpack.c.b16 %v3621, %v3620
  %v3625 = vpack.c.b16 %v3623, %v3622
  %3628 = vmatprep.subr.bf16.mxu0 0
  %3629 = vmatpush1.bf16.msra.mxu0 0
  %3630 = vmatprep.subr.bf16.mxu0 0
  %3631 = vmatpush1.bf16.msra.mxu0 0
  %3632 = vmatprep.subr.bf16.mxu0 0
  %3633 = vmatpush1.bf16.msra.mxu0 0
  %3634 = vmatprep.subr.bf16.mxu0 0
  %3635 = vmatpush1.bf16.msra.mxu0 0
  %3636 = vmatprep.subr.bf16.mxu0 0
  %3637 = vmatpush1.bf16.msra.mxu0 0
  %3638 = vmatprep.subr.bf16.mxu0 0
  %3639 = vmatpush1.bf16.msra.mxu0 0
  %3640 = vmatprep.subr.bf16.mxu0 0
  %3641 = vmatpush1.bf16.msra.mxu0 %v3625
  %3642 = vmatprep.subr.bf16.mxu0 0
  %3643 = vmatpush1.bf16.msra.mxu0 %v3624
  %3644 = vmatprep.subr.bf16.mxu0 0
  %3645 = vmatpush2.bf16.msra.mxu0 0
  %3646 = vmatprep.subr.bf16.mxu0 0
  %3647 = vmatpush2.bf16.msra.mxu0 0
  %3648 = vmatprep.subr.bf16.mxu0 0
  %3649 = vmatpush2.bf16.msra.mxu0 0
  %3650 = vmatprep.subr.bf16.mxu0 0
  %3651 = vmatpush2.bf16.msra.mxu0 0
  %3652 = vmatprep.subr.bf16.mxu0 0
  %3653 = vmatpush2.bf16.msra.mxu0 0
  %3654 = vmatprep.subr.bf16.mxu0 0
  %3655 = vmatpush2.bf16.msra.mxu0 0
  %3656 = vmatprep.subr.bf16.mxu0 0
  %3657 = vmatpush2.bf16.msra.mxu0 0
  %3658 = vmatprep.subr.bf16.mxu0 0
  %3659 = vmatpush2.bf16.msra.mxu0 0
  %3660 = vmatprep.mubr.bf16.mxu0 0
  %3661 = vmatmul.mubr.bf16.gmra.mxu0 %v3006
  %v3662 = vpop.f32.mrf.mxu0
  %v3663 = vadd.f32 %v3455, %v3662
  %v3664 = vpop.f32.mrf.mxu0
  %v3665 = vpop.f32.mrf.mxu0
  %v3666 = vpop.f32.mrf.mxu0
  %3667 = vdwg.mxu0
  %v3668 = vpack.c.bf16 %v3043, %v3043
  %v3669 = vpack.c.bf16 %v3095, %v3095
  %v3670 = vpack.c.bf16 %v3147, %v3147
  %v3671 = vpack.c.bf16 %v3199, %v3199
  %v3672 = vpack.c.bf16 %v3275, %v3275
  %v3673 = vpack.c.bf16 %v3327, %v3327
  %v3674 = vpack.c.bf16 %v3379, %v3379
  %v3675 = vpack.c.bf16 %v3431, %v3431
  %v3677 = vsel %vm906, %v3668, 0
  %v3680 = vsel %vm906, %v3672, 0
  %3682 = vmatprep.subr.bf16.mxu0 0
  %3683 = vmatpush1.bf16.xpose.msra.mxu0 0
  %3684 = vmatprep.subr.bf16.mxu0 0
  %3685 = vmatpush1.bf16.xpose.msra.mxu0 0
  %3686 = vmatprep.subr.bf16.mxu0 0
  %3687 = vmatpush1.bf16.xpose.msra.mxu0 0
  %3688 = vmatprep.subr.bf16.mxu0 0
  %3689 = vmatpush1.bf16.xpose.msra.mxu0 0
  %3690 = vmatprep.subr.bf16.mxu0 0
  %3691 = vmatpush1.bf16.xpose.msra.mxu0 0
  %3692 = vmatprep.subr.bf16.mxu0 0
  %3693 = vmatpush1.bf16.xpose.msra.mxu0 0
  %3694 = vmatprep.subr.bf16.mxu0 0
  %3695 = vmatpush1.bf16.xpose.msra.mxu0 0
  %3696 = vmatprep.subr.bf16.mxu0 0
  %3697 = vmatpush1.bf16.xpose.msra.mxu0 %v3680
  %3698 = vmatprep.subr.bf16.mxu0 0
  %3699 = vmatpush2.bf16.xpose.msra.mxu0 0
  %3700 = vmatprep.subr.bf16.mxu0 0
  %3701 = vmatpush2.bf16.xpose.msra.mxu0 0
  %3702 = vmatprep.subr.bf16.mxu0 0
  %3703 = vmatpush2.bf16.xpose.msra.mxu0 0
  %3704 = vmatprep.subr.bf16.mxu0 0
  %3705 = vmatpush2.bf16.xpose.msra.mxu0 0
  %3706 = vmatprep.subr.bf16.mxu0 0
  %3707 = vmatpush2.bf16.xpose.msra.mxu0 0
  %3708 = vmatprep.subr.bf16.mxu0 0
  %3709 = vmatpush2.bf16.xpose.msra.mxu0 0
  %3710 = vmatprep.subr.bf16.mxu0 0
  %3711 = vmatpush2.bf16.xpose.msra.mxu0 0
  %3712 = vmatprep.subr.bf16.mxu0 0
  %3713 = vmatpush2.bf16.xpose.msra.mxu0 0
  %3714 = vmatprep.mubr.bf16.mxu0 0
  %3715 = vmatmul.mubr.bf16.gmra.mxu0 %v3677
  %v3716 = vpop.f32.mrf.mxu0
  %v3717 = vadd.f32 %v904, %v3716
  %v3718 = vpop.f32.mrf.mxu0
  %v3719 = vpop.f32.mrf.mxu0
  %v3720 = vpop.f32.mrf.mxu0
  %3721 = vdwg.mxu0
  %v3723 = vsel %vm906, %v3669, 0
  %v3726 = vsel %vm906, %v3673, 0
  %3728 = vmatprep.subr.bf16.mxu0 0
  %3729 = vmatpush1.bf16.xpose.msra.mxu0 0
  %3730 = vmatprep.subr.bf16.mxu0 0
  %3731 = vmatpush1.bf16.xpose.msra.mxu0 0
  %3732 = vmatprep.subr.bf16.mxu0 0
  %3733 = vmatpush1.bf16.xpose.msra.mxu0 0
  %3734 = vmatprep.subr.bf16.mxu0 0
  %3735 = vmatpush1.bf16.xpose.msra.mxu0 0
  %3736 = vmatprep.subr.bf16.mxu0 0
  %3737 = vmatpush1.bf16.xpose.msra.mxu0 0
  %3738 = vmatprep.subr.bf16.mxu0 0
  %3739 = vmatpush1.bf16.xpose.msra.mxu0 0
  %3740 = vmatprep.subr.bf16.mxu0 0
  %3741 = vmatpush1.bf16.xpose.msra.mxu0 0
  %3742 = vmatprep.subr.bf16.mxu0 0
  %3743 = vmatpush1.bf16.xpose.msra.mxu0 %v3726
  %3744 = vmatprep.subr.bf16.mxu0 0
  %3745 = vmatpush2.bf16.xpose.msra.mxu0 0
  %3746 = vmatprep.subr.bf16.mxu0 0
  %3747 = vmatpush2.bf16.xpose.msra.mxu0 0
  %3748 = vmatprep.subr.bf16.mxu0 0
  %3749 = vmatpush2.bf16.xpose.msra.mxu0 0
  %3750 = vmatprep.subr.bf16.mxu0 0
  %3751 = vmatpush2.bf16.xpose.msra.mxu0 0
  %3752 = vmatprep.subr.bf16.mxu0 0
  %3753 = vmatpush2.bf16.xpose.msra.mxu0 0
  %3754 = vmatprep.subr.bf16.mxu0 0
  %3755 = vmatpush2.bf16.xpose.msra.mxu0 0
  %3756 = vmatprep.subr.bf16.mxu0 0
  %3757 = vmatpush2.bf16.xpose.msra.mxu0 0
  %3758 = vmatprep.subr.bf16.mxu0 0
  %3759 = vmatpush2.bf16.xpose.msra.mxu0 0
  %3760 = vmatprep.mubr.bf16.mxu0 0
  %3761 = vmatmul.mubr.bf16.gmra.mxu0 %v3723
  %v3762 = vpop.f32.mrf.mxu0
  %v3763 = vadd.f32 %v904, %v3762
  %v3764 = vpop.f32.mrf.mxu0
  %v3765 = vpop.f32.mrf.mxu0
  %v3766 = vpop.f32.mrf.mxu0
  %3767 = vdwg.mxu0
  %v3769 = vsel %vm906, %v3670, 0
  %v3772 = vsel %vm906, %v3674, 0
  %3774 = vmatprep.subr.bf16.mxu0 0
  %3775 = vmatpush1.bf16.xpose.msra.mxu0 0
  %3776 = vmatprep.subr.bf16.mxu0 0
  %3777 = vmatpush1.bf16.xpose.msra.mxu0 0
  %3778 = vmatprep.subr.bf16.mxu0 0
  %3779 = vmatpush1.bf16.xpose.msra.mxu0 0
  %3780 = vmatprep.subr.bf16.mxu0 0
  %3781 = vmatpush1.bf16.xpose.msra.mxu0 0
  %3782 = vmatprep.subr.bf16.mxu0 0
  %3783 = vmatpush1.bf16.xpose.msra.mxu0 0
  %3784 = vmatprep.subr.bf16.mxu0 0
  %3785 = vmatpush1.bf16.xpose.msra.mxu0 0
  %3786 = vmatprep.subr.bf16.mxu0 0
  %3787 = vmatpush1.bf16.xpose.msra.mxu0 0
  %3788 = vmatprep.subr.bf16.mxu0 0
  %3789 = vmatpush1.bf16.xpose.msra.mxu0 %v3772
  %3790 = vmatprep.subr.bf16.mxu0 0
  %3791 = vmatpush2.bf16.xpose.msra.mxu0 0
  %3792 = vmatprep.subr.bf16.mxu0 0
  %3793 = vmatpush2.bf16.xpose.msra.mxu0 0
  %3794 = vmatprep.subr.bf16.mxu0 0
  %3795 = vmatpush2.bf16.xpose.msra.mxu0 0
  %3796 = vmatprep.subr.bf16.mxu0 0
  %3797 = vmatpush2.bf16.xpose.msra.mxu0 0
  %3798 = vmatprep.subr.bf16.mxu0 0
  %3799 = vmatpush2.bf16.xpose.msra.mxu0 0
  %3800 = vmatprep.subr.bf16.mxu0 0
  %3801 = vmatpush2.bf16.xpose.msra.mxu0 0
  %3802 = vmatprep.subr.bf16.mxu0 0
  %3803 = vmatpush2.bf16.xpose.msra.mxu0 0
  %3804 = vmatprep.subr.bf16.mxu0 0
  %3805 = vmatpush2.bf16.xpose.msra.mxu0 0
  %3806 = vmatprep.mubr.bf16.mxu0 0
  %3807 = vmatmul.mubr.bf16.gmra.mxu0 %v3769
  %v3808 = vpop.f32.mrf.mxu0
  %v3809 = vadd.f32 %v904, %v3808
  %v3810 = vpop.f32.mrf.mxu0
  %v3811 = vpop.f32.mrf.mxu0
  %v3812 = vpop.f32.mrf.mxu0
  %3813 = vdwg.mxu0
  %v3815 = vsel %vm906, %v3671, 0
  %v3818 = vsel %vm906, %v3675, 0
  %3820 = vmatprep.subr.bf16.mxu0 0
  %3821 = vmatpush1.bf16.xpose.msra.mxu0 0
  %3822 = vmatprep.subr.bf16.mxu0 0
  %3823 = vmatpush1.bf16.xpose.msra.mxu0 0
  %3824 = vmatprep.subr.bf16.mxu0 0
  %3825 = vmatpush1.bf16.xpose.msra.mxu0 0
  %3826 = vmatprep.subr.bf16.mxu0 0
  %3827 = vmatpush1.bf16.xpose.msra.mxu0 0
  %3828 = vmatprep.subr.bf16.mxu0 0
  %3829 = vmatpush1.bf16.xpose.msra.mxu0 0
  %3830 = vmatprep.subr.bf16.mxu0 0
  %3831 = vmatpush1.bf16.xpose.msra.mxu0 0
  %3832 = vmatprep.subr.bf16.mxu0 0
  %3833 = vmatpush1.bf16.xpose.msra.mxu0 0
  %3834 = vmatprep.subr.bf16.mxu0 0
  %3835 = vmatpush1.bf16.xpose.msra.mxu0 %v3818
  %3836 = vmatprep.subr.bf16.mxu0 0
  %3837 = vmatpush2.bf16.xpose.msra.mxu0 0
  %3838 = vmatprep.subr.bf16.mxu0 0
  %3839 = vmatpush2.bf16.xpose.msra.mxu0 0
  %3840 = vmatprep.subr.bf16.mxu0 0
  %3841 = vmatpush2.bf16.xpose.msra.mxu0 0
  %3842 = vmatprep.subr.bf16.mxu0 0
  %3843 = vmatpush2.bf16.xpose.msra.mxu0 0
  %3844 = vmatprep.subr.bf16.mxu0 0
  %3845 = vmatpush2.bf16.xpose.msra.mxu0 0
  %3846 = vmatprep.subr.bf16.mxu0 0
  %3847 = vmatpush2.bf16.xpose.msra.mxu0 0
  %3848 = vmatprep.subr.bf16.mxu0 0
  %3849 = vmatpush2.bf16.xpose.msra.mxu0 0
  %3850 = vmatprep.subr.bf16.mxu0 0
  %3851 = vmatpush2.bf16.xpose.msra.mxu0 0
  %3852 = vmatprep.mubr.bf16.mxu0 0
  %3853 = vmatmul.mubr.bf16.gmra.mxu0 %v3815
  %v3854 = vpop.f32.mrf.mxu0
  %v3855 = vadd.f32 %v904, %v3854
  %v3856 = vpop.f32.mrf.mxu0
  %v3857 = vpop.f32.mrf.mxu0
  %v3858 = vpop.f32.mrf.mxu0
  %3859 = vdwg.mxu0
  %v3860 = vsel %vm906, %v3717, -inf
  %3861 = vmax.xlane.f32.xlu0 %v3860
  %v3862 = vpop.xlane.xlu0 %3861
  %v3863 = vsel %vm906, %v3763, -inf
  %3864 = vmax.xlane.f32.xlu0 %v3863
  %v3865 = vpop.xlane.xlu0 %3864
  %v3866 = vsel %vm906, %v3809, -inf
  %3867 = vmax.xlane.f32.xlu0 %v3866
  %v3868 = vpop.xlane.xlu0 %3867
  %v3869 = vsel %vm906, %v3855, -inf
  %3870 = vmax.xlane.f32.xlu0 %v3869
  %v3871 = vpop.xlane.xlu0 %3870
  %v3872 = vsub.f32 %v3717, %v3862
  %v3873 = vsub.f32 %v3763, %v3865
  %v3874 = vsub.f32 %v3809, %v3868
  %v3875 = vsub.f32 %v3855, %v3871
  %v3876 = vmul.f32 %v3872, 1.442695
  %v3877 = vpow.pop %v3876
  %v3878 = vmul.f32 %v3873, 1.442695
  %v3879 = vpow.pop %v3878
  %v3880 = vmul.f32 %v3874, 1.442695
  %v3881 = vpow.pop %v3880
  %v3882 = vmul.f32 %v3875, 1.442695
  %v3883 = vpow.pop %v3882
  %v3884 = vsel %vm906, %v3877, 0.0
  %3885 = vadd.xlane.f32.xlu0 %v3884
  %v3886 = vpop.xlane.xlu0 %3885
  %v3887 = vsel %vm906, %v3879, 0.0
  %3888 = vadd.xlane.f32.xlu0 %v3887
  %v3889 = vpop.xlane.xlu0 %3888
  %v3890 = vsel %vm906, %v3881, 0.0
  %3891 = vadd.xlane.f32.xlu0 %v3890
  %v3892 = vpop.xlane.xlu0 %3891
  %v3893 = vsel %vm906, %v3883, 0.0
  %3894 = vadd.xlane.f32.xlu0 %v3893
  %v3895 = vpop.xlane.xlu0 %3894
  %v3896 = vrcp.pop %v3886
  %v3897 = vrcp.pop %v3889
  %v3898 = vrcp.pop %v3892
  %v3899 = vrcp.pop %v3895
  %v3900 = vmul.f32 %v3877, %v3896
  %v3901 = vmul.f32 %v3879, %v3897
  %v3902 = vmul.f32 %v3881, %v3898
  %v3903 = vmul.f32 %v3883, %v3899
  %v3904 = vpack.c.bf16 %v3900, %v3900
  %v3905 = vpack.c.bf16 %v3901, %v3901
  %v3906 = vpack.c.bf16 %v3902, %v3902
  %v3907 = vpack.c.bf16 %v3903, %v3903
  %v3908 = vpack.c.bf16 %v3507, %v3507
  %v3909 = vpack.c.bf16 %v3559, %v3559
  %v3910 = vpack.c.bf16 %v3611, %v3611
  %v3911 = vpack.c.bf16 %v3663, %v3663
  %v3913 = vsel %vm906, %v3904, 0
  %v3916 = vsel %vm1146, %v3908, 0
  %3918 = vmatprep.subr.bf16.mxu0 0
  %3919 = vmatpush1.bf16.msra.mxu0 0
  %3920 = vmatprep.subr.bf16.mxu0 0
  %3921 = vmatpush1.bf16.msra.mxu0 0
  %3922 = vmatprep.subr.bf16.mxu0 0
  %3923 = vmatpush1.bf16.msra.mxu0 0
  %3924 = vmatprep.subr.bf16.mxu0 0
  %3925 = vmatpush1.bf16.msra.mxu0 0
  %3926 = vmatprep.subr.bf16.mxu0 0
  %3927 = vmatpush1.bf16.msra.mxu0 0
  %3928 = vmatprep.subr.bf16.mxu0 0
  %3929 = vmatpush1.bf16.msra.mxu0 0
  %3930 = vmatprep.subr.bf16.mxu0 0
  %3931 = vmatpush1.bf16.msra.mxu0 0
  %3932 = vmatprep.subr.bf16.mxu0 0
  %3933 = vmatpush1.bf16.msra.mxu0 %v3916
  %3934 = vmatprep.subr.bf16.mxu0 0
  %3935 = vmatpush2.bf16.msra.mxu0 0
  %3936 = vmatprep.subr.bf16.mxu0 0
  %3937 = vmatpush2.bf16.msra.mxu0 0
  %3938 = vmatprep.subr.bf16.mxu0 0
  %3939 = vmatpush2.bf16.msra.mxu0 0
  %3940 = vmatprep.subr.bf16.mxu0 0
  %3941 = vmatpush2.bf16.msra.mxu0 0
  %3942 = vmatprep.subr.bf16.mxu0 0
  %3943 = vmatpush2.bf16.msra.mxu0 0
  %3944 = vmatprep.subr.bf16.mxu0 0
  %3945 = vmatpush2.bf16.msra.mxu0 0
  %3946 = vmatprep.subr.bf16.mxu0 0
  %3947 = vmatpush2.bf16.msra.mxu0 0
  %3948 = vmatprep.subr.bf16.mxu0 0
  %3949 = vmatpush2.bf16.msra.mxu0 0
  %3950 = vmatprep.mubr.bf16.mxu0 0
  %3951 = vmatmul.mubr.bf16.gmra.mxu0 %v3913
  %v3952 = vpop.f32.mrf.mxu0
  %v3953 = vadd.f32 0.0, %v3952
  %v3954 = vpop.f32.mrf.mxu0
  %v3955 = vpop.f32.mrf.mxu0
  %v3956 = vpop.f32.mrf.mxu0
  %3957 = vdwg.mxu0
  %v3959 = vsel %vm906, %v3905, 0
  %v3962 = vsel %vm1146, %v3909, 0
  %3964 = vmatprep.subr.bf16.mxu0 0
  %3965 = vmatpush1.bf16.msra.mxu0 0
  %3966 = vmatprep.subr.bf16.mxu0 0
  %3967 = vmatpush1.bf16.msra.mxu0 0
  %3968 = vmatprep.subr.bf16.mxu0 0
  %3969 = vmatpush1.bf16.msra.mxu0 0
  %3970 = vmatprep.subr.bf16.mxu0 0
  %3971 = vmatpush1.bf16.msra.mxu0 0
  %3972 = vmatprep.subr.bf16.mxu0 0
  %3973 = vmatpush1.bf16.msra.mxu0 0
  %3974 = vmatprep.subr.bf16.mxu0 0
  %3975 = vmatpush1.bf16.msra.mxu0 0
  %3976 = vmatprep.subr.bf16.mxu0 0
  %3977 = vmatpush1.bf16.msra.mxu0 0
  %3978 = vmatprep.subr.bf16.mxu0 0
  %3979 = vmatpush1.bf16.msra.mxu0 %v3962
  %3980 = vmatprep.subr.bf16.mxu0 0
  %3981 = vmatpush2.bf16.msra.mxu0 0
  %3982 = vmatprep.subr.bf16.mxu0 0
  %3983 = vmatpush2.bf16.msra.mxu0 0
  %3984 = vmatprep.subr.bf16.mxu0 0
  %3985 = vmatpush2.bf16.msra.mxu0 0
  %3986 = vmatprep.subr.bf16.mxu0 0
  %3987 = vmatpush2.bf16.msra.mxu0 0
  %3988 = vmatprep.subr.bf16.mxu0 0
  %3989 = vmatpush2.bf16.msra.mxu0 0
  %3990 = vmatprep.subr.bf16.mxu0 0
  %3991 = vmatpush2.bf16.msra.mxu0 0
  %3992 = vmatprep.subr.bf16.mxu0 0
  %3993 = vmatpush2.bf16.msra.mxu0 0
  %3994 = vmatprep.subr.bf16.mxu0 0
  %3995 = vmatpush2.bf16.msra.mxu0 0
  %3996 = vmatprep.mubr.bf16.mxu0 0
  %3997 = vmatmul.mubr.bf16.gmra.mxu0 %v3959
  %v3998 = vpop.f32.mrf.mxu0
  %v3999 = vadd.f32 0.0, %v3998
  %v4000 = vpop.f32.mrf.mxu0
  %v4001 = vpop.f32.mrf.mxu0
  %v4002 = vpop.f32.mrf.mxu0
  %4003 = vdwg.mxu0
  %v4005 = vsel %vm906, %v3906, 0
  %v4008 = vsel %vm1146, %v3910, 0
  %4010 = vmatprep.subr.bf16.mxu0 0
  %4011 = vmatpush1.bf16.msra.mxu0 0
  %4012 = vmatprep.subr.bf16.mxu0 0
  %4013 = vmatpush1.bf16.msra.mxu0 0
  %4014 = vmatprep.subr.bf16.mxu0 0
  %4015 = vmatpush1.bf16.msra.mxu0 0
  %4016 = vmatprep.subr.bf16.mxu0 0
  %4017 = vmatpush1.bf16.msra.mxu0 0
  %4018 = vmatprep.subr.bf16.mxu0 0
  %4019 = vmatpush1.bf16.msra.mxu0 0
  %4020 = vmatprep.subr.bf16.mxu0 0
  %4021 = vmatpush1.bf16.msra.mxu0 0
  %4022 = vmatprep.subr.bf16.mxu0 0
  %4023 = vmatpush1.bf16.msra.mxu0 0
  %4024 = vmatprep.subr.bf16.mxu0 0
  %4025 = vmatpush1.bf16.msra.mxu0 %v4008
  %4026 = vmatprep.subr.bf16.mxu0 0
  %4027 = vmatpush2.bf16.msra.mxu0 0
  %4028 = vmatprep.subr.bf16.mxu0 0
  %4029 = vmatpush2.bf16.msra.mxu0 0
  %4030 = vmatprep.subr.bf16.mxu0 0
  %4031 = vmatpush2.bf16.msra.mxu0 0
  %4032 = vmatprep.subr.bf16.mxu0 0
  %4033 = vmatpush2.bf16.msra.mxu0 0
  %4034 = vmatprep.subr.bf16.mxu0 0
  %4035 = vmatpush2.bf16.msra.mxu0 0
  %4036 = vmatprep.subr.bf16.mxu0 0
  %4037 = vmatpush2.bf16.msra.mxu0 0
  %4038 = vmatprep.subr.bf16.mxu0 0
  %4039 = vmatpush2.bf16.msra.mxu0 0
  %4040 = vmatprep.subr.bf16.mxu0 0
  %4041 = vmatpush2.bf16.msra.mxu0 0
  %4042 = vmatprep.mubr.bf16.mxu0 0
  %4043 = vmatmul.mubr.bf16.gmra.mxu0 %v4005
  %v4044 = vpop.f32.mrf.mxu0
  %v4045 = vadd.f32 0.0, %v4044
  %v4046 = vpop.f32.mrf.mxu0
  %v4047 = vpop.f32.mrf.mxu0
  %v4048 = vpop.f32.mrf.mxu0
  %4049 = vdwg.mxu0
  %v4051 = vsel %vm906, %v3907, 0
  %v4054 = vsel %vm1146, %v3911, 0
  %4056 = vmatprep.subr.bf16.mxu0 0
  %4057 = vmatpush1.bf16.msra.mxu0 0
  %4058 = vmatprep.subr.bf16.mxu0 0
  %4059 = vmatpush1.bf16.msra.mxu0 0
  %4060 = vmatprep.subr.bf16.mxu0 0
  %4061 = vmatpush1.bf16.msra.mxu0 0
  %4062 = vmatprep.subr.bf16.mxu0 0
  %4063 = vmatpush1.bf16.msra.mxu0 0
  %4064 = vmatprep.subr.bf16.mxu0 0
  %4065 = vmatpush1.bf16.msra.mxu0 0
  %4066 = vmatprep.subr.bf16.mxu0 0
  %4067 = vmatpush1.bf16.msra.mxu0 0
  %4068 = vmatprep.subr.bf16.mxu0 0
  %4069 = vmatpush1.bf16.msra.mxu0 0
  %4070 = vmatprep.subr.bf16.mxu0 0
  %4071 = vmatpush1.bf16.msra.mxu0 %v4054
  %4072 = vmatprep.subr.bf16.mxu0 0
  %4073 = vmatpush2.bf16.msra.mxu0 0
  %4074 = vmatprep.subr.bf16.mxu0 0
  %4075 = vmatpush2.bf16.msra.mxu0 0
  %4076 = vmatprep.subr.bf16.mxu0 0
  %4077 = vmatpush2.bf16.msra.mxu0 0
  %4078 = vmatprep.subr.bf16.mxu0 0
  %4079 = vmatpush2.bf16.msra.mxu0 0
  %4080 = vmatprep.subr.bf16.mxu0 0
  %4081 = vmatpush2.bf16.msra.mxu0 0
  %4082 = vmatprep.subr.bf16.mxu0 0
  %4083 = vmatpush2.bf16.msra.mxu0 0
  %4084 = vmatprep.subr.bf16.mxu0 0
  %4085 = vmatpush2.bf16.msra.mxu0 0
  %4086 = vmatprep.subr.bf16.mxu0 0
  %4087 = vmatpush2.bf16.msra.mxu0 0
  %4088 = vmatprep.mubr.bf16.mxu0 0
  %4089 = vmatmul.mubr.bf16.gmra.mxu0 %v4051
  %v4090 = vpop.f32.mrf.mxu0
  %v4091 = vadd.f32 0.0, %v4090
  %v4092 = vpop.f32.mrf.mxu0
  %v4093 = vpop.f32.mrf.mxu0
  %v4094 = vpop.f32.mrf.mxu0
  %4095 = vdwg.mxu0
  %v4096 = vpack.c.bf16 %v3953, %v3953
  %v4097 = vpack.c.bf16 %v3999, %v3999
  %v4098 = vpack.c.bf16 %v4045, %v4045
  %v4099 = vpack.c.bf16 %v4091, %v4091
  %v4101 = vsel %vm906, %v4096, 0
  %v4104 = vsel %vm1146, %v2964, 0
  %4106 = vmatprep.subr.bf16.mxu0 0
  %4107 = vmatpush1.bf16.msra.mxu0 0
  %4108 = vmatprep.subr.bf16.mxu0 0
  %4109 = vmatpush1.bf16.msra.mxu0 0
  %4110 = vmatprep.subr.bf16.mxu0 0
  %4111 = vmatpush1.bf16.msra.mxu0 0
  %4112 = vmatprep.subr.bf16.mxu0 0
  %4113 = vmatpush1.bf16.msra.mxu0 0
  %4114 = vmatprep.subr.bf16.mxu0 0
  %4115 = vmatpush1.bf16.msra.mxu0 0
  %4116 = vmatprep.subr.bf16.mxu0 0
  %4117 = vmatpush1.bf16.msra.mxu0 0
  %4118 = vmatprep.subr.bf16.mxu0 0
  %4119 = vmatpush1.bf16.msra.mxu0 0
  %4120 = vmatprep.subr.bf16.mxu0 0
  %4121 = vmatpush1.bf16.msra.mxu0 %v4104
  %4122 = vmatprep.subr.bf16.mxu0 0
  %4123 = vmatpush2.bf16.msra.mxu0 0
  %4124 = vmatprep.subr.bf16.mxu0 0
  %4125 = vmatpush2.bf16.msra.mxu0 0
  %4126 = vmatprep.subr.bf16.mxu0 0
  %4127 = vmatpush2.bf16.msra.mxu0 0
  %4128 = vmatprep.subr.bf16.mxu0 0
  %4129 = vmatpush2.bf16.msra.mxu0 0
  %4130 = vmatprep.subr.bf16.mxu0 0
  %4131 = vmatpush2.bf16.msra.mxu0 0
  %4132 = vmatprep.subr.bf16.mxu0 0
  %4133 = vmatpush2.bf16.msra.mxu0 0
  %4134 = vmatprep.subr.bf16.mxu0 0
  %4135 = vmatpush2.bf16.msra.mxu0 0
  %4136 = vmatprep.subr.bf16.mxu0 0
  %4137 = vmatpush2.bf16.msra.mxu0 0
  %4138 = vmatprep.mubr.bf16.mxu0 0
  %4139 = vmatmul.mubr.bf16.gmra.mxu0 %v4101
  %v4140 = vpop.f32.mrf.mxu0
  %v4141 = vadd.f32 0.0, %v4140
  %v4142 = vpop.f32.mrf.mxu0
  %v4143 = vpop.f32.mrf.mxu0
  %v4144 = vpop.f32.mrf.mxu0
  %4145 = vdwg.mxu0
  %v4147 = vsel %vm906, %v4097, 0
  %v4150 = vsel %vm1146, %v2965, 0
  %4152 = vmatprep.subr.bf16.mxu0 0
  %4153 = vmatpush1.bf16.msra.mxu0 0
  %4154 = vmatprep.subr.bf16.mxu0 0
  %4155 = vmatpush1.bf16.msra.mxu0 0
  %4156 = vmatprep.subr.bf16.mxu0 0
  %4157 = vmatpush1.bf16.msra.mxu0 0
  %4158 = vmatprep.subr.bf16.mxu0 0
  %4159 = vmatpush1.bf16.msra.mxu0 0
  %4160 = vmatprep.subr.bf16.mxu0 0
  %4161 = vmatpush1.bf16.msra.mxu0 0
  %4162 = vmatprep.subr.bf16.mxu0 0
  %4163 = vmatpush1.bf16.msra.mxu0 0
  %4164 = vmatprep.subr.bf16.mxu0 0
  %4165 = vmatpush1.bf16.msra.mxu0 0
  %4166 = vmatprep.subr.bf16.mxu0 0
  %4167 = vmatpush1.bf16.msra.mxu0 %v4150
  %4168 = vmatprep.subr.bf16.mxu0 0
  %4169 = vmatpush2.bf16.msra.mxu0 0
  %4170 = vmatprep.subr.bf16.mxu0 0
  %4171 = vmatpush2.bf16.msra.mxu0 0
  %4172 = vmatprep.subr.bf16.mxu0 0
  %4173 = vmatpush2.bf16.msra.mxu0 0
  %4174 = vmatprep.subr.bf16.mxu0 0
  %4175 = vmatpush2.bf16.msra.mxu0 0
  %4176 = vmatprep.subr.bf16.mxu0 0
  %4177 = vmatpush2.bf16.msra.mxu0 0
  %4178 = vmatprep.subr.bf16.mxu0 0
  %4179 = vmatpush2.bf16.msra.mxu0 0
  %4180 = vmatprep.subr.bf16.mxu0 0
  %4181 = vmatpush2.bf16.msra.mxu0 0
  %4182 = vmatprep.subr.bf16.mxu0 0
  %4183 = vmatpush2.bf16.msra.mxu0 0
  %4184 = vmatprep.mubr.bf16.mxu0 0
  %4185 = vmatmul.mubr.bf16.gmra.mxu0 %v4147
  %v4186 = vpop.f32.mrf.mxu0
  %v4187 = vadd.f32 0.0, %v4186
  %v4188 = vpop.f32.mrf.mxu0
  %v4189 = vpop.f32.mrf.mxu0
  %v4190 = vpop.f32.mrf.mxu0
  %4191 = vdwg.mxu0
  %v4193 = vsel %vm906, %v4098, 0
  %v4196 = vsel %vm1146, %v2966, 0
  %4198 = vmatprep.subr.bf16.mxu0 0
  %4199 = vmatpush1.bf16.msra.mxu0 0
  %4200 = vmatprep.subr.bf16.mxu0 0
  %4201 = vmatpush1.bf16.msra.mxu0 0
  %4202 = vmatprep.subr.bf16.mxu0 0
  %4203 = vmatpush1.bf16.msra.mxu0 0
  %4204 = vmatprep.subr.bf16.mxu0 0
  %4205 = vmatpush1.bf16.msra.mxu0 0
  %4206 = vmatprep.subr.bf16.mxu0 0
  %4207 = vmatpush1.bf16.msra.mxu0 0
  %4208 = vmatprep.subr.bf16.mxu0 0
  %4209 = vmatpush1.bf16.msra.mxu0 0
  %4210 = vmatprep.subr.bf16.mxu0 0
  %4211 = vmatpush1.bf16.msra.mxu0 0
  %4212 = vmatprep.subr.bf16.mxu0 0
  %4213 = vmatpush1.bf16.msra.mxu0 %v4196
  %4214 = vmatprep.subr.bf16.mxu0 0
  %4215 = vmatpush2.bf16.msra.mxu0 0
  %4216 = vmatprep.subr.bf16.mxu0 0
  %4217 = vmatpush2.bf16.msra.mxu0 0
  %4218 = vmatprep.subr.bf16.mxu0 0
  %4219 = vmatpush2.bf16.msra.mxu0 0
  %4220 = vmatprep.subr.bf16.mxu0 0
  %4221 = vmatpush2.bf16.msra.mxu0 0
  %4222 = vmatprep.subr.bf16.mxu0 0
  %4223 = vmatpush2.bf16.msra.mxu0 0
  %4224 = vmatprep.subr.bf16.mxu0 0
  %4225 = vmatpush2.bf16.msra.mxu0 0
  %4226 = vmatprep.subr.bf16.mxu0 0
  %4227 = vmatpush2.bf16.msra.mxu0 0
  %4228 = vmatprep.subr.bf16.mxu0 0
  %4229 = vmatpush2.bf16.msra.mxu0 0
  %4230 = vmatprep.mubr.bf16.mxu0 0
  %4231 = vmatmul.mubr.bf16.gmra.mxu0 %v4193
  %v4232 = vpop.f32.mrf.mxu0
  %v4233 = vadd.f32 0.0, %v4232
  %v4234 = vpop.f32.mrf.mxu0
  %v4235 = vpop.f32.mrf.mxu0
  %v4236 = vpop.f32.mrf.mxu0
  %4237 = vdwg.mxu0
  %v4239 = vsel %vm906, %v4099, 0
  %v4242 = vsel %vm1146, %v2967, 0
  %4244 = vmatprep.subr.bf16.mxu0 0
  %4245 = vmatpush1.bf16.msra.mxu0 0
  %4246 = vmatprep.subr.bf16.mxu0 0
  %4247 = vmatpush1.bf16.msra.mxu0 0
  %4248 = vmatprep.subr.bf16.mxu0 0
  %4249 = vmatpush1.bf16.msra.mxu0 0
  %4250 = vmatprep.subr.bf16.mxu0 0
  %4251 = vmatpush1.bf16.msra.mxu0 0
  %4252 = vmatprep.subr.bf16.mxu0 0
  %4253 = vmatpush1.bf16.msra.mxu0 0
  %4254 = vmatprep.subr.bf16.mxu0 0
  %4255 = vmatpush1.bf16.msra.mxu0 0
  %4256 = vmatprep.subr.bf16.mxu0 0
  %4257 = vmatpush1.bf16.msra.mxu0 0
  %4258 = vmatprep.subr.bf16.mxu0 0
  %4259 = vmatpush1.bf16.msra.mxu0 %v4242
  %4260 = vmatprep.subr.bf16.mxu0 0
  %4261 = vmatpush2.bf16.msra.mxu0 0
  %4262 = vmatprep.subr.bf16.mxu0 0
  %4263 = vmatpush2.bf16.msra.mxu0 0
  %4264 = vmatprep.subr.bf16.mxu0 0
  %4265 = vmatpush2.bf16.msra.mxu0 0
  %4266 = vmatprep.subr.bf16.mxu0 0
  %4267 = vmatpush2.bf16.msra.mxu0 0
  %4268 = vmatprep.subr.bf16.mxu0 0
  %4269 = vmatpush2.bf16.msra.mxu0 0
  %4270 = vmatprep.subr.bf16.mxu0 0
  %4271 = vmatpush2.bf16.msra.mxu0 0
  %4272 = vmatprep.subr.bf16.mxu0 0
  %4273 = vmatpush2.bf16.msra.mxu0 0
  %4274 = vmatprep.subr.bf16.mxu0 0
  %4275 = vmatpush2.bf16.msra.mxu0 0
  %4276 = vmatprep.mubr.bf16.mxu0 0
  %4277 = vmatmul.mubr.bf16.gmra.mxu0 %v4239
  %v4278 = vpop.f32.mrf.mxu0
  %v4279 = vadd.f32 0.0, %v4278
  %v4280 = vpop.f32.mrf.mxu0
  %v4281 = vpop.f32.mrf.mxu0
  %v4282 = vpop.f32.mrf.mxu0
  %4283 = vdwg.mxu0
  %v4284 = vsel %vm78, %v4141, 0.0
  %v4285 = vsel %vm78, %v4187, 0.0
  %v4286 = vadd.f32 %v4284, %v4285
  %v4287 = vsel %vm78, %v4233, 0.0
  %v4288 = vadd.f32 %v4286, %v4287
  %v4289 = vsel %vm78, %v4279, 0.0
  %v4290 = vadd.f32 %v4288, %v4289
  %v4292 = vrot.slane %v2968, 4
  %v4294 = vsel %vm78, %v4292, 0
  %4296 = vmatprep.subr.bf16.mxu0 0
  %4297 = vmatpush1.bf16.msra.mxu0 0
  %4298 = vmatprep.subr.bf16.mxu0 0
  %4299 = vmatpush1.bf16.msra.mxu0 0
  %4300 = vmatprep.subr.bf16.mxu0 0
  %4301 = vmatpush1.bf16.msra.mxu0 0
  %4302 = vmatprep.subr.bf16.mxu0 0
  %4303 = vmatpush1.bf16.msra.mxu0 0
  %4304 = vmatprep.subr.bf16.mxu0 0
  %4305 = vmatpush1.bf16.msra.mxu0 0
  %4306 = vmatprep.subr.bf16.mxu0 0
  %4307 = vmatpush1.bf16.msra.mxu0 0
  %4308 = vmatprep.subr.bf16.mxu0 0
  %4309 = vmatpush1.bf16.msra.mxu0 %v3002
  %4310 = vmatprep.subr.bf16.mxu0 0
  %4311 = vmatpush1.bf16.msra.mxu0 %v3001
  %4312 = vmatprep.subr.bf16.mxu0 0
  %4313 = vmatpush2.bf16.msra.mxu0 0
  %4314 = vmatprep.subr.bf16.mxu0 0
  %4315 = vmatpush2.bf16.msra.mxu0 0
  %4316 = vmatprep.subr.bf16.mxu0 0
  %4317 = vmatpush2.bf16.msra.mxu0 0
  %4318 = vmatprep.subr.bf16.mxu0 0
  %4319 = vmatpush2.bf16.msra.mxu0 0
  %4320 = vmatprep.subr.bf16.mxu0 0
  %4321 = vmatpush2.bf16.msra.mxu0 0
  %4322 = vmatprep.subr.bf16.mxu0 0
  %4323 = vmatpush2.bf16.msra.mxu0 0
  %4324 = vmatprep.subr.bf16.mxu0 0
  %4325 = vmatpush2.bf16.msra.mxu0 0
  %4326 = vmatprep.subr.bf16.mxu0 0
  %4327 = vmatpush2.bf16.msra.mxu0 0
  %4328 = vmatprep.mubr.bf16.mxu0 0
  %4329 = vmatmul.mubr.bf16.gmra.mxu0 %v4294
  %v4330 = vpop.f32.mrf.mxu0
  %v4331 = vadd.f32 %v2976, %v4330
  %v4332 = vpop.f32.mrf.mxu0
  %v4333 = vpop.f32.mrf.mxu0
  %v4334 = vpop.f32.mrf.mxu0
  %4335 = vdwg.mxu0
  %4336 = vmatprep.subr.bf16.mxu0 0
  %4337 = vmatpush1.bf16.msra.mxu0 0
  %4338 = vmatprep.subr.bf16.mxu0 0
  %4339 = vmatpush1.bf16.msra.mxu0 0
  %4340 = vmatprep.subr.bf16.mxu0 0
  %4341 = vmatpush1.bf16.msra.mxu0 0
  %4342 = vmatprep.subr.bf16.mxu0 0
  %4343 = vmatpush1.bf16.msra.mxu0 0
  %4344 = vmatprep.subr.bf16.mxu0 0
  %4345 = vmatpush1.bf16.msra.mxu0 0
  %4346 = vmatprep.subr.bf16.mxu0 0
  %4347 = vmatpush1.bf16.msra.mxu0 0
  %4348 = vmatprep.subr.bf16.mxu0 0
  %4349 = vmatpush1.bf16.msra.mxu0 %v3057
  %4350 = vmatprep.subr.bf16.mxu0 0
  %4351 = vmatpush1.bf16.msra.mxu0 %v3056
  %4352 = vmatprep.subr.bf16.mxu0 0
  %4353 = vmatpush2.bf16.msra.mxu0 0
  %4354 = vmatprep.subr.bf16.mxu0 0
  %4355 = vmatpush2.bf16.msra.mxu0 0
  %4356 = vmatprep.subr.bf16.mxu0 0
  %4357 = vmatpush2.bf16.msra.mxu0 0
  %4358 = vmatprep.subr.bf16.mxu0 0
  %4359 = vmatpush2.bf16.msra.mxu0 0
  %4360 = vmatprep.subr.bf16.mxu0 0
  %4361 = vmatpush2.bf16.msra.mxu0 0
  %4362 = vmatprep.subr.bf16.mxu0 0
  %4363 = vmatpush2.bf16.msra.mxu0 0
  %4364 = vmatprep.subr.bf16.mxu0 0
  %4365 = vmatpush2.bf16.msra.mxu0 0
  %4366 = vmatprep.subr.bf16.mxu0 0
  %4367 = vmatpush2.bf16.msra.mxu0 0
  %4368 = vmatprep.mubr.bf16.mxu0 0
  %4369 = vmatmul.mubr.bf16.gmra.mxu0 %v4294
  %v4370 = vpop.f32.mrf.mxu0
  %v4371 = vadd.f32 %v2980, %v4370
  %v4372 = vpop.f32.mrf.mxu0
  %v4373 = vpop.f32.mrf.mxu0
  %v4374 = vpop.f32.mrf.mxu0
  %4375 = vdwg.mxu0
  %4376 = vmatprep.subr.bf16.mxu0 0
  %4377 = vmatpush1.bf16.msra.mxu0 0
  %4378 = vmatprep.subr.bf16.mxu0 0
  %4379 = vmatpush1.bf16.msra.mxu0 0
  %4380 = vmatprep.subr.bf16.mxu0 0
  %4381 = vmatpush1.bf16.msra.mxu0 0
  %4382 = vmatprep.subr.bf16.mxu0 0
  %4383 = vmatpush1.bf16.msra.mxu0 0
  %4384 = vmatprep.subr.bf16.mxu0 0
  %4385 = vmatpush1.bf16.msra.mxu0 0
  %4386 = vmatprep.subr.bf16.mxu0 0
  %4387 = vmatpush1.bf16.msra.mxu0 0
  %4388 = vmatprep.subr.bf16.mxu0 0
  %4389 = vmatpush1.bf16.msra.mxu0 %v3109
  %4390 = vmatprep.subr.bf16.mxu0 0
  %4391 = vmatpush1.bf16.msra.mxu0 %v3108
  %4392 = vmatprep.subr.bf16.mxu0 0
  %4393 = vmatpush2.bf16.msra.mxu0 0
  %4394 = vmatprep.subr.bf16.mxu0 0
  %4395 = vmatpush2.bf16.msra.mxu0 0
  %4396 = vmatprep.subr.bf16.mxu0 0
  %4397 = vmatpush2.bf16.msra.mxu0 0
  %4398 = vmatprep.subr.bf16.mxu0 0
  %4399 = vmatpush2.bf16.msra.mxu0 0
  %4400 = vmatprep.subr.bf16.mxu0 0
  %4401 = vmatpush2.bf16.msra.mxu0 0
  %4402 = vmatprep.subr.bf16.mxu0 0
  %4403 = vmatpush2.bf16.msra.mxu0 0
  %4404 = vmatprep.subr.bf16.mxu0 0
  %4405 = vmatpush2.bf16.msra.mxu0 0
  %4406 = vmatprep.subr.bf16.mxu0 0
  %4407 = vmatpush2.bf16.msra.mxu0 0
  %4408 = vmatprep.mubr.bf16.mxu0 0
  %4409 = vmatmul.mubr.bf16.gmra.mxu0 %v4294
  %v4410 = vpop.f32.mrf.mxu0
  %v4411 = vadd.f32 %v2984, %v4410
  %v4412 = vpop.f32.mrf.mxu0
  %v4413 = vpop.f32.mrf.mxu0
  %v4414 = vpop.f32.mrf.mxu0
  %4415 = vdwg.mxu0
  %4416 = vmatprep.subr.bf16.mxu0 0
  %4417 = vmatpush1.bf16.msra.mxu0 0
  %4418 = vmatprep.subr.bf16.mxu0 0
  %4419 = vmatpush1.bf16.msra.mxu0 0
  %4420 = vmatprep.subr.bf16.mxu0 0
  %4421 = vmatpush1.bf16.msra.mxu0 0
  %4422 = vmatprep.subr.bf16.mxu0 0
  %4423 = vmatpush1.bf16.msra.mxu0 0
  %4424 = vmatprep.subr.bf16.mxu0 0
  %4425 = vmatpush1.bf16.msra.mxu0 0
  %4426 = vmatprep.subr.bf16.mxu0 0
  %4427 = vmatpush1.bf16.msra.mxu0 0
  %4428 = vmatprep.subr.bf16.mxu0 0
  %4429 = vmatpush1.bf16.msra.mxu0 %v3161
  %4430 = vmatprep.subr.bf16.mxu0 0
  %4431 = vmatpush1.bf16.msra.mxu0 %v3160
  %4432 = vmatprep.subr.bf16.mxu0 0
  %4433 = vmatpush2.bf16.msra.mxu0 0
  %4434 = vmatprep.subr.bf16.mxu0 0
  %4435 = vmatpush2.bf16.msra.mxu0 0
  %4436 = vmatprep.subr.bf16.mxu0 0
  %4437 = vmatpush2.bf16.msra.mxu0 0
  %4438 = vmatprep.subr.bf16.mxu0 0
  %4439 = vmatpush2.bf16.msra.mxu0 0
  %4440 = vmatprep.subr.bf16.mxu0 0
  %4441 = vmatpush2.bf16.msra.mxu0 0
  %4442 = vmatprep.subr.bf16.mxu0 0
  %4443 = vmatpush2.bf16.msra.mxu0 0
  %4444 = vmatprep.subr.bf16.mxu0 0
  %4445 = vmatpush2.bf16.msra.mxu0 0
  %4446 = vmatprep.subr.bf16.mxu0 0
  %4447 = vmatpush2.bf16.msra.mxu0 0
  %4448 = vmatprep.mubr.bf16.mxu0 0
  %4449 = vmatmul.mubr.bf16.gmra.mxu0 %v4294
  %v4450 = vpop.f32.mrf.mxu0
  %v4451 = vadd.f32 %v2988, %v4450
  %v4452 = vpop.f32.mrf.mxu0
  %v4453 = vpop.f32.mrf.mxu0
  %v4454 = vpop.f32.mrf.mxu0
  %4455 = vdwg.mxu0
  %4456 = vmatprep.subr.bf16.mxu0 0
  %4457 = vmatpush1.bf16.msra.mxu0 0
  %4458 = vmatprep.subr.bf16.mxu0 0
  %4459 = vmatpush1.bf16.msra.mxu0 0
  %4460 = vmatprep.subr.bf16.mxu0 0
  %4461 = vmatpush1.bf16.msra.mxu0 0
  %4462 = vmatprep.subr.bf16.mxu0 0
  %4463 = vmatpush1.bf16.msra.mxu0 0
  %4464 = vmatprep.subr.bf16.mxu0 0
  %4465 = vmatpush1.bf16.msra.mxu0 0
  %4466 = vmatprep.subr.bf16.mxu0 0
  %4467 = vmatpush1.bf16.msra.mxu0 0
  %4468 = vmatprep.subr.bf16.mxu0 0
  %4469 = vmatpush1.bf16.msra.mxu0 %v3237
  %4470 = vmatprep.subr.bf16.mxu0 0
  %4471 = vmatpush1.bf16.msra.mxu0 %v3236
  %4472 = vmatprep.subr.bf16.mxu0 0
  %4473 = vmatpush2.bf16.msra.mxu0 0
  %4474 = vmatprep.subr.bf16.mxu0 0
  %4475 = vmatpush2.bf16.msra.mxu0 0
  %4476 = vmatprep.subr.bf16.mxu0 0
  %4477 = vmatpush2.bf16.msra.mxu0 0
  %4478 = vmatprep.subr.bf16.mxu0 0
  %4479 = vmatpush2.bf16.msra.mxu0 0
  %4480 = vmatprep.subr.bf16.mxu0 0
  %4481 = vmatpush2.bf16.msra.mxu0 0
  %4482 = vmatprep.subr.bf16.mxu0 0
  %4483 = vmatpush2.bf16.msra.mxu0 0
  %4484 = vmatprep.subr.bf16.mxu0 0
  %4485 = vmatpush2.bf16.msra.mxu0 0
  %4486 = vmatprep.subr.bf16.mxu0 0
  %4487 = vmatpush2.bf16.msra.mxu0 0
  %4488 = vmatprep.mubr.bf16.mxu0 0
  %4489 = vmatmul.mubr.bf16.gmra.mxu0 %v4294
  %v4490 = vpop.f32.mrf.mxu0
  %v4491 = vadd.f32 %v3211, %v4490
  %v4492 = vpop.f32.mrf.mxu0
  %v4493 = vpop.f32.mrf.mxu0
  %v4494 = vpop.f32.mrf.mxu0
  %4495 = vdwg.mxu0
  %4496 = vmatprep.subr.bf16.mxu0 0
  %4497 = vmatpush1.bf16.msra.mxu0 0
  %4498 = vmatprep.subr.bf16.mxu0 0
  %4499 = vmatpush1.bf16.msra.mxu0 0
  %4500 = vmatprep.subr.bf16.mxu0 0
  %4501 = vmatpush1.bf16.msra.mxu0 0
  %4502 = vmatprep.subr.bf16.mxu0 0
  %4503 = vmatpush1.bf16.msra.mxu0 0
  %4504 = vmatprep.subr.bf16.mxu0 0
  %4505 = vmatpush1.bf16.msra.mxu0 0
  %4506 = vmatprep.subr.bf16.mxu0 0
  %4507 = vmatpush1.bf16.msra.mxu0 0
  %4508 = vmatprep.subr.bf16.mxu0 0
  %4509 = vmatpush1.bf16.msra.mxu0 %v3289
  %4510 = vmatprep.subr.bf16.mxu0 0
  %4511 = vmatpush1.bf16.msra.mxu0 %v3288
  %4512 = vmatprep.subr.bf16.mxu0 0
  %4513 = vmatpush2.bf16.msra.mxu0 0
  %4514 = vmatprep.subr.bf16.mxu0 0
  %4515 = vmatpush2.bf16.msra.mxu0 0
  %4516 = vmatprep.subr.bf16.mxu0 0
  %4517 = vmatpush2.bf16.msra.mxu0 0
  %4518 = vmatprep.subr.bf16.mxu0 0
  %4519 = vmatpush2.bf16.msra.mxu0 0
  %4520 = vmatprep.subr.bf16.mxu0 0
  %4521 = vmatpush2.bf16.msra.mxu0 0
  %4522 = vmatprep.subr.bf16.mxu0 0
  %4523 = vmatpush2.bf16.msra.mxu0 0
  %4524 = vmatprep.subr.bf16.mxu0 0
  %4525 = vmatpush2.bf16.msra.mxu0 0
  %4526 = vmatprep.subr.bf16.mxu0 0
  %4527 = vmatpush2.bf16.msra.mxu0 0
  %4528 = vmatprep.mubr.bf16.mxu0 0
  %4529 = vmatmul.mubr.bf16.gmra.mxu0 %v4294
  %v4530 = vpop.f32.mrf.mxu0
  %v4531 = vadd.f32 %v3215, %v4530
  %v4532 = vpop.f32.mrf.mxu0
  %v4533 = vpop.f32.mrf.mxu0
  %v4534 = vpop.f32.mrf.mxu0
  %4535 = vdwg.mxu0
  %4536 = vmatprep.subr.bf16.mxu0 0
  %4537 = vmatpush1.bf16.msra.mxu0 0
  %4538 = vmatprep.subr.bf16.mxu0 0
  %4539 = vmatpush1.bf16.msra.mxu0 0
  %4540 = vmatprep.subr.bf16.mxu0 0
  %4541 = vmatpush1.bf16.msra.mxu0 0
  %4542 = vmatprep.subr.bf16.mxu0 0
  %4543 = vmatpush1.bf16.msra.mxu0 0
  %4544 = vmatprep.subr.bf16.mxu0 0
  %4545 = vmatpush1.bf16.msra.mxu0 0
  %4546 = vmatprep.subr.bf16.mxu0 0
  %4547 = vmatpush1.bf16.msra.mxu0 0
  %4548 = vmatprep.subr.bf16.mxu0 0
  %4549 = vmatpush1.bf16.msra.mxu0 %v3341
  %4550 = vmatprep.subr.bf16.mxu0 0
  %4551 = vmatpush1.bf16.msra.mxu0 %v3340
  %4552 = vmatprep.subr.bf16.mxu0 0
  %4553 = vmatpush2.bf16.msra.mxu0 0
  %4554 = vmatprep.subr.bf16.mxu0 0
  %4555 = vmatpush2.bf16.msra.mxu0 0
  %4556 = vmatprep.subr.bf16.mxu0 0
  %4557 = vmatpush2.bf16.msra.mxu0 0
  %4558 = vmatprep.subr.bf16.mxu0 0
  %4559 = vmatpush2.bf16.msra.mxu0 0
  %4560 = vmatprep.subr.bf16.mxu0 0
  %4561 = vmatpush2.bf16.msra.mxu0 0
  %4562 = vmatprep.subr.bf16.mxu0 0
  %4563 = vmatpush2.bf16.msra.mxu0 0
  %4564 = vmatprep.subr.bf16.mxu0 0
  %4565 = vmatpush2.bf16.msra.mxu0 0
  %4566 = vmatprep.subr.bf16.mxu0 0
  %4567 = vmatpush2.bf16.msra.mxu0 0
  %4568 = vmatprep.mubr.bf16.mxu0 0
  %4569 = vmatmul.mubr.bf16.gmra.mxu0 %v4294
  %v4570 = vpop.f32.mrf.mxu0
  %v4571 = vadd.f32 %v3219, %v4570
  %v4572 = vpop.f32.mrf.mxu0
  %v4573 = vpop.f32.mrf.mxu0
  %v4574 = vpop.f32.mrf.mxu0
  %4575 = vdwg.mxu0
  %4576 = vmatprep.subr.bf16.mxu0 0
  %4577 = vmatpush1.bf16.msra.mxu0 0
  %4578 = vmatprep.subr.bf16.mxu0 0
  %4579 = vmatpush1.bf16.msra.mxu0 0
  %4580 = vmatprep.subr.bf16.mxu0 0
  %4581 = vmatpush1.bf16.msra.mxu0 0
  %4582 = vmatprep.subr.bf16.mxu0 0
  %4583 = vmatpush1.bf16.msra.mxu0 0
  %4584 = vmatprep.subr.bf16.mxu0 0
  %4585 = vmatpush1.bf16.msra.mxu0 0
  %4586 = vmatprep.subr.bf16.mxu0 0
  %4587 = vmatpush1.bf16.msra.mxu0 0
  %4588 = vmatprep.subr.bf16.mxu0 0
  %4589 = vmatpush1.bf16.msra.mxu0 %v3393
  %4590 = vmatprep.subr.bf16.mxu0 0
  %4591 = vmatpush1.bf16.msra.mxu0 %v3392
  %4592 = vmatprep.subr.bf16.mxu0 0
  %4593 = vmatpush2.bf16.msra.mxu0 0
  %4594 = vmatprep.subr.bf16.mxu0 0
  %4595 = vmatpush2.bf16.msra.mxu0 0
  %4596 = vmatprep.subr.bf16.mxu0 0
  %4597 = vmatpush2.bf16.msra.mxu0 0
  %4598 = vmatprep.subr.bf16.mxu0 0
  %4599 = vmatpush2.bf16.msra.mxu0 0
  %4600 = vmatprep.subr.bf16.mxu0 0
  %4601 = vmatpush2.bf16.msra.mxu0 0
  %4602 = vmatprep.subr.bf16.mxu0 0
  %4603 = vmatpush2.bf16.msra.mxu0 0
  %4604 = vmatprep.subr.bf16.mxu0 0
  %4605 = vmatpush2.bf16.msra.mxu0 0
  %4606 = vmatprep.subr.bf16.mxu0 0
  %4607 = vmatpush2.bf16.msra.mxu0 0
  %4608 = vmatprep.mubr.bf16.mxu0 0
  %4609 = vmatmul.mubr.bf16.gmra.mxu0 %v4294
  %v4610 = vpop.f32.mrf.mxu0
  %v4611 = vadd.f32 %v3223, %v4610
  %v4612 = vpop.f32.mrf.mxu0
  %v4613 = vpop.f32.mrf.mxu0
  %v4614 = vpop.f32.mrf.mxu0
  %4615 = vdwg.mxu0
  %4616 = vmatprep.subr.bf16.mxu0 0
  %4617 = vmatpush1.bf16.msra.mxu0 0
  %4618 = vmatprep.subr.bf16.mxu0 0
  %4619 = vmatpush1.bf16.msra.mxu0 0
  %4620 = vmatprep.subr.bf16.mxu0 0
  %4621 = vmatpush1.bf16.msra.mxu0 0
  %4622 = vmatprep.subr.bf16.mxu0 0
  %4623 = vmatpush1.bf16.msra.mxu0 0
  %4624 = vmatprep.subr.bf16.mxu0 0
  %4625 = vmatpush1.bf16.msra.mxu0 0
  %4626 = vmatprep.subr.bf16.mxu0 0
  %4627 = vmatpush1.bf16.msra.mxu0 0
  %4628 = vmatprep.subr.bf16.mxu0 0
  %4629 = vmatpush1.bf16.msra.mxu0 %v3469
  %4630 = vmatprep.subr.bf16.mxu0 0
  %4631 = vmatpush1.bf16.msra.mxu0 %v3468
  %4632 = vmatprep.subr.bf16.mxu0 0
  %4633 = vmatpush2.bf16.msra.mxu0 0
  %4634 = vmatprep.subr.bf16.mxu0 0
  %4635 = vmatpush2.bf16.msra.mxu0 0
  %4636 = vmatprep.subr.bf16.mxu0 0
  %4637 = vmatpush2.bf16.msra.mxu0 0
  %4638 = vmatprep.subr.bf16.mxu0 0
  %4639 = vmatpush2.bf16.msra.mxu0 0
  %4640 = vmatprep.subr.bf16.mxu0 0
  %4641 = vmatpush2.bf16.msra.mxu0 0
  %4642 = vmatprep.subr.bf16.mxu0 0
  %4643 = vmatpush2.bf16.msra.mxu0 0
  %4644 = vmatprep.subr.bf16.mxu0 0
  %4645 = vmatpush2.bf16.msra.mxu0 0
  %4646 = vmatprep.subr.bf16.mxu0 0
  %4647 = vmatpush2.bf16.msra.mxu0 0
  %4648 = vmatprep.mubr.bf16.mxu0 0
  %4649 = vmatmul.mubr.bf16.gmra.mxu0 %v4294
  %v4650 = vpop.f32.mrf.mxu0
  %v4651 = vadd.f32 %v3443, %v4650
  %v4652 = vpop.f32.mrf.mxu0
  %v4653 = vpop.f32.mrf.mxu0
  %v4654 = vpop.f32.mrf.mxu0
  %4655 = vdwg.mxu0
  %4656 = vmatprep.subr.bf16.mxu0 0
  %4657 = vmatpush1.bf16.msra.mxu0 0
  %4658 = vmatprep.subr.bf16.mxu0 0
  %4659 = vmatpush1.bf16.msra.mxu0 0
  %4660 = vmatprep.subr.bf16.mxu0 0
  %4661 = vmatpush1.bf16.msra.mxu0 0
  %4662 = vmatprep.subr.bf16.mxu0 0
  %4663 = vmatpush1.bf16.msra.mxu0 0
  %4664 = vmatprep.subr.bf16.mxu0 0
  %4665 = vmatpush1.bf16.msra.mxu0 0
  %4666 = vmatprep.subr.bf16.mxu0 0
  %4667 = vmatpush1.bf16.msra.mxu0 0
  %4668 = vmatprep.subr.bf16.mxu0 0
  %4669 = vmatpush1.bf16.msra.mxu0 %v3521
  %4670 = vmatprep.subr.bf16.mxu0 0
  %4671 = vmatpush1.bf16.msra.mxu0 %v3520
  %4672 = vmatprep.subr.bf16.mxu0 0
  %4673 = vmatpush2.bf16.msra.mxu0 0
  %4674 = vmatprep.subr.bf16.mxu0 0
  %4675 = vmatpush2.bf16.msra.mxu0 0
  %4676 = vmatprep.subr.bf16.mxu0 0
  %4677 = vmatpush2.bf16.msra.mxu0 0
  %4678 = vmatprep.subr.bf16.mxu0 0
  %4679 = vmatpush2.bf16.msra.mxu0 0
  %4680 = vmatprep.subr.bf16.mxu0 0
  %4681 = vmatpush2.bf16.msra.mxu0 0
  %4682 = vmatprep.subr.bf16.mxu0 0
  %4683 = vmatpush2.bf16.msra.mxu0 0
  %4684 = vmatprep.subr.bf16.mxu0 0
  %4685 = vmatpush2.bf16.msra.mxu0 0
  %4686 = vmatprep.subr.bf16.mxu0 0
  %4687 = vmatpush2.bf16.msra.mxu0 0
  %4688 = vmatprep.mubr.bf16.mxu0 0
  %4689 = vmatmul.mubr.bf16.gmra.mxu0 %v4294
  %v4690 = vpop.f32.mrf.mxu0
  %v4691 = vadd.f32 %v3447, %v4690
  %v4692 = vpop.f32.mrf.mxu0
  %v4693 = vpop.f32.mrf.mxu0
  %v4694 = vpop.f32.mrf.mxu0
  %4695 = vdwg.mxu0
  %4696 = vmatprep.subr.bf16.mxu0 0
  %4697 = vmatpush1.bf16.msra.mxu0 0
  %4698 = vmatprep.subr.bf16.mxu0 0
  %4699 = vmatpush1.bf16.msra.mxu0 0
  %4700 = vmatprep.subr.bf16.mxu0 0
  %4701 = vmatpush1.bf16.msra.mxu0 0
  %4702 = vmatprep.subr.bf16.mxu0 0
  %4703 = vmatpush1.bf16.msra.mxu0 0
  %4704 = vmatprep.subr.bf16.mxu0 0
  %4705 = vmatpush1.bf16.msra.mxu0 0
  %4706 = vmatprep.subr.bf16.mxu0 0
  %4707 = vmatpush1.bf16.msra.mxu0 0
  %4708 = vmatprep.subr.bf16.mxu0 0
  %4709 = vmatpush1.bf16.msra.mxu0 %v3573
  %4710 = vmatprep.subr.bf16.mxu0 0
  %4711 = vmatpush1.bf16.msra.mxu0 %v3572
  %4712 = vmatprep.subr.bf16.mxu0 0
  %4713 = vmatpush2.bf16.msra.mxu0 0
  %4714 = vmatprep.subr.bf16.mxu0 0
  %4715 = vmatpush2.bf16.msra.mxu0 0
  %4716 = vmatprep.subr.bf16.mxu0 0
  %4717 = vmatpush2.bf16.msra.mxu0 0
  %4718 = vmatprep.subr.bf16.mxu0 0
  %4719 = vmatpush2.bf16.msra.mxu0 0
  %4720 = vmatprep.subr.bf16.mxu0 0
  %4721 = vmatpush2.bf16.msra.mxu0 0
  %4722 = vmatprep.subr.bf16.mxu0 0
  %4723 = vmatpush2.bf16.msra.mxu0 0
  %4724 = vmatprep.subr.bf16.mxu0 0
  %4725 = vmatpush2.bf16.msra.mxu0 0
  %4726 = vmatprep.subr.bf16.mxu0 0
  %4727 = vmatpush2.bf16.msra.mxu0 0
  %4728 = vmatprep.mubr.bf16.mxu0 0
  %4729 = vmatmul.mubr.bf16.gmra.mxu0 %v4294
  %v4730 = vpop.f32.mrf.mxu0
  %v4731 = vadd.f32 %v3451, %v4730
  %v4732 = vpop.f32.mrf.mxu0
  %v4733 = vpop.f32.mrf.mxu0
  %v4734 = vpop.f32.mrf.mxu0
  %4735 = vdwg.mxu0
  %4736 = vmatprep.subr.bf16.mxu0 0
  %4737 = vmatpush1.bf16.msra.mxu0 0
  %4738 = vmatprep.subr.bf16.mxu0 0
  %4739 = vmatpush1.bf16.msra.mxu0 0
  %4740 = vmatprep.subr.bf16.mxu0 0
  %4741 = vmatpush1.bf16.msra.mxu0 0
  %4742 = vmatprep.subr.bf16.mxu0 0
  %4743 = vmatpush1.bf16.msra.mxu0 0
  %4744 = vmatprep.subr.bf16.mxu0 0
  %4745 = vmatpush1.bf16.msra.mxu0 0
  %4746 = vmatprep.subr.bf16.mxu0 0
  %4747 = vmatpush1.bf16.msra.mxu0 0
  %4748 = vmatprep.subr.bf16.mxu0 0
  %4749 = vmatpush1.bf16.msra.mxu0 %v3625
  %4750 = vmatprep.subr.bf16.mxu0 0
  %4751 = vmatpush1.bf16.msra.mxu0 %v3624
  %4752 = vmatprep.subr.bf16.mxu0 0
  %4753 = vmatpush2.bf16.msra.mxu0 0
  %4754 = vmatprep.subr.bf16.mxu0 0
  %4755 = vmatpush2.bf16.msra.mxu0 0
  %4756 = vmatprep.subr.bf16.mxu0 0
  %4757 = vmatpush2.bf16.msra.mxu0 0
  %4758 = vmatprep.subr.bf16.mxu0 0
  %4759 = vmatpush2.bf16.msra.mxu0 0
  %4760 = vmatprep.subr.bf16.mxu0 0
  %4761 = vmatpush2.bf16.msra.mxu0 0
  %4762 = vmatprep.subr.bf16.mxu0 0
  %4763 = vmatpush2.bf16.msra.mxu0 0
  %4764 = vmatprep.subr.bf16.mxu0 0
  %4765 = vmatpush2.bf16.msra.mxu0 0
  %4766 = vmatprep.subr.bf16.mxu0 0
  %4767 = vmatpush2.bf16.msra.mxu0 0
  %4768 = vmatprep.mubr.bf16.mxu0 0
  %4769 = vmatmul.mubr.bf16.gmra.mxu0 %v4294
  %v4770 = vpop.f32.mrf.mxu0
  %v4771 = vadd.f32 %v3455, %v4770
  %v4772 = vpop.f32.mrf.mxu0
  %v4773 = vpop.f32.mrf.mxu0
  %v4774 = vpop.f32.mrf.mxu0
  %4775 = vdwg.mxu0
  %v4776 = vpack.c.bf16 %v4331, %v4331
  %v4777 = vpack.c.bf16 %v4371, %v4371
  %v4778 = vpack.c.bf16 %v4411, %v4411
  %v4779 = vpack.c.bf16 %v4451, %v4451
  %v4780 = vpack.c.bf16 %v4491, %v4491
  %v4781 = vpack.c.bf16 %v4531, %v4531
  %v4782 = vpack.c.bf16 %v4571, %v4571
  %v4783 = vpack.c.bf16 %v4611, %v4611
  %v4785 = vsel %vm906, %v4776, 0
  %v4788 = vsel %vm906, %v4780, 0
  %4790 = vmatprep.subr.bf16.mxu0 0
  %4791 = vmatpush1.bf16.xpose.msra.mxu0 0
  %4792 = vmatprep.subr.bf16.mxu0 0
  %4793 = vmatpush1.bf16.xpose.msra.mxu0 0
  %4794 = vmatprep.subr.bf16.mxu0 0
  %4795 = vmatpush1.bf16.xpose.msra.mxu0 0
  %4796 = vmatprep.subr.bf16.mxu0 0
  %4797 = vmatpush1.bf16.xpose.msra.mxu0 0
  %4798 = vmatprep.subr.bf16.mxu0 0
  %4799 = vmatpush1.bf16.xpose.msra.mxu0 0
  %4800 = vmatprep.subr.bf16.mxu0 0
  %4801 = vmatpush1.bf16.xpose.msra.mxu0 0
  %4802 = vmatprep.subr.bf16.mxu0 0
  %4803 = vmatpush1.bf16.xpose.msra.mxu0 0
  %4804 = vmatprep.subr.bf16.mxu0 0
  %4805 = vmatpush1.bf16.xpose.msra.mxu0 %v4788
  %4806 = vmatprep.subr.bf16.mxu0 0
  %4807 = vmatpush2.bf16.xpose.msra.mxu0 0
  %4808 = vmatprep.subr.bf16.mxu0 0
  %4809 = vmatpush2.bf16.xpose.msra.mxu0 0
  %4810 = vmatprep.subr.bf16.mxu0 0
  %4811 = vmatpush2.bf16.xpose.msra.mxu0 0
  %4812 = vmatprep.subr.bf16.mxu0 0
  %4813 = vmatpush2.bf16.xpose.msra.mxu0 0
  %4814 = vmatprep.subr.bf16.mxu0 0
  %4815 = vmatpush2.bf16.xpose.msra.mxu0 0
  %4816 = vmatprep.subr.bf16.mxu0 0
  %4817 = vmatpush2.bf16.xpose.msra.mxu0 0
  %4818 = vmatprep.subr.bf16.mxu0 0
  %4819 = vmatpush2.bf16.xpose.msra.mxu0 0
  %4820 = vmatprep.subr.bf16.mxu0 0
  %4821 = vmatpush2.bf16.xpose.msra.mxu0 0
  %4822 = vmatprep.mubr.bf16.mxu0 0
  %4823 = vmatmul.mubr.bf16.gmra.mxu0 %v4785
  %v4824 = vpop.f32.mrf.mxu0
  %v4825 = vadd.f32 %v2020, %v4824
  %v4826 = vpop.f32.mrf.mxu0
  %v4827 = vpop.f32.mrf.mxu0
  %v4828 = vpop.f32.mrf.mxu0
  %4829 = vdwg.mxu0
  %v4831 = vsel %vm906, %v4777, 0
  %v4834 = vsel %vm906, %v4781, 0
  %4836 = vmatprep.subr.bf16.mxu0 0
  %4837 = vmatpush1.bf16.xpose.msra.mxu0 0
  %4838 = vmatprep.subr.bf16.mxu0 0
  %4839 = vmatpush1.bf16.xpose.msra.mxu0 0
  %4840 = vmatprep.subr.bf16.mxu0 0
  %4841 = vmatpush1.bf16.xpose.msra.mxu0 0
  %4842 = vmatprep.subr.bf16.mxu0 0
  %4843 = vmatpush1.bf16.xpose.msra.mxu0 0
  %4844 = vmatprep.subr.bf16.mxu0 0
  %4845 = vmatpush1.bf16.xpose.msra.mxu0 0
  %4846 = vmatprep.subr.bf16.mxu0 0
  %4847 = vmatpush1.bf16.xpose.msra.mxu0 0
  %4848 = vmatprep.subr.bf16.mxu0 0
  %4849 = vmatpush1.bf16.xpose.msra.mxu0 0
  %4850 = vmatprep.subr.bf16.mxu0 0
  %4851 = vmatpush1.bf16.xpose.msra.mxu0 %v4834
  %4852 = vmatprep.subr.bf16.mxu0 0
  %4853 = vmatpush2.bf16.xpose.msra.mxu0 0
  %4854 = vmatprep.subr.bf16.mxu0 0
  %4855 = vmatpush2.bf16.xpose.msra.mxu0 0
  %4856 = vmatprep.subr.bf16.mxu0 0
  %4857 = vmatpush2.bf16.xpose.msra.mxu0 0
  %4858 = vmatprep.subr.bf16.mxu0 0
  %4859 = vmatpush2.bf16.xpose.msra.mxu0 0
  %4860 = vmatprep.subr.bf16.mxu0 0
  %4861 = vmatpush2.bf16.xpose.msra.mxu0 0
  %4862 = vmatprep.subr.bf16.mxu0 0
  %4863 = vmatpush2.bf16.xpose.msra.mxu0 0
  %4864 = vmatprep.subr.bf16.mxu0 0
  %4865 = vmatpush2.bf16.xpose.msra.mxu0 0
  %4866 = vmatprep.subr.bf16.mxu0 0
  %4867 = vmatpush2.bf16.xpose.msra.mxu0 0
  %4868 = vmatprep.mubr.bf16.mxu0 0
  %4869 = vmatmul.mubr.bf16.gmra.mxu0 %v4831
  %v4870 = vpop.f32.mrf.mxu0
  %v4871 = vadd.f32 %v2020, %v4870
  %v4872 = vpop.f32.mrf.mxu0
  %v4873 = vpop.f32.mrf.mxu0
  %v4874 = vpop.f32.mrf.mxu0
  %4875 = vdwg.mxu0
  %v4877 = vsel %vm906, %v4778, 0
  %v4880 = vsel %vm906, %v4782, 0
  %4882 = vmatprep.subr.bf16.mxu0 0
  %4883 = vmatpush1.bf16.xpose.msra.mxu0 0
  %4884 = vmatprep.subr.bf16.mxu0 0
  %4885 = vmatpush1.bf16.xpose.msra.mxu0 0
  %4886 = vmatprep.subr.bf16.mxu0 0
  %4887 = vmatpush1.bf16.xpose.msra.mxu0 0
  %4888 = vmatprep.subr.bf16.mxu0 0
  %4889 = vmatpush1.bf16.xpose.msra.mxu0 0
  %4890 = vmatprep.subr.bf16.mxu0 0
  %4891 = vmatpush1.bf16.xpose.msra.mxu0 0
  %4892 = vmatprep.subr.bf16.mxu0 0
  %4893 = vmatpush1.bf16.xpose.msra.mxu0 0
  %4894 = vmatprep.subr.bf16.mxu0 0
  %4895 = vmatpush1.bf16.xpose.msra.mxu0 0
  %4896 = vmatprep.subr.bf16.mxu0 0
  %4897 = vmatpush1.bf16.xpose.msra.mxu0 %v4880
  %4898 = vmatprep.subr.bf16.mxu0 0
  %4899 = vmatpush2.bf16.xpose.msra.mxu0 0
  %4900 = vmatprep.subr.bf16.mxu0 0
  %4901 = vmatpush2.bf16.xpose.msra.mxu0 0
  %4902 = vmatprep.subr.bf16.mxu0 0
  %4903 = vmatpush2.bf16.xpose.msra.mxu0 0
  %4904 = vmatprep.subr.bf16.mxu0 0
  %4905 = vmatpush2.bf16.xpose.msra.mxu0 0
  %4906 = vmatprep.subr.bf16.mxu0 0
  %4907 = vmatpush2.bf16.xpose.msra.mxu0 0
  %4908 = vmatprep.subr.bf16.mxu0 0
  %4909 = vmatpush2.bf16.xpose.msra.mxu0 0
  %4910 = vmatprep.subr.bf16.mxu0 0
  %4911 = vmatpush2.bf16.xpose.msra.mxu0 0
  %4912 = vmatprep.subr.bf16.mxu0 0
  %4913 = vmatpush2.bf16.xpose.msra.mxu0 0
  %4914 = vmatprep.mubr.bf16.mxu0 0
  %4915 = vmatmul.mubr.bf16.gmra.mxu0 %v4877
  %v4916 = vpop.f32.mrf.mxu0
  %v4917 = vadd.f32 %v2020, %v4916
  %v4918 = vpop.f32.mrf.mxu0
  %v4919 = vpop.f32.mrf.mxu0
  %v4920 = vpop.f32.mrf.mxu0
  %4921 = vdwg.mxu0
  %v4923 = vsel %vm906, %v4779, 0
  %v4926 = vsel %vm906, %v4783, 0
  %4928 = vmatprep.subr.bf16.mxu0 0
  %4929 = vmatpush1.bf16.xpose.msra.mxu0 0
  %4930 = vmatprep.subr.bf16.mxu0 0
  %4931 = vmatpush1.bf16.xpose.msra.mxu0 0
  %4932 = vmatprep.subr.bf16.mxu0 0
  %4933 = vmatpush1.bf16.xpose.msra.mxu0 0
  %4934 = vmatprep.subr.bf16.mxu0 0
  %4935 = vmatpush1.bf16.xpose.msra.mxu0 0
  %4936 = vmatprep.subr.bf16.mxu0 0
  %4937 = vmatpush1.bf16.xpose.msra.mxu0 0
  %4938 = vmatprep.subr.bf16.mxu0 0
  %4939 = vmatpush1.bf16.xpose.msra.mxu0 0
  %4940 = vmatprep.subr.bf16.mxu0 0
  %4941 = vmatpush1.bf16.xpose.msra.mxu0 0
  %4942 = vmatprep.subr.bf16.mxu0 0
  %4943 = vmatpush1.bf16.xpose.msra.mxu0 %v4926
  %4944 = vmatprep.subr.bf16.mxu0 0
  %4945 = vmatpush2.bf16.xpose.msra.mxu0 0
  %4946 = vmatprep.subr.bf16.mxu0 0
  %4947 = vmatpush2.bf16.xpose.msra.mxu0 0
  %4948 = vmatprep.subr.bf16.mxu0 0
  %4949 = vmatpush2.bf16.xpose.msra.mxu0 0
  %4950 = vmatprep.subr.bf16.mxu0 0
  %4951 = vmatpush2.bf16.xpose.msra.mxu0 0
  %4952 = vmatprep.subr.bf16.mxu0 0
  %4953 = vmatpush2.bf16.xpose.msra.mxu0 0
  %4954 = vmatprep.subr.bf16.mxu0 0
  %4955 = vmatpush2.bf16.xpose.msra.mxu0 0
  %4956 = vmatprep.subr.bf16.mxu0 0
  %4957 = vmatpush2.bf16.xpose.msra.mxu0 0
  %4958 = vmatprep.subr.bf16.mxu0 0
  %4959 = vmatpush2.bf16.xpose.msra.mxu0 0
  %4960 = vmatprep.mubr.bf16.mxu0 0
  %4961 = vmatmul.mubr.bf16.gmra.mxu0 %v4923
  %v4962 = vpop.f32.mrf.mxu0
  %v4963 = vadd.f32 %v2020, %v4962
  %v4964 = vpop.f32.mrf.mxu0
  %v4965 = vpop.f32.mrf.mxu0
  %v4966 = vpop.f32.mrf.mxu0
  %4967 = vdwg.mxu0
  %v4968 = vsel %vm906, %v4825, -inf
  %4969 = vmax.xlane.f32.xlu0 %v4968
  %v4970 = vpop.xlane.xlu0 %4969
  %v4971 = vsel %vm906, %v4871, -inf
  %4972 = vmax.xlane.f32.xlu0 %v4971
  %v4973 = vpop.xlane.xlu0 %4972
  %v4974 = vsel %vm906, %v4917, -inf
  %4975 = vmax.xlane.f32.xlu0 %v4974
  %v4976 = vpop.xlane.xlu0 %4975
  %v4977 = vsel %vm906, %v4963, -inf
  %4978 = vmax.xlane.f32.xlu0 %v4977
  %v4979 = vpop.xlane.xlu0 %4978
  %v4980 = vsub.f32 %v4825, %v4970
  %v4981 = vsub.f32 %v4871, %v4973
  %v4982 = vsub.f32 %v4917, %v4976
  %v4983 = vsub.f32 %v4963, %v4979
  %v4984 = vmul.f32 %v4980, 1.442695
  %v4985 = vpow.pop %v4984
  %v4986 = vmul.f32 %v4981, 1.442695
  %v4987 = vpow.pop %v4986
  %v4988 = vmul.f32 %v4982, 1.442695
  %v4989 = vpow.pop %v4988
  %v4990 = vmul.f32 %v4983, 1.442695
  %v4991 = vpow.pop %v4990
  %v4992 = vsel %vm906, %v4985, 0.0
  %4993 = vadd.xlane.f32.xlu0 %v4992
  %v4994 = vpop.xlane.xlu0 %4993
  %v4995 = vsel %vm906, %v4987, 0.0
  %4996 = vadd.xlane.f32.xlu0 %v4995
  %v4997 = vpop.xlane.xlu0 %4996
  %v4998 = vsel %vm906, %v4989, 0.0
  %4999 = vadd.xlane.f32.xlu0 %v4998
  %v5000 = vpop.xlane.xlu0 %4999
  %v5001 = vsel %vm906, %v4991, 0.0
  %5002 = vadd.xlane.f32.xlu0 %v5001
  %v5003 = vpop.xlane.xlu0 %5002
  %v5004 = vrcp.pop %v4994
  %v5005 = vrcp.pop %v4997
  %v5006 = vrcp.pop %v5000
  %v5007 = vrcp.pop %v5003
  %v5008 = vmul.f32 %v4985, %v5004
  %v5009 = vmul.f32 %v4987, %v5005
  %v5010 = vmul.f32 %v4989, %v5006
  %v5011 = vmul.f32 %v4991, %v5007
  %v5012 = vpack.c.bf16 %v5008, %v5008
  %v5013 = vpack.c.bf16 %v5009, %v5009
  %v5014 = vpack.c.bf16 %v5010, %v5010
  %v5015 = vpack.c.bf16 %v5011, %v5011
  %v5016 = vpack.c.bf16 %v4651, %v4651
  %v5017 = vpack.c.bf16 %v4691, %v4691
  %v5018 = vpack.c.bf16 %v4731, %v4731
  %v5019 = vpack.c.bf16 %v4771, %v4771
  %v5021 = vsel %vm906, %v5012, 0
  %v5024 = vsel %vm1146, %v5016, 0
  %5026 = vmatprep.subr.bf16.mxu0 0
  %5027 = vmatpush1.bf16.msra.mxu0 0
  %5028 = vmatprep.subr.bf16.mxu0 0
  %5029 = vmatpush1.bf16.msra.mxu0 0
  %5030 = vmatprep.subr.bf16.mxu0 0
  %5031 = vmatpush1.bf16.msra.mxu0 0
  %5032 = vmatprep.subr.bf16.mxu0 0
  %5033 = vmatpush1.bf16.msra.mxu0 0
  %5034 = vmatprep.subr.bf16.mxu0 0
  %5035 = vmatpush1.bf16.msra.mxu0 0
  %5036 = vmatprep.subr.bf16.mxu0 0
  %5037 = vmatpush1.bf16.msra.mxu0 0
  %5038 = vmatprep.subr.bf16.mxu0 0
  %5039 = vmatpush1.bf16.msra.mxu0 0
  %5040 = vmatprep.subr.bf16.mxu0 0
  %5041 = vmatpush1.bf16.msra.mxu0 %v5024
  %5042 = vmatprep.subr.bf16.mxu0 0
  %5043 = vmatpush2.bf16.msra.mxu0 0
  %5044 = vmatprep.subr.bf16.mxu0 0
  %5045 = vmatpush2.bf16.msra.mxu0 0
  %5046 = vmatprep.subr.bf16.mxu0 0
  %5047 = vmatpush2.bf16.msra.mxu0 0
  %5048 = vmatprep.subr.bf16.mxu0 0
  %5049 = vmatpush2.bf16.msra.mxu0 0
  %5050 = vmatprep.subr.bf16.mxu0 0
  %5051 = vmatpush2.bf16.msra.mxu0 0
  %5052 = vmatprep.subr.bf16.mxu0 0
  %5053 = vmatpush2.bf16.msra.mxu0 0
  %5054 = vmatprep.subr.bf16.mxu0 0
  %5055 = vmatpush2.bf16.msra.mxu0 0
  %5056 = vmatprep.subr.bf16.mxu0 0
  %5057 = vmatpush2.bf16.msra.mxu0 0
  %5058 = vmatprep.mubr.bf16.mxu0 0
  %5059 = vmatmul.mubr.bf16.gmra.mxu0 %v5021
  %v5060 = vpop.f32.mrf.mxu0
  %v5061 = vadd.f32 0.0, %v5060
  %v5062 = vpop.f32.mrf.mxu0
  %v5063 = vpop.f32.mrf.mxu0
  %v5064 = vpop.f32.mrf.mxu0
  %5065 = vdwg.mxu0
  %v5067 = vsel %vm906, %v5013, 0
  %v5070 = vsel %vm1146, %v5017, 0
  %5072 = vmatprep.subr.bf16.mxu0 0
  %5073 = vmatpush1.bf16.msra.mxu0 0
  %5074 = vmatprep.subr.bf16.mxu0 0
  %5075 = vmatpush1.bf16.msra.mxu0 0
  %5076 = vmatprep.subr.bf16.mxu0 0
  %5077 = vmatpush1.bf16.msra.mxu0 0
  %5078 = vmatprep.subr.bf16.mxu0 0
  %5079 = vmatpush1.bf16.msra.mxu0 0
  %5080 = vmatprep.subr.bf16.mxu0 0
  %5081 = vmatpush1.bf16.msra.mxu0 0
  %5082 = vmatprep.subr.bf16.mxu0 0
  %5083 = vmatpush1.bf16.msra.mxu0 0
  %5084 = vmatprep.subr.bf16.mxu0 0
  %5085 = vmatpush1.bf16.msra.mxu0 0
  %5086 = vmatprep.subr.bf16.mxu0 0
  %5087 = vmatpush1.bf16.msra.mxu0 %v5070
  %5088 = vmatprep.subr.bf16.mxu0 0
  %5089 = vmatpush2.bf16.msra.mxu0 0
  %5090 = vmatprep.subr.bf16.mxu0 0
  %5091 = vmatpush2.bf16.msra.mxu0 0
  %5092 = vmatprep.subr.bf16.mxu0 0
  %5093 = vmatpush2.bf16.msra.mxu0 0
  %5094 = vmatprep.subr.bf16.mxu0 0
  %5095 = vmatpush2.bf16.msra.mxu0 0
  %5096 = vmatprep.subr.bf16.mxu0 0
  %5097 = vmatpush2.bf16.msra.mxu0 0
  %5098 = vmatprep.subr.bf16.mxu0 0
  %5099 = vmatpush2.bf16.msra.mxu0 0
  %5100 = vmatprep.subr.bf16.mxu0 0
  %5101 = vmatpush2.bf16.msra.mxu0 0
  %5102 = vmatprep.subr.bf16.mxu0 0
  %5103 = vmatpush2.bf16.msra.mxu0 0
  %5104 = vmatprep.mubr.bf16.mxu0 0
  %5105 = vmatmul.mubr.bf16.gmra.mxu0 %v5067
  %v5106 = vpop.f32.mrf.mxu0
  %v5107 = vadd.f32 0.0, %v5106
  %v5108 = vpop.f32.mrf.mxu0
  %v5109 = vpop.f32.mrf.mxu0
  %v5110 = vpop.f32.mrf.mxu0
  %5111 = vdwg.mxu0
  %v5113 = vsel %vm906, %v5014, 0
  %v5116 = vsel %vm1146, %v5018, 0
  %5118 = vmatprep.subr.bf16.mxu0 0
  %5119 = vmatpush1.bf16.msra.mxu0 0
  %5120 = vmatprep.subr.bf16.mxu0 0
  %5121 = vmatpush1.bf16.msra.mxu0 0
  %5122 = vmatprep.subr.bf16.mxu0 0
  %5123 = vmatpush1.bf16.msra.mxu0 0
  %5124 = vmatprep.subr.bf16.mxu0 0
  %5125 = vmatpush1.bf16.msra.mxu0 0
  %5126 = vmatprep.subr.bf16.mxu0 0
  %5127 = vmatpush1.bf16.msra.mxu0 0
  %5128 = vmatprep.subr.bf16.mxu0 0
  %5129 = vmatpush1.bf16.msra.mxu0 0
  %5130 = vmatprep.subr.bf16.mxu0 0
  %5131 = vmatpush1.bf16.msra.mxu0 0
  %5132 = vmatprep.subr.bf16.mxu0 0
  %5133 = vmatpush1.bf16.msra.mxu0 %v5116
  %5134 = vmatprep.subr.bf16.mxu0 0
  %5135 = vmatpush2.bf16.msra.mxu0 0
  %5136 = vmatprep.subr.bf16.mxu0 0
  %5137 = vmatpush2.bf16.msra.mxu0 0
  %5138 = vmatprep.subr.bf16.mxu0 0
  %5139 = vmatpush2.bf16.msra.mxu0 0
  %5140 = vmatprep.subr.bf16.mxu0 0
  %5141 = vmatpush2.bf16.msra.mxu0 0
  %5142 = vmatprep.subr.bf16.mxu0 0
  %5143 = vmatpush2.bf16.msra.mxu0 0
  %5144 = vmatprep.subr.bf16.mxu0 0
  %5145 = vmatpush2.bf16.msra.mxu0 0
  %5146 = vmatprep.subr.bf16.mxu0 0
  %5147 = vmatpush2.bf16.msra.mxu0 0
  %5148 = vmatprep.subr.bf16.mxu0 0
  %5149 = vmatpush2.bf16.msra.mxu0 0
  %5150 = vmatprep.mubr.bf16.mxu0 0
  %5151 = vmatmul.mubr.bf16.gmra.mxu0 %v5113
  %v5152 = vpop.f32.mrf.mxu0
  %v5153 = vadd.f32 0.0, %v5152
  %v5154 = vpop.f32.mrf.mxu0
  %v5155 = vpop.f32.mrf.mxu0
  %v5156 = vpop.f32.mrf.mxu0
  %5157 = vdwg.mxu0
  %v5159 = vsel %vm906, %v5015, 0
  %v5162 = vsel %vm1146, %v5019, 0
  %5164 = vmatprep.subr.bf16.mxu0 0
  %5165 = vmatpush1.bf16.msra.mxu0 0
  %5166 = vmatprep.subr.bf16.mxu0 0
  %5167 = vmatpush1.bf16.msra.mxu0 0
  %5168 = vmatprep.subr.bf16.mxu0 0
  %5169 = vmatpush1.bf16.msra.mxu0 0
  %5170 = vmatprep.subr.bf16.mxu0 0
  %5171 = vmatpush1.bf16.msra.mxu0 0
  %5172 = vmatprep.subr.bf16.mxu0 0
  %5173 = vmatpush1.bf16.msra.mxu0 0
  %5174 = vmatprep.subr.bf16.mxu0 0
  %5175 = vmatpush1.bf16.msra.mxu0 0
  %5176 = vmatprep.subr.bf16.mxu0 0
  %5177 = vmatpush1.bf16.msra.mxu0 0
  %5178 = vmatprep.subr.bf16.mxu0 0
  %5179 = vmatpush1.bf16.msra.mxu0 %v5162
  %5180 = vmatprep.subr.bf16.mxu0 0
  %5181 = vmatpush2.bf16.msra.mxu0 0
  %5182 = vmatprep.subr.bf16.mxu0 0
  %5183 = vmatpush2.bf16.msra.mxu0 0
  %5184 = vmatprep.subr.bf16.mxu0 0
  %5185 = vmatpush2.bf16.msra.mxu0 0
  %5186 = vmatprep.subr.bf16.mxu0 0
  %5187 = vmatpush2.bf16.msra.mxu0 0
  %5188 = vmatprep.subr.bf16.mxu0 0
  %5189 = vmatpush2.bf16.msra.mxu0 0
  %5190 = vmatprep.subr.bf16.mxu0 0
  %5191 = vmatpush2.bf16.msra.mxu0 0
  %5192 = vmatprep.subr.bf16.mxu0 0
  %5193 = vmatpush2.bf16.msra.mxu0 0
  %5194 = vmatprep.subr.bf16.mxu0 0
  %5195 = vmatpush2.bf16.msra.mxu0 0
  %5196 = vmatprep.mubr.bf16.mxu0 0
  %5197 = vmatmul.mubr.bf16.gmra.mxu0 %v5159
  %v5198 = vpop.f32.mrf.mxu0
  %v5199 = vadd.f32 0.0, %v5198
  %v5200 = vpop.f32.mrf.mxu0
  %v5201 = vpop.f32.mrf.mxu0
  %v5202 = vpop.f32.mrf.mxu0
  %5203 = vdwg.mxu0
  %v5204 = vpack.c.bf16 %v5061, %v5061
  %v5205 = vpack.c.bf16 %v5107, %v5107
  %v5206 = vpack.c.bf16 %v5153, %v5153
  %v5207 = vpack.c.bf16 %v5199, %v5199
  %v5209 = vsel %vm906, %v5204, 0
  %5211 = vmatprep.subr.bf16.mxu0 0
  %5212 = vmatpush1.bf16.msra.mxu0 0
  %5213 = vmatprep.subr.bf16.mxu0 0
  %5214 = vmatpush1.bf16.msra.mxu0 0
  %5215 = vmatprep.subr.bf16.mxu0 0
  %5216 = vmatpush1.bf16.msra.mxu0 0
  %5217 = vmatprep.subr.bf16.mxu0 0
  %5218 = vmatpush1.bf16.msra.mxu0 0
  %5219 = vmatprep.subr.bf16.mxu0 0
  %5220 = vmatpush1.bf16.msra.mxu0 0
  %5221 = vmatprep.subr.bf16.mxu0 0
  %5222 = vmatpush1.bf16.msra.mxu0 0
  %5223 = vmatprep.subr.bf16.mxu0 0
  %5224 = vmatpush1.bf16.msra.mxu0 0
  %5225 = vmatprep.subr.bf16.mxu0 0
  %5226 = vmatpush1.bf16.msra.mxu0 %v4104
  %5227 = vmatprep.subr.bf16.mxu0 0
  %5228 = vmatpush2.bf16.msra.mxu0 0
  %5229 = vmatprep.subr.bf16.mxu0 0
  %5230 = vmatpush2.bf16.msra.mxu0 0
  %5231 = vmatprep.subr.bf16.mxu0 0
  %5232 = vmatpush2.bf16.msra.mxu0 0
  %5233 = vmatprep.subr.bf16.mxu0 0
  %5234 = vmatpush2.bf16.msra.mxu0 0
  %5235 = vmatprep.subr.bf16.mxu0 0
  %5236 = vmatpush2.bf16.msra.mxu0 0
  %5237 = vmatprep.subr.bf16.mxu0 0
  %5238 = vmatpush2.bf16.msra.mxu0 0
  %5239 = vmatprep.subr.bf16.mxu0 0
  %5240 = vmatpush2.bf16.msra.mxu0 0
  %5241 = vmatprep.subr.bf16.mxu0 0
  %5242 = vmatpush2.bf16.msra.mxu0 0
  %5243 = vmatprep.mubr.bf16.mxu0 0
  %5244 = vmatmul.mubr.bf16.gmra.mxu0 %v5209
  %v5245 = vpop.f32.mrf.mxu0
  %v5246 = vadd.f32 0.0, %v5245
  %v5247 = vpop.f32.mrf.mxu0
  %v5248 = vpop.f32.mrf.mxu0
  %v5249 = vpop.f32.mrf.mxu0
  %5250 = vdwg.mxu0
  %v5252 = vsel %vm906, %v5205, 0
  %5254 = vmatprep.subr.bf16.mxu0 0
  %5255 = vmatpush1.bf16.msra.mxu0 0
  %5256 = vmatprep.subr.bf16.mxu0 0
  %5257 = vmatpush1.bf16.msra.mxu0 0
  %5258 = vmatprep.subr.bf16.mxu0 0
  %5259 = vmatpush1.bf16.msra.mxu0 0
  %5260 = vmatprep.subr.bf16.mxu0 0
  %5261 = vmatpush1.bf16.msra.mxu0 0
  %5262 = vmatprep.subr.bf16.mxu0 0
  %5263 = vmatpush1.bf16.msra.mxu0 0
  %5264 = vmatprep.subr.bf16.mxu0 0
  %5265 = vmatpush1.bf16.msra.mxu0 0
  %5266 = vmatprep.subr.bf16.mxu0 0
  %5267 = vmatpush1.bf16.msra.mxu0 0
  %5268 = vmatprep.subr.bf16.mxu0 0
  %5269 = vmatpush1.bf16.msra.mxu0 %v4150
  %5270 = vmatprep.subr.bf16.mxu0 0
  %5271 = vmatpush2.bf16.msra.mxu0 0
  %5272 = vmatprep.subr.bf16.mxu0 0
  %5273 = vmatpush2.bf16.msra.mxu0 0
  %5274 = vmatprep.subr.bf16.mxu0 0
  %5275 = vmatpush2.bf16.msra.mxu0 0
  %5276 = vmatprep.subr.bf16.mxu0 0
  %5277 = vmatpush2.bf16.msra.mxu0 0
  %5278 = vmatprep.subr.bf16.mxu0 0
  %5279 = vmatpush2.bf16.msra.mxu0 0
  %5280 = vmatprep.subr.bf16.mxu0 0
  %5281 = vmatpush2.bf16.msra.mxu0 0
  %5282 = vmatprep.subr.bf16.mxu0 0
  %5283 = vmatpush2.bf16.msra.mxu0 0
  %5284 = vmatprep.subr.bf16.mxu0 0
  %5285 = vmatpush2.bf16.msra.mxu0 0
  %5286 = vmatprep.mubr.bf16.mxu0 0
  %5287 = vmatmul.mubr.bf16.gmra.mxu0 %v5252
  %v5288 = vpop.f32.mrf.mxu0
  %v5289 = vadd.f32 0.0, %v5288
  %v5290 = vpop.f32.mrf.mxu0
  %v5291 = vpop.f32.mrf.mxu0
  %v5292 = vpop.f32.mrf.mxu0
  %5293 = vdwg.mxu0
  %v5295 = vsel %vm906, %v5206, 0
  %5297 = vmatprep.subr.bf16.mxu0 0
  %5298 = vmatpush1.bf16.msra.mxu0 0
  %5299 = vmatprep.subr.bf16.mxu0 0
  %5300 = vmatpush1.bf16.msra.mxu0 0
  %5301 = vmatprep.subr.bf16.mxu0 0
  %5302 = vmatpush1.bf16.msra.mxu0 0
  %5303 = vmatprep.subr.bf16.mxu0 0
  %5304 = vmatpush1.bf16.msra.mxu0 0
  %5305 = vmatprep.subr.bf16.mxu0 0
  %5306 = vmatpush1.bf16.msra.mxu0 0
  %5307 = vmatprep.subr.bf16.mxu0 0
  %5308 = vmatpush1.bf16.msra.mxu0 0
  %5309 = vmatprep.subr.bf16.mxu0 0
  %5310 = vmatpush1.bf16.msra.mxu0 0
  %5311 = vmatprep.subr.bf16.mxu0 0
  %5312 = vmatpush1.bf16.msra.mxu0 %v4196
  %5313 = vmatprep.subr.bf16.mxu0 0
  %5314 = vmatpush2.bf16.msra.mxu0 0
  %5315 = vmatprep.subr.bf16.mxu0 0
  %5316 = vmatpush2.bf16.msra.mxu0 0
  %5317 = vmatprep.subr.bf16.mxu0 0
  %5318 = vmatpush2.bf16.msra.mxu0 0
  %5319 = vmatprep.subr.bf16.mxu0 0
  %5320 = vmatpush2.bf16.msra.mxu0 0
  %5321 = vmatprep.subr.bf16.mxu0 0
  %5322 = vmatpush2.bf16.msra.mxu0 0
  %5323 = vmatprep.subr.bf16.mxu0 0
  %5324 = vmatpush2.bf16.msra.mxu0 0
  %5325 = vmatprep.subr.bf16.mxu0 0
  %5326 = vmatpush2.bf16.msra.mxu0 0
  %5327 = vmatprep.subr.bf16.mxu0 0
  %5328 = vmatpush2.bf16.msra.mxu0 0
  %5329 = vmatprep.mubr.bf16.mxu0 0
  %5330 = vmatmul.mubr.bf16.gmra.mxu0 %v5295
  %v5331 = vpop.f32.mrf.mxu0
  %v5332 = vadd.f32 0.0, %v5331
  %v5333 = vpop.f32.mrf.mxu0
  %v5334 = vpop.f32.mrf.mxu0
  %v5335 = vpop.f32.mrf.mxu0
  %5336 = vdwg.mxu0
  %v5338 = vsel %vm906, %v5207, 0
  %5340 = vmatprep.subr.bf16.mxu0 0
  %5341 = vmatpush1.bf16.msra.mxu0 0
  %5342 = vmatprep.subr.bf16.mxu0 0
  %5343 = vmatpush1.bf16.msra.mxu0 0
  %5344 = vmatprep.subr.bf16.mxu0 0
  %5345 = vmatpush1.bf16.msra.mxu0 0
  %5346 = vmatprep.subr.bf16.mxu0 0
  %5347 = vmatpush1.bf16.msra.mxu0 0
  %5348 = vmatprep.subr.bf16.mxu0 0
  %5349 = vmatpush1.bf16.msra.mxu0 0
  %5350 = vmatprep.subr.bf16.mxu0 0
  %5351 = vmatpush1.bf16.msra.mxu0 0
  %5352 = vmatprep.subr.bf16.mxu0 0
  %5353 = vmatpush1.bf16.msra.mxu0 0
  %5354 = vmatprep.subr.bf16.mxu0 0
  %5355 = vmatpush1.bf16.msra.mxu0 %v4242
  %5356 = vmatprep.subr.bf16.mxu0 0
  %5357 = vmatpush2.bf16.msra.mxu0 0
  %5358 = vmatprep.subr.bf16.mxu0 0
  %5359 = vmatpush2.bf16.msra.mxu0 0
  %5360 = vmatprep.subr.bf16.mxu0 0
  %5361 = vmatpush2.bf16.msra.mxu0 0
  %5362 = vmatprep.subr.bf16.mxu0 0
  %5363 = vmatpush2.bf16.msra.mxu0 0
  %5364 = vmatprep.subr.bf16.mxu0 0
  %5365 = vmatpush2.bf16.msra.mxu0 0
  %5366 = vmatprep.subr.bf16.mxu0 0
  %5367 = vmatpush2.bf16.msra.mxu0 0
  %5368 = vmatprep.subr.bf16.mxu0 0
  %5369 = vmatpush2.bf16.msra.mxu0 0
  %5370 = vmatprep.subr.bf16.mxu0 0
  %5371 = vmatpush2.bf16.msra.mxu0 0
  %5372 = vmatprep.mubr.bf16.mxu0 0
  %5373 = vmatmul.mubr.bf16.gmra.mxu0 %v5338
  %v5374 = vpop.f32.mrf.mxu0
  %v5375 = vadd.f32 0.0, %v5374
  %v5376 = vpop.f32.mrf.mxu0
  %v5377 = vpop.f32.mrf.mxu0
  %v5378 = vpop.f32.mrf.mxu0
  %5379 = vdwg.mxu0
  %v5380 = vsel %vm78, %v5246, 0.0
  %v5381 = vsel %vm78, %v5289, 0.0
  %v5382 = vadd.f32 %v5380, %v5381
  %v5383 = vsel %vm78, %v5332, 0.0
  %v5384 = vadd.f32 %v5382, %v5383
  %v5385 = vsel %vm78, %v5375, 0.0
  %v5386 = vadd.f32 %v5384, %v5385
  %s5387 = scalar_lea.vmem %s11, 1
  %v5388 = vld [vmem:[%s5387] sm:$0x1]
  %v5390 = vlaneseq
  %v5391 = vshrl.u32 %v5390, 7
  %v5392 = vsub.s32 0, %v5391
  %v5393 = vrot.slane %v5388, %v5392
  %v5395 = vadd.f32 %v4290, %v5393
  %v5396 = vadd.f32 %v5386, %v5393
  %v5397 = vadd.f32 %v2895, %v5395
  %v5398 = vadd.f32 %v2896, %v5396
  %s5399 = scalar_lea.vmem %s12, 1
  %v5400 = vld [vmem:[%s5399] sm:$0x1]
  %s5401 = scalar_lea.vmem %s13, 1
  %v5402 = vld [vmem:[%s5401] sm:$0x1]
  %v5403 = vsel %vm78, %v5397, 0.0
  %5404 = vadd.xlane.f32.xlu0 %v5403
  %v5405 = vpop.xlane.xlu0 %5404
  %v5406 = vsel %vm78, %v5398, 0.0
  %5407 = vadd.xlane.f32.xlu0 %v5406
  %v5408 = vpop.xlane.xlu0 %5407
  %v5409 = vmul.f32 %v5405, %v85
  %v5410 = vmul.f32 %v5408, %v85
  %v5411 = vsub.f32 %v5397, %v5409
  %v5412 = vsub.f32 %v5398, %v5410
  %v5413 = vmul.f32 %v5411, %v5411
  %v5414 = vmul.f32 %v5412, %v5412
  %v5415 = vsel %vm78, %v5413, 0.0
  %5416 = vadd.xlane.f32.xlu0 %v5415
  %v5417 = vpop.xlane.xlu0 %5416
  %v5418 = vsel %vm78, %v5414, 0.0
  %5419 = vadd.xlane.f32.xlu0 %v5418
  %v5420 = vpop.xlane.xlu0 %5419
  %v5421 = vmul.f32 %v5417, %v85
  %v5422 = vmul.f32 %v5420, %v85
  %v5423 = vadd.f32 %v5421, 1e-12
  %v5424 = vadd.f32 %v5422, 1e-12
  %v5425 = vrsqrt.pop %v5423
  %v5426 = vrsqrt.pop %v5424
  %v5427 = vmul.f32 %v5411, %v5425
  %v5428 = vmul.f32 %v5412, %v5426
  %v5430 = vlaneseq
  %v5431 = vshrl.u32 %v5430, 7
  %v5432 = vsub.s32 0, %v5431
  %v5433 = vrot.slane %v5400, %v5432
  %v5435 = vmul.f32 %v5427, %v5433
  %v5436 = vmul.f32 %v5428, %v5433
  %v5438 = vlaneseq
  %v5439 = vshrl.u32 %v5438, 7
  %v5440 = vsub.s32 0, %v5439
  %v5441 = vrot.slane %v5402, %v5440
  %v5443 = vadd.f32 %v5435, %v5441
  %v5444 = vadd.f32 %v5436, %v5441
  %v5445 = vpack.c.bf16 %v5444, %v5443
  %s5446 = scalar_lea.vmem %s14, 16
  %v5447 = vld [vmem:[%s5446] sm:$0xf]
  %v5448 = vld [vmem:[%s5446 + $0x4] sm:$0xf]
  %v5449 = vld [vmem:[%s5446 + $0x8] sm:$0xf]
  %v5450 = vld [vmem:[%s5446 + $0xc] sm:$0xf]
  %s5451 = scalar_lea.vmem %s15, 1
  %v5452 = vld [vmem:[%s5451] sm:$0x1]
  %v5454 = vlaneseq
  %v5455 = vshrl.u32 %v5454, 7
  %v5456 = vsub.s32 0, %v5455
  %v5457 = vrot.slane %v5452, %v5456
  %v5463 = vunpack.c.l.b16 %v5447
  %v5464 = vunpack.c.l.b16 %v5448
  %v5465 = vunpack.c.l.b16 %v5449
  %v5466 = vunpack.c.l.b16 %v5450
  %v5467 = vpack.c.b16 %v5464, %v5463
  %v5468 = vpack.c.b16 %v5466, %v5465
  %v5472 = vsel %vm78, %v5445, 0
  %5474 = vmatprep.subr.bf16.mxu0 0
  %5475 = vmatpush1.bf16.msra.mxu0 0
  %5476 = vmatprep.subr.bf16.mxu0 0
  %5477 = vmatpush1.bf16.msra.mxu0 0
  %5478 = vmatprep.subr.bf16.mxu0 0
  %5479 = vmatpush1.bf16.msra.mxu0 0
  %5480 = vmatprep.subr.bf16.mxu0 0
  %5481 = vmatpush1.bf16.msra.mxu0 0
  %5482 = vmatprep.subr.bf16.mxu0 0
  %5483 = vmatpush1.bf16.msra.mxu0 0
  %5484 = vmatprep.subr.bf16.mxu0 0
  %5485 = vmatpush1.bf16.msra.mxu0 0
  %5486 = vmatprep.subr.bf16.mxu0 0
  %5487 = vmatpush1.bf16.msra.mxu0 %v5468
  %5488 = vmatprep.subr.bf16.mxu0 0
  %5489 = vmatpush1.bf16.msra.mxu0 %v5467
  %5490 = vmatprep.subr.bf16.mxu0 0
  %5491 = vmatpush2.bf16.msra.mxu0 0
  %5492 = vmatprep.subr.bf16.mxu0 0
  %5493 = vmatpush2.bf16.msra.mxu0 0
  %5494 = vmatprep.subr.bf16.mxu0 0
  %5495 = vmatpush2.bf16.msra.mxu0 0
  %5496 = vmatprep.subr.bf16.mxu0 0
  %5497 = vmatpush2.bf16.msra.mxu0 0
  %5498 = vmatprep.subr.bf16.mxu0 0
  %5499 = vmatpush2.bf16.msra.mxu0 0
  %5500 = vmatprep.subr.bf16.mxu0 0
  %5501 = vmatpush2.bf16.msra.mxu0 0
  %5502 = vmatprep.subr.bf16.mxu0 0
  %5503 = vmatpush2.bf16.msra.mxu0 0
  %5504 = vmatprep.subr.bf16.mxu0 0
  %5505 = vmatpush2.bf16.msra.mxu0 0
  %5506 = vmatprep.mubr.bf16.mxu0 0
  %5507 = vmatmul.mubr.bf16.gmra.mxu0 %v5472
  %v5508 = vpop.f32.mrf.mxu0
  %v5509 = vadd.f32 %v5457, %v5508
  %v5510 = vpop.f32.mrf.mxu0
  %v5511 = vpop.f32.mrf.mxu0
  %v5512 = vadd.f32 %v5457, %v5511
  %v5513 = vpop.f32.mrf.mxu0
  %5514 = vdwg.mxu0
  %v5515 = vmul.f32 %v5509, 0.5
  %v5516 = vmul.f32 %v5512, 0.5
  %v5517 = vmul.f32 %v5509, 0.044715
  %v5518 = vmul.f32 %v5512, 0.044715
  %v5519 = vmul.f32 %v5517, %v5509
  %v5520 = vmul.f32 %v5518, %v5512
  %v5521 = vmul.f32 %v5519, %v5509
  %v5522 = vmul.f32 %v5520, %v5512
  %v5523 = vadd.f32 %v5509, %v5521
  %v5524 = vadd.f32 %v5512, %v5522
  %v5525 = vmul.f32 %v5523, 0.7978846
  %v5526 = vmul.f32 %v5524, 0.7978846
  %v5527 = vtanh.pop %v5525
  %v5528 = vtanh.pop %v5526
  %v5529 = vadd.f32 %v5527, 1.0
  %v5530 = vadd.f32 %v5528, 1.0
  %v5531 = vmul.f32 %v5515, %v5529
  %v5532 = vmul.f32 %v5516, %v5530
  %v5533 = vpack.c.bf16 %v5532, %v5531
  %s5534 = scalar_lea.vmem %s16, 32
  %v5535 = vld [vmem:[%s5534] sm:$0xf]
  %v5536 = vld [vmem:[%s5534 + $0x4] sm:$0xf]
  %v5537 = vld [vmem:[%s5534 + $0x8] sm:$0xf]
  %v5538 = vld [vmem:[%s5534 + $0xc] sm:$0xf]
  %v5539 = vld [vmem:[%s5534 + $0x10] sm:$0xf]
  %v5540 = vld [vmem:[%s5534 + $0x14] sm:$0xf]
  %v5541 = vld [vmem:[%s5534 + $0x18] sm:$0xf]
  %v5542 = vld [vmem:[%s5534 + $0x1c] sm:$0xf]
  %s5543 = scalar_lea.vmem %s17, 1
  %v5544 = vld [vmem:[%s5543] sm:$0x1]
  %v5546 = vlaneseq
  %v5547 = vshrl.u32 %v5546, 7
  %v5548 = vsub.s32 0, %v5547
  %v5549 = vrot.slane %v5544, %v5548
  %v5559 = vunpack.c.l.b16 %v5535
  %v5560 = vunpack.c.l.b16 %v5536
  %v5561 = vunpack.c.l.b16 %v5537
  %v5562 = vunpack.c.l.b16 %v5538
  %v5563 = vunpack.c.l.b16 %v5539
  %v5564 = vunpack.c.l.b16 %v5540
  %v5565 = vunpack.c.l.b16 %v5541
  %v5566 = vunpack.c.l.b16 %v5542
  %v5567 = vpack.c.b16 %v5560, %v5559
  %v5568 = vpack.c.b16 %v5562, %v5561
  %v5569 = vpack.c.b16 %v5564, %v5563
  %v5570 = vpack.c.b16 %v5566, %v5565
  %v5576 = vsel %vm2806, %v5533, 0
  %5578 = vmatprep.subr.bf16.mxu0 0
  %5579 = vmatpush1.bf16.msra.mxu0 0
  %5580 = vmatprep.subr.bf16.mxu0 0
  %5581 = vmatpush1.bf16.msra.mxu0 0
  %5582 = vmatprep.subr.bf16.mxu0 0
  %5583 = vmatpush1.bf16.msra.mxu0 0
  %5584 = vmatprep.subr.bf16.mxu0 0
  %5585 = vmatpush1.bf16.msra.mxu0 0
  %5586 = vmatprep.subr.bf16.mxu0 0
  %5587 = vmatpush1.bf16.msra.mxu0 %v5570
  %5588 = vmatprep.subr.bf16.mxu0 0
  %5589 = vmatpush1.bf16.msra.mxu0 %v5569
  %5590 = vmatprep.subr.bf16.mxu0 0
  %5591 = vmatpush1.bf16.msra.mxu0 %v5568
  %5592 = vmatprep.subr.bf16.mxu0 0
  %5593 = vmatpush1.bf16.msra.mxu0 %v5567
  %5594 = vmatprep.subr.bf16.mxu0 0
  %5595 = vmatpush2.bf16.msra.mxu0 0
  %5596 = vmatprep.subr.bf16.mxu0 0
  %5597 = vmatpush2.bf16.msra.mxu0 0
  %5598 = vmatprep.subr.bf16.mxu0 0
  %5599 = vmatpush2.bf16.msra.mxu0 0
  %5600 = vmatprep.subr.bf16.mxu0 0
  %5601 = vmatpush2.bf16.msra.mxu0 0
  %5602 = vmatprep.subr.bf16.mxu0 0
  %5603 = vmatpush2.bf16.msra.mxu0 0
  %5604 = vmatprep.subr.bf16.mxu0 0
  %5605 = vmatpush2.bf16.msra.mxu0 0
  %5606 = vmatprep.subr.bf16.mxu0 0
  %5607 = vmatpush2.bf16.msra.mxu0 0
  %5608 = vmatprep.subr.bf16.mxu0 0
  %5609 = vmatpush2.bf16.msra.mxu0 0
  %5610 = vmatprep.mubr.bf16.mxu0 0
  %5611 = vmatmul.mubr.bf16.gmra.mxu0 %v5576
  %v5612 = vpop.f32.mrf.mxu0
  %v5613 = vadd.f32 %v5549, %v5612
  %v5614 = vpop.f32.mrf.mxu0
  %v5615 = vpop.f32.mrf.mxu0
  %v5616 = vadd.f32 %v5549, %v5615
  %v5617 = vpop.f32.mrf.mxu0
  %5618 = vdwg.mxu0
  %v5619 = vadd.f32 %v5443, %v5613
  %v5620 = vadd.f32 %v5444, %v5616
  %s5621 = scalar_lea.vmem %s18, 1
  %v5622 = vld [vmem:[%s5621] sm:$0x1]
  %s5623 = scalar_lea.vmem %s19, 1
  %v5624 = vld [vmem:[%s5623] sm:$0x1]
  %v5625 = vsel %vm78, %v5619, 0.0
  %5626 = vadd.xlane.f32.xlu0 %v5625
  %v5627 = vpop.xlane.xlu0 %5626
  %v5628 = vsel %vm78, %v5620, 0.0
  %5629 = vadd.xlane.f32.xlu0 %v5628
  %v5630 = vpop.xlane.xlu0 %5629
  %v5631 = vmul.f32 %v5627, %v85
  %v5632 = vmul.f32 %v5630, %v85
  %v5633 = vsub.f32 %v5619, %v5631
  %v5634 = vsub.f32 %v5620, %v5632
  %v5635 = vmul.f32 %v5633, %v5633
  %v5636 = vmul.f32 %v5634, %v5634
  %v5637 = vsel %vm78, %v5635, 0.0
  %5638 = vadd.xlane.f32.xlu0 %v5637
  %v5639 = vpop.xlane.xlu0 %5638
  %v5640 = vsel %vm78, %v5636, 0.0
  %5641 = vadd.xlane.f32.xlu0 %v5640
  %v5642 = vpop.xlane.xlu0 %5641
  %v5643 = vmul.f32 %v5639, %v85
  %v5644 = vmul.f32 %v5642, %v85
  %v5645 = vadd.f32 %v5643, 1e-12
  %v5646 = vadd.f32 %v5644, 1e-12
  %v5647 = vrsqrt.pop %v5645
  %v5648 = vrsqrt.pop %v5646
  %v5649 = vmul.f32 %v5633, %v5647
  %v5650 = vmul.f32 %v5634, %v5648
  %v5652 = vlaneseq
  %v5653 = vshrl.u32 %v5652, 7
  %v5654 = vsub.s32 0, %v5653
  %v5655 = vrot.slane %v5622, %v5654
  %v5657 = vmul.f32 %v5649, %v5655
  %v5658 = vmul.f32 %v5650, %v5655
  %v5660 = vlaneseq
  %v5661 = vshrl.u32 %v5660, 7
  %v5662 = vsub.s32 0, %v5661
  %v5663 = vrot.slane %v5624, %v5662
  %v5665 = vadd.f32 %v5657, %v5663
  %v5666 = vadd.f32 %v5658, %v5663
  %v5668 = vrot.slane %v5666, 7
  %vm5670 = vcmask 1040384
  %v5671 = vsel %vm5670, %v5665, %v5668
  %v5672 = vld [vmem:[%s20] sm:$0x1]
  %v5674 = vlaneseq
  %v5675 = vshrl.u32 %v5674, 7
  %v5676 = vsub.s32 0, %v5675
  %v5677 = vrot.slane %v5672, %v5676
  %v5679 = vmul.f32 %v5671, %v5677
  %vm5680 = vcmask 254976
  %v5681 = vsel %vm5680, %v5679, 0.0
  %5682 = vadd.xlane.f32.xlu0 %v5681
  %v5683 = vpop.xlane.xlu0 %5682
  %v5684 = vld [vmem:[#allocation2] sm:$0x1]
  %v5686 = vlaneseq
  %v5687 = vshrl.u32 %v5686, 7
  %v5688 = vsub.s32 0, %v5687
  %v5689 = vrot.slane %v5684, %v5688
  %v5691 = vadd.f32 %v5683, %v5689
  %v5692 = vmul.f32 %v5691, 0.5
  %v5693 = vtanh.pop %v5692
  %v5694 = vadd.f32 %v5693, 1.0
  %v5695 = vmul.f32 %v5694, 0.5
  %vm5696 = vcmask 1024
  %5697 = vst.msk [vmem:[%s22] sm:$0x3] %vm5696, %v5695
  // Predicated region
  $region90: #{ext_summarizer_forward.1} parent=0 // pred_check
    _
  $region91: #{ext_summarizer_forward.1} parent=0 // pred_check_branch
    %5699 = sbr.rel (0) target = $region93
  $region92: #{ext_summarizer_forward.1} parent=0 // pred_region
    _
  $region93: #{ext_summarizer_forward.1} parent=0 // pred_fallthru
    _
  // Predicated region
  $region94: #{ext_summarizer_forward.1} parent=0 // pred_check
    _
  $region95: #{ext_summarizer_forward.1} parent=0 // pred_check_branch
    %5701 = sbr.rel (0) target = $region97
  $region96: #{ext_summarizer_forward.1} parent=0 // pred_region
    _
  $region97: #{ext_summarizer_forward.1} parent=0 // pred_fallthru
    _

</llo_original>
